<compile_context>
chip_gen: v7x
topology: tpu7x:2x2x1
jax: 0.10.0
libtpu: 0.0.40
codegen_flags: <defaults>
</compile_context>

<pallas_src>
import numpy as np
import jax
import jax.numpy as jnp
from jax.experimental import pallas as pl
from jax.experimental.pallas import tpu as pltpu


# ----------------------------------------------------------------------------
# Deterministic constants (numpy, built once at module construction)
# ----------------------------------------------------------------------------
def _centered_dft_matrix(n):
    """Real/imag parts of the centered DFT matrix Fc.

    Centered 1D FFT: fftshift(fft(ifftshift(x))) == Fc @ x with Fc = P F P
    (P = fftshift permutation; for even n, P == P^T and P @ P == I), so the
    centered 2D FFT of X is Fc @ X @ Fc and the centered 2D IFFT matrix is
    conj(Fc) / n.  Fc is symmetric.
    """
    assert n % 2 == 0, "even N required for the centered-DFT folding"
    idx = np.arange(n)
    F = np.exp(-2j * np.pi * np.outer(idx, idx) / n)
    P = np.zeros((n, n), dtype=np.float64)
    P[idx, (idx + n // 2) % n] = 1.0
    Fc = P @ F @ P
    return Fc.real, Fc.imag                      # float64


def _make_bk2dsphere(radius, nf, aperture_size, computation_size, n_pts):
    """Back-focal-plane blurring kernel for a uniform fluorescent sphere.

    # TODO(synk): torchBK2DSphere.get_pupil_array source was not provided; we
    # use the standard pyPSFstack model: 3D-sphere form factor
    # 3*(sin u - u cos u)/u**3 with u = 2*pi*nf*radius*ur, times a hard
    # circular aperture of radius `aperture_size` (already 2*NA/nf here).
    """
    step = computation_size / n_pts
    u = np.arange(n_pts) * step - computation_size / 2.0
    ux, uy = np.meshgrid(u, u, indexing="ij")
    ur = np.sqrt(ux ** 2 + uy ** 2)
    aperture = (ur <= aperture_size).astype(np.float64)
    if radius == 0.0:
        return aperture
    arg = 2.0 * np.pi * nf * radius * ur
    small = arg < 1e-6
    arg_safe = np.where(small, 1.0, arg)
    ff = 3.0 * (np.sin(arg_safe) - arg_safe * np.cos(arg_safe)) / arg_safe ** 3
    ff = np.where(small, 1.0, ff)
    return ff * aperture


def _pick_kb(k, kb_max):
    """Largest divisor of K that is <= kb_max and (when K >= 2) keeps grid >= 2."""
    kb_max = max(1, int(kb_max))
    cap = kb_max
    if k >= 2:
        cap = min(cap, max(1, k // 2))
    best = 1
    for d in range(1, cap + 1):
        if k % d == 0:
            best = d
    return best


def _vmem_limit_bytes(kb):
    # ~0.9 MiB of live f32 intermediates per slice + resident constants;
    # keep a small footprint on v7x (64 MiB physical) while letting large kb
    # on the 128 MiB parts breathe.
    return int(min(100, max(32, 3 * kb))) * 1024 * 1024


# ----------------------------------------------------------------------------
# Pallas kernels: centered FFT2 * BK + centered IFFT2 + abs  (intensity input)
# ----------------------------------------------------------------------------
def _blur_kernel_f32(x_ref, w1_ref, fcr_ref, fci_ref, nfci_ref, sumf_ref,
                     sumb_ref, bk_ref, o_ref):
    # x_ref : (KB*N, N)  intensity slab, KB stack slices row-stacked
    # w1    : (N, 2N)    [Fc_re | Fc_im]              (packed S1 constant)
    # fcr/fci/nfci : (N, N)  Fc_re / Fc_im / -Fc_im
    # sumf/sumb    : (N, N)  Fc_re+Fc_im / Fc_re-Fc_im (Karatsuba helpers)
    # bk    : (N, N)     bk^T / N^2                    (IFFT scale folded in)
    # o_ref : (KB*N, N)  |blurred intensity|
    M, N = x_ref.shape
    KB = M // N

    fcr = fcr_ref[...]
    fci = fci_ref[...]
    nfci = nfci_ref[...]
    sumf = sumf_ref[...]
    sumb = sumb_ref[...]
    bk = bk_ref[...]

    def rdot(a, b):                      # (M, N) @ (N, N) on the MXU
        return jnp.dot(a, b, preferred_element_type=jnp.float32)

    def batch_t(slab):                   # per-slice transpose, one batched XLU op
        return jnp.swapaxes(slab.reshape(KB, N, N), 1, 2).reshape(M, N)

    def bk_mul(slab):                    # per-slice bk multiply on a 3-D view
        return (slab.reshape(KB, N, N) * bk[None]).reshape(M, N)

    def cmul(xr, xi, mr, mi, msum):      # 3-matmul Gauss/Karatsuba complex product
        p1 = rdot(xr, mr)
        p2 = rdot(xi, mi)
        p3 = rdot(xr + xi, msum)
        return p1 - p2, p3 - p1 - p2

    # S1 = I @ Fc : one packed matmul producing [real | imag]
    s1 = rdot(x_ref[...], w1_ref[...])               # (M, 2N)
    s1r, s1i = s1[:, :N], s1[:, N:]
    # S2 = S1^T @ Fc = Fc I^T Fc  (per slice)
    s2r, s2i = cmul(batch_t(s1r), batch_t(s1i), fcr, fci, sumf)
    # Ct = bk^T/N^2 * S2
    ctr = bk_mul(s2r)
    cti = bk_mul(s2i)
    # S3 = Ct @ conj(Fc)
    s3r, s3i = cmul(ctr, cti, fcr, nfci, sumb)
    # S4 = S3^T @ conj(Fc) = Fic (bk * Fc I Fc) Fic  = blurred
    s4r, s4i = cmul(batch_t(s3r), batch_t(s3i), fcr, nfci, sumb)

    o_ref[...] = jnp.sqrt(s4r * s4r + s4i * s4i)     # torch.abs of the complex result


def _blur_kernel_bf16(x_ref, w1_ref, wf_ref, wb_ref, bk_ref, o_ref):
    # bf16 operands / f32 accumulation, 2x2 block-form complex matmuls
    # (fills the 256x256 MXUs on v6e/v7x, avoids Karatsuba cancellation).
    M, N = x_ref.shape
    KB = M // N

    wf = wf_ref[...]                     # (2N, 2N) = [[Fr, Fi], [-Fi, Fr]]
    wb = wb_ref[...]                     # (2N, 2N) = [[Fr, -Fi], [Fi, Fr]]  (conj)
    bk = bk_ref[...]

    def rdot(a, w):
        return jnp.dot(a.astype(jnp.bfloat16), w, preferred_element_type=jnp.float32)

    def batch_t(slab):
        return jnp.swapaxes(slab.reshape(KB, N, N), 1, 2).reshape(M, N)

    def bk_mul(slab):
        return (slab.reshape(KB, N, N) * bk[None]).reshape(M, N)

    def cmul(xr, xi, w):                 # [xr | xi] @ [[Mr, Mi], [-Mi, Mr]]
        y = rdot(jnp.concatenate([xr, xi], axis=-1), w)
        return y[:, :N], y[:, N:]

    s1 = rdot(x_ref[...], w1_ref[...])               # (M, 2N)
    s1r, s1i = s1[:, :N], s1[:, N:]
    s2r, s2i = cmul(batch_t(s1r), batch_t(s1i), wf)
    s3r, s3i = cmul(bk_mul(s2r), bk_mul(s2i), wb)
    s4r, s4i = cmul(batch_t(s3r), batch_t(s3i), wb)
    o_ref[...] = jnp.sqrt(s4r * s4r + s4i * s4i)


def _blur_pallas_f32(inten, w1, fcr, fci, nfci, sumf, sumb, bk_eff, kb):
    KN, N = inten.shape
    K = KN // N
    assert K % kb == 0
    M = kb * N

    def const(shape):
        return pl.BlockSpec(shape, lambda g: (0, 0))

    return pl.pallas_call(
        _blur_kernel_f32,
        out_shape=jax.ShapeDtypeStruct((KN, N), jnp.float32),
        grid_spec=pltpu.PrefetchScalarGridSpec(
            num_scalar_prefetch=0,
            grid=(K // kb,),
            in_specs=[
                pl.BlockSpec((M, N), lambda g: (g, 0)),
                const((N, 2 * N)),
                const((N, N)), const((N, N)), const((N, N)),
                const((N, N)), const((N, N)), const((N, N)),
            ],
            out_specs=pl.BlockSpec((M, N), lambda g: (g, 0)),
        ),
        compiler_params=pltpu.CompilerParams(
            dimension_semantics=("parallel",),
            vmem_limit_bytes=_vmem_limit_bytes(kb),
        ),
    )(inten, w1, fcr, fci, nfci, sumf, sumb, bk_eff)


def _blur_pallas_bf16(inten, w1b, wf, wb, bk_eff, kb):
    KN, N = inten.shape
    K = KN // N
    assert K % kb == 0
    M = kb * N

    def const(shape):
        return pl.BlockSpec(shape, lambda g: (0, 0))

    return pl.pallas_call(
        _blur_kernel_bf16,
        out_shape=jax.ShapeDtypeStruct((KN, N), jnp.float32),
        grid_spec=pltpu.PrefetchScalarGridSpec(
            num_scalar_prefetch=0,
            grid=(K // kb,),
            in_specs=[
                pl.BlockSpec((M, N), lambda g: (g, 0)),
                const((N, 2 * N)),
                const((2 * N, 2 * N)),
                const((2 * N, 2 * N)),
                const((N, N)),
            ],
            out_specs=pl.BlockSpec((M, N), lambda g: (g, 0)),
        ),
        compiler_params=pltpu.CompilerParams(
            dimension_semantics=("parallel",),
            vmem_limit_bytes=_vmem_limit_bytes(kb),
        ),
    )(inten, w1b, wf, wb, bk_eff)


# ----------------------------------------------------------------------------
# Module wrapper (matches torch2DBlurring.__init__ / forward)
# ----------------------------------------------------------------------------
class Torch2DBlurringPallas:
    def __init__(self, radius=0.0, emission="sphere", nf=1.518, aperture_size=1.0,
                 computation_size=4.0, N_pts=128, opt_radius=False,
                 slices_per_step=8, use_bf16=False):
        assert emission == "sphere", "only the sphere emission model is implemented"
        self.N = int(N_pts)
        assert self.N % 2 == 0 and self.N % 8 == 0, \
            "N_pts must be even and a multiple of 8 (multiples of 128 for full MXU use)"
        self.kb = max(1, int(slices_per_step))
        self.use_bf16 = bool(use_bf16)

        # torch2DBlurring passes 2*aperture_size to the blurring-kernel pupil.
        bk64 = _make_bk2dsphere(radius, nf, 2.0 * aperture_size, computation_size, self.N)
        fcr64, fci64 = _centered_dft_matrix(self.N)

        f32, bf16 = jnp.float32, jnp.bfloat16
        self.bk = jnp.asarray(bk64, f32)                                  # for reference()
        self.bk_eff = jnp.asarray(bk64.T / float(self.N) ** 2, f32)       # IFFT scale folded in
        self.fcr = jnp.asarray(fcr64, f32)
        self.fci = jnp.asarray(fci64, f32)
        self.nfci = jnp.asarray(-fci64, f32)
        self.sumf = jnp.asarray(fcr64 + fci64, f32)
        self.sumb = jnp.asarray(fcr64 - fci64, f32)
        self.w1 = jnp.asarray(np.concatenate([fcr64, fci64], axis=1), f32)
        # bf16 block-form constants (opt-in path)
        self.w1_bf16 = jnp.asarray(np.concatenate([fcr64, fci64], axis=1), bf16)
        self.wf_bf16 = jnp.asarray(np.block([[fcr64, fci64], [-fci64, fcr64]]), bf16)
        self.wb_bf16 = jnp.asarray(np.block([[fcr64, -fci64], [fci64, fcr64]]), bf16)

        # jit so the intensity reduction + layout pass fuses into one HBM sweep.
        self._forward = jax.jit(self._forward_impl)

    def _forward_impl(self, x):
        # x: complex array, shape (N, N, *stack_dims, 2, 3)  (torchPSFstack layout)
        N = self.N
        assert x.shape[0] == N and x.shape[1] == N, "spatial size must equal N_pts"
        stack_shape = x.shape[2:-2]
        K = 1
        for s in stack_shape:
            K *= int(s)

        # Intensity reduction in the wrapper (fused by XLA): sum |field|^2 over
        # the last two dims -> (N, N, K) f32.
        xr = jnp.real(x).astype(jnp.float32)
        xi = jnp.imag(x).astype(jnp.float32)
        inten = jnp.sum(xr * xr + xi * xi, axis=(-2, -1)).reshape(N, N, K)
        inten = jnp.transpose(inten, (2, 0, 1)).reshape(K * N, N)   # row-stacked slab

        kb = _pick_kb(K, self.kb)
        if self.use_bf16:
            out = _blur_pallas_bf16(inten, self.w1_bf16, self.wf_bf16,
                                    self.wb_bf16, self.bk_eff, kb)
        else:
            out = _blur_pallas_f32(inten, self.w1, self.fcr, self.fci, self.nfci,
                                   self.sumf, self.sumb, self.bk_eff, kb)

        out = out.reshape(K, N, N)
        out = jnp.transpose(out, (1, 2, 0))                          # (N, N, K)
        return out.reshape((N, N) + stack_shape)

    def __call__(self, x):
        return self._forward(x)

    def reference(self, x):
        """Pure-JAX reference with identical conventions (for validation)."""
        inten = jnp.sum(jnp.abs(x) ** 2, axis=(-2, -1))              # (N, N, *stack)
        stack_shape = inten.shape[2:]
        inten = inten.reshape(self.N, self.N, -1)
        ft = jnp.fft.fftshift(
            jnp.fft.fft2(jnp.fft.ifftshift(inten, axes=(0, 1)), axes=(0, 1)),
            axes=(0, 1))
        prod = ft * self.bk[:, :, None].astype(jnp.complex64)
        blurred = jnp.fft.fftshift(
            jnp.fft.ifft2(jnp.fft.ifftshift(prod, axes=(0, 1)), axes=(0, 1)),
            axes=(0, 1))
        return jnp.abs(blurred).reshape((self.N, self.N) + stack_shape)


if __name__ == "__main__":
    # Module-default spatial grid (full 128-lane / MXU tiling) with a small
    # stack; K=8 with the default slices_per_step resolves to kb=4 -> grid of 2
    # (exercises multi-step pipelining and dual-TC sharding on v7x).
    N, K = 128, 8
    key = jax.random.PRNGKey(0)
    k1, k2 = jax.random.split(key)
    xr = jax.random.normal(k1, (N, N, K, 2, 3), dtype=jnp.float32)
    xi = jax.random.normal(k2, (N, N, K, 2, 3), dtype=jnp.float32)
    x = (xr + 1j * xi).astype(jnp.complex64)        # PSF field stack, torchPSFstack layout

    blur = Torch2DBlurringPallas(radius=0.1, emission="sphere", nf=1.518,
                                 aperture_size=1.0, computation_size=4.0, N_pts=N)
    out = jax.block_until_ready(blur(x))
    assert out.shape == (N, N, K), out.shape
    assert bool(jnp.all(jnp.isfinite(out)))

    ref = blur.reference(x)
    rel_err = float(jnp.max(jnp.abs(out - ref)) / (jnp.max(jnp.abs(ref)) + 1e-12))
    assert rel_err < 5e-3, f"f32 Pallas vs JAX reference mismatch: rel_err={rel_err}"

    # Opt-in bf16 block-form path (recommended on v6e/v7x): smoke-test at a
    # looser tolerance appropriate for bf16 operands through 4 DFT stages.
    blur16 = Torch2DBlurringPallas(radius=0.1, emission="sphere", nf=1.518,
                                   aperture_size=1.0, computation_size=4.0, N_pts=N,
                                   use_bf16=True)
    out16 = jax.block_until_ready(blur16(x))
    assert bool(jnp.all(jnp.isfinite(out16)))
    rel_err16 = float(jnp.max(jnp.abs(out16 - ref)) / (jnp.max(jnp.abs(ref)) + 1e-12))
    assert rel_err16 < 5e-2, f"bf16 Pallas vs JAX reference mismatch: rel_err={rel_err16}"

    print("KERNEL_OK")
</pallas_src>

<mosaic_0001>
module attributes {stable_mosaic.version = 11 : i64} {
  func.func @_blur_kernel_f32(%arg0: i32, %arg1: memref<512x128xf32, #tpu.memory_space<vmem>>, %arg2: memref<128x256xf32, #tpu.memory_space<vmem>>, %arg3: memref<128x128xf32, #tpu.memory_space<vmem>>, %arg4: memref<128x128xf32, #tpu.memory_space<vmem>>, %arg5: memref<128x128xf32, #tpu.memory_space<vmem>>, %arg6: memref<128x128xf32, #tpu.memory_space<vmem>>, %arg7: memref<128x128xf32, #tpu.memory_space<vmem>>, %arg8: memref<128x128xf32, #tpu.memory_space<vmem>>, %arg9: memref<512x128xf32, #tpu.memory_space<vmem>>) attributes {dimension_semantics = [#tpu.dimension_semantics<parallel>], iteration_bounds = array<i64: 2>, scalar_prefetch = 0 : i64, scratch_operands = 0 : i64, tpu.core_type = #tpu.core_type<tc>, window_params = [{transform_indices = @transform_0, window_bounds = array<i64: 512, 128>}, {pipeline_mode = #tpu.pipeline_mode<synchronous>, transform_indices = @transform_1, window_bounds = array<i64: 128, 256>}, {pipeline_mode = #tpu.pipeline_mode<synchronous>, transform_indices = @transform_2, window_bounds = array<i64: 128, 128>}, {pipeline_mode = #tpu.pipeline_mode<synchronous>, transform_indices = @transform_3, window_bounds = array<i64: 128, 128>}, {pipeline_mode = #tpu.pipeline_mode<synchronous>, transform_indices = @transform_4, window_bounds = array<i64: 128, 128>}, {pipeline_mode = #tpu.pipeline_mode<synchronous>, transform_indices = @transform_5, window_bounds = array<i64: 128, 128>}, {pipeline_mode = #tpu.pipeline_mode<synchronous>, transform_indices = @transform_6, window_bounds = array<i64: 128, 128>}, {pipeline_mode = #tpu.pipeline_mode<synchronous>, transform_indices = @transform_7, window_bounds = array<i64: 128, 128>}, {transform_indices = @transform_8, window_bounds = array<i64: 512, 128>}]} {
    %c0 = arith.constant 0 : index
    %c0_0 = arith.constant 0 : index
    %0 = vector.load %arg3[%c0, %c0_0] : memref<128x128xf32, #tpu.memory_space<vmem>>, vector<128x128xf32>
    %c0_1 = arith.constant 0 : index
    %c0_2 = arith.constant 0 : index
    %1 = vector.load %arg4[%c0_1, %c0_2] : memref<128x128xf32, #tpu.memory_space<vmem>>, vector<128x128xf32>
    %c0_3 = arith.constant 0 : index
    %c0_4 = arith.constant 0 : index
    %2 = vector.load %arg5[%c0_3, %c0_4] : memref<128x128xf32, #tpu.memory_space<vmem>>, vector<128x128xf32>
    %c0_5 = arith.constant 0 : index
    %c0_6 = arith.constant 0 : index
    %3 = vector.load %arg6[%c0_5, %c0_6] : memref<128x128xf32, #tpu.memory_space<vmem>>, vector<128x128xf32>
    %c0_7 = arith.constant 0 : index
    %c0_8 = arith.constant 0 : index
    %4 = vector.load %arg7[%c0_7, %c0_8] : memref<128x128xf32, #tpu.memory_space<vmem>>, vector<128x128xf32>
    %c0_9 = arith.constant 0 : index
    %c0_10 = arith.constant 0 : index
    %5 = vector.load %arg8[%c0_9, %c0_10] : memref<128x128xf32, #tpu.memory_space<vmem>>, vector<128x128xf32>
    %c0_11 = arith.constant 0 : index
    %c0_12 = arith.constant 0 : index
    %6 = vector.load %arg1[%c0_11, %c0_12] : memref<512x128xf32, #tpu.memory_space<vmem>>, vector<512x128xf32>
    %c0_13 = arith.constant 0 : index
    %c0_14 = arith.constant 0 : index
    %7 = vector.load %arg2[%c0_13, %c0_14] : memref<128x256xf32, #tpu.memory_space<vmem>>, vector<128x256xf32>
    %cst = arith.constant dense<0.000000e+00> : vector<512x256xf32>
    %8 = tpu.matmul %6, %7, %cst {dimension_numbers = #tpu.dot_dimension_numbers<[1], [0], [0], [1], [0, 0, 1, 1], [], []>} : vector<512x128xf32>, vector<128x256xf32>, vector<512x256xf32> -> vector<512x256xf32>
    %9 = vector.extract_strided_slice %8 {offsets = [0, 0], sizes = [512, 128], strides = [1, 1]} : vector<512x256xf32> to vector<512x128xf32>
    %10 = vector.extract_strided_slice %8 {offsets = [0, 128], sizes = [512, 128], strides = [1, 1]} : vector<512x256xf32> to vector<512x128xf32>
    %11 = vector.shape_cast %9 : vector<512x128xf32> to vector<4x128x128xf32>
    %12 = tpu.transpose %11, [0, 2, 1] : vector<4x128x128xf32> -> vector<4x128x128xf32>
    %13 = vector.shape_cast %12 : vector<4x128x128xf32> to vector<512x128xf32>
    %14 = vector.shape_cast %10 : vector<512x128xf32> to vector<4x128x128xf32>
    %15 = tpu.transpose %14, [0, 2, 1] : vector<4x128x128xf32> -> vector<4x128x128xf32>
    %16 = vector.shape_cast %15 : vector<4x128x128xf32> to vector<512x128xf32>
    %cst_15 = arith.constant dense<0.000000e+00> : vector<512x128xf32>
    %17 = tpu.matmul %13, %0, %cst_15 {dimension_numbers = #tpu.dot_dimension_numbers<[1], [0], [0], [1], [0, 0, 1, 1], [], []>} : vector<512x128xf32>, vector<128x128xf32>, vector<512x128xf32> -> vector<512x128xf32>
    %cst_16 = arith.constant dense<0.000000e+00> : vector<512x128xf32>
    %18 = tpu.matmul %16, %1, %cst_16 {dimension_numbers = #tpu.dot_dimension_numbers<[1], [0], [0], [1], [0, 0, 1, 1], [], []>} : vector<512x128xf32>, vector<128x128xf32>, vector<512x128xf32> -> vector<512x128xf32>
    %19 = arith.addf %13, %16 : vector<512x128xf32>
    %cst_17 = arith.constant dense<0.000000e+00> : vector<512x128xf32>
    %20 = tpu.matmul %19, %3, %cst_17 {dimension_numbers = #tpu.dot_dimension_numbers<[1], [0], [0], [1], [0, 0, 1, 1], [], []>} : vector<512x128xf32>, vector<128x128xf32>, vector<512x128xf32> -> vector<512x128xf32>
    %21 = arith.subf %17, %18 : vector<512x128xf32>
    %22 = arith.subf %20, %17 : vector<512x128xf32>
    %23 = arith.subf %22, %18 : vector<512x128xf32>
    %24 = vector.shape_cast %21 : vector<512x128xf32> to vector<4x128x128xf32>
    %25 = vector.shape_cast %5 : vector<128x128xf32> to vector<1x128x128xf32>
    %26 = vector.broadcast %25 : vector<1x128x128xf32> to vector<4x128x128xf32>
    %27 = arith.mulf %24, %26 : vector<4x128x128xf32>
    %28 = vector.shape_cast %27 : vector<4x128x128xf32> to vector<512x128xf32>
    %29 = vector.shape_cast %23 : vector<512x128xf32> to vector<4x128x128xf32>
    %30 = vector.shape_cast %5 : vector<128x128xf32> to vector<1x128x128xf32>
    %31 = vector.broadcast %30 : vector<1x128x128xf32> to vector<4x128x128xf32>
    %32 = arith.mulf %29, %31 : vector<4x128x128xf32>
    %33 = vector.shape_cast %32 : vector<4x128x128xf32> to vector<512x128xf32>
    %cst_18 = arith.constant dense<0.000000e+00> : vector<512x128xf32>
    %34 = tpu.matmul %28, %0, %cst_18 {dimension_numbers = #tpu.dot_dimension_numbers<[1], [0], [0], [1], [0, 0, 1, 1], [], []>} : vector<512x128xf32>, vector<128x128xf32>, vector<512x128xf32> -> vector<512x128xf32>
    %cst_19 = arith.constant dense<0.000000e+00> : vector<512x128xf32>
    %35 = tpu.matmul %33, %2, %cst_19 {dimension_numbers = #tpu.dot_dimension_numbers<[1], [0], [0], [1], [0, 0, 1, 1], [], []>} : vector<512x128xf32>, vector<128x128xf32>, vector<512x128xf32> -> vector<512x128xf32>
    %36 = arith.addf %28, %33 : vector<512x128xf32>
    %cst_20 = arith.constant dense<0.000000e+00> : vector<512x128xf32>
    %37 = tpu.matmul %36, %4, %cst_20 {dimension_numbers = #tpu.dot_dimension_numbers<[1], [0], [0], [1], [0, 0, 1, 1], [], []>} : vector<512x128xf32>, vector<128x128xf32>, vector<512x128xf32> -> vector<512x128xf32>
    %38 = arith.subf %34, %35 : vector<512x128xf32>
    %39 = arith.subf %37, %34 : vector<512x128xf32>
    %40 = arith.subf %39, %35 : vector<512x128xf32>
    %41 = vector.shape_cast %38 : vector<512x128xf32> to vector<4x128x128xf32>
    %42 = tpu.transpose %41, [0, 2, 1] : vector<4x128x128xf32> -> vector<4x128x128xf32>
    %43 = vector.shape_cast %42 : vector<4x128x128xf32> to vector<512x128xf32>
    %44 = vector.shape_cast %40 : vector<512x128xf32> to vector<4x128x128xf32>
    %45 = tpu.transpose %44, [0, 2, 1] : vector<4x128x128xf32> -> vector<4x128x128xf32>
    %46 = vector.shape_cast %45 : vector<4x128x128xf32> to vector<512x128xf32>
    %cst_21 = arith.constant dense<0.000000e+00> : vector<512x128xf32>
    %47 = tpu.matmul %43, %0, %cst_21 {dimension_numbers = #tpu.dot_dimension_numbers<[1], [0], [0], [1], [0, 0, 1, 1], [], []>} : vector<512x128xf32>, vector<128x128xf32>, vector<512x128xf32> -> vector<512x128xf32>
    %cst_22 = arith.constant dense<0.000000e+00> : vector<512x128xf32>
    %48 = tpu.matmul %46, %2, %cst_22 {dimension_numbers = #tpu.dot_dimension_numbers<[1], [0], [0], [1], [0, 0, 1, 1], [], []>} : vector<512x128xf32>, vector<128x128xf32>, vector<512x128xf32> -> vector<512x128xf32>
    %49 = arith.addf %43, %46 : vector<512x128xf32>
    %cst_23 = arith.constant dense<0.000000e+00> : vector<512x128xf32>
    %50 = tpu.matmul %49, %4, %cst_23 {dimension_numbers = #tpu.dot_dimension_numbers<[1], [0], [0], [1], [0, 0, 1, 1], [], []>} : vector<512x128xf32>, vector<128x128xf32>, vector<512x128xf32> -> vector<512x128xf32>
    %51 = arith.subf %47, %48 : vector<512x128xf32>
    %52 = arith.subf %50, %47 : vector<512x128xf32>
    %53 = arith.subf %52, %48 : vector<512x128xf32>
    %54 = arith.mulf %51, %51 : vector<512x128xf32>
    %55 = arith.mulf %53, %53 : vector<512x128xf32>
    %56 = arith.addf %54, %55 : vector<512x128xf32>
    %57 = math.sqrt %56 : vector<512x128xf32>
    %c0_24 = arith.constant 0 : index
    %c0_25 = arith.constant 0 : index
    %58 = vector.load %arg9[%c0_24, %c0_25] : memref<512x128xf32, #tpu.memory_space<vmem>>, vector<512x128xf32>
    tpu.vector_store %arg9[%c0_24, %c0_25], %57 {strides = array<i32>} : memref<512x128xf32, #tpu.memory_space<vmem>>, vector<512x128xf32>,
    return
  }
  func.func @transform_0(%arg0: i32) -> (i32, i32) {
    %c0_i32 = arith.constant 0 : i32
    %c0_i32_0 = arith.constant 0 : i32
    return %arg0, %c0_i32 : i32, i32
  }
  func.func @transform_1(%arg0: i32) -> (i32, i32) {
    %c0_i32 = arith.constant 0 : i32
    %c0_i32_0 = arith.constant 0 : i32
    %c0_i32_1 = arith.constant 0 : i32
    return %c0_i32, %c0_i32_0 : i32, i32
  }
  func.func @transform_2(%arg0: i32) -> (i32, i32) {
    %c0_i32 = arith.constant 0 : i32
    %c0_i32_0 = arith.constant 0 : i32
    %c0_i32_1 = arith.constant 0 : i32
    return %c0_i32, %c0_i32_0 : i32, i32
  }
  func.func @transform_3(%arg0: i32) -> (i32, i32) {
    %c0_i32 = arith.constant 0 : i32
    %c0_i32_0 = arith.constant 0 : i32
    %c0_i32_1 = arith.constant 0 : i32
    return %c0_i32, %c0_i32_0 : i32, i32
  }
  func.func @transform_4(%arg0: i32) -> (i32, i32) {
    %c0_i32 = arith.constant 0 : i32
    %c0_i32_0 = arith.constant 0 : i32
    %c0_i32_1 = arith.constant 0 : i32
    return %c0_i32, %c0_i32_0 : i32, i32
  }
  func.func @transform_5(%arg0: i32) -> (i32, i32) {
    %c0_i32 = arith.constant 0 : i32
    %c0_i32_0 = arith.constant 0 : i32
    %c0_i32_1 = arith.constant 0 : i32
    return %c0_i32, %c0_i32_0 : i32, i32
  }
  func.func @transform_6(%arg0: i32) -> (i32, i32) {
    %c0_i32 = arith.constant 0 : i32
    %c0_i32_0 = arith.constant 0 : i32
    %c0_i32_1 = arith.constant 0 : i32
    return %c0_i32, %c0_i32_0 : i32, i32
  }
  func.func @transform_7(%arg0: i32) -> (i32, i32) {
    %c0_i32 = arith.constant 0 : i32
    %c0_i32_0 = arith.constant 0 : i32
    %c0_i32_1 = arith.constant 0 : i32
    return %c0_i32, %c0_i32_0 : i32, i32
  }
  func.func @transform_8(%arg0: i32) -> (i32, i32) {
    %c0_i32 = arith.constant 0 : i32
    %c0_i32_0 = arith.constant 0 : i32
    return %arg0, %c0_i32 : i32, i32
  }
}

</mosaic_0001>

<llo_original>
// kernel: custom-call.1
$region0: #{custom-call.1}
  %s0 = inlined_call_operand.hbm [shape: c64[128,128,8,2,3], index: 0, kind: input, shape index: {}]
  %s1 = inlined_call_operand.vmem [shape: f32[128,128,8,2,3], index: 1, kind: output, shape index: {}]
  %s2 = scalar_lea.hbm %s0, 98304
  $region1: #{custom-call.1} parent=0
    #allocation0 [shape = 's32[1]{0}', space=sflag, size = 0x4, scoped, tag = 'scoped memory for custom-call.1']
    %3 = vsyncpa [#allocation0], 0
    %s4 = sshll.u32 %s1, 4
    %s5 = int_to_ptr.vmem [resolvable:$true] %s4
    %7 = dma.hbm_to_vmem [thread:$0]  %s2, 98304, %s5, [#allocation0]
    %8 = dma.done [#allocation0], 98304
    %9 = vsyncpa [#allocation0], 1

// kernel: custom-call
$region0: #{custom-call}
  %s0 = inlined_call_operand.hbm [shape: c64[128,128,8,2,3], index: 0, kind: input, shape index: {}]
  %s1 = inlined_call_operand.vmem [shape: f32[128,128,8,2,3], index: 1, kind: output, shape index: {}]
  $region1: #{custom-call} parent=0
    #allocation0 [shape = 's32[1]{0}', space=sflag, size = 0x4, scoped, tag = 'scoped memory for custom-call']
    %2 = vsyncpa [#allocation0], 0
    %s3 = sshll.u32 %s1, 4
    %s4 = int_to_ptr.vmem [resolvable:$true] %s3
    %6 = dma.hbm_to_vmem [thread:$0]  %s0, 98304, %s4, [#allocation0]
    %7 = dma.done [#allocation0], 98304
    %8 = vsyncpa [#allocation0], 1

// kernel: _forward_impl.1
$region0: #{_forward_impl.1}
  #allocation0 [shape = 'u32[]', space=smem, size = 0x4, offset = 0x4, fixed_abs, tag = 'smem constant byte address 0x4 - core index']
  #allocation1 [shape = 'u32[144,128]{1,0:T(1,128)}', space=vmem, size = 0x12000, scoped, tag = 'internal scratch']
  %s0 = inlined_call_operand.vmem [shape: f32[1024,128], index: 0, kind: input, shape index: {}]
  %s1 = inlined_call_operand.vmem [shape: f32[128,256], index: 1, kind: input, shape index: {}]
  %s2 = inlined_call_operand.vmem [shape: f32[128,128], index: 2, kind: input, shape index: {}]
  %s3 = inlined_call_operand.vmem [shape: f32[128,128], index: 3, kind: input, shape index: {}]
  %s4 = inlined_call_operand.vmem [shape: f32[128,128], index: 4, kind: input, shape index: {}]
  %s5 = inlined_call_operand.vmem [shape: f32[128,128], index: 5, kind: input, shape index: {}]
  %s6 = inlined_call_operand.vmem [shape: f32[128,128], index: 6, kind: input, shape index: {}]
  %s7 = inlined_call_operand.vmem [shape: f32[128,128], index: 7, kind: input, shape index: {}]
  %s8 = inlined_call_operand.vmem [shape: f32[1024,128], index: 8, kind: output, shape index: {}]
  %s9 = sld [smem:[#allocation0]]
  $region65: #{_forward_impl.1} parent=0
    _
  %s11 = ssub.s32 1, %s9
  %s12 = scalar_select 0, %s11, %s9
  loop: start=0, step=1, limit=4
  $region2: #{_forward_impl.1} parent=0 // loop_pre_header
    _
  $region3: #{_forward_impl.1} parent=0 // loop_header
    %s14 = sphi 0, %s18
    %p15 = scmp.ge.s32.totalorder %s14, 4
    %s24 = sphi 0, %s26
    %s27 = sphi 0, %s24
    %s28 = sphi 0, %s27
    %s44 = sphi 0, %s28
    %s48 = sphi 0, %s48
    %s50 = sphi 0, %s48
    %s51 = sphi 0, %s50
    %s65 = sphi 0, %s51
    %s69 = sphi 0, %s69
    %s71 = sphi 0, %s69
    %s72 = sphi 0, %s71
    %s86 = sphi 0, %s72
    %s90 = sphi 0, %s90
    %s92 = sphi 0, %s90
    %s93 = sphi 0, %s92
    %s107 = sphi 0, %s93
    %s111 = sphi 0, %s111
    %s113 = sphi 0, %s111
    %s114 = sphi 0, %s113
    %s128 = sphi 0, %s114
    %s132 = sphi 0, %s132
    %s134 = sphi 0, %s132
    %s135 = sphi 0, %s134
    %s149 = sphi 0, %s135
    %s153 = sphi 0, %s153
    %s155 = sphi 0, %s153
    %s156 = sphi 0, %s155
    %s170 = sphi 0, %s156
    %s174 = sphi 0, %s174
    %s176 = sphi 0, %s174
    %s177 = sphi 0, %s176
    %s191 = sphi 0, %s177
    %s197 = sphi 0, %s199
    %s200 = sphi 0, %s197
    %s201 = sphi 0, %s200
    %s217 = sphi 0, %s201
  $region4: #{_forward_impl.1} parent=0 // loop_header_branch
    %17 = sbr.rel (%p15) target = $region8
  $region5: #{_forward_impl.1} parent=0 // loop_body
    %s19 = ssub.s32 %s14, 1
    %s20 = ssub.s32 %s14, 2
    %s21 = sadd.s32 %s14, 1
    %s22 = ssub.s32 %s14, %s21
    %p23 = scmp.eq.s32.totalorder %s22, 0
    %s25 = sadd.s32 %s24, 1
    %s26 = scalar_select %p23, %s24, %s25
    %p29 = pneg %p23
    %p30 = scmp.eq.s32.totalorder %s14, 1
    %p31 = por %p29, %p30
    %p32 = scmp.ne.s32.totalorder %s24, %s27
    %p33 = scmp.eq.s32.totalorder %s14, 0
    %p34 = por %p32, %p33
    %p35 = scmp.ne.s32.totalorder %s24, %s27
    %p36 = scmp.eq.s32.totalorder %s19, 1
    %p37 = por %p35, %p36
    %p38 = scmp.ne.s32.totalorder %s27, %s28
    %p39 = scmp.eq.s32.totalorder %s19, 0
    %p40 = por %p38, %p39
    %p41 = scmp.ne.s32.totalorder %s27, %s28
    %p42 = scmp.eq.s32.totalorder %s20, 1
    %p43 = por %p41, %p42
    %p45 = scmp.ne.s32.totalorder %s28, %s44
    %p46 = scmp.eq.s32.totalorder %s20, 0
    %p47 = por %p45, %p46
    %s49 = sadd.s32 %s48, 1
    %p52 = scmp.eq.s32.totalorder %s14, 1
    %p53 = scmp.ne.s32.totalorder %s48, %s50
    %p54 = scmp.eq.s32.totalorder %s14, 0
    %p55 = por %p53, %p54
    %p56 = scmp.ne.s32.totalorder %s48, %s50
    %p57 = scmp.eq.s32.totalorder %s19, 1
    %p58 = por %p56, %p57
    %p59 = scmp.ne.s32.totalorder %s50, %s51
    %p60 = scmp.eq.s32.totalorder %s19, 0
    %p61 = por %p59, %p60
    %p62 = scmp.ne.s32.totalorder %s50, %s51
    %p63 = scmp.eq.s32.totalorder %s20, 1
    %p64 = por %p62, %p63
    %p66 = scmp.ne.s32.totalorder %s51, %s65
    %p67 = scmp.eq.s32.totalorder %s20, 0
    %p68 = por %p66, %p67
    %s70 = sadd.s32 %s69, 1
    %p73 = scmp.eq.s32.totalorder %s14, 1
    %p74 = scmp.ne.s32.totalorder %s69, %s71
    %p75 = scmp.eq.s32.totalorder %s14, 0
    %p76 = por %p74, %p75
    %p77 = scmp.ne.s32.totalorder %s69, %s71
    %p78 = scmp.eq.s32.totalorder %s19, 1
    %p79 = por %p77, %p78
    %p80 = scmp.ne.s32.totalorder %s71, %s72
    %p81 = scmp.eq.s32.totalorder %s19, 0
    %p82 = por %p80, %p81
    %p83 = scmp.ne.s32.totalorder %s71, %s72
    %p84 = scmp.eq.s32.totalorder %s20, 1
    %p85 = por %p83, %p84
    %p87 = scmp.ne.s32.totalorder %s72, %s86
    %p88 = scmp.eq.s32.totalorder %s20, 0
    %p89 = por %p87, %p88
    %s91 = sadd.s32 %s90, 1
    %p94 = scmp.eq.s32.totalorder %s14, 1
    %p95 = scmp.ne.s32.totalorder %s90, %s92
    %p96 = scmp.eq.s32.totalorder %s14, 0
    %p97 = por %p95, %p96
    %p98 = scmp.ne.s32.totalorder %s90, %s92
    %p99 = scmp.eq.s32.totalorder %s19, 1
    %p100 = por %p98, %p99
    %p101 = scmp.ne.s32.totalorder %s92, %s93
    %p102 = scmp.eq.s32.totalorder %s19, 0
    %p103 = por %p101, %p102
    %p104 = scmp.ne.s32.totalorder %s92, %s93
    %p105 = scmp.eq.s32.totalorder %s20, 1
    %p106 = por %p104, %p105
    %p108 = scmp.ne.s32.totalorder %s93, %s107
    %p109 = scmp.eq.s32.totalorder %s20, 0
    %p110 = por %p108, %p109
    %s112 = sadd.s32 %s111, 1
    %p115 = scmp.eq.s32.totalorder %s14, 1
    %p116 = scmp.ne.s32.totalorder %s111, %s113
    %p117 = scmp.eq.s32.totalorder %s14, 0
    %p118 = por %p116, %p117
    %p119 = scmp.ne.s32.totalorder %s111, %s113
    %p120 = scmp.eq.s32.totalorder %s19, 1
    %p121 = por %p119, %p120
    %p122 = scmp.ne.s32.totalorder %s113, %s114
    %p123 = scmp.eq.s32.totalorder %s19, 0
    %p124 = por %p122, %p123
    %p125 = scmp.ne.s32.totalorder %s113, %s114
    %p126 = scmp.eq.s32.totalorder %s20, 1
    %p127 = por %p125, %p126
    %p129 = scmp.ne.s32.totalorder %s114, %s128
    %p130 = scmp.eq.s32.totalorder %s20, 0
    %p131 = por %p129, %p130
    %s133 = sadd.s32 %s132, 1
    %p136 = scmp.eq.s32.totalorder %s14, 1
    %p137 = scmp.ne.s32.totalorder %s132, %s134
    %p138 = scmp.eq.s32.totalorder %s14, 0
    %p139 = por %p137, %p138
    %p140 = scmp.ne.s32.totalorder %s132, %s134
    %p141 = scmp.eq.s32.totalorder %s19, 1
    %p142 = por %p140, %p141
    %p143 = scmp.ne.s32.totalorder %s134, %s135
    %p144 = scmp.eq.s32.totalorder %s19, 0
    %p145 = por %p143, %p144
    %p146 = scmp.ne.s32.totalorder %s134, %s135
    %p147 = scmp.eq.s32.totalorder %s20, 1
    %p148 = por %p146, %p147
    %p150 = scmp.ne.s32.totalorder %s135, %s149
    %p151 = scmp.eq.s32.totalorder %s20, 0
    %p152 = por %p150, %p151
    %s154 = sadd.s32 %s153, 1
    %p157 = scmp.eq.s32.totalorder %s14, 1
    %p158 = scmp.ne.s32.totalorder %s153, %s155
    %p159 = scmp.eq.s32.totalorder %s14, 0
    %p160 = por %p158, %p159
    %p161 = scmp.ne.s32.totalorder %s153, %s155
    %p162 = scmp.eq.s32.totalorder %s19, 1
    %p163 = por %p161, %p162
    %p164 = scmp.ne.s32.totalorder %s155, %s156
    %p165 = scmp.eq.s32.totalorder %s19, 0
    %p166 = por %p164, %p165
    %p167 = scmp.ne.s32.totalorder %s155, %s156
    %p168 = scmp.eq.s32.totalorder %s20, 1
    %p169 = por %p167, %p168
    %p171 = scmp.ne.s32.totalorder %s156, %s170
    %p172 = scmp.eq.s32.totalorder %s20, 0
    %p173 = por %p171, %p172
    %s175 = sadd.s32 %s174, 1
    %p178 = scmp.eq.s32.totalorder %s14, 1
    %p179 = scmp.ne.s32.totalorder %s174, %s176
    %p180 = scmp.eq.s32.totalorder %s14, 0
    %p181 = por %p179, %p180
    %p182 = scmp.ne.s32.totalorder %s174, %s176
    %p183 = scmp.eq.s32.totalorder %s19, 1
    %p184 = por %p182, %p183
    %p185 = scmp.ne.s32.totalorder %s176, %s177
    %p186 = scmp.eq.s32.totalorder %s19, 0
    %p187 = por %p185, %p186
    %p188 = scmp.ne.s32.totalorder %s176, %s177
    %p189 = scmp.eq.s32.totalorder %s20, 1
    %p190 = por %p188, %p189
    %p192 = scmp.ne.s32.totalorder %s177, %s191
    %p193 = scmp.eq.s32.totalorder %s20, 0
    %p194 = por %p192, %p193
    %s195 = ssub.s32 %s14, %s21
    %p196 = scmp.eq.s32.totalorder %s195, 0
    %s198 = sadd.s32 %s197, 1
    %s199 = scalar_select %p196, %s197, %s198
    %p202 = pneg %p196
    %p203 = scmp.eq.s32.totalorder %s14, 1
    %p204 = por %p202, %p203
    %p205 = scmp.ne.s32.totalorder %s197, %s200
    %p206 = scmp.eq.s32.totalorder %s14, 0
    %p207 = por %p205, %p206
    %p208 = scmp.ne.s32.totalorder %s197, %s200
    %p209 = scmp.eq.s32.totalorder %s19, 1
    %p210 = por %p208, %p209
    %p211 = scmp.ne.s32.totalorder %s200, %s201
    %p212 = scmp.eq.s32.totalorder %s19, 0
    %p213 = por %p211, %p212
    %p214 = scmp.ne.s32.totalorder %s200, %s201
    %p215 = scmp.eq.s32.totalorder %s20, 1
    %p216 = por %p214, %p215
    %p218 = scmp.ne.s32.totalorder %s201, %s217
    %p219 = scmp.eq.s32.totalorder %s20, 0
    %p220 = por %p218, %p219
    %p221 = scmp.le.s32.totalorder 1, %s14
    %p222 = scmp.lt.s32.totalorder %s14, 3
    %p223 = pnand %p221, %p222
    %p224 = pneg %p223
    // Predicated region
    $region9: #{_forward_impl.1} parent=5 // pred_check
      _
    $region10: #{_forward_impl.1} parent=5 // pred_check_branch
      %226 = sbr.rel (%p223) target = $region12
    $region11: #{_forward_impl.1} parent=5 // pred_region
      %s227 = ssub.s32 %s14, 1
      // Predicated region
      $region13: #{_forward_impl.1} parent=11 // pred_check
        %p228 = pneg %p61
      $region14: #{_forward_impl.1} parent=11 // pred_check_branch
        %230 = sbr.rel (%p228) target = $region16
      $region15: #{_forward_impl.1} parent=11 // pred_region
        _
      $region16: #{_forward_impl.1} parent=11 // pred_fallthru
        _
      // Predicated region
      $region17: #{_forward_impl.1} parent=11 // pred_check
        %p231 = pneg %p82
      $region18: #{_forward_impl.1} parent=11 // pred_check_branch
        %233 = sbr.rel (%p231) target = $region20
      $region19: #{_forward_impl.1} parent=11 // pred_region
        _
      $region20: #{_forward_impl.1} parent=11 // pred_fallthru
        _
      // Predicated region
      $region21: #{_forward_impl.1} parent=11 // pred_check
        %p234 = pneg %p103
      $region22: #{_forward_impl.1} parent=11 // pred_check_branch
        %236 = sbr.rel (%p234) target = $region24
      $region23: #{_forward_impl.1} parent=11 // pred_region
        _
      $region24: #{_forward_impl.1} parent=11 // pred_fallthru
        _
      // Predicated region
      $region25: #{_forward_impl.1} parent=11 // pred_check
        %p237 = pneg %p124
      $region26: #{_forward_impl.1} parent=11 // pred_check_branch
        %239 = sbr.rel (%p237) target = $region28
      $region27: #{_forward_impl.1} parent=11 // pred_region
        _
      $region28: #{_forward_impl.1} parent=11 // pred_fallthru
        _
      // Predicated region
      $region29: #{_forward_impl.1} parent=11 // pred_check
        %p240 = pneg %p145
      $region30: #{_forward_impl.1} parent=11 // pred_check_branch
        %242 = sbr.rel (%p240) target = $region32
      $region31: #{_forward_impl.1} parent=11 // pred_region
        _
      $region32: #{_forward_impl.1} parent=11 // pred_fallthru
        _
      // Predicated region
      $region33: #{_forward_impl.1} parent=11 // pred_check
        %p243 = pneg %p166
      $region34: #{_forward_impl.1} parent=11 // pred_check_branch
        %245 = sbr.rel (%p243) target = $region36
      $region35: #{_forward_impl.1} parent=11 // pred_region
        _
      $region36: #{_forward_impl.1} parent=11 // pred_fallthru
        _
      // Predicated region
      $region37: #{_forward_impl.1} parent=11 // pred_check
        %p246 = pneg %p187
      $region38: #{_forward_impl.1} parent=11 // pred_check_branch
        %248 = sbr.rel (%p246) target = $region40
      $region39: #{_forward_impl.1} parent=11 // pred_region
        _
      $region40: #{_forward_impl.1} parent=11 // pred_fallthru
        _
    $region12: #{_forward_impl.1} parent=5 // pred_fallthru
      _
    %p249 = scmp.lt.s32.totalorder %s14, 2
    // Predicated region
    $region41: #{_forward_impl.1} parent=5 // pred_check
      %p250 = pneg %p249
    $region42: #{_forward_impl.1} parent=5 // pred_check_branch
      %252 = sbr.rel (%p250) target = $region44
    $region43: #{_forward_impl.1} parent=5 // pred_region
      // Predicated region
      $region45: #{_forward_impl.1} parent=43 // pred_check
        %p253 = pneg %p34
      $region46: #{_forward_impl.1} parent=43 // pred_check_branch
        %255 = sbr.rel (%p253) target = $region48
      $region47: #{_forward_impl.1} parent=43 // pred_region
        %s256 = smul.u32 64, %s14
        %p257 = scmp.lt.s32.totalorder %s256, 127
        %s258 = scalar_select %p257, %s256, 127
        %s259 = smul.addr %s258, 8
        %s260 = scalar_lea.vmem %s0, %s259
        %s261 = smul.u32 64, %s14
      $region48: #{_forward_impl.1} parent=43 // pred_fallthru
        _
    $region44: #{_forward_impl.1} parent=5 // pred_fallthru
      _
    %p262 = scmp.le.s32.totalorder 1, %s14
    %p263 = scmp.lt.s32.totalorder %s14, 3
    %p264 = pnand %p262, %p263
    %p265 = pneg %p264
    // Predicated region
    $region49: #{_forward_impl.1} parent=5 // pred_check
      _
    $region50: #{_forward_impl.1} parent=5 // pred_check_branch
      %267 = sbr.rel (%p264) target = $region52
    $region51: #{_forward_impl.1} parent=5 // pred_region
      %s268 = ssub.s32 %s14, 1
      %s269 = smul.u32 64, %s19
      %p270 = scmp.lt.s32.totalorder %s269, 127
      %s271 = scalar_select %p270, %s269, 127
      %s272 = smul.addr %s271, 8
      %s273 = scalar_lea.vmem %s0, %s272
      %p274 = pneg %p40
      %p275 = pneg %p37
      %p276 = pneg %p61
      %p277 = pneg %p58
      %p278 = pneg %p82
      %p279 = pneg %p79
      %p280 = pneg %p103
      %p281 = pneg %p100
      %p282 = pneg %p124
      %p283 = pneg %p121
      %p284 = pneg %p145
      %p285 = pneg %p142
      %p286 = pneg %p166
      %p287 = pneg %p163
      %p288 = pneg %p187
      %p289 = pneg %p184
      %p290 = pneg %p213
      %p291 = pneg %p210
      %s292 = smul.u32 64, %s19
      %p293 = scmp.lt.s32.totalorder %s292, 127
      %s294 = scalar_select %p293, %s292, 127
      %s295 = smul.addr %s294, 8
      %s296 = scalar_lea.vmem %s8, %s295
      %s297 = smul.u32 64, %s19
      %p298 = scmp.lt.s32.totalorder %s297, 127
      %s299 = scalar_select %p298, %s297, 127
      %s300 = smul.addr %s299, 8
      %s301 = scalar_lea.vmem %s0, %s300
      %s302 = smul.u32 64, %s19
      %s303 = smul.u32 64, %s19
      %p304 = scmp.lt.s32.totalorder %s303, 127
      %s305 = scalar_select %p304, %s303, 127
      %s306 = smul.addr %s305, 8
      %s307 = scalar_lea.vmem %s8, %s306
      %s308 = smul.u32 64, %s19
      %v309 = vld [vmem:[%s2] sm:$0xff]
      %v310 = vld [vmem:[%s2 + $0x8] sm:$0xff]
      %v311 = vld [vmem:[%s2 + $0x10] sm:$0xff]
      %v312 = vld [vmem:[%s2 + $0x18] sm:$0xff]
      %v313 = vld [vmem:[%s2 + $0x20] sm:$0xff]
      %v314 = vld [vmem:[%s2 + $0x28] sm:$0xff]
      %v315 = vld [vmem:[%s2 + $0x30] sm:$0xff]
      %v316 = vld [vmem:[%s2 + $0x38] sm:$0xff]
      %v317 = vld [vmem:[%s2 + $0x40] sm:$0xff]
      %v318 = vld [vmem:[%s2 + $0x48] sm:$0xff]
      %v319 = vld [vmem:[%s2 + $0x50] sm:$0xff]
      %v320 = vld [vmem:[%s2 + $0x58] sm:$0xff]
      %v321 = vld [vmem:[%s2 + $0x60] sm:$0xff]
      %v322 = vld [vmem:[%s2 + $0x68] sm:$0xff]
      %v323 = vld [vmem:[%s2 + $0x70] sm:$0xff]
      %v324 = vld [vmem:[%s2 + $0x78] sm:$0xff]
      %v325 = vld [vmem:[%s3] sm:$0xff]
      %v326 = vld [vmem:[%s3 + $0x8] sm:$0xff]
      %v327 = vld [vmem:[%s3 + $0x10] sm:$0xff]
      %v328 = vld [vmem:[%s3 + $0x18] sm:$0xff]
      %v329 = vld [vmem:[%s3 + $0x20] sm:$0xff]
      %v330 = vld [vmem:[%s3 + $0x28] sm:$0xff]
      %v331 = vld [vmem:[%s3 + $0x30] sm:$0xff]
      %v332 = vld [vmem:[%s3 + $0x38] sm:$0xff]
      %v333 = vld [vmem:[%s3 + $0x40] sm:$0xff]
      %v334 = vld [vmem:[%s3 + $0x48] sm:$0xff]
      %v335 = vld [vmem:[%s3 + $0x50] sm:$0xff]
      %v336 = vld [vmem:[%s3 + $0x58] sm:$0xff]
      %v337 = vld [vmem:[%s3 + $0x60] sm:$0xff]
      %v338 = vld [vmem:[%s3 + $0x68] sm:$0xff]
      %v339 = vld [vmem:[%s3 + $0x70] sm:$0xff]
      %v340 = vld [vmem:[%s3 + $0x78] sm:$0xff]
      %v341 = vld [vmem:[%s4] sm:$0xff]
      %v342 = vld [vmem:[%s4 + $0x8] sm:$0xff]
      %v343 = vld [vmem:[%s4 + $0x10] sm:$0xff]
      %v344 = vld [vmem:[%s4 + $0x18] sm:$0xff]
      %v345 = vld [vmem:[%s4 + $0x20] sm:$0xff]
      %v346 = vld [vmem:[%s4 + $0x28] sm:$0xff]
      %v347 = vld [vmem:[%s4 + $0x30] sm:$0xff]
      %v348 = vld [vmem:[%s4 + $0x38] sm:$0xff]
      %v349 = vld [vmem:[%s4 + $0x40] sm:$0xff]
      %v350 = vld [vmem:[%s4 + $0x48] sm:$0xff]
      %v351 = vld [vmem:[%s4 + $0x50] sm:$0xff]
      %v352 = vld [vmem:[%s4 + $0x58] sm:$0xff]
      %v353 = vld [vmem:[%s4 + $0x60] sm:$0xff]
      %v354 = vld [vmem:[%s4 + $0x68] sm:$0xff]
      %v355 = vld [vmem:[%s4 + $0x70] sm:$0xff]
      %v356 = vld [vmem:[%s4 + $0x78] sm:$0xff]
      %v357 = vld [vmem:[%s5] sm:$0xff]
      %v358 = vld [vmem:[%s5 + $0x8] sm:$0xff]
      %v359 = vld [vmem:[%s5 + $0x10] sm:$0xff]
      %v360 = vld [vmem:[%s5 + $0x18] sm:$0xff]
      %v361 = vld [vmem:[%s5 + $0x20] sm:$0xff]
      %v362 = vld [vmem:[%s5 + $0x28] sm:$0xff]
      %v363 = vld [vmem:[%s5 + $0x30] sm:$0xff]
      %v364 = vld [vmem:[%s5 + $0x38] sm:$0xff]
      %v365 = vld [vmem:[%s5 + $0x40] sm:$0xff]
      %v366 = vld [vmem:[%s5 + $0x48] sm:$0xff]
      %v367 = vld [vmem:[%s5 + $0x50] sm:$0xff]
      %v368 = vld [vmem:[%s5 + $0x58] sm:$0xff]
      %v369 = vld [vmem:[%s5 + $0x60] sm:$0xff]
      %v370 = vld [vmem:[%s5 + $0x68] sm:$0xff]
      %v371 = vld [vmem:[%s5 + $0x70] sm:$0xff]
      %v372 = vld [vmem:[%s5 + $0x78] sm:$0xff]
      %v373 = vld [vmem:[%s6] sm:$0xff]
      %v374 = vld [vmem:[%s6 + $0x8] sm:$0xff]
      %v375 = vld [vmem:[%s6 + $0x10] sm:$0xff]
      %v376 = vld [vmem:[%s6 + $0x18] sm:$0xff]
      %v377 = vld [vmem:[%s6 + $0x20] sm:$0xff]
      %v378 = vld [vmem:[%s6 + $0x28] sm:$0xff]
      %v379 = vld [vmem:[%s6 + $0x30] sm:$0xff]
      %v380 = vld [vmem:[%s6 + $0x38] sm:$0xff]
      %v381 = vld [vmem:[%s6 + $0x40] sm:$0xff]
      %v382 = vld [vmem:[%s6 + $0x48] sm:$0xff]
      %v383 = vld [vmem:[%s6 + $0x50] sm:$0xff]
      %v384 = vld [vmem:[%s6 + $0x58] sm:$0xff]
      %v385 = vld [vmem:[%s6 + $0x60] sm:$0xff]
      %v386 = vld [vmem:[%s6 + $0x68] sm:$0xff]
      %v387 = vld [vmem:[%s6 + $0x70] sm:$0xff]
      %v388 = vld [vmem:[%s6 + $0x78] sm:$0xff]
      %v389 = vld [vmem:[%s7] sm:$0xff]
      %v390 = vld [vmem:[%s7 + $0x8] sm:$0xff]
      %v391 = vld [vmem:[%s7 + $0x10] sm:$0xff]
      %v392 = vld [vmem:[%s7 + $0x18] sm:$0xff]
      %v393 = vld [vmem:[%s7 + $0x20] sm:$0xff]
      %v394 = vld [vmem:[%s7 + $0x28] sm:$0xff]
      %v395 = vld [vmem:[%s7 + $0x30] sm:$0xff]
      %v396 = vld [vmem:[%s7 + $0x38] sm:$0xff]
      %v397 = vld [vmem:[%s7 + $0x40] sm:$0xff]
      %v398 = vld [vmem:[%s7 + $0x48] sm:$0xff]
      %v399 = vld [vmem:[%s7 + $0x50] sm:$0xff]
      %v400 = vld [vmem:[%s7 + $0x58] sm:$0xff]
      %v401 = vld [vmem:[%s7 + $0x60] sm:$0xff]
      %v402 = vld [vmem:[%s7 + $0x68] sm:$0xff]
      %v403 = vld [vmem:[%s7 + $0x70] sm:$0xff]
      %v404 = vld [vmem:[%s7 + $0x78] sm:$0xff]
      %v405 = vld [vmem:[%s301] sm:$0xff]
      %v406 = vld [vmem:[%s301 + $0x8] sm:$0xff]
      %v407 = vld [vmem:[%s301 + $0x10] sm:$0xff]
      %v408 = vld [vmem:[%s301 + $0x18] sm:$0xff]
      %v409 = vld [vmem:[%s301 + $0x20] sm:$0xff]
      %v410 = vld [vmem:[%s301 + $0x28] sm:$0xff]
      %v411 = vld [vmem:[%s301 + $0x30] sm:$0xff]
      %v412 = vld [vmem:[%s301 + $0x38] sm:$0xff]
      %v413 = vld [vmem:[%s301 + $0x40] sm:$0xff]
      %v414 = vld [vmem:[%s301 + $0x48] sm:$0xff]
      %v415 = vld [vmem:[%s301 + $0x50] sm:$0xff]
      %v416 = vld [vmem:[%s301 + $0x58] sm:$0xff]
      %v417 = vld [vmem:[%s301 + $0x60] sm:$0xff]
      %v418 = vld [vmem:[%s301 + $0x68] sm:$0xff]
      %v419 = vld [vmem:[%s301 + $0x70] sm:$0xff]
      %v420 = vld [vmem:[%s301 + $0x78] sm:$0xff]
      %v421 = vld [vmem:[%s301 + $0x80] sm:$0xff]
      %v422 = vld [vmem:[%s301 + $0x88] sm:$0xff]
      %v423 = vld [vmem:[%s301 + $0x90] sm:$0xff]
      %v424 = vld [vmem:[%s301 + $0x98] sm:$0xff]
      %v425 = vld [vmem:[%s301 + $0xa0] sm:$0xff]
      %v426 = vld [vmem:[%s301 + $0xa8] sm:$0xff]
      %v427 = vld [vmem:[%s301 + $0xb0] sm:$0xff]
      %v428 = vld [vmem:[%s301 + $0xb8] sm:$0xff]
      %v429 = vld [vmem:[%s301 + $0xc0] sm:$0xff]
      %v430 = vld [vmem:[%s301 + $0xc8] sm:$0xff]
      %v431 = vld [vmem:[%s301 + $0xd0] sm:$0xff]
      %v432 = vld [vmem:[%s301 + $0xd8] sm:$0xff]
      %v433 = vld [vmem:[%s301 + $0xe0] sm:$0xff]
      %v434 = vld [vmem:[%s301 + $0xe8] sm:$0xff]
      %v435 = vld [vmem:[%s301 + $0xf0] sm:$0xff]
      %v436 = vld [vmem:[%s301 + $0xf8] sm:$0xff]
      %v437 = vld [vmem:[%s301 + $0x100] sm:$0xff]
      %v438 = vld [vmem:[%s301 + $0x108] sm:$0xff]
      %v439 = vld [vmem:[%s301 + $0x110] sm:$0xff]
      %v440 = vld [vmem:[%s301 + $0x118] sm:$0xff]
      %v441 = vld [vmem:[%s301 + $0x120] sm:$0xff]
      %v442 = vld [vmem:[%s301 + $0x128] sm:$0xff]
      %v443 = vld [vmem:[%s301 + $0x130] sm:$0xff]
      %v444 = vld [vmem:[%s301 + $0x138] sm:$0xff]
      %v445 = vld [vmem:[%s301 + $0x140] sm:$0xff]
      %v446 = vld [vmem:[%s301 + $0x148] sm:$0xff]
      %v447 = vld [vmem:[%s301 + $0x150] sm:$0xff]
      %v448 = vld [vmem:[%s301 + $0x158] sm:$0xff]
      %v449 = vld [vmem:[%s301 + $0x160] sm:$0xff]
      %v450 = vld [vmem:[%s301 + $0x168] sm:$0xff]
      %v451 = vld [vmem:[%s301 + $0x170] sm:$0xff]
      %v452 = vld [vmem:[%s301 + $0x178] sm:$0xff]
      %v453 = vld [vmem:[%s301 + $0x180] sm:$0xff]
      %v454 = vld [vmem:[%s301 + $0x188] sm:$0xff]
      %v455 = vld [vmem:[%s301 + $0x190] sm:$0xff]
      %v456 = vld [vmem:[%s301 + $0x198] sm:$0xff]
      %v457 = vld [vmem:[%s301 + $0x1a0] sm:$0xff]
      %v458 = vld [vmem:[%s301 + $0x1a8] sm:$0xff]
      %v459 = vld [vmem:[%s301 + $0x1b0] sm:$0xff]
      %v460 = vld [vmem:[%s301 + $0x1b8] sm:$0xff]
      %v461 = vld [vmem:[%s301 + $0x1c0] sm:$0xff]
      %v462 = vld [vmem:[%s301 + $0x1c8] sm:$0xff]
      %v463 = vld [vmem:[%s301 + $0x1d0] sm:$0xff]
      %v464 = vld [vmem:[%s301 + $0x1d8] sm:$0xff]
      %v465 = vld [vmem:[%s301 + $0x1e0] sm:$0xff]
      %v466 = vld [vmem:[%s301 + $0x1e8] sm:$0xff]
      %v467 = vld [vmem:[%s301 + $0x1f0] sm:$0xff]
      %v468 = vld [vmem:[%s301 + $0x1f8] sm:$0xff]
      %v469 = vld [vmem:[%s1] sm:$0xff]
      %v470 = vld [vmem:[%s1 + $0x8] sm:$0xff]
      %v471 = vld [vmem:[%s1 + $0x10] sm:$0xff]
      %v472 = vld [vmem:[%s1 + $0x18] sm:$0xff]
      %v473 = vld [vmem:[%s1 + $0x20] sm:$0xff]
      %v474 = vld [vmem:[%s1 + $0x28] sm:$0xff]
      %v475 = vld [vmem:[%s1 + $0x30] sm:$0xff]
      %v476 = vld [vmem:[%s1 + $0x38] sm:$0xff]
      %v477 = vld [vmem:[%s1 + $0x40] sm:$0xff]
      %v478 = vld [vmem:[%s1 + $0x48] sm:$0xff]
      %v479 = vld [vmem:[%s1 + $0x50] sm:$0xff]
      %v480 = vld [vmem:[%s1 + $0x58] sm:$0xff]
      %v481 = vld [vmem:[%s1 + $0x60] sm:$0xff]
      %v482 = vld [vmem:[%s1 + $0x68] sm:$0xff]
      %v483 = vld [vmem:[%s1 + $0x70] sm:$0xff]
      %v484 = vld [vmem:[%s1 + $0x78] sm:$0xff]
      %v485 = vld [vmem:[%s1 + $0x80] sm:$0xff]
      %v486 = vld [vmem:[%s1 + $0x88] sm:$0xff]
      %v487 = vld [vmem:[%s1 + $0x90] sm:$0xff]
      %v488 = vld [vmem:[%s1 + $0x98] sm:$0xff]
      %v489 = vld [vmem:[%s1 + $0xa0] sm:$0xff]
      %v490 = vld [vmem:[%s1 + $0xa8] sm:$0xff]
      %v491 = vld [vmem:[%s1 + $0xb0] sm:$0xff]
      %v492 = vld [vmem:[%s1 + $0xb8] sm:$0xff]
      %v493 = vld [vmem:[%s1 + $0xc0] sm:$0xff]
      %v494 = vld [vmem:[%s1 + $0xc8] sm:$0xff]
      %v495 = vld [vmem:[%s1 + $0xd0] sm:$0xff]
      %v496 = vld [vmem:[%s1 + $0xd8] sm:$0xff]
      %v497 = vld [vmem:[%s1 + $0xe0] sm:$0xff]
      %v498 = vld [vmem:[%s1 + $0xe8] sm:$0xff]
      %v499 = vld [vmem:[%s1 + $0xf0] sm:$0xff]
      %v500 = vld [vmem:[%s1 + $0xf8] sm:$0xff]
      %501 = vmatprep.subr.mxu0 %v470
      %502 = vmatpush1.msra.mxu0 %v469
      %503 = vmatprep.subr.mxu0 %v472
      %504 = vmatpush1.msra.mxu0 %v471
      %505 = vmatprep.subr.mxu0 %v474
      %506 = vmatpush1.msra.mxu0 %v473
      %507 = vmatprep.subr.mxu0 %v476
      %508 = vmatpush1.msra.mxu0 %v475
      %509 = vmatprep.subr.mxu0 %v478
      %510 = vmatpush1.msra.mxu0 %v477
      %511 = vmatprep.subr.mxu0 %v480
      %512 = vmatpush1.msra.mxu0 %v479
      %513 = vmatprep.subr.mxu0 %v482
      %514 = vmatpush1.msra.mxu0 %v481
      %515 = vmatprep.subr.mxu0 %v484
      %516 = vmatpush1.msra.mxu0 %v483
      %517 = vmatprep.subr.mxu0 %v486
      %518 = vmatpush1.msra.mxu0 %v485
      %519 = vmatprep.subr.mxu0 %v488
      %520 = vmatpush1.msra.mxu0 %v487
      %521 = vmatprep.subr.mxu0 %v490
      %522 = vmatpush1.msra.mxu0 %v489
      %523 = vmatprep.subr.mxu0 %v492
      %524 = vmatpush1.msra.mxu0 %v491
      %525 = vmatprep.subr.mxu0 %v494
      %526 = vmatpush1.msra.mxu0 %v493
      %527 = vmatprep.subr.mxu0 %v496
      %528 = vmatpush1.msra.mxu0 %v495
      %529 = vmatprep.subr.mxu0 %v498
      %530 = vmatpush1.msra.mxu0 %v497
      %531 = vmatprep.subr.mxu0 %v500
      %532 = vmatpush1.msra.mxu0 %v499
      %533 = vmatprep.subr.mxu0 0.0
      %534 = vmatpush1.msra.mxu0 0.0
      %535 = vmatprep.subr.mxu0 0.0
      %536 = vmatpush1.msra.mxu0 0.0
      %537 = vmatprep.subr.mxu0 0.0
      %538 = vmatpush1.msra.mxu0 0.0
      %539 = vmatprep.subr.mxu0 0.0
      %540 = vmatpush1.msra.mxu0 0.0
      %541 = vmatprep.subr.mxu0 0.0
      %542 = vmatpush1.msra.mxu0 0.0
      %543 = vmatprep.subr.mxu0 0.0
      %544 = vmatpush1.msra.mxu0 0.0
      %545 = vmatprep.subr.mxu0 0.0
      %546 = vmatpush1.msra.mxu0 0.0
      %547 = vmatprep.subr.mxu0 0.0
      %548 = vmatpush1.msra.mxu0 0.0
      %549 = vmatprep.subr.mxu0 0.0
      %550 = vmatpush1.msra.mxu0 0.0
      %551 = vmatprep.subr.mxu0 0.0
      %552 = vmatpush1.msra.mxu0 0.0
      %553 = vmatprep.subr.mxu0 0.0
      %554 = vmatpush1.msra.mxu0 0.0
      %555 = vmatprep.subr.mxu0 0.0
      %556 = vmatpush1.msra.mxu0 0.0
      %557 = vmatprep.subr.mxu0 0.0
      %558 = vmatpush1.msra.mxu0 0.0
      %559 = vmatprep.subr.mxu0 0.0
      %560 = vmatpush1.msra.mxu0 0.0
      %561 = vmatprep.subr.mxu0 0.0
      %562 = vmatpush1.msra.mxu0 0.0
      %563 = vmatprep.subr.mxu0 0.0
      %564 = vmatpush1.msra.mxu0 0.0
      %565 = vmatprep.mubr.f32.mxu0 0.0
      %566 = vmatmul.mubr.f32.gmra.mrb[0].mxu0 %v405
      %v567 = vpop.f32.mrb[0].mxu0
      %v568 = vadd.f32 0.0, %v567
      %v569 = vpop.f32.mrb[0].mxu0
      %v570 = vadd.f32 0.0, %v569
      %571 = vmatprep.mubr.f32.mxu0 0.0
      %572 = vmatmul.mubr.f32.gmra.mrb[0].mxu0 %v406
      %v573 = vpop.f32.mrb[0].mxu0
      %v574 = vadd.f32 0.0, %v573
      %v575 = vpop.f32.mrb[0].mxu0
      %v576 = vadd.f32 0.0, %v575
      %577 = vmatprep.mubr.f32.mxu0 0.0
      %578 = vmatmul.mubr.f32.gmra.mrb[0].mxu0 %v407
      %v579 = vpop.f32.mrb[0].mxu0
      %v580 = vadd.f32 0.0, %v579
      %v581 = vpop.f32.mrb[0].mxu0
      %v582 = vadd.f32 0.0, %v581
      %583 = vmatprep.mubr.f32.mxu0 0.0
      %584 = vmatmul.mubr.f32.gmra.mrb[0].mxu0 %v408
      %v585 = vpop.f32.mrb[0].mxu0
      %v586 = vadd.f32 0.0, %v585
      %v587 = vpop.f32.mrb[0].mxu0
      %v588 = vadd.f32 0.0, %v587
      %589 = vmatprep.mubr.f32.mxu0 0.0
      %590 = vmatmul.mubr.f32.gmra.mrb[0].mxu0 %v409
      %v591 = vpop.f32.mrb[0].mxu0
      %v592 = vadd.f32 0.0, %v591
      %v593 = vpop.f32.mrb[0].mxu0
      %v594 = vadd.f32 0.0, %v593
      %595 = vmatprep.mubr.f32.mxu0 0.0
      %596 = vmatmul.mubr.f32.gmra.mrb[0].mxu0 %v410
      %v597 = vpop.f32.mrb[0].mxu0
      %v598 = vadd.f32 0.0, %v597
      %v599 = vpop.f32.mrb[0].mxu0
      %v600 = vadd.f32 0.0, %v599
      %601 = vmatprep.mubr.f32.mxu0 0.0
      %602 = vmatmul.mubr.f32.gmra.mrb[0].mxu0 %v411
      %v603 = vpop.f32.mrb[0].mxu0
      %v604 = vadd.f32 0.0, %v603
      %v605 = vpop.f32.mrb[0].mxu0
      %v606 = vadd.f32 0.0, %v605
      %607 = vmatprep.mubr.f32.mxu0 0.0
      %608 = vmatmul.mubr.f32.gmra.mrb[0].mxu0 %v412
      %v609 = vpop.f32.mrb[0].mxu0
      %v610 = vadd.f32 0.0, %v609
      %v611 = vpop.f32.mrb[0].mxu0
      %v612 = vadd.f32 0.0, %v611
      %613 = vmatprep.mubr.f32.mxu0 0.0
      %614 = vmatmul.mubr.f32.gmra.mrb[0].mxu0 %v413
      %v615 = vpop.f32.mrb[0].mxu0
      %v616 = vadd.f32 0.0, %v615
      %v617 = vpop.f32.mrb[0].mxu0
      %v618 = vadd.f32 0.0, %v617
      %619 = vmatprep.mubr.f32.mxu0 0.0
      %620 = vmatmul.mubr.f32.gmra.mrb[0].mxu0 %v414
      %v621 = vpop.f32.mrb[0].mxu0
      %v622 = vadd.f32 0.0, %v621
      %v623 = vpop.f32.mrb[0].mxu0
      %v624 = vadd.f32 0.0, %v623
      %625 = vmatprep.mubr.f32.mxu0 0.0
      %626 = vmatmul.mubr.f32.gmra.mrb[0].mxu0 %v415
      %v627 = vpop.f32.mrb[0].mxu0
      %v628 = vadd.f32 0.0, %v627
      %v629 = vpop.f32.mrb[0].mxu0
      %v630 = vadd.f32 0.0, %v629
      %631 = vmatprep.mubr.f32.mxu0 0.0
      %632 = vmatmul.mubr.f32.gmra.mrb[0].mxu0 %v416
      %v633 = vpop.f32.mrb[0].mxu0
      %v634 = vadd.f32 0.0, %v633
      %v635 = vpop.f32.mrb[0].mxu0
      %v636 = vadd.f32 0.0, %v635
      %637 = vmatprep.mubr.f32.mxu0 0.0
      %638 = vmatmul.mubr.f32.gmra.mrb[0].mxu0 %v417
      %v639 = vpop.f32.mrb[0].mxu0
      %v640 = vadd.f32 0.0, %v639
      %v641 = vpop.f32.mrb[0].mxu0
      %v642 = vadd.f32 0.0, %v641
      %643 = vmatprep.mubr.f32.mxu0 0.0
      %644 = vmatmul.mubr.f32.gmra.mrb[0].mxu0 %v418
      %v645 = vpop.f32.mrb[0].mxu0
      %v646 = vadd.f32 0.0, %v645
      %v647 = vpop.f32.mrb[0].mxu0
      %v648 = vadd.f32 0.0, %v647
      %649 = vmatprep.mubr.f32.mxu0 0.0
      %650 = vmatmul.mubr.f32.gmra.mrb[0].mxu0 %v419
      %v651 = vpop.f32.mrb[0].mxu0
      %v652 = vadd.f32 0.0, %v651
      %v653 = vpop.f32.mrb[0].mxu0
      %v654 = vadd.f32 0.0, %v653
      %655 = vmatprep.mubr.f32.mxu0 0.0
      %656 = vmatmul.mubr.f32.gmra.mrb[0].mxu0 %v420
      %v657 = vpop.f32.mrb[0].mxu0
      %v658 = vadd.f32 0.0, %v657
      %v659 = vpop.f32.mrb[0].mxu0
      %v660 = vadd.f32 0.0, %v659
      %661 = vmatprep.mubr.f32.mxu0 0.0
      %662 = vmatmul.mubr.f32.gmra.mrb[0].mxu0 %v421
      %v663 = vpop.f32.mrb[0].mxu0
      %v664 = vadd.f32 0.0, %v663
      %v665 = vpop.f32.mrb[0].mxu0
      %v666 = vadd.f32 0.0, %v665
      %667 = vmatprep.mubr.f32.mxu0 0.0
      %668 = vmatmul.mubr.f32.gmra.mrb[0].mxu0 %v422
      %v669 = vpop.f32.mrb[0].mxu0
      %v670 = vadd.f32 0.0, %v669
      %v671 = vpop.f32.mrb[0].mxu0
      %v672 = vadd.f32 0.0, %v671
      %673 = vmatprep.mubr.f32.mxu0 0.0
      %674 = vmatmul.mubr.f32.gmra.mrb[0].mxu0 %v423
      %v675 = vpop.f32.mrb[0].mxu0
      %v676 = vadd.f32 0.0, %v675
      %v677 = vpop.f32.mrb[0].mxu0
      %v678 = vadd.f32 0.0, %v677
      %679 = vmatprep.mubr.f32.mxu0 0.0
      %680 = vmatmul.mubr.f32.gmra.mrb[0].mxu0 %v424
      %v681 = vpop.f32.mrb[0].mxu0
      %v682 = vadd.f32 0.0, %v681
      %v683 = vpop.f32.mrb[0].mxu0
      %v684 = vadd.f32 0.0, %v683
      %685 = vmatprep.mubr.f32.mxu0 0.0
      %686 = vmatmul.mubr.f32.gmra.mrb[0].mxu0 %v425
      %v687 = vpop.f32.mrb[0].mxu0
      %v688 = vadd.f32 0.0, %v687
      %v689 = vpop.f32.mrb[0].mxu0
      %v690 = vadd.f32 0.0, %v689
      %691 = vmatprep.mubr.f32.mxu0 0.0
      %692 = vmatmul.mubr.f32.gmra.mrb[0].mxu0 %v426
      %v693 = vpop.f32.mrb[0].mxu0
      %v694 = vadd.f32 0.0, %v693
      %v695 = vpop.f32.mrb[0].mxu0
      %v696 = vadd.f32 0.0, %v695
      %697 = vmatprep.mubr.f32.mxu0 0.0
      %698 = vmatmul.mubr.f32.gmra.mrb[0].mxu0 %v427
      %v699 = vpop.f32.mrb[0].mxu0
      %v700 = vadd.f32 0.0, %v699
      %v701 = vpop.f32.mrb[0].mxu0
      %v702 = vadd.f32 0.0, %v701
      %703 = vmatprep.mubr.f32.mxu0 0.0
      %704 = vmatmul.mubr.f32.gmra.mrb[0].mxu0 %v428
      %v705 = vpop.f32.mrb[0].mxu0
      %v706 = vadd.f32 0.0, %v705
      %v707 = vpop.f32.mrb[0].mxu0
      %v708 = vadd.f32 0.0, %v707
      %709 = vmatprep.mubr.f32.mxu0 0.0
      %710 = vmatmul.mubr.f32.gmra.mrb[0].mxu0 %v429
      %v711 = vpop.f32.mrb[0].mxu0
      %v712 = vadd.f32 0.0, %v711
      %v713 = vpop.f32.mrb[0].mxu0
      %v714 = vadd.f32 0.0, %v713
      %715 = vmatprep.mubr.f32.mxu0 0.0
      %716 = vmatmul.mubr.f32.gmra.mrb[0].mxu0 %v430
      %v717 = vpop.f32.mrb[0].mxu0
      %v718 = vadd.f32 0.0, %v717
      %v719 = vpop.f32.mrb[0].mxu0
      %v720 = vadd.f32 0.0, %v719
      %721 = vmatprep.mubr.f32.mxu0 0.0
      %722 = vmatmul.mubr.f32.gmra.mrb[0].mxu0 %v431
      %v723 = vpop.f32.mrb[0].mxu0
      %v724 = vadd.f32 0.0, %v723
      %v725 = vpop.f32.mrb[0].mxu0
      %v726 = vadd.f32 0.0, %v725
      %727 = vmatprep.mubr.f32.mxu0 0.0
      %728 = vmatmul.mubr.f32.gmra.mrb[0].mxu0 %v432
      %v729 = vpop.f32.mrb[0].mxu0
      %v730 = vadd.f32 0.0, %v729
      %v731 = vpop.f32.mrb[0].mxu0
      %v732 = vadd.f32 0.0, %v731
      %733 = vmatprep.mubr.f32.mxu0 0.0
      %734 = vmatmul.mubr.f32.gmra.mrb[0].mxu0 %v433
      %v735 = vpop.f32.mrb[0].mxu0
      %v736 = vadd.f32 0.0, %v735
      %v737 = vpop.f32.mrb[0].mxu0
      %v738 = vadd.f32 0.0, %v737
      %739 = vmatprep.mubr.f32.mxu0 0.0
      %740 = vmatmul.mubr.f32.gmra.mrb[0].mxu0 %v434
      %v741 = vpop.f32.mrb[0].mxu0
      %v742 = vadd.f32 0.0, %v741
      %v743 = vpop.f32.mrb[0].mxu0
      %v744 = vadd.f32 0.0, %v743
      %745 = vmatprep.mubr.f32.mxu0 0.0
      %746 = vmatmul.mubr.f32.gmra.mrb[0].mxu0 %v435
      %v747 = vpop.f32.mrb[0].mxu0
      %v748 = vadd.f32 0.0, %v747
      %v749 = vpop.f32.mrb[0].mxu0
      %v750 = vadd.f32 0.0, %v749
      %751 = vmatprep.mubr.f32.mxu0 0.0
      %752 = vmatmul.mubr.f32.gmra.mrb[0].mxu0 %v436
      %v753 = vpop.f32.mrb[0].mxu0
      %v754 = vadd.f32 0.0, %v753
      %v755 = vpop.f32.mrb[0].mxu0
      %v756 = vadd.f32 0.0, %v755
      %757 = vmatprep.mubr.f32.mxu0 0.0
      %758 = vmatmul.mubr.f32.gmra.mrb[0].mxu0 %v437
      %v759 = vpop.f32.mrb[0].mxu0
      %v760 = vadd.f32 0.0, %v759
      %v761 = vpop.f32.mrb[0].mxu0
      %v762 = vadd.f32 0.0, %v761
      %763 = vmatprep.mubr.f32.mxu0 0.0
      %764 = vmatmul.mubr.f32.gmra.mrb[0].mxu0 %v438
      %v765 = vpop.f32.mrb[0].mxu0
      %v766 = vadd.f32 0.0, %v765
      %v767 = vpop.f32.mrb[0].mxu0
      %v768 = vadd.f32 0.0, %v767
      %769 = vmatprep.mubr.f32.mxu0 0.0
      %770 = vmatmul.mubr.f32.gmra.mrb[0].mxu0 %v439
      %v771 = vpop.f32.mrb[0].mxu0
      %v772 = vadd.f32 0.0, %v771
      %v773 = vpop.f32.mrb[0].mxu0
      %v774 = vadd.f32 0.0, %v773
      %775 = vmatprep.mubr.f32.mxu0 0.0
      %776 = vmatmul.mubr.f32.gmra.mrb[0].mxu0 %v440
      %v777 = vpop.f32.mrb[0].mxu0
      %v778 = vadd.f32 0.0, %v777
      %v779 = vpop.f32.mrb[0].mxu0
      %v780 = vadd.f32 0.0, %v779
      %781 = vmatprep.mubr.f32.mxu0 0.0
      %782 = vmatmul.mubr.f32.gmra.mrb[0].mxu0 %v441
      %v783 = vpop.f32.mrb[0].mxu0
      %v784 = vadd.f32 0.0, %v783
      %v785 = vpop.f32.mrb[0].mxu0
      %v786 = vadd.f32 0.0, %v785
      %787 = vmatprep.mubr.f32.mxu0 0.0
      %788 = vmatmul.mubr.f32.gmra.mrb[0].mxu0 %v442
      %v789 = vpop.f32.mrb[0].mxu0
      %v790 = vadd.f32 0.0, %v789
      %v791 = vpop.f32.mrb[0].mxu0
      %v792 = vadd.f32 0.0, %v791
      %793 = vmatprep.mubr.f32.mxu0 0.0
      %794 = vmatmul.mubr.f32.gmra.mrb[0].mxu0 %v443
      %v795 = vpop.f32.mrb[0].mxu0
      %v796 = vadd.f32 0.0, %v795
      %v797 = vpop.f32.mrb[0].mxu0
      %v798 = vadd.f32 0.0, %v797
      %799 = vmatprep.mubr.f32.mxu0 0.0
      %800 = vmatmul.mubr.f32.gmra.mrb[0].mxu0 %v444
      %v801 = vpop.f32.mrb[0].mxu0
      %v802 = vadd.f32 0.0, %v801
      %v803 = vpop.f32.mrb[0].mxu0
      %v804 = vadd.f32 0.0, %v803
      %805 = vmatprep.mubr.f32.mxu0 0.0
      %806 = vmatmul.mubr.f32.gmra.mrb[0].mxu0 %v445
      %v807 = vpop.f32.mrb[0].mxu0
      %v808 = vadd.f32 0.0, %v807
      %v809 = vpop.f32.mrb[0].mxu0
      %v810 = vadd.f32 0.0, %v809
      %811 = vmatprep.mubr.f32.mxu0 0.0
      %812 = vmatmul.mubr.f32.gmra.mrb[0].mxu0 %v446
      %v813 = vpop.f32.mrb[0].mxu0
      %v814 = vadd.f32 0.0, %v813
      %v815 = vpop.f32.mrb[0].mxu0
      %v816 = vadd.f32 0.0, %v815
      %817 = vmatprep.mubr.f32.mxu0 0.0
      %818 = vmatmul.mubr.f32.gmra.mrb[0].mxu0 %v447
      %v819 = vpop.f32.mrb[0].mxu0
      %v820 = vadd.f32 0.0, %v819
      %v821 = vpop.f32.mrb[0].mxu0
      %v822 = vadd.f32 0.0, %v821
      %823 = vmatprep.mubr.f32.mxu0 0.0
      %824 = vmatmul.mubr.f32.gmra.mrb[0].mxu0 %v448
      %v825 = vpop.f32.mrb[0].mxu0
      %v826 = vadd.f32 0.0, %v825
      %v827 = vpop.f32.mrb[0].mxu0
      %v828 = vadd.f32 0.0, %v827
      %829 = vmatprep.mubr.f32.mxu0 0.0
      %830 = vmatmul.mubr.f32.gmra.mrb[0].mxu0 %v449
      %v831 = vpop.f32.mrb[0].mxu0
      %v832 = vadd.f32 0.0, %v831
      %v833 = vpop.f32.mrb[0].mxu0
      %v834 = vadd.f32 0.0, %v833
      %835 = vmatprep.mubr.f32.mxu0 0.0
      %836 = vmatmul.mubr.f32.gmra.mrb[0].mxu0 %v450
      %v837 = vpop.f32.mrb[0].mxu0
      %v838 = vadd.f32 0.0, %v837
      %v839 = vpop.f32.mrb[0].mxu0
      %v840 = vadd.f32 0.0, %v839
      %841 = vmatprep.mubr.f32.mxu0 0.0
      %842 = vmatmul.mubr.f32.gmra.mrb[0].mxu0 %v451
      %v843 = vpop.f32.mrb[0].mxu0
      %v844 = vadd.f32 0.0, %v843
      %v845 = vpop.f32.mrb[0].mxu0
      %v846 = vadd.f32 0.0, %v845
      %847 = vmatprep.mubr.f32.mxu0 0.0
      %848 = vmatmul.mubr.f32.gmra.mrb[0].mxu0 %v452
      %v849 = vpop.f32.mrb[0].mxu0
      %v850 = vadd.f32 0.0, %v849
      %v851 = vpop.f32.mrb[0].mxu0
      %v852 = vadd.f32 0.0, %v851
      %853 = vmatprep.mubr.f32.mxu0 0.0
      %854 = vmatmul.mubr.f32.gmra.mrb[0].mxu0 %v453
      %v855 = vpop.f32.mrb[0].mxu0
      %v856 = vadd.f32 0.0, %v855
      %v857 = vpop.f32.mrb[0].mxu0
      %v858 = vadd.f32 0.0, %v857
      %859 = vmatprep.mubr.f32.mxu0 0.0
      %860 = vmatmul.mubr.f32.gmra.mrb[0].mxu0 %v454
      %v861 = vpop.f32.mrb[0].mxu0
      %v862 = vadd.f32 0.0, %v861
      %v863 = vpop.f32.mrb[0].mxu0
      %v864 = vadd.f32 0.0, %v863
      %865 = vmatprep.mubr.f32.mxu0 0.0
      %866 = vmatmul.mubr.f32.gmra.mrb[0].mxu0 %v455
      %v867 = vpop.f32.mrb[0].mxu0
      %v868 = vadd.f32 0.0, %v867
      %v869 = vpop.f32.mrb[0].mxu0
      %v870 = vadd.f32 0.0, %v869
      %871 = vmatprep.mubr.f32.mxu0 0.0
      %872 = vmatmul.mubr.f32.gmra.mrb[0].mxu0 %v456
      %v873 = vpop.f32.mrb[0].mxu0
      %v874 = vadd.f32 0.0, %v873
      %v875 = vpop.f32.mrb[0].mxu0
      %v876 = vadd.f32 0.0, %v875
      %877 = vmatprep.mubr.f32.mxu0 0.0
      %878 = vmatmul.mubr.f32.gmra.mrb[0].mxu0 %v457
      %v879 = vpop.f32.mrb[0].mxu0
      %v880 = vadd.f32 0.0, %v879
      %v881 = vpop.f32.mrb[0].mxu0
      %v882 = vadd.f32 0.0, %v881
      %883 = vmatprep.mubr.f32.mxu0 0.0
      %884 = vmatmul.mubr.f32.gmra.mrb[0].mxu0 %v458
      %v885 = vpop.f32.mrb[0].mxu0
      %v886 = vadd.f32 0.0, %v885
      %v887 = vpop.f32.mrb[0].mxu0
      %v888 = vadd.f32 0.0, %v887
      %889 = vmatprep.mubr.f32.mxu0 0.0
      %890 = vmatmul.mubr.f32.gmra.mrb[0].mxu0 %v459
      %v891 = vpop.f32.mrb[0].mxu0
      %v892 = vadd.f32 0.0, %v891
      %v893 = vpop.f32.mrb[0].mxu0
      %v894 = vadd.f32 0.0, %v893
      %895 = vmatprep.mubr.f32.mxu0 0.0
      %896 = vmatmul.mubr.f32.gmra.mrb[0].mxu0 %v460
      %v897 = vpop.f32.mrb[0].mxu0
      %v898 = vadd.f32 0.0, %v897
      %v899 = vpop.f32.mrb[0].mxu0
      %v900 = vadd.f32 0.0, %v899
      %901 = vmatprep.mubr.f32.mxu0 0.0
      %902 = vmatmul.mubr.f32.gmra.mrb[0].mxu0 %v461
      %v903 = vpop.f32.mrb[0].mxu0
      %v904 = vadd.f32 0.0, %v903
      %v905 = vpop.f32.mrb[0].mxu0
      %v906 = vadd.f32 0.0, %v905
      %907 = vmatprep.mubr.f32.mxu0 0.0
      %908 = vmatmul.mubr.f32.gmra.mrb[0].mxu0 %v462
      %v909 = vpop.f32.mrb[0].mxu0
      %v910 = vadd.f32 0.0, %v909
      %v911 = vpop.f32.mrb[0].mxu0
      %v912 = vadd.f32 0.0, %v911
      %913 = vmatprep.mubr.f32.mxu0 0.0
      %914 = vmatmul.mubr.f32.gmra.mrb[0].mxu0 %v463
      %v915 = vpop.f32.mrb[0].mxu0
      %v916 = vadd.f32 0.0, %v915
      %v917 = vpop.f32.mrb[0].mxu0
      %v918 = vadd.f32 0.0, %v917
      %919 = vmatprep.mubr.f32.mxu0 0.0
      %920 = vmatmul.mubr.f32.gmra.mrb[0].mxu0 %v464
      %v921 = vpop.f32.mrb[0].mxu0
      %v922 = vadd.f32 0.0, %v921
      %v923 = vpop.f32.mrb[0].mxu0
      %v924 = vadd.f32 0.0, %v923
      %925 = vmatprep.mubr.f32.mxu0 0.0
      %926 = vmatmul.mubr.f32.gmra.mrb[0].mxu0 %v465
      %v927 = vpop.f32.mrb[0].mxu0
      %v928 = vadd.f32 0.0, %v927
      %v929 = vpop.f32.mrb[0].mxu0
      %v930 = vadd.f32 0.0, %v929
      %931 = vmatprep.mubr.f32.mxu0 0.0
      %932 = vmatmul.mubr.f32.gmra.mrb[0].mxu0 %v466
      %v933 = vpop.f32.mrb[0].mxu0
      %v934 = vadd.f32 0.0, %v933
      %v935 = vpop.f32.mrb[0].mxu0
      %v936 = vadd.f32 0.0, %v935
      %937 = vmatprep.mubr.f32.mxu0 0.0
      %938 = vmatmul.mubr.f32.gmra.mrb[0].mxu0 %v467
      %v939 = vpop.f32.mrb[0].mxu0
      %v940 = vadd.f32 0.0, %v939
      %v941 = vpop.f32.mrb[0].mxu0
      %v942 = vadd.f32 0.0, %v941
      %943 = vmatprep.mubr.f32.mxu0 0.0
      %944 = vmatmul.mubr.f32.gmra.mrb[0].mxu0 %v468
      %v945 = vpop.f32.mrb[0].mxu0
      %v946 = vadd.f32 0.0, %v945
      %v947 = vpop.f32.mrb[0].mxu0
      %v948 = vadd.f32 0.0, %v947
      %949 = vdwg.mxu0
      %950 = vxpose.xlu0.b32.start [1/16] %v568, 128
      %951 = vxpose.xlu0.b32.cont [2/16] %v574, 128
      %952 = vxpose.xlu0.b32.cont [3/16] %v580, 128
      %953 = vxpose.xlu0.b32.cont [4/16] %v586, 128
      %954 = vxpose.xlu0.b32.cont [5/16] %v592, 128
      %955 = vxpose.xlu0.b32.cont [6/16] %v598, 128
      %956 = vxpose.xlu0.b32.cont [7/16] %v604, 128
      %957 = vxpose.xlu0.b32.cont [8/16] %v610, 128
      %958 = vxpose.xlu0.b32.cont [9/16] %v616, 128
      %959 = vxpose.xlu0.b32.cont [10/16] %v622, 128
      %960 = vxpose.xlu0.b32.cont [11/16] %v628, 128
      %961 = vxpose.xlu0.b32.cont [12/16] %v634, 128
      %962 = vxpose.xlu0.b32.cont [13/16] %v640, 128
      %963 = vxpose.xlu0.b32.cont [14/16] %v646, 128
      %964 = vxpose.xlu0.b32.cont [15/16] %v652, 128
      %965 = vxpose.xlu0.b32.end [16/16] %v658, 128
      %v966 = vpop.trf.xlu0
      %v967 = vpop.trf.xlu0
      %v968 = vpop.trf.xlu0
      %v969 = vpop.trf.xlu0
      %v970 = vpop.trf.xlu0
      %v971 = vpop.trf.xlu0
      %v972 = vpop.trf.xlu0
      %v973 = vpop.trf.xlu0
      %v974 = vpop.trf.xlu0
      %v975 = vpop.trf.xlu0
      %v976 = vpop.trf.xlu0
      %v977 = vpop.trf.xlu0
      %v978 = vpop.trf.xlu0
      %v979 = vpop.trf.xlu0
      %v980 = vpop.trf.xlu0
      %v981 = vpop.trf.xlu0
      %982 = vxpose.xlu0.b32.start [1/16] %v664, 128
      %983 = vxpose.xlu0.b32.cont [2/16] %v670, 128
      %984 = vxpose.xlu0.b32.cont [3/16] %v676, 128
      %985 = vxpose.xlu0.b32.cont [4/16] %v682, 128
      %986 = vxpose.xlu0.b32.cont [5/16] %v688, 128
      %987 = vxpose.xlu0.b32.cont [6/16] %v694, 128
      %988 = vxpose.xlu0.b32.cont [7/16] %v700, 128
      %989 = vxpose.xlu0.b32.cont [8/16] %v706, 128
      %990 = vxpose.xlu0.b32.cont [9/16] %v712, 128
      %991 = vxpose.xlu0.b32.cont [10/16] %v718, 128
      %992 = vxpose.xlu0.b32.cont [11/16] %v724, 128
      %993 = vxpose.xlu0.b32.cont [12/16] %v730, 128
      %994 = vxpose.xlu0.b32.cont [13/16] %v736, 128
      %995 = vxpose.xlu0.b32.cont [14/16] %v742, 128
      %996 = vxpose.xlu0.b32.cont [15/16] %v748, 128
      %997 = vxpose.xlu0.b32.end [16/16] %v754, 128
      %v998 = vpop.trf.xlu0
      %v999 = vpop.trf.xlu0
      %v1000 = vpop.trf.xlu0
      %v1001 = vpop.trf.xlu0
      %v1002 = vpop.trf.xlu0
      %v1003 = vpop.trf.xlu0
      %v1004 = vpop.trf.xlu0
      %v1005 = vpop.trf.xlu0
      %v1006 = vpop.trf.xlu0
      %v1007 = vpop.trf.xlu0
      %v1008 = vpop.trf.xlu0
      %v1009 = vpop.trf.xlu0
      %v1010 = vpop.trf.xlu0
      %v1011 = vpop.trf.xlu0
      %v1012 = vpop.trf.xlu0
      %v1013 = vpop.trf.xlu0
      %1014 = vxpose.xlu0.b32.start [1/16] %v760, 128
      %1015 = vxpose.xlu0.b32.cont [2/16] %v766, 128
      %1016 = vxpose.xlu0.b32.cont [3/16] %v772, 128
      %1017 = vxpose.xlu0.b32.cont [4/16] %v778, 128
      %1018 = vxpose.xlu0.b32.cont [5/16] %v784, 128
      %1019 = vxpose.xlu0.b32.cont [6/16] %v790, 128
      %1020 = vxpose.xlu0.b32.cont [7/16] %v796, 128
      %1021 = vxpose.xlu0.b32.cont [8/16] %v802, 128
      %1022 = vxpose.xlu0.b32.cont [9/16] %v808, 128
      %1023 = vxpose.xlu0.b32.cont [10/16] %v814, 128
      %1024 = vxpose.xlu0.b32.cont [11/16] %v820, 128
      %1025 = vxpose.xlu0.b32.cont [12/16] %v826, 128
      %1026 = vxpose.xlu0.b32.cont [13/16] %v832, 128
      %1027 = vxpose.xlu0.b32.cont [14/16] %v838, 128
      %1028 = vxpose.xlu0.b32.cont [15/16] %v844, 128
      %1029 = vxpose.xlu0.b32.end [16/16] %v850, 128
      %v1030 = vpop.trf.xlu0
      %v1031 = vpop.trf.xlu0
      %v1032 = vpop.trf.xlu0
      %v1033 = vpop.trf.xlu0
      %v1034 = vpop.trf.xlu0
      %v1035 = vpop.trf.xlu0
      %v1036 = vpop.trf.xlu0
      %v1037 = vpop.trf.xlu0
      %v1038 = vpop.trf.xlu0
      %v1039 = vpop.trf.xlu0
      %v1040 = vpop.trf.xlu0
      %v1041 = vpop.trf.xlu0
      %v1042 = vpop.trf.xlu0
      %v1043 = vpop.trf.xlu0
      %v1044 = vpop.trf.xlu0
      %v1045 = vpop.trf.xlu0
      %1046 = vxpose.xlu0.b32.start [1/16] %v856, 128
      %1047 = vxpose.xlu0.b32.cont [2/16] %v862, 128
      %1048 = vxpose.xlu0.b32.cont [3/16] %v868, 128
      %1049 = vxpose.xlu0.b32.cont [4/16] %v874, 128
      %1050 = vxpose.xlu0.b32.cont [5/16] %v880, 128
      %1051 = vxpose.xlu0.b32.cont [6/16] %v886, 128
      %1052 = vxpose.xlu0.b32.cont [7/16] %v892, 128
      %1053 = vxpose.xlu0.b32.cont [8/16] %v898, 128
      %1054 = vxpose.xlu0.b32.cont [9/16] %v904, 128
      %1055 = vxpose.xlu0.b32.cont [10/16] %v910, 128
      %1056 = vxpose.xlu0.b32.cont [11/16] %v916, 128
      %1057 = vxpose.xlu0.b32.cont [12/16] %v922, 128
      %1058 = vxpose.xlu0.b32.cont [13/16] %v928, 128
      %1059 = vxpose.xlu0.b32.cont [14/16] %v934, 128
      %1060 = vxpose.xlu0.b32.cont [15/16] %v940, 128
      %1061 = vxpose.xlu0.b32.end [16/16] %v946, 128
      %v1062 = vpop.trf.xlu0
      %v1063 = vpop.trf.xlu0
      %v1064 = vpop.trf.xlu0
      %v1065 = vpop.trf.xlu0
      %v1066 = vpop.trf.xlu0
      %v1067 = vpop.trf.xlu0
      %v1068 = vpop.trf.xlu0
      %v1069 = vpop.trf.xlu0
      %v1070 = vpop.trf.xlu0
      %v1071 = vpop.trf.xlu0
      %v1072 = vpop.trf.xlu0
      %v1073 = vpop.trf.xlu0
      %v1074 = vpop.trf.xlu0
      %v1075 = vpop.trf.xlu0
      %v1076 = vpop.trf.xlu0
      %v1077 = vpop.trf.xlu0
      %1078 = vxpose.xlu0.b32.start [1/16] %v570, 128
      %1079 = vxpose.xlu0.b32.cont [2/16] %v576, 128
      %1080 = vxpose.xlu0.b32.cont [3/16] %v582, 128
      %1081 = vxpose.xlu0.b32.cont [4/16] %v588, 128
      %1082 = vxpose.xlu0.b32.cont [5/16] %v594, 128
      %1083 = vxpose.xlu0.b32.cont [6/16] %v600, 128
      %1084 = vxpose.xlu0.b32.cont [7/16] %v606, 128
      %1085 = vxpose.xlu0.b32.cont [8/16] %v612, 128
      %1086 = vxpose.xlu0.b32.cont [9/16] %v618, 128
      %1087 = vxpose.xlu0.b32.cont [10/16] %v624, 128
      %1088 = vxpose.xlu0.b32.cont [11/16] %v630, 128
      %1089 = vxpose.xlu0.b32.cont [12/16] %v636, 128
      %1090 = vxpose.xlu0.b32.cont [13/16] %v642, 128
      %1091 = vxpose.xlu0.b32.cont [14/16] %v648, 128
      %1092 = vxpose.xlu0.b32.cont [15/16] %v654, 128
      %1093 = vxpose.xlu0.b32.end [16/16] %v660, 128
      %v1094 = vpop.trf.xlu0
      %v1095 = vpop.trf.xlu0
      %v1096 = vpop.trf.xlu0
      %v1097 = vpop.trf.xlu0
      %v1098 = vpop.trf.xlu0
      %v1099 = vpop.trf.xlu0
      %v1100 = vpop.trf.xlu0
      %v1101 = vpop.trf.xlu0
      %v1102 = vpop.trf.xlu0
      %v1103 = vpop.trf.xlu0
      %v1104 = vpop.trf.xlu0
      %v1105 = vpop.trf.xlu0
      %v1106 = vpop.trf.xlu0
      %v1107 = vpop.trf.xlu0
      %v1108 = vpop.trf.xlu0
      %v1109 = vpop.trf.xlu0
      %1110 = vxpose.xlu0.b32.start [1/16] %v666, 128
      %1111 = vxpose.xlu0.b32.cont [2/16] %v672, 128
      %1112 = vxpose.xlu0.b32.cont [3/16] %v678, 128
      %1113 = vxpose.xlu0.b32.cont [4/16] %v684, 128
      %1114 = vxpose.xlu0.b32.cont [5/16] %v690, 128
      %1115 = vxpose.xlu0.b32.cont [6/16] %v696, 128
      %1116 = vxpose.xlu0.b32.cont [7/16] %v702, 128
      %1117 = vxpose.xlu0.b32.cont [8/16] %v708, 128
      %1118 = vxpose.xlu0.b32.cont [9/16] %v714, 128
      %1119 = vxpose.xlu0.b32.cont [10/16] %v720, 128
      %1120 = vxpose.xlu0.b32.cont [11/16] %v726, 128
      %1121 = vxpose.xlu0.b32.cont [12/16] %v732, 128
      %1122 = vxpose.xlu0.b32.cont [13/16] %v738, 128
      %1123 = vxpose.xlu0.b32.cont [14/16] %v744, 128
      %1124 = vxpose.xlu0.b32.cont [15/16] %v750, 128
      %1125 = vxpose.xlu0.b32.end [16/16] %v756, 128
      %v1126 = vpop.trf.xlu0
      %v1127 = vpop.trf.xlu0
      %v1128 = vpop.trf.xlu0
      %v1129 = vpop.trf.xlu0
      %v1130 = vpop.trf.xlu0
      %v1131 = vpop.trf.xlu0
      %v1132 = vpop.trf.xlu0
      %v1133 = vpop.trf.xlu0
      %v1134 = vpop.trf.xlu0
      %v1135 = vpop.trf.xlu0
      %v1136 = vpop.trf.xlu0
      %v1137 = vpop.trf.xlu0
      %v1138 = vpop.trf.xlu0
      %v1139 = vpop.trf.xlu0
      %v1140 = vpop.trf.xlu0
      %v1141 = vpop.trf.xlu0
      %1142 = vxpose.xlu0.b32.start [1/16] %v762, 128
      %1143 = vxpose.xlu0.b32.cont [2/16] %v768, 128
      %1144 = vxpose.xlu0.b32.cont [3/16] %v774, 128
      %1145 = vxpose.xlu0.b32.cont [4/16] %v780, 128
      %1146 = vxpose.xlu0.b32.cont [5/16] %v786, 128
      %1147 = vxpose.xlu0.b32.cont [6/16] %v792, 128
      %1148 = vxpose.xlu0.b32.cont [7/16] %v798, 128
      %1149 = vxpose.xlu0.b32.cont [8/16] %v804, 128
      %1150 = vxpose.xlu0.b32.cont [9/16] %v810, 128
      %1151 = vxpose.xlu0.b32.cont [10/16] %v816, 128
      %1152 = vxpose.xlu0.b32.cont [11/16] %v822, 128
      %1153 = vxpose.xlu0.b32.cont [12/16] %v828, 128
      %1154 = vxpose.xlu0.b32.cont [13/16] %v834, 128
      %1155 = vxpose.xlu0.b32.cont [14/16] %v840, 128
      %1156 = vxpose.xlu0.b32.cont [15/16] %v846, 128
      %1157 = vxpose.xlu0.b32.end [16/16] %v852, 128
      %v1158 = vpop.trf.xlu0
      %v1159 = vpop.trf.xlu0
      %v1160 = vpop.trf.xlu0
      %v1161 = vpop.trf.xlu0
      %v1162 = vpop.trf.xlu0
      %v1163 = vpop.trf.xlu0
      %v1164 = vpop.trf.xlu0
      %v1165 = vpop.trf.xlu0
      %v1166 = vpop.trf.xlu0
      %v1167 = vpop.trf.xlu0
      %v1168 = vpop.trf.xlu0
      %v1169 = vpop.trf.xlu0
      %v1170 = vpop.trf.xlu0
      %v1171 = vpop.trf.xlu0
      %v1172 = vpop.trf.xlu0
      %v1173 = vpop.trf.xlu0
      %1174 = vxpose.xlu0.b32.start [1/16] %v858, 128
      %1175 = vxpose.xlu0.b32.cont [2/16] %v864, 128
      %1176 = vxpose.xlu0.b32.cont [3/16] %v870, 128
      %1177 = vxpose.xlu0.b32.cont [4/16] %v876, 128
      %1178 = vxpose.xlu0.b32.cont [5/16] %v882, 128
      %1179 = vxpose.xlu0.b32.cont [6/16] %v888, 128
      %1180 = vxpose.xlu0.b32.cont [7/16] %v894, 128
      %1181 = vxpose.xlu0.b32.cont [8/16] %v900, 128
      %1182 = vxpose.xlu0.b32.cont [9/16] %v906, 128
      %1183 = vxpose.xlu0.b32.cont [10/16] %v912, 128
      %1184 = vxpose.xlu0.b32.cont [11/16] %v918, 128
      %1185 = vxpose.xlu0.b32.cont [12/16] %v924, 128
      %1186 = vxpose.xlu0.b32.cont [13/16] %v930, 128
      %1187 = vxpose.xlu0.b32.cont [14/16] %v936, 128
      %1188 = vxpose.xlu0.b32.cont [15/16] %v942, 128
      %1189 = vxpose.xlu0.b32.end [16/16] %v948, 128
      %v1190 = vpop.trf.xlu0
      %v1191 = vpop.trf.xlu0
      %v1192 = vpop.trf.xlu0
      %v1193 = vpop.trf.xlu0
      %v1194 = vpop.trf.xlu0
      %v1195 = vpop.trf.xlu0
      %v1196 = vpop.trf.xlu0
      %v1197 = vpop.trf.xlu0
      %v1198 = vpop.trf.xlu0
      %v1199 = vpop.trf.xlu0
      %v1200 = vpop.trf.xlu0
      %v1201 = vpop.trf.xlu0
      %v1202 = vpop.trf.xlu0
      %v1203 = vpop.trf.xlu0
      %v1204 = vpop.trf.xlu0
      %v1205 = vpop.trf.xlu0
      %1206 = vmatprep.subr.mxu0 0.0
      %1207 = vmatpush1.msra.mxu0 %v309
      %1208 = vmatprep.subr.mxu0 0.0
      %1209 = vmatpush1.msra.mxu0 %v310
      %1210 = vmatprep.subr.mxu0 0.0
      %1211 = vmatpush1.msra.mxu0 %v311
      %1212 = vmatprep.subr.mxu0 0.0
      %1213 = vmatpush1.msra.mxu0 %v312
      %1214 = vmatprep.subr.mxu0 0.0
      %1215 = vmatpush1.msra.mxu0 %v313
      %1216 = vmatprep.subr.mxu0 0.0
      %1217 = vmatpush1.msra.mxu0 %v314
      %1218 = vmatprep.subr.mxu0 0.0
      %1219 = vmatpush1.msra.mxu0 %v315
      %1220 = vmatprep.subr.mxu0 0.0
      %1221 = vmatpush1.msra.mxu0 %v316
      %1222 = vmatprep.subr.mxu0 0.0
      %1223 = vmatpush1.msra.mxu0 %v317
      %1224 = vmatprep.subr.mxu0 0.0
      %1225 = vmatpush1.msra.mxu0 %v318
      %1226 = vmatprep.subr.mxu0 0.0
      %1227 = vmatpush1.msra.mxu0 %v319
      %1228 = vmatprep.subr.mxu0 0.0
      %1229 = vmatpush1.msra.mxu0 %v320
      %1230 = vmatprep.subr.mxu0 0.0
      %1231 = vmatpush1.msra.mxu0 %v321
      %1232 = vmatprep.subr.mxu0 0.0
      %1233 = vmatpush1.msra.mxu0 %v322
      %1234 = vmatprep.subr.mxu0 0.0
      %1235 = vmatpush1.msra.mxu0 %v323
      %1236 = vmatprep.subr.mxu0 0.0
      %1237 = vmatpush1.msra.mxu0 %v324
      %1238 = vmatprep.subr.mxu0 0.0
      %1239 = vmatpush1.msra.mxu0 0.0
      %1240 = vmatprep.subr.mxu0 0.0
      %1241 = vmatpush1.msra.mxu0 0.0
      %1242 = vmatprep.subr.mxu0 0.0
      %1243 = vmatpush1.msra.mxu0 0.0
      %1244 = vmatprep.subr.mxu0 0.0
      %1245 = vmatpush1.msra.mxu0 0.0
      %1246 = vmatprep.subr.mxu0 0.0
      %1247 = vmatpush1.msra.mxu0 0.0
      %1248 = vmatprep.subr.mxu0 0.0
      %1249 = vmatpush1.msra.mxu0 0.0
      %1250 = vmatprep.subr.mxu0 0.0
      %1251 = vmatpush1.msra.mxu0 0.0
      %1252 = vmatprep.subr.mxu0 0.0
      %1253 = vmatpush1.msra.mxu0 0.0
      %1254 = vmatprep.subr.mxu0 0.0
      %1255 = vmatpush1.msra.mxu0 0.0
      %1256 = vmatprep.subr.mxu0 0.0
      %1257 = vmatpush1.msra.mxu0 0.0
      %1258 = vmatprep.subr.mxu0 0.0
      %1259 = vmatpush1.msra.mxu0 0.0
      %1260 = vmatprep.subr.mxu0 0.0
      %1261 = vmatpush1.msra.mxu0 0.0
      %1262 = vmatprep.subr.mxu0 0.0
      %1263 = vmatpush1.msra.mxu0 0.0
      %1264 = vmatprep.subr.mxu0 0.0
      %1265 = vmatpush1.msra.mxu0 0.0
      %1266 = vmatprep.subr.mxu0 0.0
      %1267 = vmatpush1.msra.mxu0 0.0
      %1268 = vmatprep.subr.mxu0 0.0
      %1269 = vmatpush1.msra.mxu0 0.0
      %1270 = vmatprep.mubr.f32.mxu0 0.0
      %1271 = vmatmul.mubr.f32.gmra.mrb[0].mxu0 %v966
      %v1272 = vpop.f32.mrb[0].mxu0
      %v1273 = vadd.f32 0.0, %v1272
      %v1274 = vpop.f32.mrb[0].mxu0
      %1275 = vmatprep.mubr.f32.mxu0 0.0
      %1276 = vmatmul.mubr.f32.gmra.mrb[0].mxu0 %v967
      %v1277 = vpop.f32.mrb[0].mxu0
      %v1278 = vadd.f32 0.0, %v1277
      %v1279 = vpop.f32.mrb[0].mxu0
      %1280 = vmatprep.mubr.f32.mxu0 0.0
      %1281 = vmatmul.mubr.f32.gmra.mrb[0].mxu0 %v968
      %v1282 = vpop.f32.mrb[0].mxu0
      %v1283 = vadd.f32 0.0, %v1282
      %v1284 = vpop.f32.mrb[0].mxu0
      %1285 = vmatprep.mubr.f32.mxu0 0.0
      %1286 = vmatmul.mubr.f32.gmra.mrb[0].mxu0 %v969
      %v1287 = vpop.f32.mrb[0].mxu0
      %v1288 = vadd.f32 0.0, %v1287
      %v1289 = vpop.f32.mrb[0].mxu0
      %1290 = vmatprep.mubr.f32.mxu0 0.0
      %1291 = vmatmul.mubr.f32.gmra.mrb[0].mxu0 %v970
      %v1292 = vpop.f32.mrb[0].mxu0
      %v1293 = vadd.f32 0.0, %v1292
      %v1294 = vpop.f32.mrb[0].mxu0
      %1295 = vmatprep.mubr.f32.mxu0 0.0
      %1296 = vmatmul.mubr.f32.gmra.mrb[0].mxu0 %v971
      %v1297 = vpop.f32.mrb[0].mxu0
      %v1298 = vadd.f32 0.0, %v1297
      %v1299 = vpop.f32.mrb[0].mxu0
      %1300 = vmatprep.mubr.f32.mxu0 0.0
      %1301 = vmatmul.mubr.f32.gmra.mrb[0].mxu0 %v972
      %v1302 = vpop.f32.mrb[0].mxu0
      %v1303 = vadd.f32 0.0, %v1302
      %v1304 = vpop.f32.mrb[0].mxu0
      %1305 = vmatprep.mubr.f32.mxu0 0.0
      %1306 = vmatmul.mubr.f32.gmra.mrb[0].mxu0 %v973
      %v1307 = vpop.f32.mrb[0].mxu0
      %v1308 = vadd.f32 0.0, %v1307
      %v1309 = vpop.f32.mrb[0].mxu0
      %1310 = vmatprep.mubr.f32.mxu0 0.0
      %1311 = vmatmul.mubr.f32.gmra.mrb[0].mxu0 %v974
      %v1312 = vpop.f32.mrb[0].mxu0
      %v1313 = vadd.f32 0.0, %v1312
      %v1314 = vpop.f32.mrb[0].mxu0
      %1315 = vmatprep.mubr.f32.mxu0 0.0
      %1316 = vmatmul.mubr.f32.gmra.mrb[0].mxu0 %v975
      %v1317 = vpop.f32.mrb[0].mxu0
      %v1318 = vadd.f32 0.0, %v1317
      %v1319 = vpop.f32.mrb[0].mxu0
      %1320 = vmatprep.mubr.f32.mxu0 0.0
      %1321 = vmatmul.mubr.f32.gmra.mrb[0].mxu0 %v976
      %v1322 = vpop.f32.mrb[0].mxu0
      %v1323 = vadd.f32 0.0, %v1322
      %v1324 = vpop.f32.mrb[0].mxu0
      %1325 = vmatprep.mubr.f32.mxu0 0.0
      %1326 = vmatmul.mubr.f32.gmra.mrb[0].mxu0 %v977
      %v1327 = vpop.f32.mrb[0].mxu0
      %v1328 = vadd.f32 0.0, %v1327
      %v1329 = vpop.f32.mrb[0].mxu0
      %1330 = vmatprep.mubr.f32.mxu0 0.0
      %1331 = vmatmul.mubr.f32.gmra.mrb[0].mxu0 %v978
      %v1332 = vpop.f32.mrb[0].mxu0
      %v1333 = vadd.f32 0.0, %v1332
      %v1334 = vpop.f32.mrb[0].mxu0
      %1335 = vmatprep.mubr.f32.mxu0 0.0
      %1336 = vmatmul.mubr.f32.gmra.mrb[0].mxu0 %v979
      %v1337 = vpop.f32.mrb[0].mxu0
      %v1338 = vadd.f32 0.0, %v1337
      %v1339 = vpop.f32.mrb[0].mxu0
      %1340 = vmatprep.mubr.f32.mxu0 0.0
      %1341 = vmatmul.mubr.f32.gmra.mrb[0].mxu0 %v980
      %v1342 = vpop.f32.mrb[0].mxu0
      %v1343 = vadd.f32 0.0, %v1342
      %v1344 = vpop.f32.mrb[0].mxu0
      %1345 = vmatprep.mubr.f32.mxu0 0.0
      %1346 = vmatmul.mubr.f32.gmra.mrb[0].mxu0 %v981
      %v1347 = vpop.f32.mrb[0].mxu0
      %v1348 = vadd.f32 0.0, %v1347
      %v1349 = vpop.f32.mrb[0].mxu0
      %1350 = vmatprep.mubr.f32.mxu0 0.0
      %1351 = vmatmul.mubr.f32.gmra.mrb[0].mxu0 %v998
      %v1352 = vpop.f32.mrb[0].mxu0
      %v1353 = vadd.f32 0.0, %v1352
      %v1354 = vpop.f32.mrb[0].mxu0
      %1355 = vmatprep.mubr.f32.mxu0 0.0
      %1356 = vmatmul.mubr.f32.gmra.mrb[0].mxu0 %v999
      %v1357 = vpop.f32.mrb[0].mxu0
      %v1358 = vadd.f32 0.0, %v1357
      %v1359 = vpop.f32.mrb[0].mxu0
      %1360 = vmatprep.mubr.f32.mxu0 0.0
      %1361 = vmatmul.mubr.f32.gmra.mrb[0].mxu0 %v1000
      %v1362 = vpop.f32.mrb[0].mxu0
      %v1363 = vadd.f32 0.0, %v1362
      %v1364 = vpop.f32.mrb[0].mxu0
      %1365 = vmatprep.mubr.f32.mxu0 0.0
      %1366 = vmatmul.mubr.f32.gmra.mrb[0].mxu0 %v1001
      %v1367 = vpop.f32.mrb[0].mxu0
      %v1368 = vadd.f32 0.0, %v1367
      %v1369 = vpop.f32.mrb[0].mxu0
      %1370 = vmatprep.mubr.f32.mxu0 0.0
      %1371 = vmatmul.mubr.f32.gmra.mrb[0].mxu0 %v1002
      %v1372 = vpop.f32.mrb[0].mxu0
      %v1373 = vadd.f32 0.0, %v1372
      %v1374 = vpop.f32.mrb[0].mxu0
      %1375 = vmatprep.mubr.f32.mxu0 0.0
      %1376 = vmatmul.mubr.f32.gmra.mrb[0].mxu0 %v1003
      %v1377 = vpop.f32.mrb[0].mxu0
      %v1378 = vadd.f32 0.0, %v1377
      %v1379 = vpop.f32.mrb[0].mxu0
      %1380 = vmatprep.mubr.f32.mxu0 0.0
      %1381 = vmatmul.mubr.f32.gmra.mrb[0].mxu0 %v1004
      %v1382 = vpop.f32.mrb[0].mxu0
      %v1383 = vadd.f32 0.0, %v1382
      %v1384 = vpop.f32.mrb[0].mxu0
      %1385 = vmatprep.mubr.f32.mxu0 0.0
      %1386 = vmatmul.mubr.f32.gmra.mrb[0].mxu0 %v1005
      %v1387 = vpop.f32.mrb[0].mxu0
      %v1388 = vadd.f32 0.0, %v1387
      %v1389 = vpop.f32.mrb[0].mxu0
      %1390 = vmatprep.mubr.f32.mxu0 0.0
      %1391 = vmatmul.mubr.f32.gmra.mrb[0].mxu0 %v1006
      %v1392 = vpop.f32.mrb[0].mxu0
      %v1393 = vadd.f32 0.0, %v1392
      %v1394 = vpop.f32.mrb[0].mxu0
      %1395 = vmatprep.mubr.f32.mxu0 0.0
      %1396 = vmatmul.mubr.f32.gmra.mrb[0].mxu0 %v1007
      %v1397 = vpop.f32.mrb[0].mxu0
      %v1398 = vadd.f32 0.0, %v1397
      %v1399 = vpop.f32.mrb[0].mxu0
      %1400 = vmatprep.mubr.f32.mxu0 0.0
      %1401 = vmatmul.mubr.f32.gmra.mrb[0].mxu0 %v1008
      %v1402 = vpop.f32.mrb[0].mxu0
      %v1403 = vadd.f32 0.0, %v1402
      %v1404 = vpop.f32.mrb[0].mxu0
      %1405 = vmatprep.mubr.f32.mxu0 0.0
      %1406 = vmatmul.mubr.f32.gmra.mrb[0].mxu0 %v1009
      %v1407 = vpop.f32.mrb[0].mxu0
      %v1408 = vadd.f32 0.0, %v1407
      %v1409 = vpop.f32.mrb[0].mxu0
      %1410 = vmatprep.mubr.f32.mxu0 0.0
      %1411 = vmatmul.mubr.f32.gmra.mrb[0].mxu0 %v1010
      %v1412 = vpop.f32.mrb[0].mxu0
      %v1413 = vadd.f32 0.0, %v1412
      %v1414 = vpop.f32.mrb[0].mxu0
      %1415 = vmatprep.mubr.f32.mxu0 0.0
      %1416 = vmatmul.mubr.f32.gmra.mrb[0].mxu0 %v1011
      %v1417 = vpop.f32.mrb[0].mxu0
      %v1418 = vadd.f32 0.0, %v1417
      %v1419 = vpop.f32.mrb[0].mxu0
      %1420 = vmatprep.mubr.f32.mxu0 0.0
      %1421 = vmatmul.mubr.f32.gmra.mrb[0].mxu0 %v1012
      %v1422 = vpop.f32.mrb[0].mxu0
      %v1423 = vadd.f32 0.0, %v1422
      %v1424 = vpop.f32.mrb[0].mxu0
      %1425 = vmatprep.mubr.f32.mxu0 0.0
      %1426 = vmatmul.mubr.f32.gmra.mrb[0].mxu0 %v1013
      %v1427 = vpop.f32.mrb[0].mxu0
      %v1428 = vadd.f32 0.0, %v1427
      %v1429 = vpop.f32.mrb[0].mxu0
      %1430 = vmatprep.mubr.f32.mxu0 0.0
      %1431 = vmatmul.mubr.f32.gmra.mrb[0].mxu0 %v1030
      %v1432 = vpop.f32.mrb[0].mxu0
      %v1433 = vadd.f32 0.0, %v1432
      %v1434 = vpop.f32.mrb[0].mxu0
      %1435 = vmatprep.mubr.f32.mxu0 0.0
      %1436 = vmatmul.mubr.f32.gmra.mrb[0].mxu0 %v1031
      %v1437 = vpop.f32.mrb[0].mxu0
      %v1438 = vadd.f32 0.0, %v1437
      %v1439 = vpop.f32.mrb[0].mxu0
      %1440 = vmatprep.mubr.f32.mxu0 0.0
      %1441 = vmatmul.mubr.f32.gmra.mrb[0].mxu0 %v1032
      %v1442 = vpop.f32.mrb[0].mxu0
      %v1443 = vadd.f32 0.0, %v1442
      %v1444 = vpop.f32.mrb[0].mxu0
      %1445 = vmatprep.mubr.f32.mxu0 0.0
      %1446 = vmatmul.mubr.f32.gmra.mrb[0].mxu0 %v1033
      %v1447 = vpop.f32.mrb[0].mxu0
      %v1448 = vadd.f32 0.0, %v1447
      %v1449 = vpop.f32.mrb[0].mxu0
      %1450 = vmatprep.mubr.f32.mxu0 0.0
      %1451 = vmatmul.mubr.f32.gmra.mrb[0].mxu0 %v1034
      %v1452 = vpop.f32.mrb[0].mxu0
      %v1453 = vadd.f32 0.0, %v1452
      %v1454 = vpop.f32.mrb[0].mxu0
      %1455 = vmatprep.mubr.f32.mxu0 0.0
      %1456 = vmatmul.mubr.f32.gmra.mrb[0].mxu0 %v1035
      %v1457 = vpop.f32.mrb[0].mxu0
      %v1458 = vadd.f32 0.0, %v1457
      %v1459 = vpop.f32.mrb[0].mxu0
      %1460 = vmatprep.mubr.f32.mxu0 0.0
      %1461 = vmatmul.mubr.f32.gmra.mrb[0].mxu0 %v1036
      %v1462 = vpop.f32.mrb[0].mxu0
      %v1463 = vadd.f32 0.0, %v1462
      %v1464 = vpop.f32.mrb[0].mxu0
      %1465 = vmatprep.mubr.f32.mxu0 0.0
      %1466 = vmatmul.mubr.f32.gmra.mrb[0].mxu0 %v1037
      %v1467 = vpop.f32.mrb[0].mxu0
      %v1468 = vadd.f32 0.0, %v1467
      %v1469 = vpop.f32.mrb[0].mxu0
      %1470 = vmatprep.mubr.f32.mxu0 0.0
      %1471 = vmatmul.mubr.f32.gmra.mrb[0].mxu0 %v1038
      %v1472 = vpop.f32.mrb[0].mxu0
      %v1473 = vadd.f32 0.0, %v1472
      %v1474 = vpop.f32.mrb[0].mxu0
      %1475 = vmatprep.mubr.f32.mxu0 0.0
      %1476 = vmatmul.mubr.f32.gmra.mrb[0].mxu0 %v1039
      %v1477 = vpop.f32.mrb[0].mxu0
      %v1478 = vadd.f32 0.0, %v1477
      %v1479 = vpop.f32.mrb[0].mxu0
      %1480 = vmatprep.mubr.f32.mxu0 0.0
      %1481 = vmatmul.mubr.f32.gmra.mrb[0].mxu0 %v1040
      %v1482 = vpop.f32.mrb[0].mxu0
      %v1483 = vadd.f32 0.0, %v1482
      %v1484 = vpop.f32.mrb[0].mxu0
      %1485 = vmatprep.mubr.f32.mxu0 0.0
      %1486 = vmatmul.mubr.f32.gmra.mrb[0].mxu0 %v1041
      %v1487 = vpop.f32.mrb[0].mxu0
      %v1488 = vadd.f32 0.0, %v1487
      %v1489 = vpop.f32.mrb[0].mxu0
      %1490 = vmatprep.mubr.f32.mxu0 0.0
      %1491 = vmatmul.mubr.f32.gmra.mrb[0].mxu0 %v1042
      %v1492 = vpop.f32.mrb[0].mxu0
      %v1493 = vadd.f32 0.0, %v1492
      %v1494 = vpop.f32.mrb[0].mxu0
      %1495 = vmatprep.mubr.f32.mxu0 0.0
      %1496 = vmatmul.mubr.f32.gmra.mrb[0].mxu0 %v1043
      %v1497 = vpop.f32.mrb[0].mxu0
      %v1498 = vadd.f32 0.0, %v1497
      %v1499 = vpop.f32.mrb[0].mxu0
      %1500 = vmatprep.mubr.f32.mxu0 0.0
      %1501 = vmatmul.mubr.f32.gmra.mrb[0].mxu0 %v1044
      %v1502 = vpop.f32.mrb[0].mxu0
      %v1503 = vadd.f32 0.0, %v1502
      %v1504 = vpop.f32.mrb[0].mxu0
      %1505 = vmatprep.mubr.f32.mxu0 0.0
      %1506 = vmatmul.mubr.f32.gmra.mrb[0].mxu0 %v1045
      %v1507 = vpop.f32.mrb[0].mxu0
      %v1508 = vadd.f32 0.0, %v1507
      %v1509 = vpop.f32.mrb[0].mxu0
      %1510 = vmatprep.mubr.f32.mxu0 0.0
      %1511 = vmatmul.mubr.f32.gmra.mrb[0].mxu0 %v1062
      %v1512 = vpop.f32.mrb[0].mxu0
      %v1513 = vadd.f32 0.0, %v1512
      %v1514 = vpop.f32.mrb[0].mxu0
      %1515 = vmatprep.mubr.f32.mxu0 0.0
      %1516 = vmatmul.mubr.f32.gmra.mrb[0].mxu0 %v1063
      %v1517 = vpop.f32.mrb[0].mxu0
      %v1518 = vadd.f32 0.0, %v1517
      %v1519 = vpop.f32.mrb[0].mxu0
      %1520 = vmatprep.mubr.f32.mxu0 0.0
      %1521 = vmatmul.mubr.f32.gmra.mrb[0].mxu0 %v1064
      %v1522 = vpop.f32.mrb[0].mxu0
      %v1523 = vadd.f32 0.0, %v1522
      %v1524 = vpop.f32.mrb[0].mxu0
      %1525 = vmatprep.mubr.f32.mxu0 0.0
      %1526 = vmatmul.mubr.f32.gmra.mrb[0].mxu0 %v1065
      %v1527 = vpop.f32.mrb[0].mxu0
      %v1528 = vadd.f32 0.0, %v1527
      %v1529 = vpop.f32.mrb[0].mxu0
      %1530 = vmatprep.mubr.f32.mxu0 0.0
      %1531 = vmatmul.mubr.f32.gmra.mrb[0].mxu0 %v1066
      %v1532 = vpop.f32.mrb[0].mxu0
      %v1533 = vadd.f32 0.0, %v1532
      %v1534 = vpop.f32.mrb[0].mxu0
      %1535 = vmatprep.mubr.f32.mxu0 0.0
      %1536 = vmatmul.mubr.f32.gmra.mrb[0].mxu0 %v1067
      %v1537 = vpop.f32.mrb[0].mxu0
      %v1538 = vadd.f32 0.0, %v1537
      %v1539 = vpop.f32.mrb[0].mxu0
      %1540 = vmatprep.mubr.f32.mxu0 0.0
      %1541 = vmatmul.mubr.f32.gmra.mrb[0].mxu0 %v1068
      %v1542 = vpop.f32.mrb[0].mxu0
      %v1543 = vadd.f32 0.0, %v1542
      %v1544 = vpop.f32.mrb[0].mxu0
      %1545 = vmatprep.mubr.f32.mxu0 0.0
      %1546 = vmatmul.mubr.f32.gmra.mrb[0].mxu0 %v1069
      %v1547 = vpop.f32.mrb[0].mxu0
      %v1548 = vadd.f32 0.0, %v1547
      %v1549 = vpop.f32.mrb[0].mxu0
      %1550 = vmatprep.mubr.f32.mxu0 0.0
      %1551 = vmatmul.mubr.f32.gmra.mrb[0].mxu0 %v1070
      %v1552 = vpop.f32.mrb[0].mxu0
      %v1553 = vadd.f32 0.0, %v1552
      %v1554 = vpop.f32.mrb[0].mxu0
      %1555 = vmatprep.mubr.f32.mxu0 0.0
      %1556 = vmatmul.mubr.f32.gmra.mrb[0].mxu0 %v1071
      %v1557 = vpop.f32.mrb[0].mxu0
      %v1558 = vadd.f32 0.0, %v1557
      %v1559 = vpop.f32.mrb[0].mxu0
      %1560 = vmatprep.mubr.f32.mxu0 0.0
      %1561 = vmatmul.mubr.f32.gmra.mrb[0].mxu0 %v1072
      %v1562 = vpop.f32.mrb[0].mxu0
      %v1563 = vadd.f32 0.0, %v1562
      %v1564 = vpop.f32.mrb[0].mxu0
      %1565 = vmatprep.mubr.f32.mxu0 0.0
      %1566 = vmatmul.mubr.f32.gmra.mrb[0].mxu0 %v1073
      %v1567 = vpop.f32.mrb[0].mxu0
      %v1568 = vadd.f32 0.0, %v1567
      %v1569 = vpop.f32.mrb[0].mxu0
      %1570 = vmatprep.mubr.f32.mxu0 0.0
      %1571 = vmatmul.mubr.f32.gmra.mrb[0].mxu0 %v1074
      %v1572 = vpop.f32.mrb[0].mxu0
      %v1573 = vadd.f32 0.0, %v1572
      %v1574 = vpop.f32.mrb[0].mxu0
      %1575 = vmatprep.mubr.f32.mxu0 0.0
      %1576 = vmatmul.mubr.f32.gmra.mrb[0].mxu0 %v1075
      %v1577 = vpop.f32.mrb[0].mxu0
      %v1578 = vadd.f32 0.0, %v1577
      %v1579 = vpop.f32.mrb[0].mxu0
      %1580 = vmatprep.mubr.f32.mxu0 0.0
      %1581 = vmatmul.mubr.f32.gmra.mrb[0].mxu0 %v1076
      %v1582 = vpop.f32.mrb[0].mxu0
      %v1583 = vadd.f32 0.0, %v1582
      %v1584 = vpop.f32.mrb[0].mxu0
      %1585 = vmatprep.mubr.f32.mxu0 0.0
      %1586 = vmatmul.mubr.f32.gmra.mrb[0].mxu0 %v1077
      %v1587 = vpop.f32.mrb[0].mxu0
      %v1588 = vadd.f32 0.0, %v1587
      %v1589 = vpop.f32.mrb[0].mxu0
      %1590 = vdwg.mxu0
      %1591 = vmatprep.subr.mxu0 0.0
      %1592 = vmatpush1.msra.mxu0 %v325
      %1593 = vmatprep.subr.mxu0 0.0
      %1594 = vmatpush1.msra.mxu0 %v326
      %1595 = vmatprep.subr.mxu0 0.0
      %1596 = vmatpush1.msra.mxu0 %v327
      %1597 = vmatprep.subr.mxu0 0.0
      %1598 = vmatpush1.msra.mxu0 %v328
      %1599 = vmatprep.subr.mxu0 0.0
      %1600 = vmatpush1.msra.mxu0 %v329
      %1601 = vmatprep.subr.mxu0 0.0
      %1602 = vmatpush1.msra.mxu0 %v330
      %1603 = vmatprep.subr.mxu0 0.0
      %1604 = vmatpush1.msra.mxu0 %v331
      %1605 = vmatprep.subr.mxu0 0.0
      %1606 = vmatpush1.msra.mxu0 %v332
      %1607 = vmatprep.subr.mxu0 0.0
      %1608 = vmatpush1.msra.mxu0 %v333
      %1609 = vmatprep.subr.mxu0 0.0
      %1610 = vmatpush1.msra.mxu0 %v334
      %1611 = vmatprep.subr.mxu0 0.0
      %1612 = vmatpush1.msra.mxu0 %v335
      %1613 = vmatprep.subr.mxu0 0.0
      %1614 = vmatpush1.msra.mxu0 %v336
      %1615 = vmatprep.subr.mxu0 0.0
      %1616 = vmatpush1.msra.mxu0 %v337
      %1617 = vmatprep.subr.mxu0 0.0
      %1618 = vmatpush1.msra.mxu0 %v338
      %1619 = vmatprep.subr.mxu0 0.0
      %1620 = vmatpush1.msra.mxu0 %v339
      %1621 = vmatprep.subr.mxu0 0.0
      %1622 = vmatpush1.msra.mxu0 %v340
      %1623 = vmatprep.subr.mxu0 0.0
      %1624 = vmatpush1.msra.mxu0 0.0
      %1625 = vmatprep.subr.mxu0 0.0
      %1626 = vmatpush1.msra.mxu0 0.0
      %1627 = vmatprep.subr.mxu0 0.0
      %1628 = vmatpush1.msra.mxu0 0.0
      %1629 = vmatprep.subr.mxu0 0.0
      %1630 = vmatpush1.msra.mxu0 0.0
      %1631 = vmatprep.subr.mxu0 0.0
      %1632 = vmatpush1.msra.mxu0 0.0
      %1633 = vmatprep.subr.mxu0 0.0
      %1634 = vmatpush1.msra.mxu0 0.0
      %1635 = vmatprep.subr.mxu0 0.0
      %1636 = vmatpush1.msra.mxu0 0.0
      %1637 = vmatprep.subr.mxu0 0.0
      %1638 = vmatpush1.msra.mxu0 0.0
      %1639 = vmatprep.subr.mxu0 0.0
      %1640 = vmatpush1.msra.mxu0 0.0
      %1641 = vmatprep.subr.mxu0 0.0
      %1642 = vmatpush1.msra.mxu0 0.0
      %1643 = vmatprep.subr.mxu0 0.0
      %1644 = vmatpush1.msra.mxu0 0.0
      %1645 = vmatprep.subr.mxu0 0.0
      %1646 = vmatpush1.msra.mxu0 0.0
      %1647 = vmatprep.subr.mxu0 0.0
      %1648 = vmatpush1.msra.mxu0 0.0
      %1649 = vmatprep.subr.mxu0 0.0
      %1650 = vmatpush1.msra.mxu0 0.0
      %1651 = vmatprep.subr.mxu0 0.0
      %1652 = vmatpush1.msra.mxu0 0.0
      %1653 = vmatprep.subr.mxu0 0.0
      %1654 = vmatpush1.msra.mxu0 0.0
      %1655 = vmatprep.mubr.f32.mxu0 0.0
      %1656 = vmatmul.mubr.f32.gmra.mrb[0].mxu0 %v1094
      %v1657 = vpop.f32.mrb[0].mxu0
      %v1658 = vadd.f32 0.0, %v1657
      %v1659 = vpop.f32.mrb[0].mxu0
      %1660 = vmatprep.mubr.f32.mxu0 0.0
      %1661 = vmatmul.mubr.f32.gmra.mrb[0].mxu0 %v1095
      %v1662 = vpop.f32.mrb[0].mxu0
      %v1663 = vadd.f32 0.0, %v1662
      %v1664 = vpop.f32.mrb[0].mxu0
      %1665 = vmatprep.mubr.f32.mxu0 0.0
      %1666 = vmatmul.mubr.f32.gmra.mrb[0].mxu0 %v1096
      %v1667 = vpop.f32.mrb[0].mxu0
      %v1668 = vadd.f32 0.0, %v1667
      %v1669 = vpop.f32.mrb[0].mxu0
      %1670 = vmatprep.mubr.f32.mxu0 0.0
      %1671 = vmatmul.mubr.f32.gmra.mrb[0].mxu0 %v1097
      %v1672 = vpop.f32.mrb[0].mxu0
      %v1673 = vadd.f32 0.0, %v1672
      %v1674 = vpop.f32.mrb[0].mxu0
      %1675 = vmatprep.mubr.f32.mxu0 0.0
      %1676 = vmatmul.mubr.f32.gmra.mrb[0].mxu0 %v1098
      %v1677 = vpop.f32.mrb[0].mxu0
      %v1678 = vadd.f32 0.0, %v1677
      %v1679 = vpop.f32.mrb[0].mxu0
      %1680 = vmatprep.mubr.f32.mxu0 0.0
      %1681 = vmatmul.mubr.f32.gmra.mrb[0].mxu0 %v1099
      %v1682 = vpop.f32.mrb[0].mxu0
      %v1683 = vadd.f32 0.0, %v1682
      %v1684 = vpop.f32.mrb[0].mxu0
      %1685 = vmatprep.mubr.f32.mxu0 0.0
      %1686 = vmatmul.mubr.f32.gmra.mrb[0].mxu0 %v1100
      %v1687 = vpop.f32.mrb[0].mxu0
      %v1688 = vadd.f32 0.0, %v1687
      %v1689 = vpop.f32.mrb[0].mxu0
      %1690 = vmatprep.mubr.f32.mxu0 0.0
      %1691 = vmatmul.mubr.f32.gmra.mrb[0].mxu0 %v1101
      %v1692 = vpop.f32.mrb[0].mxu0
      %v1693 = vadd.f32 0.0, %v1692
      %v1694 = vpop.f32.mrb[0].mxu0
      %1695 = vmatprep.mubr.f32.mxu0 0.0
      %1696 = vmatmul.mubr.f32.gmra.mrb[0].mxu0 %v1102
      %v1697 = vpop.f32.mrb[0].mxu0
      %v1698 = vadd.f32 0.0, %v1697
      %v1699 = vpop.f32.mrb[0].mxu0
      %1700 = vmatprep.mubr.f32.mxu0 0.0
      %1701 = vmatmul.mubr.f32.gmra.mrb[0].mxu0 %v1103
      %v1702 = vpop.f32.mrb[0].mxu0
      %v1703 = vadd.f32 0.0, %v1702
      %v1704 = vpop.f32.mrb[0].mxu0
      %1705 = vmatprep.mubr.f32.mxu0 0.0
      %1706 = vmatmul.mubr.f32.gmra.mrb[0].mxu0 %v1104
      %v1707 = vpop.f32.mrb[0].mxu0
      %v1708 = vadd.f32 0.0, %v1707
      %v1709 = vpop.f32.mrb[0].mxu0
      %1710 = vmatprep.mubr.f32.mxu0 0.0
      %1711 = vmatmul.mubr.f32.gmra.mrb[0].mxu0 %v1105
      %v1712 = vpop.f32.mrb[0].mxu0
      %v1713 = vadd.f32 0.0, %v1712
      %v1714 = vpop.f32.mrb[0].mxu0
      %1715 = vmatprep.mubr.f32.mxu0 0.0
      %1716 = vmatmul.mubr.f32.gmra.mrb[0].mxu0 %v1106
      %v1717 = vpop.f32.mrb[0].mxu0
      %v1718 = vadd.f32 0.0, %v1717
      %v1719 = vpop.f32.mrb[0].mxu0
      %1720 = vmatprep.mubr.f32.mxu0 0.0
      %1721 = vmatmul.mubr.f32.gmra.mrb[0].mxu0 %v1107
      %v1722 = vpop.f32.mrb[0].mxu0
      %v1723 = vadd.f32 0.0, %v1722
      %v1724 = vpop.f32.mrb[0].mxu0
      %1725 = vmatprep.mubr.f32.mxu0 0.0
      %1726 = vmatmul.mubr.f32.gmra.mrb[0].mxu0 %v1108
      %v1727 = vpop.f32.mrb[0].mxu0
      %v1728 = vadd.f32 0.0, %v1727
      %v1729 = vpop.f32.mrb[0].mxu0
      %1730 = vmatprep.mubr.f32.mxu0 0.0
      %1731 = vmatmul.mubr.f32.gmra.mrb[0].mxu0 %v1109
      %v1732 = vpop.f32.mrb[0].mxu0
      %v1733 = vadd.f32 0.0, %v1732
      %v1734 = vpop.f32.mrb[0].mxu0
      %1735 = vmatprep.mubr.f32.mxu0 0.0
      %1736 = vmatmul.mubr.f32.gmra.mrb[0].mxu0 %v1126
      %v1737 = vpop.f32.mrb[0].mxu0
      %v1738 = vadd.f32 0.0, %v1737
      %v1739 = vpop.f32.mrb[0].mxu0
      %1740 = vmatprep.mubr.f32.mxu0 0.0
      %1741 = vmatmul.mubr.f32.gmra.mrb[0].mxu0 %v1127
      %v1742 = vpop.f32.mrb[0].mxu0
      %v1743 = vadd.f32 0.0, %v1742
      %v1744 = vpop.f32.mrb[0].mxu0
      %1745 = vmatprep.mubr.f32.mxu0 0.0
      %1746 = vmatmul.mubr.f32.gmra.mrb[0].mxu0 %v1128
      %v1747 = vpop.f32.mrb[0].mxu0
      %v1748 = vadd.f32 0.0, %v1747
      %v1749 = vpop.f32.mrb[0].mxu0
      %1750 = vmatprep.mubr.f32.mxu0 0.0
      %1751 = vmatmul.mubr.f32.gmra.mrb[0].mxu0 %v1129
      %v1752 = vpop.f32.mrb[0].mxu0
      %v1753 = vadd.f32 0.0, %v1752
      %v1754 = vpop.f32.mrb[0].mxu0
      %1755 = vmatprep.mubr.f32.mxu0 0.0
      %1756 = vmatmul.mubr.f32.gmra.mrb[0].mxu0 %v1130
      %v1757 = vpop.f32.mrb[0].mxu0
      %v1758 = vadd.f32 0.0, %v1757
      %v1759 = vpop.f32.mrb[0].mxu0
      %1760 = vmatprep.mubr.f32.mxu0 0.0
      %1761 = vmatmul.mubr.f32.gmra.mrb[0].mxu0 %v1131
      %v1762 = vpop.f32.mrb[0].mxu0
      %v1763 = vadd.f32 0.0, %v1762
      %v1764 = vpop.f32.mrb[0].mxu0
      %1765 = vmatprep.mubr.f32.mxu0 0.0
      %1766 = vmatmul.mubr.f32.gmra.mrb[0].mxu0 %v1132
      %v1767 = vpop.f32.mrb[0].mxu0
      %v1768 = vadd.f32 0.0, %v1767
      %v1769 = vpop.f32.mrb[0].mxu0
      %1770 = vmatprep.mubr.f32.mxu0 0.0
      %1771 = vmatmul.mubr.f32.gmra.mrb[0].mxu0 %v1133
      %v1772 = vpop.f32.mrb[0].mxu0
      %v1773 = vadd.f32 0.0, %v1772
      %v1774 = vpop.f32.mrb[0].mxu0
      %1775 = vmatprep.mubr.f32.mxu0 0.0
      %1776 = vmatmul.mubr.f32.gmra.mrb[0].mxu0 %v1134
      %v1777 = vpop.f32.mrb[0].mxu0
      %v1778 = vadd.f32 0.0, %v1777
      %v1779 = vpop.f32.mrb[0].mxu0
      %1780 = vmatprep.mubr.f32.mxu0 0.0
      %1781 = vmatmul.mubr.f32.gmra.mrb[0].mxu0 %v1135
      %v1782 = vpop.f32.mrb[0].mxu0
      %v1783 = vadd.f32 0.0, %v1782
      %v1784 = vpop.f32.mrb[0].mxu0
      %1785 = vmatprep.mubr.f32.mxu0 0.0
      %1786 = vmatmul.mubr.f32.gmra.mrb[0].mxu0 %v1136
      %v1787 = vpop.f32.mrb[0].mxu0
      %v1788 = vadd.f32 0.0, %v1787
      %v1789 = vpop.f32.mrb[0].mxu0
      %1790 = vmatprep.mubr.f32.mxu0 0.0
      %1791 = vmatmul.mubr.f32.gmra.mrb[0].mxu0 %v1137
      %v1792 = vpop.f32.mrb[0].mxu0
      %v1793 = vadd.f32 0.0, %v1792
      %v1794 = vpop.f32.mrb[0].mxu0
      %1795 = vmatprep.mubr.f32.mxu0 0.0
      %1796 = vmatmul.mubr.f32.gmra.mrb[0].mxu0 %v1138
      %v1797 = vpop.f32.mrb[0].mxu0
      %v1798 = vadd.f32 0.0, %v1797
      %v1799 = vpop.f32.mrb[0].mxu0
      %1800 = vmatprep.mubr.f32.mxu0 0.0
      %1801 = vmatmul.mubr.f32.gmra.mrb[0].mxu0 %v1139
      %v1802 = vpop.f32.mrb[0].mxu0
      %v1803 = vadd.f32 0.0, %v1802
      %v1804 = vpop.f32.mrb[0].mxu0
      %1805 = vmatprep.mubr.f32.mxu0 0.0
      %1806 = vmatmul.mubr.f32.gmra.mrb[0].mxu0 %v1140
      %v1807 = vpop.f32.mrb[0].mxu0
      %v1808 = vadd.f32 0.0, %v1807
      %v1809 = vpop.f32.mrb[0].mxu0
      %1810 = vmatprep.mubr.f32.mxu0 0.0
      %1811 = vmatmul.mubr.f32.gmra.mrb[0].mxu0 %v1141
      %v1812 = vpop.f32.mrb[0].mxu0
      %v1813 = vadd.f32 0.0, %v1812
      %v1814 = vpop.f32.mrb[0].mxu0
      %1815 = vmatprep.mubr.f32.mxu0 0.0
      %1816 = vmatmul.mubr.f32.gmra.mrb[0].mxu0 %v1158
      %v1817 = vpop.f32.mrb[0].mxu0
      %v1818 = vadd.f32 0.0, %v1817
      %v1819 = vpop.f32.mrb[0].mxu0
      %1820 = vmatprep.mubr.f32.mxu0 0.0
      %1821 = vmatmul.mubr.f32.gmra.mrb[0].mxu0 %v1159
      %v1822 = vpop.f32.mrb[0].mxu0
      %v1823 = vadd.f32 0.0, %v1822
      %v1824 = vpop.f32.mrb[0].mxu0
      %1825 = vmatprep.mubr.f32.mxu0 0.0
      %1826 = vmatmul.mubr.f32.gmra.mrb[0].mxu0 %v1160
      %v1827 = vpop.f32.mrb[0].mxu0
      %v1828 = vadd.f32 0.0, %v1827
      %v1829 = vpop.f32.mrb[0].mxu0
      %1830 = vmatprep.mubr.f32.mxu0 0.0
      %1831 = vmatmul.mubr.f32.gmra.mrb[0].mxu0 %v1161
      %v1832 = vpop.f32.mrb[0].mxu0
      %v1833 = vadd.f32 0.0, %v1832
      %v1834 = vpop.f32.mrb[0].mxu0
      %1835 = vmatprep.mubr.f32.mxu0 0.0
      %1836 = vmatmul.mubr.f32.gmra.mrb[0].mxu0 %v1162
      %v1837 = vpop.f32.mrb[0].mxu0
      %v1838 = vadd.f32 0.0, %v1837
      %v1839 = vpop.f32.mrb[0].mxu0
      %1840 = vmatprep.mubr.f32.mxu0 0.0
      %1841 = vmatmul.mubr.f32.gmra.mrb[0].mxu0 %v1163
      %v1842 = vpop.f32.mrb[0].mxu0
      %v1843 = vadd.f32 0.0, %v1842
      %v1844 = vpop.f32.mrb[0].mxu0
      %1845 = vmatprep.mubr.f32.mxu0 0.0
      %1846 = vmatmul.mubr.f32.gmra.mrb[0].mxu0 %v1164
      %v1847 = vpop.f32.mrb[0].mxu0
      %v1848 = vadd.f32 0.0, %v1847
      %v1849 = vpop.f32.mrb[0].mxu0
      %1850 = vmatprep.mubr.f32.mxu0 0.0
      %1851 = vmatmul.mubr.f32.gmra.mrb[0].mxu0 %v1165
      %v1852 = vpop.f32.mrb[0].mxu0
      %v1853 = vadd.f32 0.0, %v1852
      %v1854 = vpop.f32.mrb[0].mxu0
      %1855 = vmatprep.mubr.f32.mxu0 0.0
      %1856 = vmatmul.mubr.f32.gmra.mrb[0].mxu0 %v1166
      %v1857 = vpop.f32.mrb[0].mxu0
      %v1858 = vadd.f32 0.0, %v1857
      %v1859 = vpop.f32.mrb[0].mxu0
      %1860 = vmatprep.mubr.f32.mxu0 0.0
      %1861 = vmatmul.mubr.f32.gmra.mrb[0].mxu0 %v1167
      %v1862 = vpop.f32.mrb[0].mxu0
      %v1863 = vadd.f32 0.0, %v1862
      %v1864 = vpop.f32.mrb[0].mxu0
      %1865 = vmatprep.mubr.f32.mxu0 0.0
      %1866 = vmatmul.mubr.f32.gmra.mrb[0].mxu0 %v1168
      %v1867 = vpop.f32.mrb[0].mxu0
      %v1868 = vadd.f32 0.0, %v1867
      %v1869 = vpop.f32.mrb[0].mxu0
      %1870 = vmatprep.mubr.f32.mxu0 0.0
      %1871 = vmatmul.mubr.f32.gmra.mrb[0].mxu0 %v1169
      %v1872 = vpop.f32.mrb[0].mxu0
      %v1873 = vadd.f32 0.0, %v1872
      %v1874 = vpop.f32.mrb[0].mxu0
      %1875 = vmatprep.mubr.f32.mxu0 0.0
      %1876 = vmatmul.mubr.f32.gmra.mrb[0].mxu0 %v1170
      %v1877 = vpop.f32.mrb[0].mxu0
      %v1878 = vadd.f32 0.0, %v1877
      %v1879 = vpop.f32.mrb[0].mxu0
      %1880 = vmatprep.mubr.f32.mxu0 0.0
      %1881 = vmatmul.mubr.f32.gmra.mrb[0].mxu0 %v1171
      %v1882 = vpop.f32.mrb[0].mxu0
      %v1883 = vadd.f32 0.0, %v1882
      %v1884 = vpop.f32.mrb[0].mxu0
      %1885 = vmatprep.mubr.f32.mxu0 0.0
      %1886 = vmatmul.mubr.f32.gmra.mrb[0].mxu0 %v1172
      %v1887 = vpop.f32.mrb[0].mxu0
      %v1888 = vadd.f32 0.0, %v1887
      %v1889 = vpop.f32.mrb[0].mxu0
      %1890 = vmatprep.mubr.f32.mxu0 0.0
      %1891 = vmatmul.mubr.f32.gmra.mrb[0].mxu0 %v1173
      %v1892 = vpop.f32.mrb[0].mxu0
      %v1893 = vadd.f32 0.0, %v1892
      %v1894 = vpop.f32.mrb[0].mxu0
      %1895 = vmatprep.mubr.f32.mxu0 0.0
      %1896 = vmatmul.mubr.f32.gmra.mrb[0].mxu0 %v1190
      %v1897 = vpop.f32.mrb[0].mxu0
      %v1898 = vadd.f32 0.0, %v1897
      %v1899 = vpop.f32.mrb[0].mxu0
      %1900 = vmatprep.mubr.f32.mxu0 0.0
      %1901 = vmatmul.mubr.f32.gmra.mrb[0].mxu0 %v1191
      %v1902 = vpop.f32.mrb[0].mxu0
      %v1903 = vadd.f32 0.0, %v1902
      %v1904 = vpop.f32.mrb[0].mxu0
      %1905 = vmatprep.mubr.f32.mxu0 0.0
      %1906 = vmatmul.mubr.f32.gmra.mrb[0].mxu0 %v1192
      %v1907 = vpop.f32.mrb[0].mxu0
      %v1908 = vadd.f32 0.0, %v1907
      %v1909 = vpop.f32.mrb[0].mxu0
      %1910 = vmatprep.mubr.f32.mxu0 0.0
      %1911 = vmatmul.mubr.f32.gmra.mrb[0].mxu0 %v1193
      %v1912 = vpop.f32.mrb[0].mxu0
      %v1913 = vadd.f32 0.0, %v1912
      %v1914 = vpop.f32.mrb[0].mxu0
      %1915 = vmatprep.mubr.f32.mxu0 0.0
      %1916 = vmatmul.mubr.f32.gmra.mrb[0].mxu0 %v1194
      %v1917 = vpop.f32.mrb[0].mxu0
      %v1918 = vadd.f32 0.0, %v1917
      %v1919 = vpop.f32.mrb[0].mxu0
      %1920 = vmatprep.mubr.f32.mxu0 0.0
      %1921 = vmatmul.mubr.f32.gmra.mrb[0].mxu0 %v1195
      %v1922 = vpop.f32.mrb[0].mxu0
      %v1923 = vadd.f32 0.0, %v1922
      %v1924 = vpop.f32.mrb[0].mxu0
      %1925 = vmatprep.mubr.f32.mxu0 0.0
      %1926 = vmatmul.mubr.f32.gmra.mrb[0].mxu0 %v1196
      %v1927 = vpop.f32.mrb[0].mxu0
      %v1928 = vadd.f32 0.0, %v1927
      %v1929 = vpop.f32.mrb[0].mxu0
      %1930 = vmatprep.mubr.f32.mxu0 0.0
      %1931 = vmatmul.mubr.f32.gmra.mrb[0].mxu0 %v1197
      %v1932 = vpop.f32.mrb[0].mxu0
      %v1933 = vadd.f32 0.0, %v1932
      %v1934 = vpop.f32.mrb[0].mxu0
      %1935 = vmatprep.mubr.f32.mxu0 0.0
      %1936 = vmatmul.mubr.f32.gmra.mrb[0].mxu0 %v1198
      %v1937 = vpop.f32.mrb[0].mxu0
      %v1938 = vadd.f32 0.0, %v1937
      %v1939 = vpop.f32.mrb[0].mxu0
      %1940 = vmatprep.mubr.f32.mxu0 0.0
      %1941 = vmatmul.mubr.f32.gmra.mrb[0].mxu0 %v1199
      %v1942 = vpop.f32.mrb[0].mxu0
      %v1943 = vadd.f32 0.0, %v1942
      %v1944 = vpop.f32.mrb[0].mxu0
      %1945 = vmatprep.mubr.f32.mxu0 0.0
      %1946 = vmatmul.mubr.f32.gmra.mrb[0].mxu0 %v1200
      %v1947 = vpop.f32.mrb[0].mxu0
      %v1948 = vadd.f32 0.0, %v1947
      %v1949 = vpop.f32.mrb[0].mxu0
      %1950 = vmatprep.mubr.f32.mxu0 0.0
      %1951 = vmatmul.mubr.f32.gmra.mrb[0].mxu0 %v1201
      %v1952 = vpop.f32.mrb[0].mxu0
      %v1953 = vadd.f32 0.0, %v1952
      %v1954 = vpop.f32.mrb[0].mxu0
      %1955 = vmatprep.mubr.f32.mxu0 0.0
      %1956 = vmatmul.mubr.f32.gmra.mrb[0].mxu0 %v1202
      %v1957 = vpop.f32.mrb[0].mxu0
      %v1958 = vadd.f32 0.0, %v1957
      %v1959 = vpop.f32.mrb[0].mxu0
      %1960 = vmatprep.mubr.f32.mxu0 0.0
      %1961 = vmatmul.mubr.f32.gmra.mrb[0].mxu0 %v1203
      %v1962 = vpop.f32.mrb[0].mxu0
      %v1963 = vadd.f32 0.0, %v1962
      %v1964 = vpop.f32.mrb[0].mxu0
      %1965 = vmatprep.mubr.f32.mxu0 0.0
      %1966 = vmatmul.mubr.f32.gmra.mrb[0].mxu0 %v1204
      %v1967 = vpop.f32.mrb[0].mxu0
      %v1968 = vadd.f32 0.0, %v1967
      %v1969 = vpop.f32.mrb[0].mxu0
      %1970 = vmatprep.mubr.f32.mxu0 0.0
      %1971 = vmatmul.mubr.f32.gmra.mrb[0].mxu0 %v1205
      %v1972 = vpop.f32.mrb[0].mxu0
      %v1973 = vadd.f32 0.0, %v1972
      %v1974 = vpop.f32.mrb[0].mxu0
      %1975 = vdwg.mxu0
      %v1976 = vadd.f32 %v966, %v1094
      %v1977 = vadd.f32 %v967, %v1095
      %v1978 = vadd.f32 %v968, %v1096
      %v1979 = vadd.f32 %v969, %v1097
      %v1980 = vadd.f32 %v970, %v1098
      %v1981 = vadd.f32 %v971, %v1099
      %v1982 = vadd.f32 %v972, %v1100
      %v1983 = vadd.f32 %v973, %v1101
      %v1984 = vadd.f32 %v974, %v1102
      %v1985 = vadd.f32 %v975, %v1103
      %v1986 = vadd.f32 %v976, %v1104
      %v1987 = vadd.f32 %v977, %v1105
      %v1988 = vadd.f32 %v978, %v1106
      %v1989 = vadd.f32 %v979, %v1107
      %v1990 = vadd.f32 %v980, %v1108
      %v1991 = vadd.f32 %v981, %v1109
      %v1992 = vadd.f32 %v998, %v1126
      %v1993 = vadd.f32 %v999, %v1127
      %v1994 = vadd.f32 %v1000, %v1128
      %v1995 = vadd.f32 %v1001, %v1129
      %v1996 = vadd.f32 %v1002, %v1130
      %v1997 = vadd.f32 %v1003, %v1131
      %v1998 = vadd.f32 %v1004, %v1132
      %v1999 = vadd.f32 %v1005, %v1133
      %v2000 = vadd.f32 %v1006, %v1134
      %v2001 = vadd.f32 %v1007, %v1135
      %v2002 = vadd.f32 %v1008, %v1136
      %v2003 = vadd.f32 %v1009, %v1137
      %v2004 = vadd.f32 %v1010, %v1138
      %v2005 = vadd.f32 %v1011, %v1139
      %v2006 = vadd.f32 %v1012, %v1140
      %v2007 = vadd.f32 %v1013, %v1141
      %v2008 = vadd.f32 %v1030, %v1158
      %v2009 = vadd.f32 %v1031, %v1159
      %v2010 = vadd.f32 %v1032, %v1160
      %v2011 = vadd.f32 %v1033, %v1161
      %v2012 = vadd.f32 %v1034, %v1162
      %v2013 = vadd.f32 %v1035, %v1163
      %v2014 = vadd.f32 %v1036, %v1164
      %v2015 = vadd.f32 %v1037, %v1165
      %v2016 = vadd.f32 %v1038, %v1166
      %v2017 = vadd.f32 %v1039, %v1167
      %v2018 = vadd.f32 %v1040, %v1168
      %v2019 = vadd.f32 %v1041, %v1169
      %v2020 = vadd.f32 %v1042, %v1170
      %v2021 = vadd.f32 %v1043, %v1171
      %v2022 = vadd.f32 %v1044, %v1172
      %v2023 = vadd.f32 %v1045, %v1173
      %v2024 = vadd.f32 %v1062, %v1190
      %v2025 = vadd.f32 %v1063, %v1191
      %v2026 = vadd.f32 %v1064, %v1192
      %v2027 = vadd.f32 %v1065, %v1193
      %v2028 = vadd.f32 %v1066, %v1194
      %v2029 = vadd.f32 %v1067, %v1195
      %v2030 = vadd.f32 %v1068, %v1196
      %v2031 = vadd.f32 %v1069, %v1197
      %v2032 = vadd.f32 %v1070, %v1198
      %v2033 = vadd.f32 %v1071, %v1199
      %v2034 = vadd.f32 %v1072, %v1200
      %v2035 = vadd.f32 %v1073, %v1201
      %v2036 = vadd.f32 %v1074, %v1202
      %v2037 = vadd.f32 %v1075, %v1203
      %v2038 = vadd.f32 %v1076, %v1204
      %v2039 = vadd.f32 %v1077, %v1205
      %2040 = vmatprep.subr.mxu0 0.0
      %2041 = vmatpush1.msra.mxu0 %v357
      %2042 = vmatprep.subr.mxu0 0.0
      %2043 = vmatpush1.msra.mxu0 %v358
      %2044 = vmatprep.subr.mxu0 0.0
      %2045 = vmatpush1.msra.mxu0 %v359
      %2046 = vmatprep.subr.mxu0 0.0
      %2047 = vmatpush1.msra.mxu0 %v360
      %2048 = vmatprep.subr.mxu0 0.0
      %2049 = vmatpush1.msra.mxu0 %v361
      %2050 = vmatprep.subr.mxu0 0.0
      %2051 = vmatpush1.msra.mxu0 %v362
      %2052 = vmatprep.subr.mxu0 0.0
      %2053 = vmatpush1.msra.mxu0 %v363
      %2054 = vmatprep.subr.mxu0 0.0
      %2055 = vmatpush1.msra.mxu0 %v364
      %2056 = vmatprep.subr.mxu0 0.0
      %2057 = vmatpush1.msra.mxu0 %v365
      %2058 = vmatprep.subr.mxu0 0.0
      %2059 = vmatpush1.msra.mxu0 %v366
      %2060 = vmatprep.subr.mxu0 0.0
      %2061 = vmatpush1.msra.mxu0 %v367
      %2062 = vmatprep.subr.mxu0 0.0
      %2063 = vmatpush1.msra.mxu0 %v368
      %2064 = vmatprep.subr.mxu0 0.0
      %2065 = vmatpush1.msra.mxu0 %v369
      %2066 = vmatprep.subr.mxu0 0.0
      %2067 = vmatpush1.msra.mxu0 %v370
      %2068 = vmatprep.subr.mxu0 0.0
      %2069 = vmatpush1.msra.mxu0 %v371
      %2070 = vmatprep.subr.mxu0 0.0
      %2071 = vmatpush1.msra.mxu0 %v372
      %2072 = vmatprep.subr.mxu0 0.0
      %2073 = vmatpush1.msra.mxu0 0.0
      %2074 = vmatprep.subr.mxu0 0.0
      %2075 = vmatpush1.msra.mxu0 0.0
      %2076 = vmatprep.subr.mxu0 0.0
      %2077 = vmatpush1.msra.mxu0 0.0
      %2078 = vmatprep.subr.mxu0 0.0
      %2079 = vmatpush1.msra.mxu0 0.0
      %2080 = vmatprep.subr.mxu0 0.0
      %2081 = vmatpush1.msra.mxu0 0.0
      %2082 = vmatprep.subr.mxu0 0.0
      %2083 = vmatpush1.msra.mxu0 0.0
      %2084 = vmatprep.subr.mxu0 0.0
      %2085 = vmatpush1.msra.mxu0 0.0
      %2086 = vmatprep.subr.mxu0 0.0
      %2087 = vmatpush1.msra.mxu0 0.0
      %2088 = vmatprep.subr.mxu0 0.0
      %2089 = vmatpush1.msra.mxu0 0.0
      %2090 = vmatprep.subr.mxu0 0.0
      %2091 = vmatpush1.msra.mxu0 0.0
      %2092 = vmatprep.subr.mxu0 0.0
      %2093 = vmatpush1.msra.mxu0 0.0
      %2094 = vmatprep.subr.mxu0 0.0
      %2095 = vmatpush1.msra.mxu0 0.0
      %2096 = vmatprep.subr.mxu0 0.0
      %2097 = vmatpush1.msra.mxu0 0.0
      %2098 = vmatprep.subr.mxu0 0.0
      %2099 = vmatpush1.msra.mxu0 0.0
      %2100 = vmatprep.subr.mxu0 0.0
      %2101 = vmatpush1.msra.mxu0 0.0
      %2102 = vmatprep.subr.mxu0 0.0
      %2103 = vmatpush1.msra.mxu0 0.0
      %2104 = vmatprep.mubr.f32.mxu0 0.0
      %2105 = vmatmul.mubr.f32.gmra.mrb[0].mxu0 %v1976
      %v2106 = vpop.f32.mrb[0].mxu0
      %v2107 = vadd.f32 0.0, %v2106
      %v2108 = vpop.f32.mrb[0].mxu0
      %2109 = vmatprep.mubr.f32.mxu0 0.0
      %2110 = vmatmul.mubr.f32.gmra.mrb[0].mxu0 %v1977
      %v2111 = vpop.f32.mrb[0].mxu0
      %v2112 = vadd.f32 0.0, %v2111
      %v2113 = vpop.f32.mrb[0].mxu0
      %2114 = vmatprep.mubr.f32.mxu0 0.0
      %2115 = vmatmul.mubr.f32.gmra.mrb[0].mxu0 %v1978
      %v2116 = vpop.f32.mrb[0].mxu0
      %v2117 = vadd.f32 0.0, %v2116
      %v2118 = vpop.f32.mrb[0].mxu0
      %2119 = vmatprep.mubr.f32.mxu0 0.0
      %2120 = vmatmul.mubr.f32.gmra.mrb[0].mxu0 %v1979
      %v2121 = vpop.f32.mrb[0].mxu0
      %v2122 = vadd.f32 0.0, %v2121
      %v2123 = vpop.f32.mrb[0].mxu0
      %2124 = vmatprep.mubr.f32.mxu0 0.0
      %2125 = vmatmul.mubr.f32.gmra.mrb[0].mxu0 %v1980
      %v2126 = vpop.f32.mrb[0].mxu0
      %v2127 = vadd.f32 0.0, %v2126
      %v2128 = vpop.f32.mrb[0].mxu0
      %2129 = vmatprep.mubr.f32.mxu0 0.0
      %2130 = vmatmul.mubr.f32.gmra.mrb[0].mxu0 %v1981
      %v2131 = vpop.f32.mrb[0].mxu0
      %v2132 = vadd.f32 0.0, %v2131
      %v2133 = vpop.f32.mrb[0].mxu0
      %2134 = vmatprep.mubr.f32.mxu0 0.0
      %2135 = vmatmul.mubr.f32.gmra.mrb[0].mxu0 %v1982
      %v2136 = vpop.f32.mrb[0].mxu0
      %v2137 = vadd.f32 0.0, %v2136
      %v2138 = vpop.f32.mrb[0].mxu0
      %2139 = vmatprep.mubr.f32.mxu0 0.0
      %2140 = vmatmul.mubr.f32.gmra.mrb[0].mxu0 %v1983
      %v2141 = vpop.f32.mrb[0].mxu0
      %v2142 = vadd.f32 0.0, %v2141
      %v2143 = vpop.f32.mrb[0].mxu0
      %2144 = vmatprep.mubr.f32.mxu0 0.0
      %2145 = vmatmul.mubr.f32.gmra.mrb[0].mxu0 %v1984
      %v2146 = vpop.f32.mrb[0].mxu0
      %v2147 = vadd.f32 0.0, %v2146
      %v2148 = vpop.f32.mrb[0].mxu0
      %2149 = vmatprep.mubr.f32.mxu0 0.0
      %2150 = vmatmul.mubr.f32.gmra.mrb[0].mxu0 %v1985
      %v2151 = vpop.f32.mrb[0].mxu0
      %v2152 = vadd.f32 0.0, %v2151
      %v2153 = vpop.f32.mrb[0].mxu0
      %2154 = vmatprep.mubr.f32.mxu0 0.0
      %2155 = vmatmul.mubr.f32.gmra.mrb[0].mxu0 %v1986
      %v2156 = vpop.f32.mrb[0].mxu0
      %v2157 = vadd.f32 0.0, %v2156
      %v2158 = vpop.f32.mrb[0].mxu0
      %2159 = vmatprep.mubr.f32.mxu0 0.0
      %2160 = vmatmul.mubr.f32.gmra.mrb[0].mxu0 %v1987
      %v2161 = vpop.f32.mrb[0].mxu0
      %v2162 = vadd.f32 0.0, %v2161
      %v2163 = vpop.f32.mrb[0].mxu0
      %2164 = vmatprep.mubr.f32.mxu0 0.0
      %2165 = vmatmul.mubr.f32.gmra.mrb[0].mxu0 %v1988
      %v2166 = vpop.f32.mrb[0].mxu0
      %v2167 = vadd.f32 0.0, %v2166
      %v2168 = vpop.f32.mrb[0].mxu0
      %2169 = vmatprep.mubr.f32.mxu0 0.0
      %2170 = vmatmul.mubr.f32.gmra.mrb[0].mxu0 %v1989
      %v2171 = vpop.f32.mrb[0].mxu0
      %v2172 = vadd.f32 0.0, %v2171
      %v2173 = vpop.f32.mrb[0].mxu0
      %2174 = vmatprep.mubr.f32.mxu0 0.0
      %2175 = vmatmul.mubr.f32.gmra.mrb[0].mxu0 %v1990
      %v2176 = vpop.f32.mrb[0].mxu0
      %v2177 = vadd.f32 0.0, %v2176
      %v2178 = vpop.f32.mrb[0].mxu0
      %2179 = vmatprep.mubr.f32.mxu0 0.0
      %2180 = vmatmul.mubr.f32.gmra.mrb[0].mxu0 %v1991
      %v2181 = vpop.f32.mrb[0].mxu0
      %v2182 = vadd.f32 0.0, %v2181
      %v2183 = vpop.f32.mrb[0].mxu0
      %2184 = vmatprep.mubr.f32.mxu0 0.0
      %2185 = vmatmul.mubr.f32.gmra.mrb[0].mxu0 %v1992
      %v2186 = vpop.f32.mrb[0].mxu0
      %v2187 = vadd.f32 0.0, %v2186
      %v2188 = vpop.f32.mrb[0].mxu0
      %2189 = vmatprep.mubr.f32.mxu0 0.0
      %2190 = vmatmul.mubr.f32.gmra.mrb[0].mxu0 %v1993
      %v2191 = vpop.f32.mrb[0].mxu0
      %v2192 = vadd.f32 0.0, %v2191
      %v2193 = vpop.f32.mrb[0].mxu0
      %2194 = vmatprep.mubr.f32.mxu0 0.0
      %2195 = vmatmul.mubr.f32.gmra.mrb[0].mxu0 %v1994
      %v2196 = vpop.f32.mrb[0].mxu0
      %v2197 = vadd.f32 0.0, %v2196
      %v2198 = vpop.f32.mrb[0].mxu0
      %2199 = vmatprep.mubr.f32.mxu0 0.0
      %2200 = vmatmul.mubr.f32.gmra.mrb[0].mxu0 %v1995
      %v2201 = vpop.f32.mrb[0].mxu0
      %v2202 = vadd.f32 0.0, %v2201
      %v2203 = vpop.f32.mrb[0].mxu0
      %2204 = vmatprep.mubr.f32.mxu0 0.0
      %2205 = vmatmul.mubr.f32.gmra.mrb[0].mxu0 %v1996
      %v2206 = vpop.f32.mrb[0].mxu0
      %v2207 = vadd.f32 0.0, %v2206
      %v2208 = vpop.f32.mrb[0].mxu0
      %2209 = vmatprep.mubr.f32.mxu0 0.0
      %2210 = vmatmul.mubr.f32.gmra.mrb[0].mxu0 %v1997
      %v2211 = vpop.f32.mrb[0].mxu0
      %v2212 = vadd.f32 0.0, %v2211
      %v2213 = vpop.f32.mrb[0].mxu0
      %2214 = vmatprep.mubr.f32.mxu0 0.0
      %2215 = vmatmul.mubr.f32.gmra.mrb[0].mxu0 %v1998
      %v2216 = vpop.f32.mrb[0].mxu0
      %v2217 = vadd.f32 0.0, %v2216
      %v2218 = vpop.f32.mrb[0].mxu0
      %2219 = vmatprep.mubr.f32.mxu0 0.0
      %2220 = vmatmul.mubr.f32.gmra.mrb[0].mxu0 %v1999
      %v2221 = vpop.f32.mrb[0].mxu0
      %v2222 = vadd.f32 0.0, %v2221
      %v2223 = vpop.f32.mrb[0].mxu0
      %2224 = vmatprep.mubr.f32.mxu0 0.0
      %2225 = vmatmul.mubr.f32.gmra.mrb[0].mxu0 %v2000
      %v2226 = vpop.f32.mrb[0].mxu0
      %v2227 = vadd.f32 0.0, %v2226
      %v2228 = vpop.f32.mrb[0].mxu0
      %2229 = vmatprep.mubr.f32.mxu0 0.0
      %2230 = vmatmul.mubr.f32.gmra.mrb[0].mxu0 %v2001
      %v2231 = vpop.f32.mrb[0].mxu0
      %v2232 = vadd.f32 0.0, %v2231
      %v2233 = vpop.f32.mrb[0].mxu0
      %2234 = vmatprep.mubr.f32.mxu0 0.0
      %2235 = vmatmul.mubr.f32.gmra.mrb[0].mxu0 %v2002
      %v2236 = vpop.f32.mrb[0].mxu0
      %v2237 = vadd.f32 0.0, %v2236
      %v2238 = vpop.f32.mrb[0].mxu0
      %2239 = vmatprep.mubr.f32.mxu0 0.0
      %2240 = vmatmul.mubr.f32.gmra.mrb[0].mxu0 %v2003
      %v2241 = vpop.f32.mrb[0].mxu0
      %v2242 = vadd.f32 0.0, %v2241
      %v2243 = vpop.f32.mrb[0].mxu0
      %2244 = vmatprep.mubr.f32.mxu0 0.0
      %2245 = vmatmul.mubr.f32.gmra.mrb[0].mxu0 %v2004
      %v2246 = vpop.f32.mrb[0].mxu0
      %v2247 = vadd.f32 0.0, %v2246
      %v2248 = vpop.f32.mrb[0].mxu0
      %2249 = vmatprep.mubr.f32.mxu0 0.0
      %2250 = vmatmul.mubr.f32.gmra.mrb[0].mxu0 %v2005
      %v2251 = vpop.f32.mrb[0].mxu0
      %v2252 = vadd.f32 0.0, %v2251
      %v2253 = vpop.f32.mrb[0].mxu0
      %2254 = vmatprep.mubr.f32.mxu0 0.0
      %2255 = vmatmul.mubr.f32.gmra.mrb[0].mxu0 %v2006
      %v2256 = vpop.f32.mrb[0].mxu0
      %v2257 = vadd.f32 0.0, %v2256
      %v2258 = vpop.f32.mrb[0].mxu0
      %2259 = vmatprep.mubr.f32.mxu0 0.0
      %2260 = vmatmul.mubr.f32.gmra.mrb[0].mxu0 %v2007
      %v2261 = vpop.f32.mrb[0].mxu0
      %v2262 = vadd.f32 0.0, %v2261
      %v2263 = vpop.f32.mrb[0].mxu0
      %2264 = vmatprep.mubr.f32.mxu0 0.0
      %2265 = vmatmul.mubr.f32.gmra.mrb[0].mxu0 %v2008
      %v2266 = vpop.f32.mrb[0].mxu0
      %v2267 = vadd.f32 0.0, %v2266
      %v2268 = vpop.f32.mrb[0].mxu0
      %2269 = vmatprep.mubr.f32.mxu0 0.0
      %2270 = vmatmul.mubr.f32.gmra.mrb[0].mxu0 %v2009
      %v2271 = vpop.f32.mrb[0].mxu0
      %v2272 = vadd.f32 0.0, %v2271
      %v2273 = vpop.f32.mrb[0].mxu0
      %2274 = vmatprep.mubr.f32.mxu0 0.0
      %2275 = vmatmul.mubr.f32.gmra.mrb[0].mxu0 %v2010
      %v2276 = vpop.f32.mrb[0].mxu0
      %v2277 = vadd.f32 0.0, %v2276
      %v2278 = vpop.f32.mrb[0].mxu0
      %2279 = vmatprep.mubr.f32.mxu0 0.0
      %2280 = vmatmul.mubr.f32.gmra.mrb[0].mxu0 %v2011
      %v2281 = vpop.f32.mrb[0].mxu0
      %v2282 = vadd.f32 0.0, %v2281
      %v2283 = vpop.f32.mrb[0].mxu0
      %2284 = vmatprep.mubr.f32.mxu0 0.0
      %2285 = vmatmul.mubr.f32.gmra.mrb[0].mxu0 %v2012
      %v2286 = vpop.f32.mrb[0].mxu0
      %v2287 = vadd.f32 0.0, %v2286
      %v2288 = vpop.f32.mrb[0].mxu0
      %2289 = vmatprep.mubr.f32.mxu0 0.0
      %2290 = vmatmul.mubr.f32.gmra.mrb[0].mxu0 %v2013
      %v2291 = vpop.f32.mrb[0].mxu0
      %v2292 = vadd.f32 0.0, %v2291
      %v2293 = vpop.f32.mrb[0].mxu0
      %2294 = vmatprep.mubr.f32.mxu0 0.0
      %2295 = vmatmul.mubr.f32.gmra.mrb[0].mxu0 %v2014
      %v2296 = vpop.f32.mrb[0].mxu0
      %v2297 = vadd.f32 0.0, %v2296
      %v2298 = vpop.f32.mrb[0].mxu0
      %2299 = vmatprep.mubr.f32.mxu0 0.0
      %2300 = vmatmul.mubr.f32.gmra.mrb[0].mxu0 %v2015
      %v2301 = vpop.f32.mrb[0].mxu0
      %v2302 = vadd.f32 0.0, %v2301
      %v2303 = vpop.f32.mrb[0].mxu0
      %2304 = vmatprep.mubr.f32.mxu0 0.0
      %2305 = vmatmul.mubr.f32.gmra.mrb[0].mxu0 %v2016
      %v2306 = vpop.f32.mrb[0].mxu0
      %v2307 = vadd.f32 0.0, %v2306
      %v2308 = vpop.f32.mrb[0].mxu0
      %2309 = vmatprep.mubr.f32.mxu0 0.0
      %2310 = vmatmul.mubr.f32.gmra.mrb[0].mxu0 %v2017
      %v2311 = vpop.f32.mrb[0].mxu0
      %v2312 = vadd.f32 0.0, %v2311
      %v2313 = vpop.f32.mrb[0].mxu0
      %2314 = vmatprep.mubr.f32.mxu0 0.0
      %2315 = vmatmul.mubr.f32.gmra.mrb[0].mxu0 %v2018
      %v2316 = vpop.f32.mrb[0].mxu0
      %v2317 = vadd.f32 0.0, %v2316
      %v2318 = vpop.f32.mrb[0].mxu0
      %2319 = vmatprep.mubr.f32.mxu0 0.0
      %2320 = vmatmul.mubr.f32.gmra.mrb[0].mxu0 %v2019
      %v2321 = vpop.f32.mrb[0].mxu0
      %v2322 = vadd.f32 0.0, %v2321
      %v2323 = vpop.f32.mrb[0].mxu0
      %2324 = vmatprep.mubr.f32.mxu0 0.0
      %2325 = vmatmul.mubr.f32.gmra.mrb[0].mxu0 %v2020
      %v2326 = vpop.f32.mrb[0].mxu0
      %v2327 = vadd.f32 0.0, %v2326
      %v2328 = vpop.f32.mrb[0].mxu0
      %2329 = vmatprep.mubr.f32.mxu0 0.0
      %2330 = vmatmul.mubr.f32.gmra.mrb[0].mxu0 %v2021
      %v2331 = vpop.f32.mrb[0].mxu0
      %v2332 = vadd.f32 0.0, %v2331
      %v2333 = vpop.f32.mrb[0].mxu0
      %2334 = vmatprep.mubr.f32.mxu0 0.0
      %2335 = vmatmul.mubr.f32.gmra.mrb[0].mxu0 %v2022
      %v2336 = vpop.f32.mrb[0].mxu0
      %v2337 = vadd.f32 0.0, %v2336
      %v2338 = vpop.f32.mrb[0].mxu0
      %2339 = vmatprep.mubr.f32.mxu0 0.0
      %2340 = vmatmul.mubr.f32.gmra.mrb[0].mxu0 %v2023
      %v2341 = vpop.f32.mrb[0].mxu0
      %v2342 = vadd.f32 0.0, %v2341
      %v2343 = vpop.f32.mrb[0].mxu0
      %2344 = vmatprep.mubr.f32.mxu0 0.0
      %2345 = vmatmul.mubr.f32.gmra.mrb[0].mxu0 %v2024
      %v2346 = vpop.f32.mrb[0].mxu0
      %v2347 = vadd.f32 0.0, %v2346
      %v2348 = vpop.f32.mrb[0].mxu0
      %2349 = vmatprep.mubr.f32.mxu0 0.0
      %2350 = vmatmul.mubr.f32.gmra.mrb[0].mxu0 %v2025
      %v2351 = vpop.f32.mrb[0].mxu0
      %v2352 = vadd.f32 0.0, %v2351
      %v2353 = vpop.f32.mrb[0].mxu0
      %2354 = vmatprep.mubr.f32.mxu0 0.0
      %2355 = vmatmul.mubr.f32.gmra.mrb[0].mxu0 %v2026
      %v2356 = vpop.f32.mrb[0].mxu0
      %v2357 = vadd.f32 0.0, %v2356
      %v2358 = vpop.f32.mrb[0].mxu0
      %2359 = vmatprep.mubr.f32.mxu0 0.0
      %2360 = vmatmul.mubr.f32.gmra.mrb[0].mxu0 %v2027
      %v2361 = vpop.f32.mrb[0].mxu0
      %v2362 = vadd.f32 0.0, %v2361
      %v2363 = vpop.f32.mrb[0].mxu0
      %2364 = vmatprep.mubr.f32.mxu0 0.0
      %2365 = vmatmul.mubr.f32.gmra.mrb[0].mxu0 %v2028
      %v2366 = vpop.f32.mrb[0].mxu0
      %v2367 = vadd.f32 0.0, %v2366
      %v2368 = vpop.f32.mrb[0].mxu0
      %2369 = vmatprep.mubr.f32.mxu0 0.0
      %2370 = vmatmul.mubr.f32.gmra.mrb[0].mxu0 %v2029
      %v2371 = vpop.f32.mrb[0].mxu0
      %v2372 = vadd.f32 0.0, %v2371
      %v2373 = vpop.f32.mrb[0].mxu0
      %2374 = vmatprep.mubr.f32.mxu0 0.0
      %2375 = vmatmul.mubr.f32.gmra.mrb[0].mxu0 %v2030
      %v2376 = vpop.f32.mrb[0].mxu0
      %v2377 = vadd.f32 0.0, %v2376
      %v2378 = vpop.f32.mrb[0].mxu0
      %2379 = vmatprep.mubr.f32.mxu0 0.0
      %2380 = vmatmul.mubr.f32.gmra.mrb[0].mxu0 %v2031
      %v2381 = vpop.f32.mrb[0].mxu0
      %v2382 = vadd.f32 0.0, %v2381
      %v2383 = vpop.f32.mrb[0].mxu0
      %2384 = vmatprep.mubr.f32.mxu0 0.0
      %2385 = vmatmul.mubr.f32.gmra.mrb[0].mxu0 %v2032
      %v2386 = vpop.f32.mrb[0].mxu0
      %v2387 = vadd.f32 0.0, %v2386
      %v2388 = vpop.f32.mrb[0].mxu0
      %2389 = vmatprep.mubr.f32.mxu0 0.0
      %2390 = vmatmul.mubr.f32.gmra.mrb[0].mxu0 %v2033
      %v2391 = vpop.f32.mrb[0].mxu0
      %v2392 = vadd.f32 0.0, %v2391
      %v2393 = vpop.f32.mrb[0].mxu0
      %2394 = vmatprep.mubr.f32.mxu0 0.0
      %2395 = vmatmul.mubr.f32.gmra.mrb[0].mxu0 %v2034
      %v2396 = vpop.f32.mrb[0].mxu0
      %v2397 = vadd.f32 0.0, %v2396
      %v2398 = vpop.f32.mrb[0].mxu0
      %2399 = vmatprep.mubr.f32.mxu0 0.0
      %2400 = vmatmul.mubr.f32.gmra.mrb[0].mxu0 %v2035
      %v2401 = vpop.f32.mrb[0].mxu0
      %v2402 = vadd.f32 0.0, %v2401
      %v2403 = vpop.f32.mrb[0].mxu0
      %2404 = vmatprep.mubr.f32.mxu0 0.0
      %2405 = vmatmul.mubr.f32.gmra.mrb[0].mxu0 %v2036
      %v2406 = vpop.f32.mrb[0].mxu0
      %v2407 = vadd.f32 0.0, %v2406
      %v2408 = vpop.f32.mrb[0].mxu0
      %2409 = vmatprep.mubr.f32.mxu0 0.0
      %2410 = vmatmul.mubr.f32.gmra.mrb[0].mxu0 %v2037
      %v2411 = vpop.f32.mrb[0].mxu0
      %v2412 = vadd.f32 0.0, %v2411
      %v2413 = vpop.f32.mrb[0].mxu0
      %2414 = vmatprep.mubr.f32.mxu0 0.0
      %2415 = vmatmul.mubr.f32.gmra.mrb[0].mxu0 %v2038
      %v2416 = vpop.f32.mrb[0].mxu0
      %v2417 = vadd.f32 0.0, %v2416
      %v2418 = vpop.f32.mrb[0].mxu0
      %2419 = vmatprep.mubr.f32.mxu0 0.0
      %2420 = vmatmul.mubr.f32.gmra.mrb[0].mxu0 %v2039
      %v2421 = vpop.f32.mrb[0].mxu0
      %v2422 = vadd.f32 0.0, %v2421
      %v2423 = vpop.f32.mrb[0].mxu0
      %2424 = vdwg.mxu0
      %v2425 = vsub.f32 %v1273, %v1658
      %v2426 = vsub.f32 %v1278, %v1663
      %v2427 = vsub.f32 %v1283, %v1668
      %v2428 = vsub.f32 %v1288, %v1673
      %v2429 = vsub.f32 %v1293, %v1678
      %v2430 = vsub.f32 %v1298, %v1683
      %v2431 = vsub.f32 %v1303, %v1688
      %v2432 = vsub.f32 %v1308, %v1693
      %v2433 = vsub.f32 %v1313, %v1698
      %v2434 = vsub.f32 %v1318, %v1703
      %v2435 = vsub.f32 %v1323, %v1708
      %v2436 = vsub.f32 %v1328, %v1713
      %v2437 = vsub.f32 %v1333, %v1718
      %v2438 = vsub.f32 %v1338, %v1723
      %v2439 = vsub.f32 %v1343, %v1728
      %v2440 = vsub.f32 %v1348, %v1733
      %v2441 = vsub.f32 %v1353, %v1738
      %v2442 = vsub.f32 %v1358, %v1743
      %v2443 = vsub.f32 %v1363, %v1748
      %v2444 = vsub.f32 %v1368, %v1753
      %v2445 = vsub.f32 %v1373, %v1758
      %v2446 = vsub.f32 %v1378, %v1763
      %v2447 = vsub.f32 %v1383, %v1768
      %v2448 = vsub.f32 %v1388, %v1773
      %v2449 = vsub.f32 %v1393, %v1778
      %v2450 = vsub.f32 %v1398, %v1783
      %v2451 = vsub.f32 %v1403, %v1788
      %v2452 = vsub.f32 %v1408, %v1793
      %v2453 = vsub.f32 %v1413, %v1798
      %v2454 = vsub.f32 %v1418, %v1803
      %v2455 = vsub.f32 %v1423, %v1808
      %v2456 = vsub.f32 %v1428, %v1813
      %v2457 = vsub.f32 %v1433, %v1818
      %v2458 = vsub.f32 %v1438, %v1823
      %v2459 = vsub.f32 %v1443, %v1828
      %v2460 = vsub.f32 %v1448, %v1833
      %v2461 = vsub.f32 %v1453, %v1838
      %v2462 = vsub.f32 %v1458, %v1843
      %v2463 = vsub.f32 %v1463, %v1848
      %v2464 = vsub.f32 %v1468, %v1853
      %v2465 = vsub.f32 %v1473, %v1858
      %v2466 = vsub.f32 %v1478, %v1863
      %v2467 = vsub.f32 %v1483, %v1868
      %v2468 = vsub.f32 %v1488, %v1873
      %v2469 = vsub.f32 %v1493, %v1878
      %v2470 = vsub.f32 %v1498, %v1883
      %v2471 = vsub.f32 %v1503, %v1888
      %v2472 = vsub.f32 %v1508, %v1893
      %v2473 = vsub.f32 %v1513, %v1898
      %v2474 = vsub.f32 %v1518, %v1903
      %v2475 = vsub.f32 %v1523, %v1908
      %v2476 = vsub.f32 %v1528, %v1913
      %v2477 = vsub.f32 %v1533, %v1918
      %v2478 = vsub.f32 %v1538, %v1923
      %v2479 = vsub.f32 %v1543, %v1928
      %v2480 = vsub.f32 %v1548, %v1933
      %v2481 = vsub.f32 %v1553, %v1938
      %v2482 = vsub.f32 %v1558, %v1943
      %v2483 = vsub.f32 %v1563, %v1948
      %v2484 = vsub.f32 %v1568, %v1953
      %v2485 = vsub.f32 %v1573, %v1958
      %v2486 = vsub.f32 %v1578, %v1963
      %v2487 = vsub.f32 %v1583, %v1968
      %v2488 = vsub.f32 %v1588, %v1973
      %v2489 = vsub.f32 %v2107, %v1273
      %v2490 = vsub.f32 %v2112, %v1278
      %v2491 = vsub.f32 %v2117, %v1283
      %v2492 = vsub.f32 %v2122, %v1288
      %v2493 = vsub.f32 %v2127, %v1293
      %v2494 = vsub.f32 %v2132, %v1298
      %v2495 = vsub.f32 %v2137, %v1303
      %v2496 = vsub.f32 %v2142, %v1308
      %v2497 = vsub.f32 %v2147, %v1313
      %v2498 = vsub.f32 %v2152, %v1318
      %v2499 = vsub.f32 %v2157, %v1323
      %v2500 = vsub.f32 %v2162, %v1328
      %v2501 = vsub.f32 %v2167, %v1333
      %v2502 = vsub.f32 %v2172, %v1338
      %v2503 = vsub.f32 %v2177, %v1343
      %v2504 = vsub.f32 %v2182, %v1348
      %v2505 = vsub.f32 %v2187, %v1353
      %v2506 = vsub.f32 %v2192, %v1358
      %v2507 = vsub.f32 %v2197, %v1363
      %v2508 = vsub.f32 %v2202, %v1368
      %v2509 = vsub.f32 %v2207, %v1373
      %v2510 = vsub.f32 %v2212, %v1378
      %v2511 = vsub.f32 %v2217, %v1383
      %v2512 = vsub.f32 %v2222, %v1388
      %v2513 = vsub.f32 %v2227, %v1393
      %v2514 = vsub.f32 %v2232, %v1398
      %v2515 = vsub.f32 %v2237, %v1403
      %v2516 = vsub.f32 %v2242, %v1408
      %v2517 = vsub.f32 %v2247, %v1413
      %v2518 = vsub.f32 %v2252, %v1418
      %v2519 = vsub.f32 %v2257, %v1423
      %v2520 = vsub.f32 %v2262, %v1428
      %v2521 = vsub.f32 %v2267, %v1433
      %v2522 = vsub.f32 %v2272, %v1438
      %v2523 = vsub.f32 %v2277, %v1443
      %v2524 = vsub.f32 %v2282, %v1448
      %v2525 = vsub.f32 %v2287, %v1453
      %v2526 = vsub.f32 %v2292, %v1458
      %v2527 = vsub.f32 %v2297, %v1463
      %v2528 = vsub.f32 %v2302, %v1468
      %v2529 = vsub.f32 %v2307, %v1473
      %v2530 = vsub.f32 %v2312, %v1478
      %v2531 = vsub.f32 %v2317, %v1483
      %v2532 = vsub.f32 %v2322, %v1488
      %v2533 = vsub.f32 %v2327, %v1493
      %v2534 = vsub.f32 %v2332, %v1498
      %v2535 = vsub.f32 %v2337, %v1503
      %v2536 = vsub.f32 %v2342, %v1508
      %v2537 = vsub.f32 %v2347, %v1513
      %v2538 = vsub.f32 %v2352, %v1518
      %v2539 = vsub.f32 %v2357, %v1523
      %v2540 = vsub.f32 %v2362, %v1528
      %v2541 = vsub.f32 %v2367, %v1533
      %v2542 = vsub.f32 %v2372, %v1538
      %v2543 = vsub.f32 %v2377, %v1543
      %v2544 = vsub.f32 %v2382, %v1548
      %v2545 = vsub.f32 %v2387, %v1553
      %v2546 = vsub.f32 %v2392, %v1558
      %v2547 = vsub.f32 %v2397, %v1563
      %v2548 = vsub.f32 %v2402, %v1568
      %v2549 = vsub.f32 %v2407, %v1573
      %v2550 = vsub.f32 %v2412, %v1578
      %v2551 = vsub.f32 %v2417, %v1583
      %v2552 = vsub.f32 %v2422, %v1588
      %v2553 = vsub.f32 %v2489, %v1658
      %v2554 = vsub.f32 %v2490, %v1663
      %v2555 = vsub.f32 %v2491, %v1668
      %v2556 = vsub.f32 %v2492, %v1673
      %v2557 = vsub.f32 %v2493, %v1678
      %v2558 = vsub.f32 %v2494, %v1683
      %v2559 = vsub.f32 %v2495, %v1688
      %v2560 = vsub.f32 %v2496, %v1693
      %v2561 = vsub.f32 %v2497, %v1698
      %v2562 = vsub.f32 %v2498, %v1703
      %v2563 = vsub.f32 %v2499, %v1708
      %v2564 = vsub.f32 %v2500, %v1713
      %v2565 = vsub.f32 %v2501, %v1718
      %v2566 = vsub.f32 %v2502, %v1723
      %v2567 = vsub.f32 %v2503, %v1728
      %v2568 = vsub.f32 %v2504, %v1733
      %v2569 = vsub.f32 %v2505, %v1738
      %v2570 = vsub.f32 %v2506, %v1743
      %v2571 = vsub.f32 %v2507, %v1748
      %v2572 = vsub.f32 %v2508, %v1753
      %v2573 = vsub.f32 %v2509, %v1758
      %v2574 = vsub.f32 %v2510, %v1763
      %v2575 = vsub.f32 %v2511, %v1768
      %v2576 = vsub.f32 %v2512, %v1773
      %v2577 = vsub.f32 %v2513, %v1778
      %v2578 = vsub.f32 %v2514, %v1783
      %v2579 = vsub.f32 %v2515, %v1788
      %v2580 = vsub.f32 %v2516, %v1793
      %v2581 = vsub.f32 %v2517, %v1798
      %v2582 = vsub.f32 %v2518, %v1803
      %v2583 = vsub.f32 %v2519, %v1808
      %v2584 = vsub.f32 %v2520, %v1813
      %v2585 = vsub.f32 %v2521, %v1818
      %v2586 = vsub.f32 %v2522, %v1823
      %v2587 = vsub.f32 %v2523, %v1828
      %v2588 = vsub.f32 %v2524, %v1833
      %v2589 = vsub.f32 %v2525, %v1838
      %v2590 = vsub.f32 %v2526, %v1843
      %v2591 = vsub.f32 %v2527, %v1848
      %v2592 = vsub.f32 %v2528, %v1853
      %v2593 = vsub.f32 %v2529, %v1858
      %v2594 = vsub.f32 %v2530, %v1863
      %v2595 = vsub.f32 %v2531, %v1868
      %v2596 = vsub.f32 %v2532, %v1873
      %v2597 = vsub.f32 %v2533, %v1878
      %v2598 = vsub.f32 %v2534, %v1883
      %v2599 = vsub.f32 %v2535, %v1888
      %v2600 = vsub.f32 %v2536, %v1893
      %v2601 = vsub.f32 %v2537, %v1898
      %v2602 = vsub.f32 %v2538, %v1903
      %v2603 = vsub.f32 %v2539, %v1908
      %v2604 = vsub.f32 %v2540, %v1913
      %v2605 = vsub.f32 %v2541, %v1918
      %v2606 = vsub.f32 %v2542, %v1923
      %v2607 = vsub.f32 %v2543, %v1928
      %v2608 = vsub.f32 %v2544, %v1933
      %v2609 = vsub.f32 %v2545, %v1938
      %v2610 = vsub.f32 %v2546, %v1943
      %v2611 = vsub.f32 %v2547, %v1948
      %v2612 = vsub.f32 %v2548, %v1953
      %v2613 = vsub.f32 %v2549, %v1958
      %v2614 = vsub.f32 %v2550, %v1963
      %v2615 = vsub.f32 %v2551, %v1968
      %v2616 = vsub.f32 %v2552, %v1973
      %v2617 = vmul.f32 %v2425, %v389
      %v2618 = vmul.f32 %v2426, %v390
      %v2619 = vmul.f32 %v2427, %v391
      %v2620 = vmul.f32 %v2428, %v392
      %v2621 = vmul.f32 %v2429, %v393
      %v2622 = vmul.f32 %v2430, %v394
      %v2623 = vmul.f32 %v2431, %v395
      %v2624 = vmul.f32 %v2432, %v396
      %v2625 = vmul.f32 %v2433, %v397
      %v2626 = vmul.f32 %v2434, %v398
      %v2627 = vmul.f32 %v2435, %v399
      %v2628 = vmul.f32 %v2436, %v400
      %v2629 = vmul.f32 %v2437, %v401
      %v2630 = vmul.f32 %v2438, %v402
      %v2631 = vmul.f32 %v2439, %v403
      %v2632 = vmul.f32 %v2440, %v404
      %v2633 = vmul.f32 %v2441, %v389
      %v2634 = vmul.f32 %v2442, %v390
      %v2635 = vmul.f32 %v2443, %v391
      %v2636 = vmul.f32 %v2444, %v392
      %v2637 = vmul.f32 %v2445, %v393
      %v2638 = vmul.f32 %v2446, %v394
      %v2639 = vmul.f32 %v2447, %v395
      %v2640 = vmul.f32 %v2448, %v396
      %v2641 = vmul.f32 %v2449, %v397
      %v2642 = vmul.f32 %v2450, %v398
      %v2643 = vmul.f32 %v2451, %v399
      %v2644 = vmul.f32 %v2452, %v400
      %v2645 = vmul.f32 %v2453, %v401
      %v2646 = vmul.f32 %v2454, %v402
      %v2647 = vmul.f32 %v2455, %v403
      %v2648 = vmul.f32 %v2456, %v404
      %v2649 = vmul.f32 %v2457, %v389
      %v2650 = vmul.f32 %v2458, %v390
      %v2651 = vmul.f32 %v2459, %v391
      %v2652 = vmul.f32 %v2460, %v392
      %v2653 = vmul.f32 %v2461, %v393
      %v2654 = vmul.f32 %v2462, %v394
      %v2655 = vmul.f32 %v2463, %v395
      %v2656 = vmul.f32 %v2464, %v396
      %v2657 = vmul.f32 %v2465, %v397
      %v2658 = vmul.f32 %v2466, %v398
      %v2659 = vmul.f32 %v2467, %v399
      %v2660 = vmul.f32 %v2468, %v400
      %v2661 = vmul.f32 %v2469, %v401
      %v2662 = vmul.f32 %v2470, %v402
      %v2663 = vmul.f32 %v2471, %v403
      %v2664 = vmul.f32 %v2472, %v404
      %v2665 = vmul.f32 %v2473, %v389
      %v2666 = vmul.f32 %v2474, %v390
      %v2667 = vmul.f32 %v2475, %v391
      %v2668 = vmul.f32 %v2476, %v392
      %v2669 = vmul.f32 %v2477, %v393
      %v2670 = vmul.f32 %v2478, %v394
      %v2671 = vmul.f32 %v2479, %v395
      %v2672 = vmul.f32 %v2480, %v396
      %v2673 = vmul.f32 %v2481, %v397
      %v2674 = vmul.f32 %v2482, %v398
      %v2675 = vmul.f32 %v2483, %v399
      %v2676 = vmul.f32 %v2484, %v400
      %v2677 = vmul.f32 %v2485, %v401
      %v2678 = vmul.f32 %v2486, %v402
      %v2679 = vmul.f32 %v2487, %v403
      %v2680 = vmul.f32 %v2488, %v404
      %v2681 = vmul.f32 %v2553, %v389
      %v2682 = vmul.f32 %v2554, %v390
      %v2683 = vmul.f32 %v2555, %v391
      %v2684 = vmul.f32 %v2556, %v392
      %v2685 = vmul.f32 %v2557, %v393
      %v2686 = vmul.f32 %v2558, %v394
      %v2687 = vmul.f32 %v2559, %v395
      %v2688 = vmul.f32 %v2560, %v396
      %v2689 = vmul.f32 %v2561, %v397
      %v2690 = vmul.f32 %v2562, %v398
      %v2691 = vmul.f32 %v2563, %v399
      %v2692 = vmul.f32 %v2564, %v400
      %v2693 = vmul.f32 %v2565, %v401
      %v2694 = vmul.f32 %v2566, %v402
      %v2695 = vmul.f32 %v2567, %v403
      %v2696 = vmul.f32 %v2568, %v404
      %v2697 = vmul.f32 %v2569, %v389
      %v2698 = vmul.f32 %v2570, %v390
      %v2699 = vmul.f32 %v2571, %v391
      %v2700 = vmul.f32 %v2572, %v392
      %v2701 = vmul.f32 %v2573, %v393
      %v2702 = vmul.f32 %v2574, %v394
      %v2703 = vmul.f32 %v2575, %v395
      %v2704 = vmul.f32 %v2576, %v396
      %v2705 = vmul.f32 %v2577, %v397
      %v2706 = vmul.f32 %v2578, %v398
      %v2707 = vmul.f32 %v2579, %v399
      %v2708 = vmul.f32 %v2580, %v400
      %v2709 = vmul.f32 %v2581, %v401
      %v2710 = vmul.f32 %v2582, %v402
      %v2711 = vmul.f32 %v2583, %v403
      %v2712 = vmul.f32 %v2584, %v404
      %v2713 = vmul.f32 %v2585, %v389
      %v2714 = vmul.f32 %v2586, %v390
      %v2715 = vmul.f32 %v2587, %v391
      %v2716 = vmul.f32 %v2588, %v392
      %v2717 = vmul.f32 %v2589, %v393
      %v2718 = vmul.f32 %v2590, %v394
      %v2719 = vmul.f32 %v2591, %v395
      %v2720 = vmul.f32 %v2592, %v396
      %v2721 = vmul.f32 %v2593, %v397
      %v2722 = vmul.f32 %v2594, %v398
      %v2723 = vmul.f32 %v2595, %v399
      %v2724 = vmul.f32 %v2596, %v400
      %v2725 = vmul.f32 %v2597, %v401
      %v2726 = vmul.f32 %v2598, %v402
      %v2727 = vmul.f32 %v2599, %v403
      %v2728 = vmul.f32 %v2600, %v404
      %v2729 = vmul.f32 %v2601, %v389
      %v2730 = vmul.f32 %v2602, %v390
      %v2731 = vmul.f32 %v2603, %v391
      %v2732 = vmul.f32 %v2604, %v392
      %v2733 = vmul.f32 %v2605, %v393
      %v2734 = vmul.f32 %v2606, %v394
      %v2735 = vmul.f32 %v2607, %v395
      %v2736 = vmul.f32 %v2608, %v396
      %v2737 = vmul.f32 %v2609, %v397
      %v2738 = vmul.f32 %v2610, %v398
      %v2739 = vmul.f32 %v2611, %v399
      %v2740 = vmul.f32 %v2612, %v400
      %v2741 = vmul.f32 %v2613, %v401
      %v2742 = vmul.f32 %v2614, %v402
      %v2743 = vmul.f32 %v2615, %v403
      %v2744 = vmul.f32 %v2616, %v404
      %2745 = vmatprep.subr.mxu0 0.0
      %2746 = vmatpush1.msra.mxu0 %v309
      %2747 = vmatprep.subr.mxu0 0.0
      %2748 = vmatpush1.msra.mxu0 %v310
      %2749 = vmatprep.subr.mxu0 0.0
      %2750 = vmatpush1.msra.mxu0 %v311
      %2751 = vmatprep.subr.mxu0 0.0
      %2752 = vmatpush1.msra.mxu0 %v312
      %2753 = vmatprep.subr.mxu0 0.0
      %2754 = vmatpush1.msra.mxu0 %v313
      %2755 = vmatprep.subr.mxu0 0.0
      %2756 = vmatpush1.msra.mxu0 %v314
      %2757 = vmatprep.subr.mxu0 0.0
      %2758 = vmatpush1.msra.mxu0 %v315
      %2759 = vmatprep.subr.mxu0 0.0
      %2760 = vmatpush1.msra.mxu0 %v316
      %2761 = vmatprep.subr.mxu0 0.0
      %2762 = vmatpush1.msra.mxu0 %v317
      %2763 = vmatprep.subr.mxu0 0.0
      %2764 = vmatpush1.msra.mxu0 %v318
      %2765 = vmatprep.subr.mxu0 0.0
      %2766 = vmatpush1.msra.mxu0 %v319
      %2767 = vmatprep.subr.mxu0 0.0
      %2768 = vmatpush1.msra.mxu0 %v320
      %2769 = vmatprep.subr.mxu0 0.0
      %2770 = vmatpush1.msra.mxu0 %v321
      %2771 = vmatprep.subr.mxu0 0.0
      %2772 = vmatpush1.msra.mxu0 %v322
      %2773 = vmatprep.subr.mxu0 0.0
      %2774 = vmatpush1.msra.mxu0 %v323
      %2775 = vmatprep.subr.mxu0 0.0
      %2776 = vmatpush1.msra.mxu0 %v324
      %2777 = vmatprep.subr.mxu0 0.0
      %2778 = vmatpush1.msra.mxu0 0.0
      %2779 = vmatprep.subr.mxu0 0.0
      %2780 = vmatpush1.msra.mxu0 0.0
      %2781 = vmatprep.subr.mxu0 0.0
      %2782 = vmatpush1.msra.mxu0 0.0
      %2783 = vmatprep.subr.mxu0 0.0
      %2784 = vmatpush1.msra.mxu0 0.0
      %2785 = vmatprep.subr.mxu0 0.0
      %2786 = vmatpush1.msra.mxu0 0.0
      %2787 = vmatprep.subr.mxu0 0.0
      %2788 = vmatpush1.msra.mxu0 0.0
      %2789 = vmatprep.subr.mxu0 0.0
      %2790 = vmatpush1.msra.mxu0 0.0
      %2791 = vmatprep.subr.mxu0 0.0
      %2792 = vmatpush1.msra.mxu0 0.0
      %2793 = vmatprep.subr.mxu0 0.0
      %2794 = vmatpush1.msra.mxu0 0.0
      %2795 = vmatprep.subr.mxu0 0.0
      %2796 = vmatpush1.msra.mxu0 0.0
      %2797 = vmatprep.subr.mxu0 0.0
      %2798 = vmatpush1.msra.mxu0 0.0
      %2799 = vmatprep.subr.mxu0 0.0
      %2800 = vmatpush1.msra.mxu0 0.0
      %2801 = vmatprep.subr.mxu0 0.0
      %2802 = vmatpush1.msra.mxu0 0.0
      %2803 = vmatprep.subr.mxu0 0.0
      %2804 = vmatpush1.msra.mxu0 0.0
      %2805 = vmatprep.subr.mxu0 0.0
      %2806 = vmatpush1.msra.mxu0 0.0
      %2807 = vmatprep.subr.mxu0 0.0
      %2808 = vmatpush1.msra.mxu0 0.0
      %2809 = vmatprep.mubr.f32.mxu0 0.0
      %2810 = vmatmul.mubr.f32.gmra.mrb[0].mxu0 %v2617
      %v2811 = vpop.f32.mrb[0].mxu0
      %v2812 = vadd.f32 0.0, %v2811
      %v2813 = vpop.f32.mrb[0].mxu0
      %2814 = vmatprep.mubr.f32.mxu0 0.0
      %2815 = vmatmul.mubr.f32.gmra.mrb[0].mxu0 %v2618
      %v2816 = vpop.f32.mrb[0].mxu0
      %v2817 = vadd.f32 0.0, %v2816
      %v2818 = vpop.f32.mrb[0].mxu0
      %2819 = vmatprep.mubr.f32.mxu0 0.0
      %2820 = vmatmul.mubr.f32.gmra.mrb[0].mxu0 %v2619
      %v2821 = vpop.f32.mrb[0].mxu0
      %v2822 = vadd.f32 0.0, %v2821
      %v2823 = vpop.f32.mrb[0].mxu0
      %2824 = vmatprep.mubr.f32.mxu0 0.0
      %2825 = vmatmul.mubr.f32.gmra.mrb[0].mxu0 %v2620
      %v2826 = vpop.f32.mrb[0].mxu0
      %v2827 = vadd.f32 0.0, %v2826
      %v2828 = vpop.f32.mrb[0].mxu0
      %2829 = vmatprep.mubr.f32.mxu0 0.0
      %2830 = vmatmul.mubr.f32.gmra.mrb[0].mxu0 %v2621
      %v2831 = vpop.f32.mrb[0].mxu0
      %v2832 = vadd.f32 0.0, %v2831
      %v2833 = vpop.f32.mrb[0].mxu0
      %2834 = vmatprep.mubr.f32.mxu0 0.0
      %2835 = vmatmul.mubr.f32.gmra.mrb[0].mxu0 %v2622
      %v2836 = vpop.f32.mrb[0].mxu0
      %v2837 = vadd.f32 0.0, %v2836
      %v2838 = vpop.f32.mrb[0].mxu0
      %2839 = vmatprep.mubr.f32.mxu0 0.0
      %2840 = vmatmul.mubr.f32.gmra.mrb[0].mxu0 %v2623
      %v2841 = vpop.f32.mrb[0].mxu0
      %v2842 = vadd.f32 0.0, %v2841
      %v2843 = vpop.f32.mrb[0].mxu0
      %2844 = vmatprep.mubr.f32.mxu0 0.0
      %2845 = vmatmul.mubr.f32.gmra.mrb[0].mxu0 %v2624
      %v2846 = vpop.f32.mrb[0].mxu0
      %v2847 = vadd.f32 0.0, %v2846
      %v2848 = vpop.f32.mrb[0].mxu0
      %2849 = vmatprep.mubr.f32.mxu0 0.0
      %2850 = vmatmul.mubr.f32.gmra.mrb[0].mxu0 %v2625
      %v2851 = vpop.f32.mrb[0].mxu0
      %v2852 = vadd.f32 0.0, %v2851
      %v2853 = vpop.f32.mrb[0].mxu0
      %2854 = vmatprep.mubr.f32.mxu0 0.0
      %2855 = vmatmul.mubr.f32.gmra.mrb[0].mxu0 %v2626
      %v2856 = vpop.f32.mrb[0].mxu0
      %v2857 = vadd.f32 0.0, %v2856
      %v2858 = vpop.f32.mrb[0].mxu0
      %2859 = vmatprep.mubr.f32.mxu0 0.0
      %2860 = vmatmul.mubr.f32.gmra.mrb[0].mxu0 %v2627
      %v2861 = vpop.f32.mrb[0].mxu0
      %v2862 = vadd.f32 0.0, %v2861
      %v2863 = vpop.f32.mrb[0].mxu0
      %2864 = vmatprep.mubr.f32.mxu0 0.0
      %2865 = vmatmul.mubr.f32.gmra.mrb[0].mxu0 %v2628
      %v2866 = vpop.f32.mrb[0].mxu0
      %v2867 = vadd.f32 0.0, %v2866
      %v2868 = vpop.f32.mrb[0].mxu0
      %2869 = vmatprep.mubr.f32.mxu0 0.0
      %2870 = vmatmul.mubr.f32.gmra.mrb[0].mxu0 %v2629
      %v2871 = vpop.f32.mrb[0].mxu0
      %v2872 = vadd.f32 0.0, %v2871
      %v2873 = vpop.f32.mrb[0].mxu0
      %2874 = vmatprep.mubr.f32.mxu0 0.0
      %2875 = vmatmul.mubr.f32.gmra.mrb[0].mxu0 %v2630
      %v2876 = vpop.f32.mrb[0].mxu0
      %v2877 = vadd.f32 0.0, %v2876
      %v2878 = vpop.f32.mrb[0].mxu0
      %2879 = vmatprep.mubr.f32.mxu0 0.0
      %2880 = vmatmul.mubr.f32.gmra.mrb[0].mxu0 %v2631
      %v2881 = vpop.f32.mrb[0].mxu0
      %v2882 = vadd.f32 0.0, %v2881
      %v2883 = vpop.f32.mrb[0].mxu0
      %2884 = vmatprep.mubr.f32.mxu0 0.0
      %2885 = vmatmul.mubr.f32.gmra.mrb[0].mxu0 %v2632
      %v2886 = vpop.f32.mrb[0].mxu0
      %v2887 = vadd.f32 0.0, %v2886
      %v2888 = vpop.f32.mrb[0].mxu0
      %2889 = vmatprep.mubr.f32.mxu0 0.0
      %2890 = vmatmul.mubr.f32.gmra.mrb[0].mxu0 %v2633
      %v2891 = vpop.f32.mrb[0].mxu0
      %v2892 = vadd.f32 0.0, %v2891
      %v2893 = vpop.f32.mrb[0].mxu0
      %2894 = vmatprep.mubr.f32.mxu0 0.0
      %2895 = vmatmul.mubr.f32.gmra.mrb[0].mxu0 %v2634
      %v2896 = vpop.f32.mrb[0].mxu0
      %v2897 = vadd.f32 0.0, %v2896
      %v2898 = vpop.f32.mrb[0].mxu0
      %2899 = vmatprep.mubr.f32.mxu0 0.0
      %2900 = vmatmul.mubr.f32.gmra.mrb[0].mxu0 %v2635
      %v2901 = vpop.f32.mrb[0].mxu0
      %v2902 = vadd.f32 0.0, %v2901
      %v2903 = vpop.f32.mrb[0].mxu0
      %2904 = vmatprep.mubr.f32.mxu0 0.0
      %2905 = vmatmul.mubr.f32.gmra.mrb[0].mxu0 %v2636
      %v2906 = vpop.f32.mrb[0].mxu0
      %v2907 = vadd.f32 0.0, %v2906
      %v2908 = vpop.f32.mrb[0].mxu0
      %2909 = vmatprep.mubr.f32.mxu0 0.0
      %2910 = vmatmul.mubr.f32.gmra.mrb[0].mxu0 %v2637
      %v2911 = vpop.f32.mrb[0].mxu0
      %v2912 = vadd.f32 0.0, %v2911
      %v2913 = vpop.f32.mrb[0].mxu0
      %2914 = vmatprep.mubr.f32.mxu0 0.0
      %2915 = vmatmul.mubr.f32.gmra.mrb[0].mxu0 %v2638
      %v2916 = vpop.f32.mrb[0].mxu0
      %v2917 = vadd.f32 0.0, %v2916
      %v2918 = vpop.f32.mrb[0].mxu0
      %2919 = vmatprep.mubr.f32.mxu0 0.0
      %2920 = vmatmul.mubr.f32.gmra.mrb[0].mxu0 %v2639
      %v2921 = vpop.f32.mrb[0].mxu0
      %v2922 = vadd.f32 0.0, %v2921
      %v2923 = vpop.f32.mrb[0].mxu0
      %2924 = vmatprep.mubr.f32.mxu0 0.0
      %2925 = vmatmul.mubr.f32.gmra.mrb[0].mxu0 %v2640
      %v2926 = vpop.f32.mrb[0].mxu0
      %v2927 = vadd.f32 0.0, %v2926
      %v2928 = vpop.f32.mrb[0].mxu0
      %2929 = vmatprep.mubr.f32.mxu0 0.0
      %2930 = vmatmul.mubr.f32.gmra.mrb[0].mxu0 %v2641
      %v2931 = vpop.f32.mrb[0].mxu0
      %v2932 = vadd.f32 0.0, %v2931
      %v2933 = vpop.f32.mrb[0].mxu0
      %2934 = vmatprep.mubr.f32.mxu0 0.0
      %2935 = vmatmul.mubr.f32.gmra.mrb[0].mxu0 %v2642
      %v2936 = vpop.f32.mrb[0].mxu0
      %v2937 = vadd.f32 0.0, %v2936
      %v2938 = vpop.f32.mrb[0].mxu0
      %2939 = vmatprep.mubr.f32.mxu0 0.0
      %2940 = vmatmul.mubr.f32.gmra.mrb[0].mxu0 %v2643
      %v2941 = vpop.f32.mrb[0].mxu0
      %v2942 = vadd.f32 0.0, %v2941
      %v2943 = vpop.f32.mrb[0].mxu0
      %2944 = vmatprep.mubr.f32.mxu0 0.0
      %2945 = vmatmul.mubr.f32.gmra.mrb[0].mxu0 %v2644
      %v2946 = vpop.f32.mrb[0].mxu0
      %v2947 = vadd.f32 0.0, %v2946
      %v2948 = vpop.f32.mrb[0].mxu0
      %2949 = vmatprep.mubr.f32.mxu0 0.0
      %2950 = vmatmul.mubr.f32.gmra.mrb[0].mxu0 %v2645
      %v2951 = vpop.f32.mrb[0].mxu0
      %v2952 = vadd.f32 0.0, %v2951
      %v2953 = vpop.f32.mrb[0].mxu0
      %2954 = vmatprep.mubr.f32.mxu0 0.0
      %2955 = vmatmul.mubr.f32.gmra.mrb[0].mxu0 %v2646
      %v2956 = vpop.f32.mrb[0].mxu0
      %v2957 = vadd.f32 0.0, %v2956
      %v2958 = vpop.f32.mrb[0].mxu0
      %2959 = vmatprep.mubr.f32.mxu0 0.0
      %2960 = vmatmul.mubr.f32.gmra.mrb[0].mxu0 %v2647
      %v2961 = vpop.f32.mrb[0].mxu0
      %v2962 = vadd.f32 0.0, %v2961
      %v2963 = vpop.f32.mrb[0].mxu0
      %2964 = vmatprep.mubr.f32.mxu0 0.0
      %2965 = vmatmul.mubr.f32.gmra.mrb[0].mxu0 %v2648
      %v2966 = vpop.f32.mrb[0].mxu0
      %v2967 = vadd.f32 0.0, %v2966
      %v2968 = vpop.f32.mrb[0].mxu0
      %2969 = vmatprep.mubr.f32.mxu0 0.0
      %2970 = vmatmul.mubr.f32.gmra.mrb[0].mxu0 %v2649
      %v2971 = vpop.f32.mrb[0].mxu0
      %v2972 = vadd.f32 0.0, %v2971
      %v2973 = vpop.f32.mrb[0].mxu0
      %2974 = vmatprep.mubr.f32.mxu0 0.0
      %2975 = vmatmul.mubr.f32.gmra.mrb[0].mxu0 %v2650
      %v2976 = vpop.f32.mrb[0].mxu0
      %v2977 = vadd.f32 0.0, %v2976
      %v2978 = vpop.f32.mrb[0].mxu0
      %2979 = vmatprep.mubr.f32.mxu0 0.0
      %2980 = vmatmul.mubr.f32.gmra.mrb[0].mxu0 %v2651
      %v2981 = vpop.f32.mrb[0].mxu0
      %v2982 = vadd.f32 0.0, %v2981
      %v2983 = vpop.f32.mrb[0].mxu0
      %2984 = vmatprep.mubr.f32.mxu0 0.0
      %2985 = vmatmul.mubr.f32.gmra.mrb[0].mxu0 %v2652
      %v2986 = vpop.f32.mrb[0].mxu0
      %v2987 = vadd.f32 0.0, %v2986
      %v2988 = vpop.f32.mrb[0].mxu0
      %2989 = vmatprep.mubr.f32.mxu0 0.0
      %2990 = vmatmul.mubr.f32.gmra.mrb[0].mxu0 %v2653
      %v2991 = vpop.f32.mrb[0].mxu0
      %v2992 = vadd.f32 0.0, %v2991
      %v2993 = vpop.f32.mrb[0].mxu0
      %2994 = vmatprep.mubr.f32.mxu0 0.0
      %2995 = vmatmul.mubr.f32.gmra.mrb[0].mxu0 %v2654
      %v2996 = vpop.f32.mrb[0].mxu0
      %v2997 = vadd.f32 0.0, %v2996
      %v2998 = vpop.f32.mrb[0].mxu0
      %2999 = vmatprep.mubr.f32.mxu0 0.0
      %3000 = vmatmul.mubr.f32.gmra.mrb[0].mxu0 %v2655
      %v3001 = vpop.f32.mrb[0].mxu0
      %v3002 = vadd.f32 0.0, %v3001
      %v3003 = vpop.f32.mrb[0].mxu0
      %3004 = vmatprep.mubr.f32.mxu0 0.0
      %3005 = vmatmul.mubr.f32.gmra.mrb[0].mxu0 %v2656
      %v3006 = vpop.f32.mrb[0].mxu0
      %v3007 = vadd.f32 0.0, %v3006
      %v3008 = vpop.f32.mrb[0].mxu0
      %3009 = vmatprep.mubr.f32.mxu0 0.0
      %3010 = vmatmul.mubr.f32.gmra.mrb[0].mxu0 %v2657
      %v3011 = vpop.f32.mrb[0].mxu0
      %v3012 = vadd.f32 0.0, %v3011
      %v3013 = vpop.f32.mrb[0].mxu0
      %3014 = vmatprep.mubr.f32.mxu0 0.0
      %3015 = vmatmul.mubr.f32.gmra.mrb[0].mxu0 %v2658
      %v3016 = vpop.f32.mrb[0].mxu0
      %v3017 = vadd.f32 0.0, %v3016
      %v3018 = vpop.f32.mrb[0].mxu0
      %3019 = vmatprep.mubr.f32.mxu0 0.0
      %3020 = vmatmul.mubr.f32.gmra.mrb[0].mxu0 %v2659
      %v3021 = vpop.f32.mrb[0].mxu0
      %v3022 = vadd.f32 0.0, %v3021
      %v3023 = vpop.f32.mrb[0].mxu0
      %3024 = vmatprep.mubr.f32.mxu0 0.0
      %3025 = vmatmul.mubr.f32.gmra.mrb[0].mxu0 %v2660
      %v3026 = vpop.f32.mrb[0].mxu0
      %v3027 = vadd.f32 0.0, %v3026
      %v3028 = vpop.f32.mrb[0].mxu0
      %3029 = vmatprep.mubr.f32.mxu0 0.0
      %3030 = vmatmul.mubr.f32.gmra.mrb[0].mxu0 %v2661
      %v3031 = vpop.f32.mrb[0].mxu0
      %v3032 = vadd.f32 0.0, %v3031
      %v3033 = vpop.f32.mrb[0].mxu0
      %3034 = vmatprep.mubr.f32.mxu0 0.0
      %3035 = vmatmul.mubr.f32.gmra.mrb[0].mxu0 %v2662
      %v3036 = vpop.f32.mrb[0].mxu0
      %v3037 = vadd.f32 0.0, %v3036
      %v3038 = vpop.f32.mrb[0].mxu0
      %3039 = vmatprep.mubr.f32.mxu0 0.0
      %3040 = vmatmul.mubr.f32.gmra.mrb[0].mxu0 %v2663
      %v3041 = vpop.f32.mrb[0].mxu0
      %v3042 = vadd.f32 0.0, %v3041
      %v3043 = vpop.f32.mrb[0].mxu0
      %3044 = vmatprep.mubr.f32.mxu0 0.0
      %3045 = vmatmul.mubr.f32.gmra.mrb[0].mxu0 %v2664
      %v3046 = vpop.f32.mrb[0].mxu0
      %v3047 = vadd.f32 0.0, %v3046
      %v3048 = vpop.f32.mrb[0].mxu0
      %3049 = vmatprep.mubr.f32.mxu0 0.0
      %3050 = vmatmul.mubr.f32.gmra.mrb[0].mxu0 %v2665
      %v3051 = vpop.f32.mrb[0].mxu0
      %v3052 = vadd.f32 0.0, %v3051
      %v3053 = vpop.f32.mrb[0].mxu0
      %3054 = vmatprep.mubr.f32.mxu0 0.0
      %3055 = vmatmul.mubr.f32.gmra.mrb[0].mxu0 %v2666
      %v3056 = vpop.f32.mrb[0].mxu0
      %v3057 = vadd.f32 0.0, %v3056
      %v3058 = vpop.f32.mrb[0].mxu0
      %3059 = vmatprep.mubr.f32.mxu0 0.0
      %3060 = vmatmul.mubr.f32.gmra.mrb[0].mxu0 %v2667
      %v3061 = vpop.f32.mrb[0].mxu0
      %v3062 = vadd.f32 0.0, %v3061
      %v3063 = vpop.f32.mrb[0].mxu0
      %3064 = vmatprep.mubr.f32.mxu0 0.0
      %3065 = vmatmul.mubr.f32.gmra.mrb[0].mxu0 %v2668
      %v3066 = vpop.f32.mrb[0].mxu0
      %v3067 = vadd.f32 0.0, %v3066
      %v3068 = vpop.f32.mrb[0].mxu0
      %3069 = vmatprep.mubr.f32.mxu0 0.0
      %3070 = vmatmul.mubr.f32.gmra.mrb[0].mxu0 %v2669
      %v3071 = vpop.f32.mrb[0].mxu0
      %v3072 = vadd.f32 0.0, %v3071
      %v3073 = vpop.f32.mrb[0].mxu0
      %3074 = vmatprep.mubr.f32.mxu0 0.0
      %3075 = vmatmul.mubr.f32.gmra.mrb[0].mxu0 %v2670
      %v3076 = vpop.f32.mrb[0].mxu0
      %v3077 = vadd.f32 0.0, %v3076
      %v3078 = vpop.f32.mrb[0].mxu0
      %3079 = vmatprep.mubr.f32.mxu0 0.0
      %3080 = vmatmul.mubr.f32.gmra.mrb[0].mxu0 %v2671
      %v3081 = vpop.f32.mrb[0].mxu0
      %v3082 = vadd.f32 0.0, %v3081
      %v3083 = vpop.f32.mrb[0].mxu0
      %3084 = vmatprep.mubr.f32.mxu0 0.0
      %3085 = vmatmul.mubr.f32.gmra.mrb[0].mxu0 %v2672
      %v3086 = vpop.f32.mrb[0].mxu0
      %v3087 = vadd.f32 0.0, %v3086
      %v3088 = vpop.f32.mrb[0].mxu0
      %3089 = vmatprep.mubr.f32.mxu0 0.0
      %3090 = vmatmul.mubr.f32.gmra.mrb[0].mxu0 %v2673
      %v3091 = vpop.f32.mrb[0].mxu0
      %v3092 = vadd.f32 0.0, %v3091
      %v3093 = vpop.f32.mrb[0].mxu0
      %3094 = vmatprep.mubr.f32.mxu0 0.0
      %3095 = vmatmul.mubr.f32.gmra.mrb[0].mxu0 %v2674
      %v3096 = vpop.f32.mrb[0].mxu0
      %v3097 = vadd.f32 0.0, %v3096
      %v3098 = vpop.f32.mrb[0].mxu0
      %3099 = vmatprep.mubr.f32.mxu0 0.0
      %3100 = vmatmul.mubr.f32.gmra.mrb[0].mxu0 %v2675
      %v3101 = vpop.f32.mrb[0].mxu0
      %v3102 = vadd.f32 0.0, %v3101
      %v3103 = vpop.f32.mrb[0].mxu0
      %3104 = vmatprep.mubr.f32.mxu0 0.0
      %3105 = vmatmul.mubr.f32.gmra.mrb[0].mxu0 %v2676
      %v3106 = vpop.f32.mrb[0].mxu0
      %v3107 = vadd.f32 0.0, %v3106
      %v3108 = vpop.f32.mrb[0].mxu0
      %3109 = vmatprep.mubr.f32.mxu0 0.0
      %3110 = vmatmul.mubr.f32.gmra.mrb[0].mxu0 %v2677
      %v3111 = vpop.f32.mrb[0].mxu0
      %v3112 = vadd.f32 0.0, %v3111
      %v3113 = vpop.f32.mrb[0].mxu0
      %3114 = vmatprep.mubr.f32.mxu0 0.0
      %3115 = vmatmul.mubr.f32.gmra.mrb[0].mxu0 %v2678
      %v3116 = vpop.f32.mrb[0].mxu0
      %v3117 = vadd.f32 0.0, %v3116
      %v3118 = vpop.f32.mrb[0].mxu0
      %3119 = vmatprep.mubr.f32.mxu0 0.0
      %3120 = vmatmul.mubr.f32.gmra.mrb[0].mxu0 %v2679
      %v3121 = vpop.f32.mrb[0].mxu0
      %v3122 = vadd.f32 0.0, %v3121
      %v3123 = vpop.f32.mrb[0].mxu0
      %3124 = vmatprep.mubr.f32.mxu0 0.0
      %3125 = vmatmul.mubr.f32.gmra.mrb[0].mxu0 %v2680
      %v3126 = vpop.f32.mrb[0].mxu0
      %v3127 = vadd.f32 0.0, %v3126
      %v3128 = vpop.f32.mrb[0].mxu0
      %3129 = vdwg.mxu0
      %3130 = vmatprep.subr.mxu0 0.0
      %3131 = vmatpush1.msra.mxu0 %v341
      %3132 = vmatprep.subr.mxu0 0.0
      %3133 = vmatpush1.msra.mxu0 %v342
      %3134 = vmatprep.subr.mxu0 0.0
      %3135 = vmatpush1.msra.mxu0 %v343
      %3136 = vmatprep.subr.mxu0 0.0
      %3137 = vmatpush1.msra.mxu0 %v344
      %3138 = vmatprep.subr.mxu0 0.0
      %3139 = vmatpush1.msra.mxu0 %v345
      %3140 = vmatprep.subr.mxu0 0.0
      %3141 = vmatpush1.msra.mxu0 %v346
      %3142 = vmatprep.subr.mxu0 0.0
      %3143 = vmatpush1.msra.mxu0 %v347
      %3144 = vmatprep.subr.mxu0 0.0
      %3145 = vmatpush1.msra.mxu0 %v348
      %3146 = vmatprep.subr.mxu0 0.0
      %3147 = vmatpush1.msra.mxu0 %v349
      %3148 = vmatprep.subr.mxu0 0.0
      %3149 = vmatpush1.msra.mxu0 %v350
      %3150 = vmatprep.subr.mxu0 0.0
      %3151 = vmatpush1.msra.mxu0 %v351
      %3152 = vmatprep.subr.mxu0 0.0
      %3153 = vmatpush1.msra.mxu0 %v352
      %3154 = vmatprep.subr.mxu0 0.0
      %3155 = vmatpush1.msra.mxu0 %v353
      %3156 = vmatprep.subr.mxu0 0.0
      %3157 = vmatpush1.msra.mxu0 %v354
      %3158 = vmatprep.subr.mxu0 0.0
      %3159 = vmatpush1.msra.mxu0 %v355
      %3160 = vmatprep.subr.mxu0 0.0
      %3161 = vmatpush1.msra.mxu0 %v356
      %3162 = vmatprep.subr.mxu0 0.0
      %3163 = vmatpush1.msra.mxu0 0.0
      %3164 = vmatprep.subr.mxu0 0.0
      %3165 = vmatpush1.msra.mxu0 0.0
      %3166 = vmatprep.subr.mxu0 0.0
      %3167 = vmatpush1.msra.mxu0 0.0
      %3168 = vmatprep.subr.mxu0 0.0
      %3169 = vmatpush1.msra.mxu0 0.0
      %3170 = vmatprep.subr.mxu0 0.0
      %3171 = vmatpush1.msra.mxu0 0.0
      %3172 = vmatprep.subr.mxu0 0.0
      %3173 = vmatpush1.msra.mxu0 0.0
      %3174 = vmatprep.subr.mxu0 0.0
      %3175 = vmatpush1.msra.mxu0 0.0
      %3176 = vmatprep.subr.mxu0 0.0
      %3177 = vmatpush1.msra.mxu0 0.0
      %3178 = vmatprep.subr.mxu0 0.0
      %3179 = vmatpush1.msra.mxu0 0.0
      %3180 = vmatprep.subr.mxu0 0.0
      %3181 = vmatpush1.msra.mxu0 0.0
      %3182 = vmatprep.subr.mxu0 0.0
      %3183 = vmatpush1.msra.mxu0 0.0
      %3184 = vmatprep.subr.mxu0 0.0
      %3185 = vmatpush1.msra.mxu0 0.0
      %3186 = vmatprep.subr.mxu0 0.0
      %3187 = vmatpush1.msra.mxu0 0.0
      %3188 = vmatprep.subr.mxu0 0.0
      %3189 = vmatpush1.msra.mxu0 0.0
      %3190 = vmatprep.subr.mxu0 0.0
      %3191 = vmatpush1.msra.mxu0 0.0
      %3192 = vmatprep.subr.mxu0 0.0
      %3193 = vmatpush1.msra.mxu0 0.0
      %3194 = vmatprep.mubr.f32.mxu0 0.0
      %3195 = vmatmul.mubr.f32.gmra.mrb[0].mxu0 %v2681
      %v3196 = vpop.f32.mrb[0].mxu0
      %v3197 = vadd.f32 0.0, %v3196
      %v3198 = vpop.f32.mrb[0].mxu0
      %3199 = vmatprep.mubr.f32.mxu0 0.0
      %3200 = vmatmul.mubr.f32.gmra.mrb[0].mxu0 %v2682
      %v3201 = vpop.f32.mrb[0].mxu0
      %v3202 = vadd.f32 0.0, %v3201
      %v3203 = vpop.f32.mrb[0].mxu0
      %3204 = vmatprep.mubr.f32.mxu0 0.0
      %3205 = vmatmul.mubr.f32.gmra.mrb[0].mxu0 %v2683
      %v3206 = vpop.f32.mrb[0].mxu0
      %v3207 = vadd.f32 0.0, %v3206
      %v3208 = vpop.f32.mrb[0].mxu0
      %3209 = vmatprep.mubr.f32.mxu0 0.0
      %3210 = vmatmul.mubr.f32.gmra.mrb[0].mxu0 %v2684
      %v3211 = vpop.f32.mrb[0].mxu0
      %v3212 = vadd.f32 0.0, %v3211
      %v3213 = vpop.f32.mrb[0].mxu0
      %3214 = vmatprep.mubr.f32.mxu0 0.0
      %3215 = vmatmul.mubr.f32.gmra.mrb[0].mxu0 %v2685
      %v3216 = vpop.f32.mrb[0].mxu0
      %v3217 = vadd.f32 0.0, %v3216
      %v3218 = vpop.f32.mrb[0].mxu0
      %3219 = vmatprep.mubr.f32.mxu0 0.0
      %3220 = vmatmul.mubr.f32.gmra.mrb[0].mxu0 %v2686
      %v3221 = vpop.f32.mrb[0].mxu0
      %v3222 = vadd.f32 0.0, %v3221
      %v3223 = vpop.f32.mrb[0].mxu0
      %3224 = vmatprep.mubr.f32.mxu0 0.0
      %3225 = vmatmul.mubr.f32.gmra.mrb[0].mxu0 %v2687
      %v3226 = vpop.f32.mrb[0].mxu0
      %v3227 = vadd.f32 0.0, %v3226
      %v3228 = vpop.f32.mrb[0].mxu0
      %3229 = vmatprep.mubr.f32.mxu0 0.0
      %3230 = vmatmul.mubr.f32.gmra.mrb[0].mxu0 %v2688
      %v3231 = vpop.f32.mrb[0].mxu0
      %v3232 = vadd.f32 0.0, %v3231
      %v3233 = vpop.f32.mrb[0].mxu0
      %3234 = vmatprep.mubr.f32.mxu0 0.0
      %3235 = vmatmul.mubr.f32.gmra.mrb[0].mxu0 %v2689
      %v3236 = vpop.f32.mrb[0].mxu0
      %v3237 = vadd.f32 0.0, %v3236
      %v3238 = vpop.f32.mrb[0].mxu0
      %3239 = vmatprep.mubr.f32.mxu0 0.0
      %3240 = vmatmul.mubr.f32.gmra.mrb[0].mxu0 %v2690
      %v3241 = vpop.f32.mrb[0].mxu0
      %v3242 = vadd.f32 0.0, %v3241
      %v3243 = vpop.f32.mrb[0].mxu0
      %3244 = vmatprep.mubr.f32.mxu0 0.0
      %3245 = vmatmul.mubr.f32.gmra.mrb[0].mxu0 %v2691
      %v3246 = vpop.f32.mrb[0].mxu0
      %v3247 = vadd.f32 0.0, %v3246
      %v3248 = vpop.f32.mrb[0].mxu0
      %3249 = vmatprep.mubr.f32.mxu0 0.0
      %3250 = vmatmul.mubr.f32.gmra.mrb[0].mxu0 %v2692
      %v3251 = vpop.f32.mrb[0].mxu0
      %v3252 = vadd.f32 0.0, %v3251
      %v3253 = vpop.f32.mrb[0].mxu0
      %3254 = vmatprep.mubr.f32.mxu0 0.0
      %3255 = vmatmul.mubr.f32.gmra.mrb[0].mxu0 %v2693
      %v3256 = vpop.f32.mrb[0].mxu0
      %v3257 = vadd.f32 0.0, %v3256
      %v3258 = vpop.f32.mrb[0].mxu0
      %3259 = vmatprep.mubr.f32.mxu0 0.0
      %3260 = vmatmul.mubr.f32.gmra.mrb[0].mxu0 %v2694
      %v3261 = vpop.f32.mrb[0].mxu0
      %v3262 = vadd.f32 0.0, %v3261
      %v3263 = vpop.f32.mrb[0].mxu0
      %3264 = vmatprep.mubr.f32.mxu0 0.0
      %3265 = vmatmul.mubr.f32.gmra.mrb[0].mxu0 %v2695
      %v3266 = vpop.f32.mrb[0].mxu0
      %v3267 = vadd.f32 0.0, %v3266
      %v3268 = vpop.f32.mrb[0].mxu0
      %3269 = vmatprep.mubr.f32.mxu0 0.0
      %3270 = vmatmul.mubr.f32.gmra.mrb[0].mxu0 %v2696
      %v3271 = vpop.f32.mrb[0].mxu0
      %v3272 = vadd.f32 0.0, %v3271
      %v3273 = vpop.f32.mrb[0].mxu0
      %3274 = vmatprep.mubr.f32.mxu0 0.0
      %3275 = vmatmul.mubr.f32.gmra.mrb[0].mxu0 %v2697
      %v3276 = vpop.f32.mrb[0].mxu0
      %v3277 = vadd.f32 0.0, %v3276
      %v3278 = vpop.f32.mrb[0].mxu0
      %3279 = vmatprep.mubr.f32.mxu0 0.0
      %3280 = vmatmul.mubr.f32.gmra.mrb[0].mxu0 %v2698
      %v3281 = vpop.f32.mrb[0].mxu0
      %v3282 = vadd.f32 0.0, %v3281
      %v3283 = vpop.f32.mrb[0].mxu0
      %3284 = vmatprep.mubr.f32.mxu0 0.0
      %3285 = vmatmul.mubr.f32.gmra.mrb[0].mxu0 %v2699
      %v3286 = vpop.f32.mrb[0].mxu0
      %v3287 = vadd.f32 0.0, %v3286
      %v3288 = vpop.f32.mrb[0].mxu0
      %3289 = vmatprep.mubr.f32.mxu0 0.0
      %3290 = vmatmul.mubr.f32.gmra.mrb[0].mxu0 %v2700
      %v3291 = vpop.f32.mrb[0].mxu0
      %v3292 = vadd.f32 0.0, %v3291
      %v3293 = vpop.f32.mrb[0].mxu0
      %3294 = vmatprep.mubr.f32.mxu0 0.0
      %3295 = vmatmul.mubr.f32.gmra.mrb[0].mxu0 %v2701
      %v3296 = vpop.f32.mrb[0].mxu0
      %v3297 = vadd.f32 0.0, %v3296
      %v3298 = vpop.f32.mrb[0].mxu0
      %3299 = vmatprep.mubr.f32.mxu0 0.0
      %3300 = vmatmul.mubr.f32.gmra.mrb[0].mxu0 %v2702
      %v3301 = vpop.f32.mrb[0].mxu0
      %v3302 = vadd.f32 0.0, %v3301
      %v3303 = vpop.f32.mrb[0].mxu0
      %3304 = vmatprep.mubr.f32.mxu0 0.0
      %3305 = vmatmul.mubr.f32.gmra.mrb[0].mxu0 %v2703
      %v3306 = vpop.f32.mrb[0].mxu0
      %v3307 = vadd.f32 0.0, %v3306
      %v3308 = vpop.f32.mrb[0].mxu0
      %3309 = vmatprep.mubr.f32.mxu0 0.0
      %3310 = vmatmul.mubr.f32.gmra.mrb[0].mxu0 %v2704
      %v3311 = vpop.f32.mrb[0].mxu0
      %v3312 = vadd.f32 0.0, %v3311
      %v3313 = vpop.f32.mrb[0].mxu0
      %3314 = vmatprep.mubr.f32.mxu0 0.0
      %3315 = vmatmul.mubr.f32.gmra.mrb[0].mxu0 %v2705
      %v3316 = vpop.f32.mrb[0].mxu0
      %v3317 = vadd.f32 0.0, %v3316
      %v3318 = vpop.f32.mrb[0].mxu0
      %3319 = vmatprep.mubr.f32.mxu0 0.0
      %3320 = vmatmul.mubr.f32.gmra.mrb[0].mxu0 %v2706
      %v3321 = vpop.f32.mrb[0].mxu0
      %v3322 = vadd.f32 0.0, %v3321
      %v3323 = vpop.f32.mrb[0].mxu0
      %3324 = vmatprep.mubr.f32.mxu0 0.0
      %3325 = vmatmul.mubr.f32.gmra.mrb[0].mxu0 %v2707
      %v3326 = vpop.f32.mrb[0].mxu0
      %v3327 = vadd.f32 0.0, %v3326
      %v3328 = vpop.f32.mrb[0].mxu0
      %3329 = vmatprep.mubr.f32.mxu0 0.0
      %3330 = vmatmul.mubr.f32.gmra.mrb[0].mxu0 %v2708
      %v3331 = vpop.f32.mrb[0].mxu0
      %v3332 = vadd.f32 0.0, %v3331
      %v3333 = vpop.f32.mrb[0].mxu0
      %3334 = vmatprep.mubr.f32.mxu0 0.0
      %3335 = vmatmul.mubr.f32.gmra.mrb[0].mxu0 %v2709
      %v3336 = vpop.f32.mrb[0].mxu0
      %v3337 = vadd.f32 0.0, %v3336
      %v3338 = vpop.f32.mrb[0].mxu0
      %3339 = vmatprep.mubr.f32.mxu0 0.0
      %3340 = vmatmul.mubr.f32.gmra.mrb[0].mxu0 %v2710
      %v3341 = vpop.f32.mrb[0].mxu0
      %v3342 = vadd.f32 0.0, %v3341
      %v3343 = vpop.f32.mrb[0].mxu0
      %3344 = vmatprep.mubr.f32.mxu0 0.0
      %3345 = vmatmul.mubr.f32.gmra.mrb[0].mxu0 %v2711
      %v3346 = vpop.f32.mrb[0].mxu0
      %v3347 = vadd.f32 0.0, %v3346
      %v3348 = vpop.f32.mrb[0].mxu0
      %3349 = vmatprep.mubr.f32.mxu0 0.0
      %3350 = vmatmul.mubr.f32.gmra.mrb[0].mxu0 %v2712
      %v3351 = vpop.f32.mrb[0].mxu0
      %v3352 = vadd.f32 0.0, %v3351
      %v3353 = vpop.f32.mrb[0].mxu0
      %3354 = vmatprep.mubr.f32.mxu0 0.0
      %3355 = vmatmul.mubr.f32.gmra.mrb[0].mxu0 %v2713
      %v3356 = vpop.f32.mrb[0].mxu0
      %v3357 = vadd.f32 0.0, %v3356
      %v3358 = vpop.f32.mrb[0].mxu0
      %3359 = vmatprep.mubr.f32.mxu0 0.0
      %3360 = vmatmul.mubr.f32.gmra.mrb[0].mxu0 %v2714
      %v3361 = vpop.f32.mrb[0].mxu0
      %v3362 = vadd.f32 0.0, %v3361
      %v3363 = vpop.f32.mrb[0].mxu0
      %3364 = vmatprep.mubr.f32.mxu0 0.0
      %3365 = vmatmul.mubr.f32.gmra.mrb[0].mxu0 %v2715
      %v3366 = vpop.f32.mrb[0].mxu0
      %v3367 = vadd.f32 0.0, %v3366
      %v3368 = vpop.f32.mrb[0].mxu0
      %3369 = vmatprep.mubr.f32.mxu0 0.0
      %3370 = vmatmul.mubr.f32.gmra.mrb[0].mxu0 %v2716
      %v3371 = vpop.f32.mrb[0].mxu0
      %v3372 = vadd.f32 0.0, %v3371
      %v3373 = vpop.f32.mrb[0].mxu0
      %3374 = vmatprep.mubr.f32.mxu0 0.0
      %3375 = vmatmul.mubr.f32.gmra.mrb[0].mxu0 %v2717
      %v3376 = vpop.f32.mrb[0].mxu0
      %v3377 = vadd.f32 0.0, %v3376
      %v3378 = vpop.f32.mrb[0].mxu0
      %3379 = vmatprep.mubr.f32.mxu0 0.0
      %3380 = vmatmul.mubr.f32.gmra.mrb[0].mxu0 %v2718
      %v3381 = vpop.f32.mrb[0].mxu0
      %v3382 = vadd.f32 0.0, %v3381
      %v3383 = vpop.f32.mrb[0].mxu0
      %3384 = vmatprep.mubr.f32.mxu0 0.0
      %3385 = vmatmul.mubr.f32.gmra.mrb[0].mxu0 %v2719
      %v3386 = vpop.f32.mrb[0].mxu0
      %v3387 = vadd.f32 0.0, %v3386
      %v3388 = vpop.f32.mrb[0].mxu0
      %3389 = vmatprep.mubr.f32.mxu0 0.0
      %3390 = vmatmul.mubr.f32.gmra.mrb[0].mxu0 %v2720
      %v3391 = vpop.f32.mrb[0].mxu0
      %v3392 = vadd.f32 0.0, %v3391
      %v3393 = vpop.f32.mrb[0].mxu0
      %3394 = vmatprep.mubr.f32.mxu0 0.0
      %3395 = vmatmul.mubr.f32.gmra.mrb[0].mxu0 %v2721
      %v3396 = vpop.f32.mrb[0].mxu0
      %v3397 = vadd.f32 0.0, %v3396
      %v3398 = vpop.f32.mrb[0].mxu0
      %3399 = vmatprep.mubr.f32.mxu0 0.0
      %3400 = vmatmul.mubr.f32.gmra.mrb[0].mxu0 %v2722
      %v3401 = vpop.f32.mrb[0].mxu0
      %v3402 = vadd.f32 0.0, %v3401
      %v3403 = vpop.f32.mrb[0].mxu0
      %3404 = vmatprep.mubr.f32.mxu0 0.0
      %3405 = vmatmul.mubr.f32.gmra.mrb[0].mxu0 %v2723
      %v3406 = vpop.f32.mrb[0].mxu0
      %v3407 = vadd.f32 0.0, %v3406
      %v3408 = vpop.f32.mrb[0].mxu0
      %3409 = vmatprep.mubr.f32.mxu0 0.0
      %3410 = vmatmul.mubr.f32.gmra.mrb[0].mxu0 %v2724
      %v3411 = vpop.f32.mrb[0].mxu0
      %v3412 = vadd.f32 0.0, %v3411
      %v3413 = vpop.f32.mrb[0].mxu0
      %3414 = vmatprep.mubr.f32.mxu0 0.0
      %3415 = vmatmul.mubr.f32.gmra.mrb[0].mxu0 %v2725
      %v3416 = vpop.f32.mrb[0].mxu0
      %v3417 = vadd.f32 0.0, %v3416
      %v3418 = vpop.f32.mrb[0].mxu0
      %3419 = vmatprep.mubr.f32.mxu0 0.0
      %3420 = vmatmul.mubr.f32.gmra.mrb[0].mxu0 %v2726
      %v3421 = vpop.f32.mrb[0].mxu0
      %v3422 = vadd.f32 0.0, %v3421
      %v3423 = vpop.f32.mrb[0].mxu0
      %3424 = vmatprep.mubr.f32.mxu0 0.0
      %3425 = vmatmul.mubr.f32.gmra.mrb[0].mxu0 %v2727
      %v3426 = vpop.f32.mrb[0].mxu0
      %v3427 = vadd.f32 0.0, %v3426
      %v3428 = vpop.f32.mrb[0].mxu0
      %3429 = vmatprep.mubr.f32.mxu0 0.0
      %3430 = vmatmul.mubr.f32.gmra.mrb[0].mxu0 %v2728
      %v3431 = vpop.f32.mrb[0].mxu0
      %v3432 = vadd.f32 0.0, %v3431
      %v3433 = vpop.f32.mrb[0].mxu0
      %3434 = vmatprep.mubr.f32.mxu0 0.0
      %3435 = vmatmul.mubr.f32.gmra.mrb[0].mxu0 %v2729
      %v3436 = vpop.f32.mrb[0].mxu0
      %v3437 = vadd.f32 0.0, %v3436
      %v3438 = vpop.f32.mrb[0].mxu0
      %3439 = vmatprep.mubr.f32.mxu0 0.0
      %3440 = vmatmul.mubr.f32.gmra.mrb[0].mxu0 %v2730
      %v3441 = vpop.f32.mrb[0].mxu0
      %v3442 = vadd.f32 0.0, %v3441
      %v3443 = vpop.f32.mrb[0].mxu0
      %3444 = vmatprep.mubr.f32.mxu0 0.0
      %3445 = vmatmul.mubr.f32.gmra.mrb[0].mxu0 %v2731
      %v3446 = vpop.f32.mrb[0].mxu0
      %v3447 = vadd.f32 0.0, %v3446
      %v3448 = vpop.f32.mrb[0].mxu0
      %3449 = vmatprep.mubr.f32.mxu0 0.0
      %3450 = vmatmul.mubr.f32.gmra.mrb[0].mxu0 %v2732
      %v3451 = vpop.f32.mrb[0].mxu0
      %v3452 = vadd.f32 0.0, %v3451
      %v3453 = vpop.f32.mrb[0].mxu0
      %3454 = vmatprep.mubr.f32.mxu0 0.0
      %3455 = vmatmul.mubr.f32.gmra.mrb[0].mxu0 %v2733
      %v3456 = vpop.f32.mrb[0].mxu0
      %v3457 = vadd.f32 0.0, %v3456
      %v3458 = vpop.f32.mrb[0].mxu0
      %3459 = vmatprep.mubr.f32.mxu0 0.0
      %3460 = vmatmul.mubr.f32.gmra.mrb[0].mxu0 %v2734
      %v3461 = vpop.f32.mrb[0].mxu0
      %v3462 = vadd.f32 0.0, %v3461
      %v3463 = vpop.f32.mrb[0].mxu0
      %3464 = vmatprep.mubr.f32.mxu0 0.0
      %3465 = vmatmul.mubr.f32.gmra.mrb[0].mxu0 %v2735
      %v3466 = vpop.f32.mrb[0].mxu0
      %v3467 = vadd.f32 0.0, %v3466
      %v3468 = vpop.f32.mrb[0].mxu0
      %3469 = vmatprep.mubr.f32.mxu0 0.0
      %3470 = vmatmul.mubr.f32.gmra.mrb[0].mxu0 %v2736
      %v3471 = vpop.f32.mrb[0].mxu0
      %v3472 = vadd.f32 0.0, %v3471
      %v3473 = vpop.f32.mrb[0].mxu0
      %3474 = vmatprep.mubr.f32.mxu0 0.0
      %3475 = vmatmul.mubr.f32.gmra.mrb[0].mxu0 %v2737
      %v3476 = vpop.f32.mrb[0].mxu0
      %v3477 = vadd.f32 0.0, %v3476
      %v3478 = vpop.f32.mrb[0].mxu0
      %3479 = vmatprep.mubr.f32.mxu0 0.0
      %3480 = vmatmul.mubr.f32.gmra.mrb[0].mxu0 %v2738
      %v3481 = vpop.f32.mrb[0].mxu0
      %v3482 = vadd.f32 0.0, %v3481
      %v3483 = vpop.f32.mrb[0].mxu0
      %3484 = vmatprep.mubr.f32.mxu0 0.0
      %3485 = vmatmul.mubr.f32.gmra.mrb[0].mxu0 %v2739
      %v3486 = vpop.f32.mrb[0].mxu0
      %v3487 = vadd.f32 0.0, %v3486
      %v3488 = vpop.f32.mrb[0].mxu0
      %3489 = vmatprep.mubr.f32.mxu0 0.0
      %3490 = vmatmul.mubr.f32.gmra.mrb[0].mxu0 %v2740
      %v3491 = vpop.f32.mrb[0].mxu0
      %v3492 = vadd.f32 0.0, %v3491
      %v3493 = vpop.f32.mrb[0].mxu0
      %3494 = vmatprep.mubr.f32.mxu0 0.0
      %3495 = vmatmul.mubr.f32.gmra.mrb[0].mxu0 %v2741
      %v3496 = vpop.f32.mrb[0].mxu0
      %v3497 = vadd.f32 0.0, %v3496
      %v3498 = vpop.f32.mrb[0].mxu0
      %3499 = vmatprep.mubr.f32.mxu0 0.0
      %3500 = vmatmul.mubr.f32.gmra.mrb[0].mxu0 %v2742
      %v3501 = vpop.f32.mrb[0].mxu0
      %v3502 = vadd.f32 0.0, %v3501
      %v3503 = vpop.f32.mrb[0].mxu0
      %3504 = vmatprep.mubr.f32.mxu0 0.0
      %3505 = vmatmul.mubr.f32.gmra.mrb[0].mxu0 %v2743
      %v3506 = vpop.f32.mrb[0].mxu0
      %v3507 = vadd.f32 0.0, %v3506
      %v3508 = vpop.f32.mrb[0].mxu0
      %3509 = vmatprep.mubr.f32.mxu0 0.0
      %3510 = vmatmul.mubr.f32.gmra.mrb[0].mxu0 %v2744
      %v3511 = vpop.f32.mrb[0].mxu0
      %v3512 = vadd.f32 0.0, %v3511
      %v3513 = vpop.f32.mrb[0].mxu0
      %3514 = vdwg.mxu0
      %v3515 = vadd.f32 %v2617, %v2681
      %v3516 = vadd.f32 %v2618, %v2682
      %v3517 = vadd.f32 %v2619, %v2683
      %v3518 = vadd.f32 %v2620, %v2684
      %v3519 = vadd.f32 %v2621, %v2685
      %v3520 = vadd.f32 %v2622, %v2686
      %v3521 = vadd.f32 %v2623, %v2687
      %v3522 = vadd.f32 %v2624, %v2688
      %v3523 = vadd.f32 %v2625, %v2689
      %v3524 = vadd.f32 %v2626, %v2690
      %v3525 = vadd.f32 %v2627, %v2691
      %v3526 = vadd.f32 %v2628, %v2692
      %v3527 = vadd.f32 %v2629, %v2693
      %v3528 = vadd.f32 %v2630, %v2694
      %v3529 = vadd.f32 %v2631, %v2695
      %v3530 = vadd.f32 %v2632, %v2696
      %v3531 = vadd.f32 %v2633, %v2697
      %v3532 = vadd.f32 %v2634, %v2698
      %v3533 = vadd.f32 %v2635, %v2699
      %v3534 = vadd.f32 %v2636, %v2700
      %v3535 = vadd.f32 %v2637, %v2701
      %v3536 = vadd.f32 %v2638, %v2702
      %v3537 = vadd.f32 %v2639, %v2703
      %v3538 = vadd.f32 %v2640, %v2704
      %v3539 = vadd.f32 %v2641, %v2705
      %v3540 = vadd.f32 %v2642, %v2706
      %v3541 = vadd.f32 %v2643, %v2707
      %v3542 = vadd.f32 %v2644, %v2708
      %v3543 = vadd.f32 %v2645, %v2709
      %v3544 = vadd.f32 %v2646, %v2710
      %v3545 = vadd.f32 %v2647, %v2711
      %v3546 = vadd.f32 %v2648, %v2712
      %v3547 = vadd.f32 %v2649, %v2713
      %v3548 = vadd.f32 %v2650, %v2714
      %v3549 = vadd.f32 %v2651, %v2715
      %v3550 = vadd.f32 %v2652, %v2716
      %v3551 = vadd.f32 %v2653, %v2717
      %v3552 = vadd.f32 %v2654, %v2718
      %v3553 = vadd.f32 %v2655, %v2719
      %v3554 = vadd.f32 %v2656, %v2720
      %v3555 = vadd.f32 %v2657, %v2721
      %v3556 = vadd.f32 %v2658, %v2722
      %v3557 = vadd.f32 %v2659, %v2723
      %v3558 = vadd.f32 %v2660, %v2724
      %v3559 = vadd.f32 %v2661, %v2725
      %v3560 = vadd.f32 %v2662, %v2726
      %v3561 = vadd.f32 %v2663, %v2727
      %v3562 = vadd.f32 %v2664, %v2728
      %v3563 = vadd.f32 %v2665, %v2729
      %v3564 = vadd.f32 %v2666, %v2730
      %v3565 = vadd.f32 %v2667, %v2731
      %v3566 = vadd.f32 %v2668, %v2732
      %v3567 = vadd.f32 %v2669, %v2733
      %v3568 = vadd.f32 %v2670, %v2734
      %v3569 = vadd.f32 %v2671, %v2735
      %v3570 = vadd.f32 %v2672, %v2736
      %v3571 = vadd.f32 %v2673, %v2737
      %v3572 = vadd.f32 %v2674, %v2738
      %v3573 = vadd.f32 %v2675, %v2739
      %v3574 = vadd.f32 %v2676, %v2740
      %v3575 = vadd.f32 %v2677, %v2741
      %v3576 = vadd.f32 %v2678, %v2742
      %v3577 = vadd.f32 %v2679, %v2743
      %v3578 = vadd.f32 %v2680, %v2744
      %3579 = vmatprep.subr.mxu0 0.0
      %3580 = vmatpush1.msra.mxu0 %v373
      %3581 = vmatprep.subr.mxu0 0.0
      %3582 = vmatpush1.msra.mxu0 %v374
      %3583 = vmatprep.subr.mxu0 0.0
      %3584 = vmatpush1.msra.mxu0 %v375
      %3585 = vmatprep.subr.mxu0 0.0
      %3586 = vmatpush1.msra.mxu0 %v376
      %3587 = vmatprep.subr.mxu0 0.0
      %3588 = vmatpush1.msra.mxu0 %v377
      %3589 = vmatprep.subr.mxu0 0.0
      %3590 = vmatpush1.msra.mxu0 %v378
      %3591 = vmatprep.subr.mxu0 0.0
      %3592 = vmatpush1.msra.mxu0 %v379
      %3593 = vmatprep.subr.mxu0 0.0
      %3594 = vmatpush1.msra.mxu0 %v380
      %3595 = vmatprep.subr.mxu0 0.0
      %3596 = vmatpush1.msra.mxu0 %v381
      %3597 = vmatprep.subr.mxu0 0.0
      %3598 = vmatpush1.msra.mxu0 %v382
      %3599 = vmatprep.subr.mxu0 0.0
      %3600 = vmatpush1.msra.mxu0 %v383
      %3601 = vmatprep.subr.mxu0 0.0
      %3602 = vmatpush1.msra.mxu0 %v384
      %3603 = vmatprep.subr.mxu0 0.0
      %3604 = vmatpush1.msra.mxu0 %v385
      %3605 = vmatprep.subr.mxu0 0.0
      %3606 = vmatpush1.msra.mxu0 %v386
      %3607 = vmatprep.subr.mxu0 0.0
      %3608 = vmatpush1.msra.mxu0 %v387
      %3609 = vmatprep.subr.mxu0 0.0
      %3610 = vmatpush1.msra.mxu0 %v388
      %3611 = vmatprep.subr.mxu0 0.0
      %3612 = vmatpush1.msra.mxu0 0.0
      %3613 = vmatprep.subr.mxu0 0.0
      %3614 = vmatpush1.msra.mxu0 0.0
      %3615 = vmatprep.subr.mxu0 0.0
      %3616 = vmatpush1.msra.mxu0 0.0
      %3617 = vmatprep.subr.mxu0 0.0
      %3618 = vmatpush1.msra.mxu0 0.0
      %3619 = vmatprep.subr.mxu0 0.0
      %3620 = vmatpush1.msra.mxu0 0.0
      %3621 = vmatprep.subr.mxu0 0.0
      %3622 = vmatpush1.msra.mxu0 0.0
      %3623 = vmatprep.subr.mxu0 0.0
      %3624 = vmatpush1.msra.mxu0 0.0
      %3625 = vmatprep.subr.mxu0 0.0
      %3626 = vmatpush1.msra.mxu0 0.0
      %3627 = vmatprep.subr.mxu0 0.0
      %3628 = vmatpush1.msra.mxu0 0.0
      %3629 = vmatprep.subr.mxu0 0.0
      %3630 = vmatpush1.msra.mxu0 0.0
      %3631 = vmatprep.subr.mxu0 0.0
      %3632 = vmatpush1.msra.mxu0 0.0
      %3633 = vmatprep.subr.mxu0 0.0
      %3634 = vmatpush1.msra.mxu0 0.0
      %3635 = vmatprep.subr.mxu0 0.0
      %3636 = vmatpush1.msra.mxu0 0.0
      %3637 = vmatprep.subr.mxu0 0.0
      %3638 = vmatpush1.msra.mxu0 0.0
      %3639 = vmatprep.subr.mxu0 0.0
      %3640 = vmatpush1.msra.mxu0 0.0
      %3641 = vmatprep.subr.mxu0 0.0
      %3642 = vmatpush1.msra.mxu0 0.0
      %3643 = vmatprep.mubr.f32.mxu0 0.0
      %3644 = vmatmul.mubr.f32.gmra.mrb[0].mxu0 %v3515
      %v3645 = vpop.f32.mrb[0].mxu0
      %v3646 = vadd.f32 0.0, %v3645
      %v3647 = vpop.f32.mrb[0].mxu0
      %3648 = vmatprep.mubr.f32.mxu0 0.0
      %3649 = vmatmul.mubr.f32.gmra.mrb[0].mxu0 %v3516
      %v3650 = vpop.f32.mrb[0].mxu0
      %v3651 = vadd.f32 0.0, %v3650
      %v3652 = vpop.f32.mrb[0].mxu0
      %3653 = vmatprep.mubr.f32.mxu0 0.0
      %3654 = vmatmul.mubr.f32.gmra.mrb[0].mxu0 %v3517
      %v3655 = vpop.f32.mrb[0].mxu0
      %v3656 = vadd.f32 0.0, %v3655
      %v3657 = vpop.f32.mrb[0].mxu0
      %3658 = vmatprep.mubr.f32.mxu0 0.0
      %3659 = vmatmul.mubr.f32.gmra.mrb[0].mxu0 %v3518
      %v3660 = vpop.f32.mrb[0].mxu0
      %v3661 = vadd.f32 0.0, %v3660
      %v3662 = vpop.f32.mrb[0].mxu0
      %3663 = vmatprep.mubr.f32.mxu0 0.0
      %3664 = vmatmul.mubr.f32.gmra.mrb[0].mxu0 %v3519
      %v3665 = vpop.f32.mrb[0].mxu0
      %v3666 = vadd.f32 0.0, %v3665
      %v3667 = vpop.f32.mrb[0].mxu0
      %3668 = vmatprep.mubr.f32.mxu0 0.0
      %3669 = vmatmul.mubr.f32.gmra.mrb[0].mxu0 %v3520
      %v3670 = vpop.f32.mrb[0].mxu0
      %v3671 = vadd.f32 0.0, %v3670
      %v3672 = vpop.f32.mrb[0].mxu0
      %3673 = vmatprep.mubr.f32.mxu0 0.0
      %3674 = vmatmul.mubr.f32.gmra.mrb[0].mxu0 %v3521
      %v3675 = vpop.f32.mrb[0].mxu0
      %v3676 = vadd.f32 0.0, %v3675
      %v3677 = vpop.f32.mrb[0].mxu0
      %3678 = vmatprep.mubr.f32.mxu0 0.0
      %3679 = vmatmul.mubr.f32.gmra.mrb[0].mxu0 %v3522
      %v3680 = vpop.f32.mrb[0].mxu0
      %v3681 = vadd.f32 0.0, %v3680
      %v3682 = vpop.f32.mrb[0].mxu0
      %3683 = vmatprep.mubr.f32.mxu0 0.0
      %3684 = vmatmul.mubr.f32.gmra.mrb[0].mxu0 %v3523
      %v3685 = vpop.f32.mrb[0].mxu0
      %v3686 = vadd.f32 0.0, %v3685
      %v3687 = vpop.f32.mrb[0].mxu0
      %3688 = vmatprep.mubr.f32.mxu0 0.0
      %3689 = vmatmul.mubr.f32.gmra.mrb[0].mxu0 %v3524
      %v3690 = vpop.f32.mrb[0].mxu0
      %v3691 = vadd.f32 0.0, %v3690
      %v3692 = vpop.f32.mrb[0].mxu0
      %3693 = vmatprep.mubr.f32.mxu0 0.0
      %3694 = vmatmul.mubr.f32.gmra.mrb[0].mxu0 %v3525
      %v3695 = vpop.f32.mrb[0].mxu0
      %v3696 = vadd.f32 0.0, %v3695
      %v3697 = vpop.f32.mrb[0].mxu0
      %3698 = vmatprep.mubr.f32.mxu0 0.0
      %3699 = vmatmul.mubr.f32.gmra.mrb[0].mxu0 %v3526
      %v3700 = vpop.f32.mrb[0].mxu0
      %v3701 = vadd.f32 0.0, %v3700
      %v3702 = vpop.f32.mrb[0].mxu0
      %3703 = vmatprep.mubr.f32.mxu0 0.0
      %3704 = vmatmul.mubr.f32.gmra.mrb[0].mxu0 %v3527
      %v3705 = vpop.f32.mrb[0].mxu0
      %v3706 = vadd.f32 0.0, %v3705
      %v3707 = vpop.f32.mrb[0].mxu0
      %3708 = vmatprep.mubr.f32.mxu0 0.0
      %3709 = vmatmul.mubr.f32.gmra.mrb[0].mxu0 %v3528
      %v3710 = vpop.f32.mrb[0].mxu0
      %v3711 = vadd.f32 0.0, %v3710
      %v3712 = vpop.f32.mrb[0].mxu0
      %3713 = vmatprep.mubr.f32.mxu0 0.0
      %3714 = vmatmul.mubr.f32.gmra.mrb[0].mxu0 %v3529
      %v3715 = vpop.f32.mrb[0].mxu0
      %v3716 = vadd.f32 0.0, %v3715
      %v3717 = vpop.f32.mrb[0].mxu0
      %3718 = vmatprep.mubr.f32.mxu0 0.0
      %3719 = vmatmul.mubr.f32.gmra.mrb[0].mxu0 %v3530
      %v3720 = vpop.f32.mrb[0].mxu0
      %v3721 = vadd.f32 0.0, %v3720
      %v3722 = vpop.f32.mrb[0].mxu0
      %3723 = vmatprep.mubr.f32.mxu0 0.0
      %3724 = vmatmul.mubr.f32.gmra.mrb[0].mxu0 %v3531
      %v3725 = vpop.f32.mrb[0].mxu0
      %v3726 = vadd.f32 0.0, %v3725
      %v3727 = vpop.f32.mrb[0].mxu0
      %3728 = vmatprep.mubr.f32.mxu0 0.0
      %3729 = vmatmul.mubr.f32.gmra.mrb[0].mxu0 %v3532
      %v3730 = vpop.f32.mrb[0].mxu0
      %v3731 = vadd.f32 0.0, %v3730
      %v3732 = vpop.f32.mrb[0].mxu0
      %3733 = vmatprep.mubr.f32.mxu0 0.0
      %3734 = vmatmul.mubr.f32.gmra.mrb[0].mxu0 %v3533
      %v3735 = vpop.f32.mrb[0].mxu0
      %v3736 = vadd.f32 0.0, %v3735
      %v3737 = vpop.f32.mrb[0].mxu0
      %3738 = vmatprep.mubr.f32.mxu0 0.0
      %3739 = vmatmul.mubr.f32.gmra.mrb[0].mxu0 %v3534
      %v3740 = vpop.f32.mrb[0].mxu0
      %v3741 = vadd.f32 0.0, %v3740
      %v3742 = vpop.f32.mrb[0].mxu0
      %3743 = vmatprep.mubr.f32.mxu0 0.0
      %3744 = vmatmul.mubr.f32.gmra.mrb[0].mxu0 %v3535
      %v3745 = vpop.f32.mrb[0].mxu0
      %v3746 = vadd.f32 0.0, %v3745
      %v3747 = vpop.f32.mrb[0].mxu0
      %3748 = vmatprep.mubr.f32.mxu0 0.0
      %3749 = vmatmul.mubr.f32.gmra.mrb[0].mxu0 %v3536
      %v3750 = vpop.f32.mrb[0].mxu0
      %v3751 = vadd.f32 0.0, %v3750
      %v3752 = vpop.f32.mrb[0].mxu0
      %3753 = vmatprep.mubr.f32.mxu0 0.0
      %3754 = vmatmul.mubr.f32.gmra.mrb[0].mxu0 %v3537
      %v3755 = vpop.f32.mrb[0].mxu0
      %v3756 = vadd.f32 0.0, %v3755
      %v3757 = vpop.f32.mrb[0].mxu0
      %3758 = vmatprep.mubr.f32.mxu0 0.0
      %3759 = vmatmul.mubr.f32.gmra.mrb[0].mxu0 %v3538
      %v3760 = vpop.f32.mrb[0].mxu0
      %v3761 = vadd.f32 0.0, %v3760
      %v3762 = vpop.f32.mrb[0].mxu0
      %3763 = vmatprep.mubr.f32.mxu0 0.0
      %3764 = vmatmul.mubr.f32.gmra.mrb[0].mxu0 %v3539
      %v3765 = vpop.f32.mrb[0].mxu0
      %v3766 = vadd.f32 0.0, %v3765
      %v3767 = vpop.f32.mrb[0].mxu0
      %3768 = vmatprep.mubr.f32.mxu0 0.0
      %3769 = vmatmul.mubr.f32.gmra.mrb[0].mxu0 %v3540
      %v3770 = vpop.f32.mrb[0].mxu0
      %v3771 = vadd.f32 0.0, %v3770
      %v3772 = vpop.f32.mrb[0].mxu0
      %3773 = vmatprep.mubr.f32.mxu0 0.0
      %3774 = vmatmul.mubr.f32.gmra.mrb[0].mxu0 %v3541
      %v3775 = vpop.f32.mrb[0].mxu0
      %v3776 = vadd.f32 0.0, %v3775
      %v3777 = vpop.f32.mrb[0].mxu0
      %3778 = vmatprep.mubr.f32.mxu0 0.0
      %3779 = vmatmul.mubr.f32.gmra.mrb[0].mxu0 %v3542
      %v3780 = vpop.f32.mrb[0].mxu0
      %v3781 = vadd.f32 0.0, %v3780
      %v3782 = vpop.f32.mrb[0].mxu0
      %3783 = vmatprep.mubr.f32.mxu0 0.0
      %3784 = vmatmul.mubr.f32.gmra.mrb[0].mxu0 %v3543
      %v3785 = vpop.f32.mrb[0].mxu0
      %v3786 = vadd.f32 0.0, %v3785
      %v3787 = vpop.f32.mrb[0].mxu0
      %3788 = vmatprep.mubr.f32.mxu0 0.0
      %3789 = vmatmul.mubr.f32.gmra.mrb[0].mxu0 %v3544
      %v3790 = vpop.f32.mrb[0].mxu0
      %v3791 = vadd.f32 0.0, %v3790
      %v3792 = vpop.f32.mrb[0].mxu0
      %3793 = vmatprep.mubr.f32.mxu0 0.0
      %3794 = vmatmul.mubr.f32.gmra.mrb[0].mxu0 %v3545
      %v3795 = vpop.f32.mrb[0].mxu0
      %v3796 = vadd.f32 0.0, %v3795
      %v3797 = vpop.f32.mrb[0].mxu0
      %3798 = vmatprep.mubr.f32.mxu0 0.0
      %3799 = vmatmul.mubr.f32.gmra.mrb[0].mxu0 %v3546
      %v3800 = vpop.f32.mrb[0].mxu0
      %v3801 = vadd.f32 0.0, %v3800
      %v3802 = vpop.f32.mrb[0].mxu0
      %3803 = vmatprep.mubr.f32.mxu0 0.0
      %3804 = vmatmul.mubr.f32.gmra.mrb[0].mxu0 %v3547
      %v3805 = vpop.f32.mrb[0].mxu0
      %v3806 = vadd.f32 0.0, %v3805
      %v3807 = vpop.f32.mrb[0].mxu0
      %3808 = vmatprep.mubr.f32.mxu0 0.0
      %3809 = vmatmul.mubr.f32.gmra.mrb[0].mxu0 %v3548
      %v3810 = vpop.f32.mrb[0].mxu0
      %v3811 = vadd.f32 0.0, %v3810
      %v3812 = vpop.f32.mrb[0].mxu0
      %3813 = vmatprep.mubr.f32.mxu0 0.0
      %3814 = vmatmul.mubr.f32.gmra.mrb[0].mxu0 %v3549
      %v3815 = vpop.f32.mrb[0].mxu0
      %v3816 = vadd.f32 0.0, %v3815
      %v3817 = vpop.f32.mrb[0].mxu0
      %3818 = vmatprep.mubr.f32.mxu0 0.0
      %3819 = vmatmul.mubr.f32.gmra.mrb[0].mxu0 %v3550
      %v3820 = vpop.f32.mrb[0].mxu0
      %v3821 = vadd.f32 0.0, %v3820
      %v3822 = vpop.f32.mrb[0].mxu0
      %3823 = vmatprep.mubr.f32.mxu0 0.0
      %3824 = vmatmul.mubr.f32.gmra.mrb[0].mxu0 %v3551
      %v3825 = vpop.f32.mrb[0].mxu0
      %v3826 = vadd.f32 0.0, %v3825
      %v3827 = vpop.f32.mrb[0].mxu0
      %3828 = vmatprep.mubr.f32.mxu0 0.0
      %3829 = vmatmul.mubr.f32.gmra.mrb[0].mxu0 %v3552
      %v3830 = vpop.f32.mrb[0].mxu0
      %v3831 = vadd.f32 0.0, %v3830
      %v3832 = vpop.f32.mrb[0].mxu0
      %3833 = vmatprep.mubr.f32.mxu0 0.0
      %3834 = vmatmul.mubr.f32.gmra.mrb[0].mxu0 %v3553
      %v3835 = vpop.f32.mrb[0].mxu0
      %v3836 = vadd.f32 0.0, %v3835
      %v3837 = vpop.f32.mrb[0].mxu0
      %3838 = vmatprep.mubr.f32.mxu0 0.0
      %3839 = vmatmul.mubr.f32.gmra.mrb[0].mxu0 %v3554
      %v3840 = vpop.f32.mrb[0].mxu0
      %v3841 = vadd.f32 0.0, %v3840
      %v3842 = vpop.f32.mrb[0].mxu0
      %3843 = vmatprep.mubr.f32.mxu0 0.0
      %3844 = vmatmul.mubr.f32.gmra.mrb[0].mxu0 %v3555
      %v3845 = vpop.f32.mrb[0].mxu0
      %v3846 = vadd.f32 0.0, %v3845
      %v3847 = vpop.f32.mrb[0].mxu0
      %3848 = vmatprep.mubr.f32.mxu0 0.0
      %3849 = vmatmul.mubr.f32.gmra.mrb[0].mxu0 %v3556
      %v3850 = vpop.f32.mrb[0].mxu0
      %v3851 = vadd.f32 0.0, %v3850
      %v3852 = vpop.f32.mrb[0].mxu0
      %3853 = vmatprep.mubr.f32.mxu0 0.0
      %3854 = vmatmul.mubr.f32.gmra.mrb[0].mxu0 %v3557
      %v3855 = vpop.f32.mrb[0].mxu0
      %v3856 = vadd.f32 0.0, %v3855
      %v3857 = vpop.f32.mrb[0].mxu0
      %3858 = vmatprep.mubr.f32.mxu0 0.0
      %3859 = vmatmul.mubr.f32.gmra.mrb[0].mxu0 %v3558
      %v3860 = vpop.f32.mrb[0].mxu0
      %v3861 = vadd.f32 0.0, %v3860
      %v3862 = vpop.f32.mrb[0].mxu0
      %3863 = vmatprep.mubr.f32.mxu0 0.0
      %3864 = vmatmul.mubr.f32.gmra.mrb[0].mxu0 %v3559
      %v3865 = vpop.f32.mrb[0].mxu0
      %v3866 = vadd.f32 0.0, %v3865
      %v3867 = vpop.f32.mrb[0].mxu0
      %3868 = vmatprep.mubr.f32.mxu0 0.0
      %3869 = vmatmul.mubr.f32.gmra.mrb[0].mxu0 %v3560
      %v3870 = vpop.f32.mrb[0].mxu0
      %v3871 = vadd.f32 0.0, %v3870
      %v3872 = vpop.f32.mrb[0].mxu0
      %3873 = vmatprep.mubr.f32.mxu0 0.0
      %3874 = vmatmul.mubr.f32.gmra.mrb[0].mxu0 %v3561
      %v3875 = vpop.f32.mrb[0].mxu0
      %v3876 = vadd.f32 0.0, %v3875
      %v3877 = vpop.f32.mrb[0].mxu0
      %3878 = vmatprep.mubr.f32.mxu0 0.0
      %3879 = vmatmul.mubr.f32.gmra.mrb[0].mxu0 %v3562
      %v3880 = vpop.f32.mrb[0].mxu0
      %v3881 = vadd.f32 0.0, %v3880
      %v3882 = vpop.f32.mrb[0].mxu0
      %3883 = vmatprep.mubr.f32.mxu0 0.0
      %3884 = vmatmul.mubr.f32.gmra.mrb[0].mxu0 %v3563
      %v3885 = vpop.f32.mrb[0].mxu0
      %v3886 = vadd.f32 0.0, %v3885
      %v3887 = vpop.f32.mrb[0].mxu0
      %3888 = vmatprep.mubr.f32.mxu0 0.0
      %3889 = vmatmul.mubr.f32.gmra.mrb[0].mxu0 %v3564
      %v3890 = vpop.f32.mrb[0].mxu0
      %v3891 = vadd.f32 0.0, %v3890
      %v3892 = vpop.f32.mrb[0].mxu0
      %3893 = vmatprep.mubr.f32.mxu0 0.0
      %3894 = vmatmul.mubr.f32.gmra.mrb[0].mxu0 %v3565
      %v3895 = vpop.f32.mrb[0].mxu0
      %v3896 = vadd.f32 0.0, %v3895
      %v3897 = vpop.f32.mrb[0].mxu0
      %3898 = vmatprep.mubr.f32.mxu0 0.0
      %3899 = vmatmul.mubr.f32.gmra.mrb[0].mxu0 %v3566
      %v3900 = vpop.f32.mrb[0].mxu0
      %v3901 = vadd.f32 0.0, %v3900
      %v3902 = vpop.f32.mrb[0].mxu0
      %3903 = vmatprep.mubr.f32.mxu0 0.0
      %3904 = vmatmul.mubr.f32.gmra.mrb[0].mxu0 %v3567
      %v3905 = vpop.f32.mrb[0].mxu0
      %v3906 = vadd.f32 0.0, %v3905
      %v3907 = vpop.f32.mrb[0].mxu0
      %3908 = vmatprep.mubr.f32.mxu0 0.0
      %3909 = vmatmul.mubr.f32.gmra.mrb[0].mxu0 %v3568
      %v3910 = vpop.f32.mrb[0].mxu0
      %v3911 = vadd.f32 0.0, %v3910
      %v3912 = vpop.f32.mrb[0].mxu0
      %3913 = vmatprep.mubr.f32.mxu0 0.0
      %3914 = vmatmul.mubr.f32.gmra.mrb[0].mxu0 %v3569
      %v3915 = vpop.f32.mrb[0].mxu0
      %v3916 = vadd.f32 0.0, %v3915
      %v3917 = vpop.f32.mrb[0].mxu0
      %3918 = vmatprep.mubr.f32.mxu0 0.0
      %3919 = vmatmul.mubr.f32.gmra.mrb[0].mxu0 %v3570
      %v3920 = vpop.f32.mrb[0].mxu0
      %v3921 = vadd.f32 0.0, %v3920
      %v3922 = vpop.f32.mrb[0].mxu0
      %3923 = vmatprep.mubr.f32.mxu0 0.0
      %3924 = vmatmul.mubr.f32.gmra.mrb[0].mxu0 %v3571
      %v3925 = vpop.f32.mrb[0].mxu0
      %v3926 = vadd.f32 0.0, %v3925
      %v3927 = vpop.f32.mrb[0].mxu0
      %3928 = vmatprep.mubr.f32.mxu0 0.0
      %3929 = vmatmul.mubr.f32.gmra.mrb[0].mxu0 %v3572
      %v3930 = vpop.f32.mrb[0].mxu0
      %v3931 = vadd.f32 0.0, %v3930
      %v3932 = vpop.f32.mrb[0].mxu0
      %3933 = vmatprep.mubr.f32.mxu0 0.0
      %3934 = vmatmul.mubr.f32.gmra.mrb[0].mxu0 %v3573
      %v3935 = vpop.f32.mrb[0].mxu0
      %v3936 = vadd.f32 0.0, %v3935
      %v3937 = vpop.f32.mrb[0].mxu0
      %3938 = vmatprep.mubr.f32.mxu0 0.0
      %3939 = vmatmul.mubr.f32.gmra.mrb[0].mxu0 %v3574
      %v3940 = vpop.f32.mrb[0].mxu0
      %v3941 = vadd.f32 0.0, %v3940
      %v3942 = vpop.f32.mrb[0].mxu0
      %3943 = vmatprep.mubr.f32.mxu0 0.0
      %3944 = vmatmul.mubr.f32.gmra.mrb[0].mxu0 %v3575
      %v3945 = vpop.f32.mrb[0].mxu0
      %v3946 = vadd.f32 0.0, %v3945
      %v3947 = vpop.f32.mrb[0].mxu0
      %3948 = vmatprep.mubr.f32.mxu0 0.0
      %3949 = vmatmul.mubr.f32.gmra.mrb[0].mxu0 %v3576
      %v3950 = vpop.f32.mrb[0].mxu0
      %v3951 = vadd.f32 0.0, %v3950
      %v3952 = vpop.f32.mrb[0].mxu0
      %3953 = vmatprep.mubr.f32.mxu0 0.0
      %3954 = vmatmul.mubr.f32.gmra.mrb[0].mxu0 %v3577
      %v3955 = vpop.f32.mrb[0].mxu0
      %v3956 = vadd.f32 0.0, %v3955
      %v3957 = vpop.f32.mrb[0].mxu0
      %3958 = vmatprep.mubr.f32.mxu0 0.0
      %3959 = vmatmul.mubr.f32.gmra.mrb[0].mxu0 %v3578
      %v3960 = vpop.f32.mrb[0].mxu0
      %v3961 = vadd.f32 0.0, %v3960
      %v3962 = vpop.f32.mrb[0].mxu0
      %3963 = vdwg.mxu0
      %v3964 = vsub.f32 %v2812, %v3197
      %v3965 = vsub.f32 %v2817, %v3202
      %v3966 = vsub.f32 %v2822, %v3207
      %v3967 = vsub.f32 %v2827, %v3212
      %v3968 = vsub.f32 %v2832, %v3217
      %v3969 = vsub.f32 %v2837, %v3222
      %v3970 = vsub.f32 %v2842, %v3227
      %v3971 = vsub.f32 %v2847, %v3232
      %v3972 = vsub.f32 %v2852, %v3237
      %v3973 = vsub.f32 %v2857, %v3242
      %v3974 = vsub.f32 %v2862, %v3247
      %v3975 = vsub.f32 %v2867, %v3252
      %v3976 = vsub.f32 %v2872, %v3257
      %v3977 = vsub.f32 %v2877, %v3262
      %v3978 = vsub.f32 %v2882, %v3267
      %v3979 = vsub.f32 %v2887, %v3272
      %v3980 = vsub.f32 %v2892, %v3277
      %v3981 = vsub.f32 %v2897, %v3282
      %v3982 = vsub.f32 %v2902, %v3287
      %v3983 = vsub.f32 %v2907, %v3292
      %v3984 = vsub.f32 %v2912, %v3297
      %v3985 = vsub.f32 %v2917, %v3302
      %v3986 = vsub.f32 %v2922, %v3307
      %v3987 = vsub.f32 %v2927, %v3312
      %v3988 = vsub.f32 %v2932, %v3317
      %v3989 = vsub.f32 %v2937, %v3322
      %v3990 = vsub.f32 %v2942, %v3327
      %v3991 = vsub.f32 %v2947, %v3332
      %v3992 = vsub.f32 %v2952, %v3337
      %v3993 = vsub.f32 %v2957, %v3342
      %v3994 = vsub.f32 %v2962, %v3347
      %v3995 = vsub.f32 %v2967, %v3352
      %v3996 = vsub.f32 %v2972, %v3357
      %v3997 = vsub.f32 %v2977, %v3362
      %v3998 = vsub.f32 %v2982, %v3367
      %v3999 = vsub.f32 %v2987, %v3372
      %v4000 = vsub.f32 %v2992, %v3377
      %v4001 = vsub.f32 %v2997, %v3382
      %v4002 = vsub.f32 %v3002, %v3387
      %v4003 = vsub.f32 %v3007, %v3392
      %v4004 = vsub.f32 %v3012, %v3397
      %v4005 = vsub.f32 %v3017, %v3402
      %v4006 = vsub.f32 %v3022, %v3407
      %v4007 = vsub.f32 %v3027, %v3412
      %v4008 = vsub.f32 %v3032, %v3417
      %v4009 = vsub.f32 %v3037, %v3422
      %v4010 = vsub.f32 %v3042, %v3427
      %v4011 = vsub.f32 %v3047, %v3432
      %v4012 = vsub.f32 %v3052, %v3437
      %v4013 = vsub.f32 %v3057, %v3442
      %v4014 = vsub.f32 %v3062, %v3447
      %v4015 = vsub.f32 %v3067, %v3452
      %v4016 = vsub.f32 %v3072, %v3457
      %v4017 = vsub.f32 %v3077, %v3462
      %v4018 = vsub.f32 %v3082, %v3467
      %v4019 = vsub.f32 %v3087, %v3472
      %v4020 = vsub.f32 %v3092, %v3477
      %v4021 = vsub.f32 %v3097, %v3482
      %v4022 = vsub.f32 %v3102, %v3487
      %v4023 = vsub.f32 %v3107, %v3492
      %v4024 = vsub.f32 %v3112, %v3497
      %v4025 = vsub.f32 %v3117, %v3502
      %v4026 = vsub.f32 %v3122, %v3507
      %v4027 = vsub.f32 %v3127, %v3512
      %v4028 = vsub.f32 %v3646, %v2812
      %v4029 = vsub.f32 %v3651, %v2817
      %v4030 = vsub.f32 %v3656, %v2822
      %v4031 = vsub.f32 %v3661, %v2827
      %v4032 = vsub.f32 %v3666, %v2832
      %v4033 = vsub.f32 %v3671, %v2837
      %v4034 = vsub.f32 %v3676, %v2842
      %v4035 = vsub.f32 %v3681, %v2847
      %v4036 = vsub.f32 %v3686, %v2852
      %v4037 = vsub.f32 %v3691, %v2857
      %v4038 = vsub.f32 %v3696, %v2862
      %v4039 = vsub.f32 %v3701, %v2867
      %v4040 = vsub.f32 %v3706, %v2872
      %v4041 = vsub.f32 %v3711, %v2877
      %v4042 = vsub.f32 %v3716, %v2882
      %v4043 = vsub.f32 %v3721, %v2887
      %v4044 = vsub.f32 %v3726, %v2892
      %v4045 = vsub.f32 %v3731, %v2897
      %v4046 = vsub.f32 %v3736, %v2902
      %v4047 = vsub.f32 %v3741, %v2907
      %v4048 = vsub.f32 %v3746, %v2912
      %v4049 = vsub.f32 %v3751, %v2917
      %v4050 = vsub.f32 %v3756, %v2922
      %v4051 = vsub.f32 %v3761, %v2927
      %v4052 = vsub.f32 %v3766, %v2932
      %v4053 = vsub.f32 %v3771, %v2937
      %v4054 = vsub.f32 %v3776, %v2942
      %v4055 = vsub.f32 %v3781, %v2947
      %v4056 = vsub.f32 %v3786, %v2952
      %v4057 = vsub.f32 %v3791, %v2957
      %v4058 = vsub.f32 %v3796, %v2962
      %v4059 = vsub.f32 %v3801, %v2967
      %v4060 = vsub.f32 %v3806, %v2972
      %v4061 = vsub.f32 %v3811, %v2977
      %v4062 = vsub.f32 %v3816, %v2982
      %v4063 = vsub.f32 %v3821, %v2987
      %v4064 = vsub.f32 %v3826, %v2992
      %v4065 = vsub.f32 %v3831, %v2997
      %v4066 = vsub.f32 %v3836, %v3002
      %v4067 = vsub.f32 %v3841, %v3007
      %v4068 = vsub.f32 %v3846, %v3012
      %v4069 = vsub.f32 %v3851, %v3017
      %v4070 = vsub.f32 %v3856, %v3022
      %v4071 = vsub.f32 %v3861, %v3027
      %v4072 = vsub.f32 %v3866, %v3032
      %v4073 = vsub.f32 %v3871, %v3037
      %v4074 = vsub.f32 %v3876, %v3042
      %v4075 = vsub.f32 %v3881, %v3047
      %v4076 = vsub.f32 %v3886, %v3052
      %v4077 = vsub.f32 %v3891, %v3057
      %v4078 = vsub.f32 %v3896, %v3062
      %v4079 = vsub.f32 %v3901, %v3067
      %v4080 = vsub.f32 %v3906, %v3072
      %v4081 = vsub.f32 %v3911, %v3077
      %v4082 = vsub.f32 %v3916, %v3082
      %v4083 = vsub.f32 %v3921, %v3087
      %v4084 = vsub.f32 %v3926, %v3092
      %v4085 = vsub.f32 %v3931, %v3097
      %v4086 = vsub.f32 %v3936, %v3102
      %v4087 = vsub.f32 %v3941, %v3107
      %v4088 = vsub.f32 %v3946, %v3112
      %v4089 = vsub.f32 %v3951, %v3117
      %v4090 = vsub.f32 %v3956, %v3122
      %v4091 = vsub.f32 %v3961, %v3127
      %v4092 = vsub.f32 %v4028, %v3197
      %v4093 = vsub.f32 %v4029, %v3202
      %v4094 = vsub.f32 %v4030, %v3207
      %v4095 = vsub.f32 %v4031, %v3212
      %v4096 = vsub.f32 %v4032, %v3217
      %v4097 = vsub.f32 %v4033, %v3222
      %v4098 = vsub.f32 %v4034, %v3227
      %v4099 = vsub.f32 %v4035, %v3232
      %v4100 = vsub.f32 %v4036, %v3237
      %v4101 = vsub.f32 %v4037, %v3242
      %v4102 = vsub.f32 %v4038, %v3247
      %v4103 = vsub.f32 %v4039, %v3252
      %v4104 = vsub.f32 %v4040, %v3257
      %v4105 = vsub.f32 %v4041, %v3262
      %v4106 = vsub.f32 %v4042, %v3267
      %v4107 = vsub.f32 %v4043, %v3272
      %v4108 = vsub.f32 %v4044, %v3277
      %v4109 = vsub.f32 %v4045, %v3282
      %v4110 = vsub.f32 %v4046, %v3287
      %v4111 = vsub.f32 %v4047, %v3292
      %v4112 = vsub.f32 %v4048, %v3297
      %v4113 = vsub.f32 %v4049, %v3302
      %v4114 = vsub.f32 %v4050, %v3307
      %v4115 = vsub.f32 %v4051, %v3312
      %v4116 = vsub.f32 %v4052, %v3317
      %v4117 = vsub.f32 %v4053, %v3322
      %v4118 = vsub.f32 %v4054, %v3327
      %v4119 = vsub.f32 %v4055, %v3332
      %v4120 = vsub.f32 %v4056, %v3337
      %v4121 = vsub.f32 %v4057, %v3342
      %v4122 = vsub.f32 %v4058, %v3347
      %v4123 = vsub.f32 %v4059, %v3352
      %v4124 = vsub.f32 %v4060, %v3357
      %v4125 = vsub.f32 %v4061, %v3362
      %v4126 = vsub.f32 %v4062, %v3367
      %v4127 = vsub.f32 %v4063, %v3372
      %v4128 = vsub.f32 %v4064, %v3377
      %v4129 = vsub.f32 %v4065, %v3382
      %v4130 = vsub.f32 %v4066, %v3387
      %v4131 = vsub.f32 %v4067, %v3392
      %v4132 = vsub.f32 %v4068, %v3397
      %v4133 = vsub.f32 %v4069, %v3402
      %v4134 = vsub.f32 %v4070, %v3407
      %v4135 = vsub.f32 %v4071, %v3412
      %v4136 = vsub.f32 %v4072, %v3417
      %v4137 = vsub.f32 %v4073, %v3422
      %v4138 = vsub.f32 %v4074, %v3427
      %v4139 = vsub.f32 %v4075, %v3432
      %v4140 = vsub.f32 %v4076, %v3437
      %v4141 = vsub.f32 %v4077, %v3442
      %v4142 = vsub.f32 %v4078, %v3447
      %v4143 = vsub.f32 %v4079, %v3452
      %v4144 = vsub.f32 %v4080, %v3457
      %v4145 = vsub.f32 %v4081, %v3462
      %v4146 = vsub.f32 %v4082, %v3467
      %v4147 = vsub.f32 %v4083, %v3472
      %v4148 = vsub.f32 %v4084, %v3477
      %v4149 = vsub.f32 %v4085, %v3482
      %v4150 = vsub.f32 %v4086, %v3487
      %v4151 = vsub.f32 %v4087, %v3492
      %v4152 = vsub.f32 %v4088, %v3497
      %v4153 = vsub.f32 %v4089, %v3502
      %v4154 = vsub.f32 %v4090, %v3507
      %v4155 = vsub.f32 %v4091, %v3512
      %4156 = vxpose.xlu0.b32.start [1/16] %v3964, 128
      %4157 = vxpose.xlu0.b32.cont [2/16] %v3965, 128
      %4158 = vxpose.xlu0.b32.cont [3/16] %v3966, 128
      %4159 = vxpose.xlu0.b32.cont [4/16] %v3967, 128
      %4160 = vxpose.xlu0.b32.cont [5/16] %v3968, 128
      %4161 = vxpose.xlu0.b32.cont [6/16] %v3969, 128
      %4162 = vxpose.xlu0.b32.cont [7/16] %v3970, 128
      %4163 = vxpose.xlu0.b32.cont [8/16] %v3971, 128
      %4164 = vxpose.xlu0.b32.cont [9/16] %v3972, 128
      %4165 = vxpose.xlu0.b32.cont [10/16] %v3973, 128
      %4166 = vxpose.xlu0.b32.cont [11/16] %v3974, 128
      %4167 = vxpose.xlu0.b32.cont [12/16] %v3975, 128
      %4168 = vxpose.xlu0.b32.cont [13/16] %v3976, 128
      %4169 = vxpose.xlu0.b32.cont [14/16] %v3977, 128
      %4170 = vxpose.xlu0.b32.cont [15/16] %v3978, 128
      %4171 = vxpose.xlu0.b32.end [16/16] %v3979, 128
      %v4172 = vpop.trf.xlu0
      %v4173 = vpop.trf.xlu0
      %v4174 = vpop.trf.xlu0
      %v4175 = vpop.trf.xlu0
      %v4176 = vpop.trf.xlu0
      %v4177 = vpop.trf.xlu0
      %v4178 = vpop.trf.xlu0
      %v4179 = vpop.trf.xlu0
      %v4180 = vpop.trf.xlu0
      %v4181 = vpop.trf.xlu0
      %v4182 = vpop.trf.xlu0
      %v4183 = vpop.trf.xlu0
      %v4184 = vpop.trf.xlu0
      %v4185 = vpop.trf.xlu0
      %v4186 = vpop.trf.xlu0
      %v4187 = vpop.trf.xlu0
      %4188 = vxpose.xlu0.b32.start [1/16] %v3980, 128
      %4189 = vxpose.xlu0.b32.cont [2/16] %v3981, 128
      %4190 = vxpose.xlu0.b32.cont [3/16] %v3982, 128
      %4191 = vxpose.xlu0.b32.cont [4/16] %v3983, 128
      %4192 = vxpose.xlu0.b32.cont [5/16] %v3984, 128
      %4193 = vxpose.xlu0.b32.cont [6/16] %v3985, 128
      %4194 = vxpose.xlu0.b32.cont [7/16] %v3986, 128
      %4195 = vxpose.xlu0.b32.cont [8/16] %v3987, 128
      %4196 = vxpose.xlu0.b32.cont [9/16] %v3988, 128
      %4197 = vxpose.xlu0.b32.cont [10/16] %v3989, 128
      %4198 = vxpose.xlu0.b32.cont [11/16] %v3990, 128
      %4199 = vxpose.xlu0.b32.cont [12/16] %v3991, 128
      %4200 = vxpose.xlu0.b32.cont [13/16] %v3992, 128
      %4201 = vxpose.xlu0.b32.cont [14/16] %v3993, 128
      %4202 = vxpose.xlu0.b32.cont [15/16] %v3994, 128
      %4203 = vxpose.xlu0.b32.end [16/16] %v3995, 128
      %v4204 = vpop.trf.xlu0
      %v4205 = vpop.trf.xlu0
      %v4206 = vpop.trf.xlu0
      %v4207 = vpop.trf.xlu0
      %v4208 = vpop.trf.xlu0
      %v4209 = vpop.trf.xlu0
      %v4210 = vpop.trf.xlu0
      %v4211 = vpop.trf.xlu0
      %v4212 = vpop.trf.xlu0
      %v4213 = vpop.trf.xlu0
      %v4214 = vpop.trf.xlu0
      %v4215 = vpop.trf.xlu0
      %v4216 = vpop.trf.xlu0
      %v4217 = vpop.trf.xlu0
      %v4218 = vpop.trf.xlu0
      %v4219 = vpop.trf.xlu0
      %4220 = vxpose.xlu0.b32.start [1/16] %v3996, 128
      %4221 = vxpose.xlu0.b32.cont [2/16] %v3997, 128
      %4222 = vxpose.xlu0.b32.cont [3/16] %v3998, 128
      %4223 = vxpose.xlu0.b32.cont [4/16] %v3999, 128
      %4224 = vxpose.xlu0.b32.cont [5/16] %v4000, 128
      %4225 = vxpose.xlu0.b32.cont [6/16] %v4001, 128
      %4226 = vxpose.xlu0.b32.cont [7/16] %v4002, 128
      %4227 = vxpose.xlu0.b32.cont [8/16] %v4003, 128
      %4228 = vxpose.xlu0.b32.cont [9/16] %v4004, 128
      %4229 = vxpose.xlu0.b32.cont [10/16] %v4005, 128
      %4230 = vxpose.xlu0.b32.cont [11/16] %v4006, 128
      %4231 = vxpose.xlu0.b32.cont [12/16] %v4007, 128
      %4232 = vxpose.xlu0.b32.cont [13/16] %v4008, 128
      %4233 = vxpose.xlu0.b32.cont [14/16] %v4009, 128
      %4234 = vxpose.xlu0.b32.cont [15/16] %v4010, 128
      %4235 = vxpose.xlu0.b32.end [16/16] %v4011, 128
      %v4236 = vpop.trf.xlu0
      %v4237 = vpop.trf.xlu0
      %v4238 = vpop.trf.xlu0
      %v4239 = vpop.trf.xlu0
      %v4240 = vpop.trf.xlu0
      %v4241 = vpop.trf.xlu0
      %v4242 = vpop.trf.xlu0
      %v4243 = vpop.trf.xlu0
      %v4244 = vpop.trf.xlu0
      %v4245 = vpop.trf.xlu0
      %v4246 = vpop.trf.xlu0
      %v4247 = vpop.trf.xlu0
      %v4248 = vpop.trf.xlu0
      %v4249 = vpop.trf.xlu0
      %v4250 = vpop.trf.xlu0
      %v4251 = vpop.trf.xlu0
      %4252 = vxpose.xlu0.b32.start [1/16] %v4012, 128
      %4253 = vxpose.xlu0.b32.cont [2/16] %v4013, 128
      %4254 = vxpose.xlu0.b32.cont [3/16] %v4014, 128
      %4255 = vxpose.xlu0.b32.cont [4/16] %v4015, 128
      %4256 = vxpose.xlu0.b32.cont [5/16] %v4016, 128
      %4257 = vxpose.xlu0.b32.cont [6/16] %v4017, 128
      %4258 = vxpose.xlu0.b32.cont [7/16] %v4018, 128
      %4259 = vxpose.xlu0.b32.cont [8/16] %v4019, 128
      %4260 = vxpose.xlu0.b32.cont [9/16] %v4020, 128
      %4261 = vxpose.xlu0.b32.cont [10/16] %v4021, 128
      %4262 = vxpose.xlu0.b32.cont [11/16] %v4022, 128
      %4263 = vxpose.xlu0.b32.cont [12/16] %v4023, 128
      %4264 = vxpose.xlu0.b32.cont [13/16] %v4024, 128
      %4265 = vxpose.xlu0.b32.cont [14/16] %v4025, 128
      %4266 = vxpose.xlu0.b32.cont [15/16] %v4026, 128
      %4267 = vxpose.xlu0.b32.end [16/16] %v4027, 128
      %v4268 = vpop.trf.xlu0
      %v4269 = vpop.trf.xlu0
      %v4270 = vpop.trf.xlu0
      %v4271 = vpop.trf.xlu0
      %v4272 = vpop.trf.xlu0
      %v4273 = vpop.trf.xlu0
      %v4274 = vpop.trf.xlu0
      %v4275 = vpop.trf.xlu0
      %v4276 = vpop.trf.xlu0
      %v4277 = vpop.trf.xlu0
      %v4278 = vpop.trf.xlu0
      %v4279 = vpop.trf.xlu0
      %v4280 = vpop.trf.xlu0
      %v4281 = vpop.trf.xlu0
      %v4282 = vpop.trf.xlu0
      %v4283 = vpop.trf.xlu0
      %4284 = vxpose.xlu0.b32.start [1/16] %v4092, 128
      %4285 = vxpose.xlu0.b32.cont [2/16] %v4093, 128
      %4286 = vxpose.xlu0.b32.cont [3/16] %v4094, 128
      %4287 = vxpose.xlu0.b32.cont [4/16] %v4095, 128
      %4288 = vxpose.xlu0.b32.cont [5/16] %v4096, 128
      %4289 = vxpose.xlu0.b32.cont [6/16] %v4097, 128
      %4290 = vxpose.xlu0.b32.cont [7/16] %v4098, 128
      %4291 = vxpose.xlu0.b32.cont [8/16] %v4099, 128
      %4292 = vxpose.xlu0.b32.cont [9/16] %v4100, 128
      %4293 = vxpose.xlu0.b32.cont [10/16] %v4101, 128
      %4294 = vxpose.xlu0.b32.cont [11/16] %v4102, 128
      %4295 = vxpose.xlu0.b32.cont [12/16] %v4103, 128
      %4296 = vxpose.xlu0.b32.cont [13/16] %v4104, 128
      %4297 = vxpose.xlu0.b32.cont [14/16] %v4105, 128
      %4298 = vxpose.xlu0.b32.cont [15/16] %v4106, 128
      %4299 = vxpose.xlu0.b32.end [16/16] %v4107, 128
      %v4300 = vpop.trf.xlu0
      %v4301 = vpop.trf.xlu0
      %v4302 = vpop.trf.xlu0
      %v4303 = vpop.trf.xlu0
      %v4304 = vpop.trf.xlu0
      %v4305 = vpop.trf.xlu0
      %v4306 = vpop.trf.xlu0
      %v4307 = vpop.trf.xlu0
      %v4308 = vpop.trf.xlu0
      %v4309 = vpop.trf.xlu0
      %v4310 = vpop.trf.xlu0
      %v4311 = vpop.trf.xlu0
      %v4312 = vpop.trf.xlu0
      %v4313 = vpop.trf.xlu0
      %v4314 = vpop.trf.xlu0
      %v4315 = vpop.trf.xlu0
      %4316 = vxpose.xlu0.b32.start [1/16] %v4108, 128
      %4317 = vxpose.xlu0.b32.cont [2/16] %v4109, 128
      %4318 = vxpose.xlu0.b32.cont [3/16] %v4110, 128
      %4319 = vxpose.xlu0.b32.cont [4/16] %v4111, 128
      %4320 = vxpose.xlu0.b32.cont [5/16] %v4112, 128
      %4321 = vxpose.xlu0.b32.cont [6/16] %v4113, 128
      %4322 = vxpose.xlu0.b32.cont [7/16] %v4114, 128
      %4323 = vxpose.xlu0.b32.cont [8/16] %v4115, 128
      %4324 = vxpose.xlu0.b32.cont [9/16] %v4116, 128
      %4325 = vxpose.xlu0.b32.cont [10/16] %v4117, 128
      %4326 = vxpose.xlu0.b32.cont [11/16] %v4118, 128
      %4327 = vxpose.xlu0.b32.cont [12/16] %v4119, 128
      %4328 = vxpose.xlu0.b32.cont [13/16] %v4120, 128
      %4329 = vxpose.xlu0.b32.cont [14/16] %v4121, 128
      %4330 = vxpose.xlu0.b32.cont [15/16] %v4122, 128
      %4331 = vxpose.xlu0.b32.end [16/16] %v4123, 128
      %v4332 = vpop.trf.xlu0
      %v4333 = vpop.trf.xlu0
      %v4334 = vpop.trf.xlu0
      %v4335 = vpop.trf.xlu0
      %v4336 = vpop.trf.xlu0
      %v4337 = vpop.trf.xlu0
      %v4338 = vpop.trf.xlu0
      %v4339 = vpop.trf.xlu0
      %v4340 = vpop.trf.xlu0
      %v4341 = vpop.trf.xlu0
      %v4342 = vpop.trf.xlu0
      %v4343 = vpop.trf.xlu0
      %v4344 = vpop.trf.xlu0
      %v4345 = vpop.trf.xlu0
      %v4346 = vpop.trf.xlu0
      %v4347 = vpop.trf.xlu0
      %4348 = vxpose.xlu0.b32.start [1/16] %v4124, 128
      %4349 = vxpose.xlu0.b32.cont [2/16] %v4125, 128
      %4350 = vxpose.xlu0.b32.cont [3/16] %v4126, 128
      %4351 = vxpose.xlu0.b32.cont [4/16] %v4127, 128
      %4352 = vxpose.xlu0.b32.cont [5/16] %v4128, 128
      %4353 = vxpose.xlu0.b32.cont [6/16] %v4129, 128
      %4354 = vxpose.xlu0.b32.cont [7/16] %v4130, 128
      %4355 = vxpose.xlu0.b32.cont [8/16] %v4131, 128
      %4356 = vxpose.xlu0.b32.cont [9/16] %v4132, 128
      %4357 = vxpose.xlu0.b32.cont [10/16] %v4133, 128
      %4358 = vxpose.xlu0.b32.cont [11/16] %v4134, 128
      %4359 = vxpose.xlu0.b32.cont [12/16] %v4135, 128
      %4360 = vxpose.xlu0.b32.cont [13/16] %v4136, 128
      %4361 = vxpose.xlu0.b32.cont [14/16] %v4137, 128
      %4362 = vxpose.xlu0.b32.cont [15/16] %v4138, 128
      %4363 = vxpose.xlu0.b32.end [16/16] %v4139, 128
      %v4364 = vpop.trf.xlu0
      %v4365 = vpop.trf.xlu0
      %v4366 = vpop.trf.xlu0
      %v4367 = vpop.trf.xlu0
      %v4368 = vpop.trf.xlu0
      %v4369 = vpop.trf.xlu0
      %v4370 = vpop.trf.xlu0
      %v4371 = vpop.trf.xlu0
      %v4372 = vpop.trf.xlu0
      %v4373 = vpop.trf.xlu0
      %v4374 = vpop.trf.xlu0
      %v4375 = vpop.trf.xlu0
      %v4376 = vpop.trf.xlu0
      %v4377 = vpop.trf.xlu0
      %v4378 = vpop.trf.xlu0
      %v4379 = vpop.trf.xlu0
      %4380 = vxpose.xlu0.b32.start [1/16] %v4140, 128
      %4381 = vxpose.xlu0.b32.cont [2/16] %v4141, 128
      %4382 = vxpose.xlu0.b32.cont [3/16] %v4142, 128
      %4383 = vxpose.xlu0.b32.cont [4/16] %v4143, 128
      %4384 = vxpose.xlu0.b32.cont [5/16] %v4144, 128
      %4385 = vxpose.xlu0.b32.cont [6/16] %v4145, 128
      %4386 = vxpose.xlu0.b32.cont [7/16] %v4146, 128
      %4387 = vxpose.xlu0.b32.cont [8/16] %v4147, 128
      %4388 = vxpose.xlu0.b32.cont [9/16] %v4148, 128
      %4389 = vxpose.xlu0.b32.cont [10/16] %v4149, 128
      %4390 = vxpose.xlu0.b32.cont [11/16] %v4150, 128
      %4391 = vxpose.xlu0.b32.cont [12/16] %v4151, 128
      %4392 = vxpose.xlu0.b32.cont [13/16] %v4152, 128
      %4393 = vxpose.xlu0.b32.cont [14/16] %v4153, 128
      %4394 = vxpose.xlu0.b32.cont [15/16] %v4154, 128
      %4395 = vxpose.xlu0.b32.end [16/16] %v4155, 128
      %v4396 = vpop.trf.xlu0
      %v4397 = vpop.trf.xlu0
      %v4398 = vpop.trf.xlu0
      %v4399 = vpop.trf.xlu0
      %v4400 = vpop.trf.xlu0
      %v4401 = vpop.trf.xlu0
      %v4402 = vpop.trf.xlu0
      %v4403 = vpop.trf.xlu0
      %v4404 = vpop.trf.xlu0
      %v4405 = vpop.trf.xlu0
      %v4406 = vpop.trf.xlu0
      %v4407 = vpop.trf.xlu0
      %v4408 = vpop.trf.xlu0
      %v4409 = vpop.trf.xlu0
      %v4410 = vpop.trf.xlu0
      %v4411 = vpop.trf.xlu0
      %4412 = vmatprep.subr.mxu0 0.0
      %4413 = vmatpush1.msra.mxu0 %v309
      %4414 = vmatprep.subr.mxu0 0.0
      %4415 = vmatpush1.msra.mxu0 %v310
      %4416 = vmatprep.subr.mxu0 0.0
      %4417 = vmatpush1.msra.mxu0 %v311
      %4418 = vmatprep.subr.mxu0 0.0
      %4419 = vmatpush1.msra.mxu0 %v312
      %4420 = vmatprep.subr.mxu0 0.0
      %4421 = vmatpush1.msra.mxu0 %v313
      %4422 = vmatprep.subr.mxu0 0.0
      %4423 = vmatpush1.msra.mxu0 %v314
      %4424 = vmatprep.subr.mxu0 0.0
      %4425 = vmatpush1.msra.mxu0 %v315
      %4426 = vmatprep.subr.mxu0 0.0
      %4427 = vmatpush1.msra.mxu0 %v316
      %4428 = vmatprep.subr.mxu0 0.0
      %4429 = vmatpush1.msra.mxu0 %v317
      %4430 = vmatprep.subr.mxu0 0.0
      %4431 = vmatpush1.msra.mxu0 %v318
      %4432 = vmatprep.subr.mxu0 0.0
      %4433 = vmatpush1.msra.mxu0 %v319
      %4434 = vmatprep.subr.mxu0 0.0
      %4435 = vmatpush1.msra.mxu0 %v320
      %4436 = vmatprep.subr.mxu0 0.0
      %4437 = vmatpush1.msra.mxu0 %v321
      %4438 = vmatprep.subr.mxu0 0.0
      %4439 = vmatpush1.msra.mxu0 %v322
      %4440 = vmatprep.subr.mxu0 0.0
      %4441 = vmatpush1.msra.mxu0 %v323
      %4442 = vmatprep.subr.mxu0 0.0
      %4443 = vmatpush1.msra.mxu0 %v324
      %4444 = vmatprep.subr.mxu0 0.0
      %4445 = vmatpush1.msra.mxu0 0.0
      %4446 = vmatprep.subr.mxu0 0.0
      %4447 = vmatpush1.msra.mxu0 0.0
      %4448 = vmatprep.subr.mxu0 0.0
      %4449 = vmatpush1.msra.mxu0 0.0
      %4450 = vmatprep.subr.mxu0 0.0
      %4451 = vmatpush1.msra.mxu0 0.0
      %4452 = vmatprep.subr.mxu0 0.0
      %4453 = vmatpush1.msra.mxu0 0.0
      %4454 = vmatprep.subr.mxu0 0.0
      %4455 = vmatpush1.msra.mxu0 0.0
      %4456 = vmatprep.subr.mxu0 0.0
      %4457 = vmatpush1.msra.mxu0 0.0
      %4458 = vmatprep.subr.mxu0 0.0
      %4459 = vmatpush1.msra.mxu0 0.0
      %4460 = vmatprep.subr.mxu0 0.0
      %4461 = vmatpush1.msra.mxu0 0.0
      %4462 = vmatprep.subr.mxu0 0.0
      %4463 = vmatpush1.msra.mxu0 0.0
      %4464 = vmatprep.subr.mxu0 0.0
      %4465 = vmatpush1.msra.mxu0 0.0
      %4466 = vmatprep.subr.mxu0 0.0
      %4467 = vmatpush1.msra.mxu0 0.0
      %4468 = vmatprep.subr.mxu0 0.0
      %4469 = vmatpush1.msra.mxu0 0.0
      %4470 = vmatprep.subr.mxu0 0.0
      %4471 = vmatpush1.msra.mxu0 0.0
      %4472 = vmatprep.subr.mxu0 0.0
      %4473 = vmatpush1.msra.mxu0 0.0
      %4474 = vmatprep.subr.mxu0 0.0
      %4475 = vmatpush1.msra.mxu0 0.0
      %4476 = vmatprep.mubr.f32.mxu0 0.0
      %4477 = vmatmul.mubr.f32.gmra.mrb[0].mxu0 %v4172
      %v4478 = vpop.f32.mrb[0].mxu0
      %v4479 = vadd.f32 0.0, %v4478
      %v4480 = vpop.f32.mrb[0].mxu0
      %4481 = vmatprep.mubr.f32.mxu0 0.0
      %4482 = vmatmul.mubr.f32.gmra.mrb[0].mxu0 %v4173
      %v4483 = vpop.f32.mrb[0].mxu0
      %v4484 = vadd.f32 0.0, %v4483
      %v4485 = vpop.f32.mrb[0].mxu0
      %4486 = vmatprep.mubr.f32.mxu0 0.0
      %4487 = vmatmul.mubr.f32.gmra.mrb[0].mxu0 %v4174
      %v4488 = vpop.f32.mrb[0].mxu0
      %v4489 = vadd.f32 0.0, %v4488
      %v4490 = vpop.f32.mrb[0].mxu0
      %4491 = vmatprep.mubr.f32.mxu0 0.0
      %4492 = vmatmul.mubr.f32.gmra.mrb[0].mxu0 %v4175
      %v4493 = vpop.f32.mrb[0].mxu0
      %v4494 = vadd.f32 0.0, %v4493
      %v4495 = vpop.f32.mrb[0].mxu0
      %4496 = vmatprep.mubr.f32.mxu0 0.0
      %4497 = vmatmul.mubr.f32.gmra.mrb[0].mxu0 %v4176
      %v4498 = vpop.f32.mrb[0].mxu0
      %v4499 = vadd.f32 0.0, %v4498
      %v4500 = vpop.f32.mrb[0].mxu0
      %4501 = vmatprep.mubr.f32.mxu0 0.0
      %4502 = vmatmul.mubr.f32.gmra.mrb[0].mxu0 %v4177
      %v4503 = vpop.f32.mrb[0].mxu0
      %v4504 = vadd.f32 0.0, %v4503
      %v4505 = vpop.f32.mrb[0].mxu0
      %4506 = vmatprep.mubr.f32.mxu0 0.0
      %4507 = vmatmul.mubr.f32.gmra.mrb[0].mxu0 %v4178
      %v4508 = vpop.f32.mrb[0].mxu0
      %v4509 = vadd.f32 0.0, %v4508
      %v4510 = vpop.f32.mrb[0].mxu0
      %4511 = vmatprep.mubr.f32.mxu0 0.0
      %4512 = vmatmul.mubr.f32.gmra.mrb[0].mxu0 %v4179
      %v4513 = vpop.f32.mrb[0].mxu0
      %v4514 = vadd.f32 0.0, %v4513
      %v4515 = vpop.f32.mrb[0].mxu0
      %4516 = vmatprep.mubr.f32.mxu0 0.0
      %4517 = vmatmul.mubr.f32.gmra.mrb[0].mxu0 %v4180
      %v4518 = vpop.f32.mrb[0].mxu0
      %v4519 = vadd.f32 0.0, %v4518
      %v4520 = vpop.f32.mrb[0].mxu0
      %4521 = vmatprep.mubr.f32.mxu0 0.0
      %4522 = vmatmul.mubr.f32.gmra.mrb[0].mxu0 %v4181
      %v4523 = vpop.f32.mrb[0].mxu0
      %v4524 = vadd.f32 0.0, %v4523
      %v4525 = vpop.f32.mrb[0].mxu0
      %4526 = vmatprep.mubr.f32.mxu0 0.0
      %4527 = vmatmul.mubr.f32.gmra.mrb[0].mxu0 %v4182
      %v4528 = vpop.f32.mrb[0].mxu0
      %v4529 = vadd.f32 0.0, %v4528
      %v4530 = vpop.f32.mrb[0].mxu0
      %4531 = vmatprep.mubr.f32.mxu0 0.0
      %4532 = vmatmul.mubr.f32.gmra.mrb[0].mxu0 %v4183
      %v4533 = vpop.f32.mrb[0].mxu0
      %v4534 = vadd.f32 0.0, %v4533
      %v4535 = vpop.f32.mrb[0].mxu0
      %4536 = vmatprep.mubr.f32.mxu0 0.0
      %4537 = vmatmul.mubr.f32.gmra.mrb[0].mxu0 %v4184
      %v4538 = vpop.f32.mrb[0].mxu0
      %v4539 = vadd.f32 0.0, %v4538
      %v4540 = vpop.f32.mrb[0].mxu0
      %4541 = vmatprep.mubr.f32.mxu0 0.0
      %4542 = vmatmul.mubr.f32.gmra.mrb[0].mxu0 %v4185
      %v4543 = vpop.f32.mrb[0].mxu0
      %v4544 = vadd.f32 0.0, %v4543
      %v4545 = vpop.f32.mrb[0].mxu0
      %4546 = vmatprep.mubr.f32.mxu0 0.0
      %4547 = vmatmul.mubr.f32.gmra.mrb[0].mxu0 %v4186
      %v4548 = vpop.f32.mrb[0].mxu0
      %v4549 = vadd.f32 0.0, %v4548
      %v4550 = vpop.f32.mrb[0].mxu0
      %4551 = vmatprep.mubr.f32.mxu0 0.0
      %4552 = vmatmul.mubr.f32.gmra.mrb[0].mxu0 %v4187
      %v4553 = vpop.f32.mrb[0].mxu0
      %v4554 = vadd.f32 0.0, %v4553
      %v4555 = vpop.f32.mrb[0].mxu0
      %4556 = vmatprep.mubr.f32.mxu0 0.0
      %4557 = vmatmul.mubr.f32.gmra.mrb[0].mxu0 %v4204
      %v4558 = vpop.f32.mrb[0].mxu0
      %v4559 = vadd.f32 0.0, %v4558
      %v4560 = vpop.f32.mrb[0].mxu0
      %4561 = vmatprep.mubr.f32.mxu0 0.0
      %4562 = vmatmul.mubr.f32.gmra.mrb[0].mxu0 %v4205
      %v4563 = vpop.f32.mrb[0].mxu0
      %v4564 = vadd.f32 0.0, %v4563
      %v4565 = vpop.f32.mrb[0].mxu0
      %4566 = vmatprep.mubr.f32.mxu0 0.0
      %4567 = vmatmul.mubr.f32.gmra.mrb[0].mxu0 %v4206
      %v4568 = vpop.f32.mrb[0].mxu0
      %v4569 = vadd.f32 0.0, %v4568
      %v4570 = vpop.f32.mrb[0].mxu0
      %4571 = vmatprep.mubr.f32.mxu0 0.0
      %4572 = vmatmul.mubr.f32.gmra.mrb[0].mxu0 %v4207
      %v4573 = vpop.f32.mrb[0].mxu0
      %v4574 = vadd.f32 0.0, %v4573
      %v4575 = vpop.f32.mrb[0].mxu0
      %4576 = vmatprep.mubr.f32.mxu0 0.0
      %4577 = vmatmul.mubr.f32.gmra.mrb[0].mxu0 %v4208
      %v4578 = vpop.f32.mrb[0].mxu0
      %v4579 = vadd.f32 0.0, %v4578
      %v4580 = vpop.f32.mrb[0].mxu0
      %4581 = vmatprep.mubr.f32.mxu0 0.0
      %4582 = vmatmul.mubr.f32.gmra.mrb[0].mxu0 %v4209
      %v4583 = vpop.f32.mrb[0].mxu0
      %v4584 = vadd.f32 0.0, %v4583
      %v4585 = vpop.f32.mrb[0].mxu0
      %4586 = vmatprep.mubr.f32.mxu0 0.0
      %4587 = vmatmul.mubr.f32.gmra.mrb[0].mxu0 %v4210
      %v4588 = vpop.f32.mrb[0].mxu0
      %v4589 = vadd.f32 0.0, %v4588
      %v4590 = vpop.f32.mrb[0].mxu0
      %4591 = vmatprep.mubr.f32.mxu0 0.0
      %4592 = vmatmul.mubr.f32.gmra.mrb[0].mxu0 %v4211
      %v4593 = vpop.f32.mrb[0].mxu0
      %v4594 = vadd.f32 0.0, %v4593
      %v4595 = vpop.f32.mrb[0].mxu0
      %4596 = vmatprep.mubr.f32.mxu0 0.0
      %4597 = vmatmul.mubr.f32.gmra.mrb[0].mxu0 %v4212
      %v4598 = vpop.f32.mrb[0].mxu0
      %v4599 = vadd.f32 0.0, %v4598
      %v4600 = vpop.f32.mrb[0].mxu0
      %4601 = vmatprep.mubr.f32.mxu0 0.0
      %4602 = vmatmul.mubr.f32.gmra.mrb[0].mxu0 %v4213
      %v4603 = vpop.f32.mrb[0].mxu0
      %v4604 = vadd.f32 0.0, %v4603
      %v4605 = vpop.f32.mrb[0].mxu0
      %4606 = vmatprep.mubr.f32.mxu0 0.0
      %4607 = vmatmul.mubr.f32.gmra.mrb[0].mxu0 %v4214
      %v4608 = vpop.f32.mrb[0].mxu0
      %v4609 = vadd.f32 0.0, %v4608
      %v4610 = vpop.f32.mrb[0].mxu0
      %4611 = vmatprep.mubr.f32.mxu0 0.0
      %4612 = vmatmul.mubr.f32.gmra.mrb[0].mxu0 %v4215
      %v4613 = vpop.f32.mrb[0].mxu0
      %v4614 = vadd.f32 0.0, %v4613
      %v4615 = vpop.f32.mrb[0].mxu0
      %4616 = vmatprep.mubr.f32.mxu0 0.0
      %4617 = vmatmul.mubr.f32.gmra.mrb[0].mxu0 %v4216
      %v4618 = vpop.f32.mrb[0].mxu0
      %v4619 = vadd.f32 0.0, %v4618
      %v4620 = vpop.f32.mrb[0].mxu0
      %4621 = vmatprep.mubr.f32.mxu0 0.0
      %4622 = vmatmul.mubr.f32.gmra.mrb[0].mxu0 %v4217
      %v4623 = vpop.f32.mrb[0].mxu0
      %v4624 = vadd.f32 0.0, %v4623
      %v4625 = vpop.f32.mrb[0].mxu0
      %4626 = vmatprep.mubr.f32.mxu0 0.0
      %4627 = vmatmul.mubr.f32.gmra.mrb[0].mxu0 %v4218
      %v4628 = vpop.f32.mrb[0].mxu0
      %v4629 = vadd.f32 0.0, %v4628
      %v4630 = vpop.f32.mrb[0].mxu0
      %4631 = vmatprep.mubr.f32.mxu0 0.0
      %4632 = vmatmul.mubr.f32.gmra.mrb[0].mxu0 %v4219
      %v4633 = vpop.f32.mrb[0].mxu0
      %v4634 = vadd.f32 0.0, %v4633
      %v4635 = vpop.f32.mrb[0].mxu0
      %4636 = vmatprep.mubr.f32.mxu0 0.0
      %4637 = vmatmul.mubr.f32.gmra.mrb[0].mxu0 %v4236
      %v4638 = vpop.f32.mrb[0].mxu0
      %v4639 = vadd.f32 0.0, %v4638
      %v4640 = vpop.f32.mrb[0].mxu0
      %4641 = vmatprep.mubr.f32.mxu0 0.0
      %4642 = vmatmul.mubr.f32.gmra.mrb[0].mxu0 %v4237
      %v4643 = vpop.f32.mrb[0].mxu0
      %v4644 = vadd.f32 0.0, %v4643
      %v4645 = vpop.f32.mrb[0].mxu0
      %4646 = vmatprep.mubr.f32.mxu0 0.0
      %4647 = vmatmul.mubr.f32.gmra.mrb[0].mxu0 %v4238
      %v4648 = vpop.f32.mrb[0].mxu0
      %v4649 = vadd.f32 0.0, %v4648
      %v4650 = vpop.f32.mrb[0].mxu0
      %4651 = vmatprep.mubr.f32.mxu0 0.0
      %4652 = vmatmul.mubr.f32.gmra.mrb[0].mxu0 %v4239
      %v4653 = vpop.f32.mrb[0].mxu0
      %v4654 = vadd.f32 0.0, %v4653
      %v4655 = vpop.f32.mrb[0].mxu0
      %4656 = vmatprep.mubr.f32.mxu0 0.0
      %4657 = vmatmul.mubr.f32.gmra.mrb[0].mxu0 %v4240
      %v4658 = vpop.f32.mrb[0].mxu0
      %v4659 = vadd.f32 0.0, %v4658
      %v4660 = vpop.f32.mrb[0].mxu0
      %4661 = vmatprep.mubr.f32.mxu0 0.0
      %4662 = vmatmul.mubr.f32.gmra.mrb[0].mxu0 %v4241
      %v4663 = vpop.f32.mrb[0].mxu0
      %v4664 = vadd.f32 0.0, %v4663
      %v4665 = vpop.f32.mrb[0].mxu0
      %4666 = vmatprep.mubr.f32.mxu0 0.0
      %4667 = vmatmul.mubr.f32.gmra.mrb[0].mxu0 %v4242
      %v4668 = vpop.f32.mrb[0].mxu0
      %v4669 = vadd.f32 0.0, %v4668
      %v4670 = vpop.f32.mrb[0].mxu0
      %4671 = vmatprep.mubr.f32.mxu0 0.0
      %4672 = vmatmul.mubr.f32.gmra.mrb[0].mxu0 %v4243
      %v4673 = vpop.f32.mrb[0].mxu0
      %v4674 = vadd.f32 0.0, %v4673
      %v4675 = vpop.f32.mrb[0].mxu0
      %4676 = vmatprep.mubr.f32.mxu0 0.0
      %4677 = vmatmul.mubr.f32.gmra.mrb[0].mxu0 %v4244
      %v4678 = vpop.f32.mrb[0].mxu0
      %v4679 = vadd.f32 0.0, %v4678
      %v4680 = vpop.f32.mrb[0].mxu0
      %4681 = vmatprep.mubr.f32.mxu0 0.0
      %4682 = vmatmul.mubr.f32.gmra.mrb[0].mxu0 %v4245
      %v4683 = vpop.f32.mrb[0].mxu0
      %v4684 = vadd.f32 0.0, %v4683
      %v4685 = vpop.f32.mrb[0].mxu0
      %4686 = vmatprep.mubr.f32.mxu0 0.0
      %4687 = vmatmul.mubr.f32.gmra.mrb[0].mxu0 %v4246
      %v4688 = vpop.f32.mrb[0].mxu0
      %v4689 = vadd.f32 0.0, %v4688
      %v4690 = vpop.f32.mrb[0].mxu0
      %4691 = vmatprep.mubr.f32.mxu0 0.0
      %4692 = vmatmul.mubr.f32.gmra.mrb[0].mxu0 %v4247
      %v4693 = vpop.f32.mrb[0].mxu0
      %v4694 = vadd.f32 0.0, %v4693
      %v4695 = vpop.f32.mrb[0].mxu0
      %4696 = vmatprep.mubr.f32.mxu0 0.0
      %4697 = vmatmul.mubr.f32.gmra.mrb[0].mxu0 %v4248
      %v4698 = vpop.f32.mrb[0].mxu0
      %v4699 = vadd.f32 0.0, %v4698
      %v4700 = vpop.f32.mrb[0].mxu0
      %4701 = vmatprep.mubr.f32.mxu0 0.0
      %4702 = vmatmul.mubr.f32.gmra.mrb[0].mxu0 %v4249
      %v4703 = vpop.f32.mrb[0].mxu0
      %v4704 = vadd.f32 0.0, %v4703
      %v4705 = vpop.f32.mrb[0].mxu0
      %4706 = vmatprep.mubr.f32.mxu0 0.0
      %4707 = vmatmul.mubr.f32.gmra.mrb[0].mxu0 %v4250
      %v4708 = vpop.f32.mrb[0].mxu0
      %v4709 = vadd.f32 0.0, %v4708
      %v4710 = vpop.f32.mrb[0].mxu0
      %4711 = vmatprep.mubr.f32.mxu0 0.0
      %4712 = vmatmul.mubr.f32.gmra.mrb[0].mxu0 %v4251
      %v4713 = vpop.f32.mrb[0].mxu0
      %v4714 = vadd.f32 0.0, %v4713
      %v4715 = vpop.f32.mrb[0].mxu0
      %4716 = vmatprep.mubr.f32.mxu0 0.0
      %4717 = vmatmul.mubr.f32.gmra.mrb[0].mxu0 %v4268
      %v4718 = vpop.f32.mrb[0].mxu0
      %v4719 = vadd.f32 0.0, %v4718
      %v4720 = vpop.f32.mrb[0].mxu0
      %4721 = vmatprep.mubr.f32.mxu0 0.0
      %4722 = vmatmul.mubr.f32.gmra.mrb[0].mxu0 %v4269
      %v4723 = vpop.f32.mrb[0].mxu0
      %v4724 = vadd.f32 0.0, %v4723
      %v4725 = vpop.f32.mrb[0].mxu0
      %4726 = vmatprep.mubr.f32.mxu0 0.0
      %4727 = vmatmul.mubr.f32.gmra.mrb[0].mxu0 %v4270
      %v4728 = vpop.f32.mrb[0].mxu0
      %v4729 = vadd.f32 0.0, %v4728
      %v4730 = vpop.f32.mrb[0].mxu0
      %4731 = vmatprep.mubr.f32.mxu0 0.0
      %4732 = vmatmul.mubr.f32.gmra.mrb[0].mxu0 %v4271
      %v4733 = vpop.f32.mrb[0].mxu0
      %v4734 = vadd.f32 0.0, %v4733
      %v4735 = vpop.f32.mrb[0].mxu0
      %4736 = vmatprep.mubr.f32.mxu0 0.0
      %4737 = vmatmul.mubr.f32.gmra.mrb[0].mxu0 %v4272
      %v4738 = vpop.f32.mrb[0].mxu0
      %v4739 = vadd.f32 0.0, %v4738
      %v4740 = vpop.f32.mrb[0].mxu0
      %4741 = vmatprep.mubr.f32.mxu0 0.0
      %4742 = vmatmul.mubr.f32.gmra.mrb[0].mxu0 %v4273
      %v4743 = vpop.f32.mrb[0].mxu0
      %v4744 = vadd.f32 0.0, %v4743
      %v4745 = vpop.f32.mrb[0].mxu0
      %4746 = vmatprep.mubr.f32.mxu0 0.0
      %4747 = vmatmul.mubr.f32.gmra.mrb[0].mxu0 %v4274
      %v4748 = vpop.f32.mrb[0].mxu0
      %v4749 = vadd.f32 0.0, %v4748
      %v4750 = vpop.f32.mrb[0].mxu0
      %4751 = vmatprep.mubr.f32.mxu0 0.0
      %4752 = vmatmul.mubr.f32.gmra.mrb[0].mxu0 %v4275
      %v4753 = vpop.f32.mrb[0].mxu0
      %v4754 = vadd.f32 0.0, %v4753
      %v4755 = vpop.f32.mrb[0].mxu0
      %4756 = vmatprep.mubr.f32.mxu0 0.0
      %4757 = vmatmul.mubr.f32.gmra.mrb[0].mxu0 %v4276
      %v4758 = vpop.f32.mrb[0].mxu0
      %v4759 = vadd.f32 0.0, %v4758
      %v4760 = vpop.f32.mrb[0].mxu0
      %4761 = vmatprep.mubr.f32.mxu0 0.0
      %4762 = vmatmul.mubr.f32.gmra.mrb[0].mxu0 %v4277
      %v4763 = vpop.f32.mrb[0].mxu0
      %v4764 = vadd.f32 0.0, %v4763
      %v4765 = vpop.f32.mrb[0].mxu0
      %4766 = vmatprep.mubr.f32.mxu0 0.0
      %4767 = vmatmul.mubr.f32.gmra.mrb[0].mxu0 %v4278
      %v4768 = vpop.f32.mrb[0].mxu0
      %v4769 = vadd.f32 0.0, %v4768
      %v4770 = vpop.f32.mrb[0].mxu0
      %4771 = vmatprep.mubr.f32.mxu0 0.0
      %4772 = vmatmul.mubr.f32.gmra.mrb[0].mxu0 %v4279
      %v4773 = vpop.f32.mrb[0].mxu0
      %v4774 = vadd.f32 0.0, %v4773
      %v4775 = vpop.f32.mrb[0].mxu0
      %4776 = vmatprep.mubr.f32.mxu0 0.0
      %4777 = vmatmul.mubr.f32.gmra.mrb[0].mxu0 %v4280
      %v4778 = vpop.f32.mrb[0].mxu0
      %v4779 = vadd.f32 0.0, %v4778
      %v4780 = vpop.f32.mrb[0].mxu0
      %4781 = vmatprep.mubr.f32.mxu0 0.0
      %4782 = vmatmul.mubr.f32.gmra.mrb[0].mxu0 %v4281
      %v4783 = vpop.f32.mrb[0].mxu0
      %v4784 = vadd.f32 0.0, %v4783
      %v4785 = vpop.f32.mrb[0].mxu0
      %4786 = vmatprep.mubr.f32.mxu0 0.0
      %4787 = vmatmul.mubr.f32.gmra.mrb[0].mxu0 %v4282
      %v4788 = vpop.f32.mrb[0].mxu0
      %v4789 = vadd.f32 0.0, %v4788
      %v4790 = vpop.f32.mrb[0].mxu0
      %4791 = vmatprep.mubr.f32.mxu0 0.0
      %4792 = vmatmul.mubr.f32.gmra.mrb[0].mxu0 %v4283
      %v4793 = vpop.f32.mrb[0].mxu0
      %v4794 = vadd.f32 0.0, %v4793
      %v4795 = vpop.f32.mrb[0].mxu0
      %4796 = vdwg.mxu0
      %4797 = vmatprep.subr.mxu0 0.0
      %4798 = vmatpush1.msra.mxu0 %v341
      %4799 = vmatprep.subr.mxu0 0.0
      %4800 = vmatpush1.msra.mxu0 %v342
      %4801 = vmatprep.subr.mxu0 0.0
      %4802 = vmatpush1.msra.mxu0 %v343
      %4803 = vmatprep.subr.mxu0 0.0
      %4804 = vmatpush1.msra.mxu0 %v344
      %4805 = vmatprep.subr.mxu0 0.0
      %4806 = vmatpush1.msra.mxu0 %v345
      %4807 = vmatprep.subr.mxu0 0.0
      %4808 = vmatpush1.msra.mxu0 %v346
      %4809 = vmatprep.subr.mxu0 0.0
      %4810 = vmatpush1.msra.mxu0 %v347
      %4811 = vmatprep.subr.mxu0 0.0
      %4812 = vmatpush1.msra.mxu0 %v348
      %4813 = vmatprep.subr.mxu0 0.0
      %4814 = vmatpush1.msra.mxu0 %v349
      %4815 = vmatprep.subr.mxu0 0.0
      %4816 = vmatpush1.msra.mxu0 %v350
      %4817 = vmatprep.subr.mxu0 0.0
      %4818 = vmatpush1.msra.mxu0 %v351
      %4819 = vmatprep.subr.mxu0 0.0
      %4820 = vmatpush1.msra.mxu0 %v352
      %4821 = vmatprep.subr.mxu0 0.0
      %4822 = vmatpush1.msra.mxu0 %v353
      %4823 = vmatprep.subr.mxu0 0.0
      %4824 = vmatpush1.msra.mxu0 %v354
      %4825 = vmatprep.subr.mxu0 0.0
      %4826 = vmatpush1.msra.mxu0 %v355
      %4827 = vmatprep.subr.mxu0 0.0
      %4828 = vmatpush1.msra.mxu0 %v356
      %4829 = vmatprep.subr.mxu0 0.0
      %4830 = vmatpush1.msra.mxu0 0.0
      %4831 = vmatprep.subr.mxu0 0.0
      %4832 = vmatpush1.msra.mxu0 0.0
      %4833 = vmatprep.subr.mxu0 0.0
      %4834 = vmatpush1.msra.mxu0 0.0
      %4835 = vmatprep.subr.mxu0 0.0
      %4836 = vmatpush1.msra.mxu0 0.0
      %4837 = vmatprep.subr.mxu0 0.0
      %4838 = vmatpush1.msra.mxu0 0.0
      %4839 = vmatprep.subr.mxu0 0.0
      %4840 = vmatpush1.msra.mxu0 0.0
      %4841 = vmatprep.subr.mxu0 0.0
      %4842 = vmatpush1.msra.mxu0 0.0
      %4843 = vmatprep.subr.mxu0 0.0
      %4844 = vmatpush1.msra.mxu0 0.0
      %4845 = vmatprep.subr.mxu0 0.0
      %4846 = vmatpush1.msra.mxu0 0.0
      %4847 = vmatprep.subr.mxu0 0.0
      %4848 = vmatpush1.msra.mxu0 0.0
      %4849 = vmatprep.subr.mxu0 0.0
      %4850 = vmatpush1.msra.mxu0 0.0
      %4851 = vmatprep.subr.mxu0 0.0
      %4852 = vmatpush1.msra.mxu0 0.0
      %4853 = vmatprep.subr.mxu0 0.0
      %4854 = vmatpush1.msra.mxu0 0.0
      %4855 = vmatprep.subr.mxu0 0.0
      %4856 = vmatpush1.msra.mxu0 0.0
      %4857 = vmatprep.subr.mxu0 0.0
      %4858 = vmatpush1.msra.mxu0 0.0
      %4859 = vmatprep.subr.mxu0 0.0
      %4860 = vmatpush1.msra.mxu0 0.0
      %4861 = vmatprep.mubr.f32.mxu0 0.0
      %4862 = vmatmul.mubr.f32.gmra.mrb[0].mxu0 %v4300
      %v4863 = vpop.f32.mrb[0].mxu0
      %v4864 = vadd.f32 0.0, %v4863
      %v4865 = vpop.f32.mrb[0].mxu0
      %4866 = vmatprep.mubr.f32.mxu0 0.0
      %4867 = vmatmul.mubr.f32.gmra.mrb[0].mxu0 %v4301
      %v4868 = vpop.f32.mrb[0].mxu0
      %v4869 = vadd.f32 0.0, %v4868
      %v4870 = vpop.f32.mrb[0].mxu0
      %4871 = vmatprep.mubr.f32.mxu0 0.0
      %4872 = vmatmul.mubr.f32.gmra.mrb[0].mxu0 %v4302
      %v4873 = vpop.f32.mrb[0].mxu0
      %v4874 = vadd.f32 0.0, %v4873
      %v4875 = vpop.f32.mrb[0].mxu0
      %4876 = vmatprep.mubr.f32.mxu0 0.0
      %4877 = vmatmul.mubr.f32.gmra.mrb[0].mxu0 %v4303
      %v4878 = vpop.f32.mrb[0].mxu0
      %v4879 = vadd.f32 0.0, %v4878
      %v4880 = vpop.f32.mrb[0].mxu0
      %4881 = vmatprep.mubr.f32.mxu0 0.0
      %4882 = vmatmul.mubr.f32.gmra.mrb[0].mxu0 %v4304
      %v4883 = vpop.f32.mrb[0].mxu0
      %v4884 = vadd.f32 0.0, %v4883
      %v4885 = vpop.f32.mrb[0].mxu0
      %4886 = vmatprep.mubr.f32.mxu0 0.0
      %4887 = vmatmul.mubr.f32.gmra.mrb[0].mxu0 %v4305
      %v4888 = vpop.f32.mrb[0].mxu0
      %v4889 = vadd.f32 0.0, %v4888
      %v4890 = vpop.f32.mrb[0].mxu0
      %4891 = vmatprep.mubr.f32.mxu0 0.0
      %4892 = vmatmul.mubr.f32.gmra.mrb[0].mxu0 %v4306
      %v4893 = vpop.f32.mrb[0].mxu0
      %v4894 = vadd.f32 0.0, %v4893
      %v4895 = vpop.f32.mrb[0].mxu0
      %4896 = vmatprep.mubr.f32.mxu0 0.0
      %4897 = vmatmul.mubr.f32.gmra.mrb[0].mxu0 %v4307
      %v4898 = vpop.f32.mrb[0].mxu0
      %v4899 = vadd.f32 0.0, %v4898
      %v4900 = vpop.f32.mrb[0].mxu0
      %4901 = vmatprep.mubr.f32.mxu0 0.0
      %4902 = vmatmul.mubr.f32.gmra.mrb[0].mxu0 %v4308
      %v4903 = vpop.f32.mrb[0].mxu0
      %v4904 = vadd.f32 0.0, %v4903
      %v4905 = vpop.f32.mrb[0].mxu0
      %4906 = vmatprep.mubr.f32.mxu0 0.0
      %4907 = vmatmul.mubr.f32.gmra.mrb[0].mxu0 %v4309
      %v4908 = vpop.f32.mrb[0].mxu0
      %v4909 = vadd.f32 0.0, %v4908
      %v4910 = vpop.f32.mrb[0].mxu0
      %4911 = vmatprep.mubr.f32.mxu0 0.0
      %4912 = vmatmul.mubr.f32.gmra.mrb[0].mxu0 %v4310
      %v4913 = vpop.f32.mrb[0].mxu0
      %v4914 = vadd.f32 0.0, %v4913
      %v4915 = vpop.f32.mrb[0].mxu0
      %4916 = vmatprep.mubr.f32.mxu0 0.0
      %4917 = vmatmul.mubr.f32.gmra.mrb[0].mxu0 %v4311
      %v4918 = vpop.f32.mrb[0].mxu0
      %v4919 = vadd.f32 0.0, %v4918
      %v4920 = vpop.f32.mrb[0].mxu0
      %4921 = vmatprep.mubr.f32.mxu0 0.0
      %4922 = vmatmul.mubr.f32.gmra.mrb[0].mxu0 %v4312
      %v4923 = vpop.f32.mrb[0].mxu0
      %v4924 = vadd.f32 0.0, %v4923
      %v4925 = vpop.f32.mrb[0].mxu0
      %4926 = vmatprep.mubr.f32.mxu0 0.0
      %4927 = vmatmul.mubr.f32.gmra.mrb[0].mxu0 %v4313
      %v4928 = vpop.f32.mrb[0].mxu0
      %v4929 = vadd.f32 0.0, %v4928
      %v4930 = vpop.f32.mrb[0].mxu0
      %4931 = vmatprep.mubr.f32.mxu0 0.0
      %4932 = vmatmul.mubr.f32.gmra.mrb[0].mxu0 %v4314
      %v4933 = vpop.f32.mrb[0].mxu0
      %v4934 = vadd.f32 0.0, %v4933
      %v4935 = vpop.f32.mrb[0].mxu0
      %4936 = vmatprep.mubr.f32.mxu0 0.0
      %4937 = vmatmul.mubr.f32.gmra.mrb[0].mxu0 %v4315
      %v4938 = vpop.f32.mrb[0].mxu0
      %v4939 = vadd.f32 0.0, %v4938
      %v4940 = vpop.f32.mrb[0].mxu0
      %4941 = vmatprep.mubr.f32.mxu0 0.0
      %4942 = vmatmul.mubr.f32.gmra.mrb[0].mxu0 %v4332
      %v4943 = vpop.f32.mrb[0].mxu0
      %v4944 = vadd.f32 0.0, %v4943
      %v4945 = vpop.f32.mrb[0].mxu0
      %4946 = vmatprep.mubr.f32.mxu0 0.0
      %4947 = vmatmul.mubr.f32.gmra.mrb[0].mxu0 %v4333
      %v4948 = vpop.f32.mrb[0].mxu0
      %v4949 = vadd.f32 0.0, %v4948
      %v4950 = vpop.f32.mrb[0].mxu0
      %4951 = vmatprep.mubr.f32.mxu0 0.0
      %4952 = vmatmul.mubr.f32.gmra.mrb[0].mxu0 %v4334
      %v4953 = vpop.f32.mrb[0].mxu0
      %v4954 = vadd.f32 0.0, %v4953
      %v4955 = vpop.f32.mrb[0].mxu0
      %4956 = vmatprep.mubr.f32.mxu0 0.0
      %4957 = vmatmul.mubr.f32.gmra.mrb[0].mxu0 %v4335
      %v4958 = vpop.f32.mrb[0].mxu0
      %v4959 = vadd.f32 0.0, %v4958
      %v4960 = vpop.f32.mrb[0].mxu0
      %4961 = vmatprep.mubr.f32.mxu0 0.0
      %4962 = vmatmul.mubr.f32.gmra.mrb[0].mxu0 %v4336
      %v4963 = vpop.f32.mrb[0].mxu0
      %v4964 = vadd.f32 0.0, %v4963
      %v4965 = vpop.f32.mrb[0].mxu0
      %4966 = vmatprep.mubr.f32.mxu0 0.0
      %4967 = vmatmul.mubr.f32.gmra.mrb[0].mxu0 %v4337
      %v4968 = vpop.f32.mrb[0].mxu0
      %v4969 = vadd.f32 0.0, %v4968
      %v4970 = vpop.f32.mrb[0].mxu0
      %4971 = vmatprep.mubr.f32.mxu0 0.0
      %4972 = vmatmul.mubr.f32.gmra.mrb[0].mxu0 %v4338
      %v4973 = vpop.f32.mrb[0].mxu0
      %v4974 = vadd.f32 0.0, %v4973
      %v4975 = vpop.f32.mrb[0].mxu0
      %4976 = vmatprep.mubr.f32.mxu0 0.0
      %4977 = vmatmul.mubr.f32.gmra.mrb[0].mxu0 %v4339
      %v4978 = vpop.f32.mrb[0].mxu0
      %v4979 = vadd.f32 0.0, %v4978
      %v4980 = vpop.f32.mrb[0].mxu0
      %4981 = vmatprep.mubr.f32.mxu0 0.0
      %4982 = vmatmul.mubr.f32.gmra.mrb[0].mxu0 %v4340
      %v4983 = vpop.f32.mrb[0].mxu0
      %v4984 = vadd.f32 0.0, %v4983
      %v4985 = vpop.f32.mrb[0].mxu0
      %4986 = vmatprep.mubr.f32.mxu0 0.0
      %4987 = vmatmul.mubr.f32.gmra.mrb[0].mxu0 %v4341
      %v4988 = vpop.f32.mrb[0].mxu0
      %v4989 = vadd.f32 0.0, %v4988
      %v4990 = vpop.f32.mrb[0].mxu0
      %4991 = vmatprep.mubr.f32.mxu0 0.0
      %4992 = vmatmul.mubr.f32.gmra.mrb[0].mxu0 %v4342
      %v4993 = vpop.f32.mrb[0].mxu0
      %v4994 = vadd.f32 0.0, %v4993
      %v4995 = vpop.f32.mrb[0].mxu0
      %4996 = vmatprep.mubr.f32.mxu0 0.0
      %4997 = vmatmul.mubr.f32.gmra.mrb[0].mxu0 %v4343
      %v4998 = vpop.f32.mrb[0].mxu0
      %v4999 = vadd.f32 0.0, %v4998
      %v5000 = vpop.f32.mrb[0].mxu0
      %5001 = vmatprep.mubr.f32.mxu0 0.0
      %5002 = vmatmul.mubr.f32.gmra.mrb[0].mxu0 %v4344
      %v5003 = vpop.f32.mrb[0].mxu0
      %v5004 = vadd.f32 0.0, %v5003
      %v5005 = vpop.f32.mrb[0].mxu0
      %5006 = vmatprep.mubr.f32.mxu0 0.0
      %5007 = vmatmul.mubr.f32.gmra.mrb[0].mxu0 %v4345
      %v5008 = vpop.f32.mrb[0].mxu0
      %v5009 = vadd.f32 0.0, %v5008
      %v5010 = vpop.f32.mrb[0].mxu0
      %5011 = vmatprep.mubr.f32.mxu0 0.0
      %5012 = vmatmul.mubr.f32.gmra.mrb[0].mxu0 %v4346
      %v5013 = vpop.f32.mrb[0].mxu0
      %v5014 = vadd.f32 0.0, %v5013
      %v5015 = vpop.f32.mrb[0].mxu0
      %5016 = vmatprep.mubr.f32.mxu0 0.0
      %5017 = vmatmul.mubr.f32.gmra.mrb[0].mxu0 %v4347
      %v5018 = vpop.f32.mrb[0].mxu0
      %v5019 = vadd.f32 0.0, %v5018
      %v5020 = vpop.f32.mrb[0].mxu0
      %5021 = vmatprep.mubr.f32.mxu0 0.0
      %5022 = vmatmul.mubr.f32.gmra.mrb[0].mxu0 %v4364
      %v5023 = vpop.f32.mrb[0].mxu0
      %v5024 = vadd.f32 0.0, %v5023
      %v5025 = vpop.f32.mrb[0].mxu0
      %5026 = vmatprep.mubr.f32.mxu0 0.0
      %5027 = vmatmul.mubr.f32.gmra.mrb[0].mxu0 %v4365
      %v5028 = vpop.f32.mrb[0].mxu0
      %v5029 = vadd.f32 0.0, %v5028
      %v5030 = vpop.f32.mrb[0].mxu0
      %5031 = vmatprep.mubr.f32.mxu0 0.0
      %5032 = vmatmul.mubr.f32.gmra.mrb[0].mxu0 %v4366
      %v5033 = vpop.f32.mrb[0].mxu0
      %v5034 = vadd.f32 0.0, %v5033
      %v5035 = vpop.f32.mrb[0].mxu0
      %5036 = vmatprep.mubr.f32.mxu0 0.0
      %5037 = vmatmul.mubr.f32.gmra.mrb[0].mxu0 %v4367
      %v5038 = vpop.f32.mrb[0].mxu0
      %v5039 = vadd.f32 0.0, %v5038
      %v5040 = vpop.f32.mrb[0].mxu0
      %5041 = vmatprep.mubr.f32.mxu0 0.0
      %5042 = vmatmul.mubr.f32.gmra.mrb[0].mxu0 %v4368
      %v5043 = vpop.f32.mrb[0].mxu0
      %v5044 = vadd.f32 0.0, %v5043
      %v5045 = vpop.f32.mrb[0].mxu0
      %5046 = vmatprep.mubr.f32.mxu0 0.0
      %5047 = vmatmul.mubr.f32.gmra.mrb[0].mxu0 %v4369
      %v5048 = vpop.f32.mrb[0].mxu0
      %v5049 = vadd.f32 0.0, %v5048
      %v5050 = vpop.f32.mrb[0].mxu0
      %5051 = vmatprep.mubr.f32.mxu0 0.0
      %5052 = vmatmul.mubr.f32.gmra.mrb[0].mxu0 %v4370
      %v5053 = vpop.f32.mrb[0].mxu0
      %v5054 = vadd.f32 0.0, %v5053
      %v5055 = vpop.f32.mrb[0].mxu0
      %5056 = vmatprep.mubr.f32.mxu0 0.0
      %5057 = vmatmul.mubr.f32.gmra.mrb[0].mxu0 %v4371
      %v5058 = vpop.f32.mrb[0].mxu0
      %v5059 = vadd.f32 0.0, %v5058
      %v5060 = vpop.f32.mrb[0].mxu0
      %5061 = vmatprep.mubr.f32.mxu0 0.0
      %5062 = vmatmul.mubr.f32.gmra.mrb[0].mxu0 %v4372
      %v5063 = vpop.f32.mrb[0].mxu0
      %v5064 = vadd.f32 0.0, %v5063
      %v5065 = vpop.f32.mrb[0].mxu0
      %5066 = vmatprep.mubr.f32.mxu0 0.0
      %5067 = vmatmul.mubr.f32.gmra.mrb[0].mxu0 %v4373
      %v5068 = vpop.f32.mrb[0].mxu0
      %v5069 = vadd.f32 0.0, %v5068
      %v5070 = vpop.f32.mrb[0].mxu0
      %5071 = vmatprep.mubr.f32.mxu0 0.0
      %5072 = vmatmul.mubr.f32.gmra.mrb[0].mxu0 %v4374
      %v5073 = vpop.f32.mrb[0].mxu0
      %v5074 = vadd.f32 0.0, %v5073
      %v5075 = vpop.f32.mrb[0].mxu0
      %5076 = vmatprep.mubr.f32.mxu0 0.0
      %5077 = vmatmul.mubr.f32.gmra.mrb[0].mxu0 %v4375
      %v5078 = vpop.f32.mrb[0].mxu0
      %v5079 = vadd.f32 0.0, %v5078
      %v5080 = vpop.f32.mrb[0].mxu0
      %5081 = vmatprep.mubr.f32.mxu0 0.0
      %5082 = vmatmul.mubr.f32.gmra.mrb[0].mxu0 %v4376
      %v5083 = vpop.f32.mrb[0].mxu0
      %v5084 = vadd.f32 0.0, %v5083
      %v5085 = vpop.f32.mrb[0].mxu0
      %5086 = vmatprep.mubr.f32.mxu0 0.0
      %5087 = vmatmul.mubr.f32.gmra.mrb[0].mxu0 %v4377
      %v5088 = vpop.f32.mrb[0].mxu0
      %v5089 = vadd.f32 0.0, %v5088
      %v5090 = vpop.f32.mrb[0].mxu0
      %5091 = vmatprep.mubr.f32.mxu0 0.0
      %5092 = vmatmul.mubr.f32.gmra.mrb[0].mxu0 %v4378
      %v5093 = vpop.f32.mrb[0].mxu0
      %v5094 = vadd.f32 0.0, %v5093
      %v5095 = vpop.f32.mrb[0].mxu0
      %5096 = vmatprep.mubr.f32.mxu0 0.0
      %5097 = vmatmul.mubr.f32.gmra.mrb[0].mxu0 %v4379
      %v5098 = vpop.f32.mrb[0].mxu0
      %v5099 = vadd.f32 0.0, %v5098
      %v5100 = vpop.f32.mrb[0].mxu0
      %5101 = vmatprep.mubr.f32.mxu0 0.0
      %5102 = vmatmul.mubr.f32.gmra.mrb[0].mxu0 %v4396
      %v5103 = vpop.f32.mrb[0].mxu0
      %v5104 = vadd.f32 0.0, %v5103
      %v5105 = vpop.f32.mrb[0].mxu0
      %5106 = vmatprep.mubr.f32.mxu0 0.0
      %5107 = vmatmul.mubr.f32.gmra.mrb[0].mxu0 %v4397
      %v5108 = vpop.f32.mrb[0].mxu0
      %v5109 = vadd.f32 0.0, %v5108
      %v5110 = vpop.f32.mrb[0].mxu0
      %5111 = vmatprep.mubr.f32.mxu0 0.0
      %5112 = vmatmul.mubr.f32.gmra.mrb[0].mxu0 %v4398
      %v5113 = vpop.f32.mrb[0].mxu0
      %v5114 = vadd.f32 0.0, %v5113
      %v5115 = vpop.f32.mrb[0].mxu0
      %5116 = vmatprep.mubr.f32.mxu0 0.0
      %5117 = vmatmul.mubr.f32.gmra.mrb[0].mxu0 %v4399
      %v5118 = vpop.f32.mrb[0].mxu0
      %v5119 = vadd.f32 0.0, %v5118
      %v5120 = vpop.f32.mrb[0].mxu0
      %5121 = vmatprep.mubr.f32.mxu0 0.0
      %5122 = vmatmul.mubr.f32.gmra.mrb[0].mxu0 %v4400
      %v5123 = vpop.f32.mrb[0].mxu0
      %v5124 = vadd.f32 0.0, %v5123
      %v5125 = vpop.f32.mrb[0].mxu0
      %5126 = vmatprep.mubr.f32.mxu0 0.0
      %5127 = vmatmul.mubr.f32.gmra.mrb[0].mxu0 %v4401
      %v5128 = vpop.f32.mrb[0].mxu0
      %v5129 = vadd.f32 0.0, %v5128
      %v5130 = vpop.f32.mrb[0].mxu0
      %5131 = vmatprep.mubr.f32.mxu0 0.0
      %5132 = vmatmul.mubr.f32.gmra.mrb[0].mxu0 %v4402
      %v5133 = vpop.f32.mrb[0].mxu0
      %v5134 = vadd.f32 0.0, %v5133
      %v5135 = vpop.f32.mrb[0].mxu0
      %5136 = vmatprep.mubr.f32.mxu0 0.0
      %5137 = vmatmul.mubr.f32.gmra.mrb[0].mxu0 %v4403
      %v5138 = vpop.f32.mrb[0].mxu0
      %v5139 = vadd.f32 0.0, %v5138
      %v5140 = vpop.f32.mrb[0].mxu0
      %5141 = vmatprep.mubr.f32.mxu0 0.0
      %5142 = vmatmul.mubr.f32.gmra.mrb[0].mxu0 %v4404
      %v5143 = vpop.f32.mrb[0].mxu0
      %v5144 = vadd.f32 0.0, %v5143
      %v5145 = vpop.f32.mrb[0].mxu0
      %5146 = vmatprep.mubr.f32.mxu0 0.0
      %5147 = vmatmul.mubr.f32.gmra.mrb[0].mxu0 %v4405
      %v5148 = vpop.f32.mrb[0].mxu0
      %v5149 = vadd.f32 0.0, %v5148
      %v5150 = vpop.f32.mrb[0].mxu0
      %5151 = vmatprep.mubr.f32.mxu0 0.0
      %5152 = vmatmul.mubr.f32.gmra.mrb[0].mxu0 %v4406
      %v5153 = vpop.f32.mrb[0].mxu0
      %v5154 = vadd.f32 0.0, %v5153
      %v5155 = vpop.f32.mrb[0].mxu0
      %5156 = vmatprep.mubr.f32.mxu0 0.0
      %5157 = vmatmul.mubr.f32.gmra.mrb[0].mxu0 %v4407
      %v5158 = vpop.f32.mrb[0].mxu0
      %v5159 = vadd.f32 0.0, %v5158
      %v5160 = vpop.f32.mrb[0].mxu0
      %5161 = vmatprep.mubr.f32.mxu0 0.0
      %5162 = vmatmul.mubr.f32.gmra.mrb[0].mxu0 %v4408
      %v5163 = vpop.f32.mrb[0].mxu0
      %v5164 = vadd.f32 0.0, %v5163
      %v5165 = vpop.f32.mrb[0].mxu0
      %5166 = vmatprep.mubr.f32.mxu0 0.0
      %5167 = vmatmul.mubr.f32.gmra.mrb[0].mxu0 %v4409
      %v5168 = vpop.f32.mrb[0].mxu0
      %v5169 = vadd.f32 0.0, %v5168
      %v5170 = vpop.f32.mrb[0].mxu0
      %5171 = vmatprep.mubr.f32.mxu0 0.0
      %5172 = vmatmul.mubr.f32.gmra.mrb[0].mxu0 %v4410
      %v5173 = vpop.f32.mrb[0].mxu0
      %v5174 = vadd.f32 0.0, %v5173
      %v5175 = vpop.f32.mrb[0].mxu0
      %5176 = vmatprep.mubr.f32.mxu0 0.0
      %5177 = vmatmul.mubr.f32.gmra.mrb[0].mxu0 %v4411
      %v5178 = vpop.f32.mrb[0].mxu0
      %v5179 = vadd.f32 0.0, %v5178
      %v5180 = vpop.f32.mrb[0].mxu0
      %5181 = vdwg.mxu0
      %v5182 = vadd.f32 %v4172, %v4300
      %v5183 = vadd.f32 %v4173, %v4301
      %v5184 = vadd.f32 %v4174, %v4302
      %v5185 = vadd.f32 %v4175, %v4303
      %v5186 = vadd.f32 %v4176, %v4304
      %v5187 = vadd.f32 %v4177, %v4305
      %v5188 = vadd.f32 %v4178, %v4306
      %v5189 = vadd.f32 %v4179, %v4307
      %v5190 = vadd.f32 %v4180, %v4308
      %v5191 = vadd.f32 %v4181, %v4309
      %v5192 = vadd.f32 %v4182, %v4310
      %v5193 = vadd.f32 %v4183, %v4311
      %v5194 = vadd.f32 %v4184, %v4312
      %v5195 = vadd.f32 %v4185, %v4313
      %v5196 = vadd.f32 %v4186, %v4314
      %v5197 = vadd.f32 %v4187, %v4315
      %v5198 = vadd.f32 %v4204, %v4332
      %v5199 = vadd.f32 %v4205, %v4333
      %v5200 = vadd.f32 %v4206, %v4334
      %v5201 = vadd.f32 %v4207, %v4335
      %v5202 = vadd.f32 %v4208, %v4336
      %v5203 = vadd.f32 %v4209, %v4337
      %v5204 = vadd.f32 %v4210, %v4338
      %v5205 = vadd.f32 %v4211, %v4339
      %v5206 = vadd.f32 %v4212, %v4340
      %v5207 = vadd.f32 %v4213, %v4341
      %v5208 = vadd.f32 %v4214, %v4342
      %v5209 = vadd.f32 %v4215, %v4343
      %v5210 = vadd.f32 %v4216, %v4344
      %v5211 = vadd.f32 %v4217, %v4345
      %v5212 = vadd.f32 %v4218, %v4346
      %v5213 = vadd.f32 %v4219, %v4347
      %v5214 = vadd.f32 %v4236, %v4364
      %v5215 = vadd.f32 %v4237, %v4365
      %v5216 = vadd.f32 %v4238, %v4366
      %v5217 = vadd.f32 %v4239, %v4367
      %v5218 = vadd.f32 %v4240, %v4368
      %v5219 = vadd.f32 %v4241, %v4369
      %v5220 = vadd.f32 %v4242, %v4370
      %v5221 = vadd.f32 %v4243, %v4371
      %v5222 = vadd.f32 %v4244, %v4372
      %v5223 = vadd.f32 %v4245, %v4373
      %v5224 = vadd.f32 %v4246, %v4374
      %v5225 = vadd.f32 %v4247, %v4375
      %v5226 = vadd.f32 %v4248, %v4376
      %v5227 = vadd.f32 %v4249, %v4377
      %v5228 = vadd.f32 %v4250, %v4378
      %v5229 = vadd.f32 %v4251, %v4379
      %v5230 = vadd.f32 %v4268, %v4396
      %v5231 = vadd.f32 %v4269, %v4397
      %v5232 = vadd.f32 %v4270, %v4398
      %v5233 = vadd.f32 %v4271, %v4399
      %v5234 = vadd.f32 %v4272, %v4400
      %v5235 = vadd.f32 %v4273, %v4401
      %v5236 = vadd.f32 %v4274, %v4402
      %v5237 = vadd.f32 %v4275, %v4403
      %v5238 = vadd.f32 %v4276, %v4404
      %v5239 = vadd.f32 %v4277, %v4405
      %v5240 = vadd.f32 %v4278, %v4406
      %v5241 = vadd.f32 %v4279, %v4407
      %v5242 = vadd.f32 %v4280, %v4408
      %v5243 = vadd.f32 %v4281, %v4409
      %v5244 = vadd.f32 %v4282, %v4410
      %v5245 = vadd.f32 %v4283, %v4411
      %5246 = vmatprep.subr.mxu0 0.0
      %5247 = vmatpush1.msra.mxu0 %v373
      %5248 = vmatprep.subr.mxu0 0.0
      %5249 = vmatpush1.msra.mxu0 %v374
      %5250 = vmatprep.subr.mxu0 0.0
      %5251 = vmatpush1.msra.mxu0 %v375
      %5252 = vmatprep.subr.mxu0 0.0
      %5253 = vmatpush1.msra.mxu0 %v376
      %5254 = vmatprep.subr.mxu0 0.0
      %5255 = vmatpush1.msra.mxu0 %v377
      %5256 = vmatprep.subr.mxu0 0.0
      %5257 = vmatpush1.msra.mxu0 %v378
      %5258 = vmatprep.subr.mxu0 0.0
      %5259 = vmatpush1.msra.mxu0 %v379
      %5260 = vmatprep.subr.mxu0 0.0
      %5261 = vmatpush1.msra.mxu0 %v380
      %5262 = vmatprep.subr.mxu0 0.0
      %5263 = vmatpush1.msra.mxu0 %v381
      %5264 = vmatprep.subr.mxu0 0.0
      %5265 = vmatpush1.msra.mxu0 %v382
      %5266 = vmatprep.subr.mxu0 0.0
      %5267 = vmatpush1.msra.mxu0 %v383
      %5268 = vmatprep.subr.mxu0 0.0
      %5269 = vmatpush1.msra.mxu0 %v384
      %5270 = vmatprep.subr.mxu0 0.0
      %5271 = vmatpush1.msra.mxu0 %v385
      %5272 = vmatprep.subr.mxu0 0.0
      %5273 = vmatpush1.msra.mxu0 %v386
      %5274 = vmatprep.subr.mxu0 0.0
      %5275 = vmatpush1.msra.mxu0 %v387
      %5276 = vmatprep.subr.mxu0 0.0
      %5277 = vmatpush1.msra.mxu0 %v388
      %5278 = vmatprep.subr.mxu0 0.0
      %5279 = vmatpush1.msra.mxu0 0.0
      %5280 = vmatprep.subr.mxu0 0.0
      %5281 = vmatpush1.msra.mxu0 0.0
      %5282 = vmatprep.subr.mxu0 0.0
      %5283 = vmatpush1.msra.mxu0 0.0
      %5284 = vmatprep.subr.mxu0 0.0
      %5285 = vmatpush1.msra.mxu0 0.0
      %5286 = vmatprep.subr.mxu0 0.0
      %5287 = vmatpush1.msra.mxu0 0.0
      %5288 = vmatprep.subr.mxu0 0.0
      %5289 = vmatpush1.msra.mxu0 0.0
      %5290 = vmatprep.subr.mxu0 0.0
      %5291 = vmatpush1.msra.mxu0 0.0
      %5292 = vmatprep.subr.mxu0 0.0
      %5293 = vmatpush1.msra.mxu0 0.0
      %5294 = vmatprep.subr.mxu0 0.0
      %5295 = vmatpush1.msra.mxu0 0.0
      %5296 = vmatprep.subr.mxu0 0.0
      %5297 = vmatpush1.msra.mxu0 0.0
      %5298 = vmatprep.subr.mxu0 0.0
      %5299 = vmatpush1.msra.mxu0 0.0
      %5300 = vmatprep.subr.mxu0 0.0
      %5301 = vmatpush1.msra.mxu0 0.0
      %5302 = vmatprep.subr.mxu0 0.0
      %5303 = vmatpush1.msra.mxu0 0.0
      %5304 = vmatprep.subr.mxu0 0.0
      %5305 = vmatpush1.msra.mxu0 0.0
      %5306 = vmatprep.subr.mxu0 0.0
      %5307 = vmatpush1.msra.mxu0 0.0
      %5308 = vmatprep.subr.mxu0 0.0
      %5309 = vmatpush1.msra.mxu0 0.0
      %5310 = vmatprep.mubr.f32.mxu0 0.0
      %5311 = vmatmul.mubr.f32.gmra.mrb[0].mxu0 %v5182
      %v5312 = vpop.f32.mrb[0].mxu0
      %v5313 = vadd.f32 0.0, %v5312
      %v5314 = vpop.f32.mrb[0].mxu0
      %5315 = vmatprep.mubr.f32.mxu0 0.0
      %5316 = vmatmul.mubr.f32.gmra.mrb[0].mxu0 %v5183
      %v5317 = vpop.f32.mrb[0].mxu0
      %v5318 = vadd.f32 0.0, %v5317
      %v5319 = vpop.f32.mrb[0].mxu0
      %5320 = vmatprep.mubr.f32.mxu0 0.0
      %5321 = vmatmul.mubr.f32.gmra.mrb[0].mxu0 %v5184
      %v5322 = vpop.f32.mrb[0].mxu0
      %v5323 = vadd.f32 0.0, %v5322
      %v5324 = vpop.f32.mrb[0].mxu0
      %5325 = vmatprep.mubr.f32.mxu0 0.0
      %5326 = vmatmul.mubr.f32.gmra.mrb[0].mxu0 %v5185
      %v5327 = vpop.f32.mrb[0].mxu0
      %v5328 = vadd.f32 0.0, %v5327
      %v5329 = vpop.f32.mrb[0].mxu0
      %5330 = vmatprep.mubr.f32.mxu0 0.0
      %5331 = vmatmul.mubr.f32.gmra.mrb[0].mxu0 %v5186
      %v5332 = vpop.f32.mrb[0].mxu0
      %v5333 = vadd.f32 0.0, %v5332
      %v5334 = vpop.f32.mrb[0].mxu0
      %5335 = vmatprep.mubr.f32.mxu0 0.0
      %5336 = vmatmul.mubr.f32.gmra.mrb[0].mxu0 %v5187
      %v5337 = vpop.f32.mrb[0].mxu0
      %v5338 = vadd.f32 0.0, %v5337
      %v5339 = vpop.f32.mrb[0].mxu0
      %5340 = vmatprep.mubr.f32.mxu0 0.0
      %5341 = vmatmul.mubr.f32.gmra.mrb[0].mxu0 %v5188
      %v5342 = vpop.f32.mrb[0].mxu0
      %v5343 = vadd.f32 0.0, %v5342
      %v5344 = vpop.f32.mrb[0].mxu0
      %5345 = vmatprep.mubr.f32.mxu0 0.0
      %5346 = vmatmul.mubr.f32.gmra.mrb[0].mxu0 %v5189
      %v5347 = vpop.f32.mrb[0].mxu0
      %v5348 = vadd.f32 0.0, %v5347
      %v5349 = vpop.f32.mrb[0].mxu0
      %5350 = vmatprep.mubr.f32.mxu0 0.0
      %5351 = vmatmul.mubr.f32.gmra.mrb[0].mxu0 %v5190
      %v5352 = vpop.f32.mrb[0].mxu0
      %v5353 = vadd.f32 0.0, %v5352
      %v5354 = vpop.f32.mrb[0].mxu0
      %5355 = vmatprep.mubr.f32.mxu0 0.0
      %5356 = vmatmul.mubr.f32.gmra.mrb[0].mxu0 %v5191
      %v5357 = vpop.f32.mrb[0].mxu0
      %v5358 = vadd.f32 0.0, %v5357
      %v5359 = vpop.f32.mrb[0].mxu0
      %5360 = vmatprep.mubr.f32.mxu0 0.0
      %5361 = vmatmul.mubr.f32.gmra.mrb[0].mxu0 %v5192
      %v5362 = vpop.f32.mrb[0].mxu0
      %v5363 = vadd.f32 0.0, %v5362
      %v5364 = vpop.f32.mrb[0].mxu0
      %5365 = vmatprep.mubr.f32.mxu0 0.0
      %5366 = vmatmul.mubr.f32.gmra.mrb[0].mxu0 %v5193
      %v5367 = vpop.f32.mrb[0].mxu0
      %v5368 = vadd.f32 0.0, %v5367
      %v5369 = vpop.f32.mrb[0].mxu0
      %5370 = vmatprep.mubr.f32.mxu0 0.0
      %5371 = vmatmul.mubr.f32.gmra.mrb[0].mxu0 %v5194
      %v5372 = vpop.f32.mrb[0].mxu0
      %v5373 = vadd.f32 0.0, %v5372
      %v5374 = vpop.f32.mrb[0].mxu0
      %5375 = vmatprep.mubr.f32.mxu0 0.0
      %5376 = vmatmul.mubr.f32.gmra.mrb[0].mxu0 %v5195
      %v5377 = vpop.f32.mrb[0].mxu0
      %v5378 = vadd.f32 0.0, %v5377
      %v5379 = vpop.f32.mrb[0].mxu0
      %5380 = vmatprep.mubr.f32.mxu0 0.0
      %5381 = vmatmul.mubr.f32.gmra.mrb[0].mxu0 %v5196
      %v5382 = vpop.f32.mrb[0].mxu0
      %v5383 = vadd.f32 0.0, %v5382
      %v5384 = vpop.f32.mrb[0].mxu0
      %5385 = vmatprep.mubr.f32.mxu0 0.0
      %5386 = vmatmul.mubr.f32.gmra.mrb[0].mxu0 %v5197
      %v5387 = vpop.f32.mrb[0].mxu0
      %v5388 = vadd.f32 0.0, %v5387
      %v5389 = vpop.f32.mrb[0].mxu0
      %5390 = vmatprep.mubr.f32.mxu0 0.0
      %5391 = vmatmul.mubr.f32.gmra.mrb[0].mxu0 %v5198
      %v5392 = vpop.f32.mrb[0].mxu0
      %v5393 = vadd.f32 0.0, %v5392
      %v5394 = vpop.f32.mrb[0].mxu0
      %5395 = vmatprep.mubr.f32.mxu0 0.0
      %5396 = vmatmul.mubr.f32.gmra.mrb[0].mxu0 %v5199
      %v5397 = vpop.f32.mrb[0].mxu0
      %v5398 = vadd.f32 0.0, %v5397
      %v5399 = vpop.f32.mrb[0].mxu0
      %5400 = vmatprep.mubr.f32.mxu0 0.0
      %5401 = vmatmul.mubr.f32.gmra.mrb[0].mxu0 %v5200
      %v5402 = vpop.f32.mrb[0].mxu0
      %v5403 = vadd.f32 0.0, %v5402
      %v5404 = vpop.f32.mrb[0].mxu0
      %5405 = vmatprep.mubr.f32.mxu0 0.0
      %5406 = vmatmul.mubr.f32.gmra.mrb[0].mxu0 %v5201
      %v5407 = vpop.f32.mrb[0].mxu0
      %v5408 = vadd.f32 0.0, %v5407
      %v5409 = vpop.f32.mrb[0].mxu0
      %5410 = vmatprep.mubr.f32.mxu0 0.0
      %5411 = vmatmul.mubr.f32.gmra.mrb[0].mxu0 %v5202
      %v5412 = vpop.f32.mrb[0].mxu0
      %v5413 = vadd.f32 0.0, %v5412
      %v5414 = vpop.f32.mrb[0].mxu0
      %5415 = vmatprep.mubr.f32.mxu0 0.0
      %5416 = vmatmul.mubr.f32.gmra.mrb[0].mxu0 %v5203
      %v5417 = vpop.f32.mrb[0].mxu0
      %v5418 = vadd.f32 0.0, %v5417
      %v5419 = vpop.f32.mrb[0].mxu0
      %5420 = vmatprep.mubr.f32.mxu0 0.0
      %5421 = vmatmul.mubr.f32.gmra.mrb[0].mxu0 %v5204
      %v5422 = vpop.f32.mrb[0].mxu0
      %v5423 = vadd.f32 0.0, %v5422
      %v5424 = vpop.f32.mrb[0].mxu0
      %5425 = vmatprep.mubr.f32.mxu0 0.0
      %5426 = vmatmul.mubr.f32.gmra.mrb[0].mxu0 %v5205
      %v5427 = vpop.f32.mrb[0].mxu0
      %v5428 = vadd.f32 0.0, %v5427
      %v5429 = vpop.f32.mrb[0].mxu0
      %5430 = vmatprep.mubr.f32.mxu0 0.0
      %5431 = vmatmul.mubr.f32.gmra.mrb[0].mxu0 %v5206
      %v5432 = vpop.f32.mrb[0].mxu0
      %v5433 = vadd.f32 0.0, %v5432
      %v5434 = vpop.f32.mrb[0].mxu0
      %5435 = vmatprep.mubr.f32.mxu0 0.0
      %5436 = vmatmul.mubr.f32.gmra.mrb[0].mxu0 %v5207
      %v5437 = vpop.f32.mrb[0].mxu0
      %v5438 = vadd.f32 0.0, %v5437
      %v5439 = vpop.f32.mrb[0].mxu0
      %5440 = vmatprep.mubr.f32.mxu0 0.0
      %5441 = vmatmul.mubr.f32.gmra.mrb[0].mxu0 %v5208
      %v5442 = vpop.f32.mrb[0].mxu0
      %v5443 = vadd.f32 0.0, %v5442
      %v5444 = vpop.f32.mrb[0].mxu0
      %5445 = vmatprep.mubr.f32.mxu0 0.0
      %5446 = vmatmul.mubr.f32.gmra.mrb[0].mxu0 %v5209
      %v5447 = vpop.f32.mrb[0].mxu0
      %v5448 = vadd.f32 0.0, %v5447
      %v5449 = vpop.f32.mrb[0].mxu0
      %5450 = vmatprep.mubr.f32.mxu0 0.0
      %5451 = vmatmul.mubr.f32.gmra.mrb[0].mxu0 %v5210
      %v5452 = vpop.f32.mrb[0].mxu0
      %v5453 = vadd.f32 0.0, %v5452
      %v5454 = vpop.f32.mrb[0].mxu0
      %5455 = vmatprep.mubr.f32.mxu0 0.0
      %5456 = vmatmul.mubr.f32.gmra.mrb[0].mxu0 %v5211
      %v5457 = vpop.f32.mrb[0].mxu0
      %v5458 = vadd.f32 0.0, %v5457
      %v5459 = vpop.f32.mrb[0].mxu0
      %5460 = vmatprep.mubr.f32.mxu0 0.0
      %5461 = vmatmul.mubr.f32.gmra.mrb[0].mxu0 %v5212
      %v5462 = vpop.f32.mrb[0].mxu0
      %v5463 = vadd.f32 0.0, %v5462
      %v5464 = vpop.f32.mrb[0].mxu0
      %5465 = vmatprep.mubr.f32.mxu0 0.0
      %5466 = vmatmul.mubr.f32.gmra.mrb[0].mxu0 %v5213
      %v5467 = vpop.f32.mrb[0].mxu0
      %v5468 = vadd.f32 0.0, %v5467
      %v5469 = vpop.f32.mrb[0].mxu0
      %5470 = vmatprep.mubr.f32.mxu0 0.0
      %5471 = vmatmul.mubr.f32.gmra.mrb[0].mxu0 %v5214
      %v5472 = vpop.f32.mrb[0].mxu0
      %v5473 = vadd.f32 0.0, %v5472
      %v5474 = vpop.f32.mrb[0].mxu0
      %5475 = vmatprep.mubr.f32.mxu0 0.0
      %5476 = vmatmul.mubr.f32.gmra.mrb[0].mxu0 %v5215
      %v5477 = vpop.f32.mrb[0].mxu0
      %v5478 = vadd.f32 0.0, %v5477
      %v5479 = vpop.f32.mrb[0].mxu0
      %5480 = vmatprep.mubr.f32.mxu0 0.0
      %5481 = vmatmul.mubr.f32.gmra.mrb[0].mxu0 %v5216
      %v5482 = vpop.f32.mrb[0].mxu0
      %v5483 = vadd.f32 0.0, %v5482
      %v5484 = vpop.f32.mrb[0].mxu0
      %5485 = vmatprep.mubr.f32.mxu0 0.0
      %5486 = vmatmul.mubr.f32.gmra.mrb[0].mxu0 %v5217
      %v5487 = vpop.f32.mrb[0].mxu0
      %v5488 = vadd.f32 0.0, %v5487
      %v5489 = vpop.f32.mrb[0].mxu0
      %5490 = vmatprep.mubr.f32.mxu0 0.0
      %5491 = vmatmul.mubr.f32.gmra.mrb[0].mxu0 %v5218
      %v5492 = vpop.f32.mrb[0].mxu0
      %v5493 = vadd.f32 0.0, %v5492
      %v5494 = vpop.f32.mrb[0].mxu0
      %5495 = vmatprep.mubr.f32.mxu0 0.0
      %5496 = vmatmul.mubr.f32.gmra.mrb[0].mxu0 %v5219
      %v5497 = vpop.f32.mrb[0].mxu0
      %v5498 = vadd.f32 0.0, %v5497
      %v5499 = vpop.f32.mrb[0].mxu0
      %5500 = vmatprep.mubr.f32.mxu0 0.0
      %5501 = vmatmul.mubr.f32.gmra.mrb[0].mxu0 %v5220
      %v5502 = vpop.f32.mrb[0].mxu0
      %v5503 = vadd.f32 0.0, %v5502
      %v5504 = vpop.f32.mrb[0].mxu0
      %5505 = vmatprep.mubr.f32.mxu0 0.0
      %5506 = vmatmul.mubr.f32.gmra.mrb[0].mxu0 %v5221
      %v5507 = vpop.f32.mrb[0].mxu0
      %v5508 = vadd.f32 0.0, %v5507
      %v5509 = vpop.f32.mrb[0].mxu0
      %5510 = vmatprep.mubr.f32.mxu0 0.0
      %5511 = vmatmul.mubr.f32.gmra.mrb[0].mxu0 %v5222
      %v5512 = vpop.f32.mrb[0].mxu0
      %v5513 = vadd.f32 0.0, %v5512
      %v5514 = vpop.f32.mrb[0].mxu0
      %5515 = vmatprep.mubr.f32.mxu0 0.0
      %5516 = vmatmul.mubr.f32.gmra.mrb[0].mxu0 %v5223
      %v5517 = vpop.f32.mrb[0].mxu0
      %v5518 = vadd.f32 0.0, %v5517
      %v5519 = vpop.f32.mrb[0].mxu0
      %5520 = vmatprep.mubr.f32.mxu0 0.0
      %5521 = vmatmul.mubr.f32.gmra.mrb[0].mxu0 %v5224
      %v5522 = vpop.f32.mrb[0].mxu0
      %v5523 = vadd.f32 0.0, %v5522
      %v5524 = vpop.f32.mrb[0].mxu0
      %5525 = vmatprep.mubr.f32.mxu0 0.0
      %5526 = vmatmul.mubr.f32.gmra.mrb[0].mxu0 %v5225
      %v5527 = vpop.f32.mrb[0].mxu0
      %v5528 = vadd.f32 0.0, %v5527
      %v5529 = vpop.f32.mrb[0].mxu0
      %5530 = vmatprep.mubr.f32.mxu0 0.0
      %5531 = vmatmul.mubr.f32.gmra.mrb[0].mxu0 %v5226
      %v5532 = vpop.f32.mrb[0].mxu0
      %v5533 = vadd.f32 0.0, %v5532
      %v5534 = vpop.f32.mrb[0].mxu0
      %5535 = vmatprep.mubr.f32.mxu0 0.0
      %5536 = vmatmul.mubr.f32.gmra.mrb[0].mxu0 %v5227
      %v5537 = vpop.f32.mrb[0].mxu0
      %v5538 = vadd.f32 0.0, %v5537
      %v5539 = vpop.f32.mrb[0].mxu0
      %5540 = vmatprep.mubr.f32.mxu0 0.0
      %5541 = vmatmul.mubr.f32.gmra.mrb[0].mxu0 %v5228
      %v5542 = vpop.f32.mrb[0].mxu0
      %v5543 = vadd.f32 0.0, %v5542
      %v5544 = vpop.f32.mrb[0].mxu0
      %5545 = vmatprep.mubr.f32.mxu0 0.0
      %5546 = vmatmul.mubr.f32.gmra.mrb[0].mxu0 %v5229
      %v5547 = vpop.f32.mrb[0].mxu0
      %v5548 = vadd.f32 0.0, %v5547
      %v5549 = vpop.f32.mrb[0].mxu0
      %5550 = vmatprep.mubr.f32.mxu0 0.0
      %5551 = vmatmul.mubr.f32.gmra.mrb[0].mxu0 %v5230
      %v5552 = vpop.f32.mrb[0].mxu0
      %v5553 = vadd.f32 0.0, %v5552
      %v5554 = vpop.f32.mrb[0].mxu0
      %5555 = vmatprep.mubr.f32.mxu0 0.0
      %5556 = vmatmul.mubr.f32.gmra.mrb[0].mxu0 %v5231
      %v5557 = vpop.f32.mrb[0].mxu0
      %v5558 = vadd.f32 0.0, %v5557
      %v5559 = vpop.f32.mrb[0].mxu0
      %5560 = vmatprep.mubr.f32.mxu0 0.0
      %5561 = vmatmul.mubr.f32.gmra.mrb[0].mxu0 %v5232
      %v5562 = vpop.f32.mrb[0].mxu0
      %v5563 = vadd.f32 0.0, %v5562
      %v5564 = vpop.f32.mrb[0].mxu0
      %5565 = vmatprep.mubr.f32.mxu0 0.0
      %5566 = vmatmul.mubr.f32.gmra.mrb[0].mxu0 %v5233
      %v5567 = vpop.f32.mrb[0].mxu0
      %v5568 = vadd.f32 0.0, %v5567
      %v5569 = vpop.f32.mrb[0].mxu0
      %5570 = vmatprep.mubr.f32.mxu0 0.0
      %5571 = vmatmul.mubr.f32.gmra.mrb[0].mxu0 %v5234
      %v5572 = vpop.f32.mrb[0].mxu0
      %v5573 = vadd.f32 0.0, %v5572
      %v5574 = vpop.f32.mrb[0].mxu0
      %5575 = vmatprep.mubr.f32.mxu0 0.0
      %5576 = vmatmul.mubr.f32.gmra.mrb[0].mxu0 %v5235
      %v5577 = vpop.f32.mrb[0].mxu0
      %v5578 = vadd.f32 0.0, %v5577
      %v5579 = vpop.f32.mrb[0].mxu0
      %5580 = vmatprep.mubr.f32.mxu0 0.0
      %5581 = vmatmul.mubr.f32.gmra.mrb[0].mxu0 %v5236
      %v5582 = vpop.f32.mrb[0].mxu0
      %v5583 = vadd.f32 0.0, %v5582
      %v5584 = vpop.f32.mrb[0].mxu0
      %5585 = vmatprep.mubr.f32.mxu0 0.0
      %5586 = vmatmul.mubr.f32.gmra.mrb[0].mxu0 %v5237
      %v5587 = vpop.f32.mrb[0].mxu0
      %v5588 = vadd.f32 0.0, %v5587
      %v5589 = vpop.f32.mrb[0].mxu0
      %5590 = vmatprep.mubr.f32.mxu0 0.0
      %5591 = vmatmul.mubr.f32.gmra.mrb[0].mxu0 %v5238
      %v5592 = vpop.f32.mrb[0].mxu0
      %v5593 = vadd.f32 0.0, %v5592
      %v5594 = vpop.f32.mrb[0].mxu0
      %5595 = vmatprep.mubr.f32.mxu0 0.0
      %5596 = vmatmul.mubr.f32.gmra.mrb[0].mxu0 %v5239
      %v5597 = vpop.f32.mrb[0].mxu0
      %v5598 = vadd.f32 0.0, %v5597
      %v5599 = vpop.f32.mrb[0].mxu0
      %5600 = vmatprep.mubr.f32.mxu0 0.0
      %5601 = vmatmul.mubr.f32.gmra.mrb[0].mxu0 %v5240
      %v5602 = vpop.f32.mrb[0].mxu0
      %v5603 = vadd.f32 0.0, %v5602
      %v5604 = vpop.f32.mrb[0].mxu0
      %5605 = vmatprep.mubr.f32.mxu0 0.0
      %5606 = vmatmul.mubr.f32.gmra.mrb[0].mxu0 %v5241
      %v5607 = vpop.f32.mrb[0].mxu0
      %v5608 = vadd.f32 0.0, %v5607
      %v5609 = vpop.f32.mrb[0].mxu0
      %5610 = vmatprep.mubr.f32.mxu0 0.0
      %5611 = vmatmul.mubr.f32.gmra.mrb[0].mxu0 %v5242
      %v5612 = vpop.f32.mrb[0].mxu0
      %v5613 = vadd.f32 0.0, %v5612
      %v5614 = vpop.f32.mrb[0].mxu0
      %5615 = vmatprep.mubr.f32.mxu0 0.0
      %5616 = vmatmul.mubr.f32.gmra.mrb[0].mxu0 %v5243
      %v5617 = vpop.f32.mrb[0].mxu0
      %v5618 = vadd.f32 0.0, %v5617
      %v5619 = vpop.f32.mrb[0].mxu0
      %5620 = vmatprep.mubr.f32.mxu0 0.0
      %5621 = vmatmul.mubr.f32.gmra.mrb[0].mxu0 %v5244
      %v5622 = vpop.f32.mrb[0].mxu0
      %v5623 = vadd.f32 0.0, %v5622
      %v5624 = vpop.f32.mrb[0].mxu0
      %5625 = vmatprep.mubr.f32.mxu0 0.0
      %5626 = vmatmul.mubr.f32.gmra.mrb[0].mxu0 %v5245
      %v5627 = vpop.f32.mrb[0].mxu0
      %v5628 = vadd.f32 0.0, %v5627
      %v5629 = vpop.f32.mrb[0].mxu0
      %5630 = vdwg.mxu0
      %v5631 = vsub.f32 %v4479, %v4864
      %v5632 = vsub.f32 %v4484, %v4869
      %v5633 = vsub.f32 %v4489, %v4874
      %v5634 = vsub.f32 %v4494, %v4879
      %v5635 = vsub.f32 %v4499, %v4884
      %v5636 = vsub.f32 %v4504, %v4889
      %v5637 = vsub.f32 %v4509, %v4894
      %v5638 = vsub.f32 %v4514, %v4899
      %v5639 = vsub.f32 %v4519, %v4904
      %v5640 = vsub.f32 %v4524, %v4909
      %v5641 = vsub.f32 %v4529, %v4914
      %v5642 = vsub.f32 %v4534, %v4919
      %v5643 = vsub.f32 %v4539, %v4924
      %v5644 = vsub.f32 %v4544, %v4929
      %v5645 = vsub.f32 %v4549, %v4934
      %v5646 = vsub.f32 %v4554, %v4939
      %v5647 = vsub.f32 %v4559, %v4944
      %v5648 = vsub.f32 %v4564, %v4949
      %v5649 = vsub.f32 %v4569, %v4954
      %v5650 = vsub.f32 %v4574, %v4959
      %v5651 = vsub.f32 %v4579, %v4964
      %v5652 = vsub.f32 %v4584, %v4969
      %v5653 = vsub.f32 %v4589, %v4974
      %v5654 = vsub.f32 %v4594, %v4979
      %v5655 = vsub.f32 %v4599, %v4984
      %v5656 = vsub.f32 %v4604, %v4989
      %v5657 = vsub.f32 %v4609, %v4994
      %v5658 = vsub.f32 %v4614, %v4999
      %v5659 = vsub.f32 %v4619, %v5004
      %v5660 = vsub.f32 %v4624, %v5009
      %v5661 = vsub.f32 %v4629, %v5014
      %v5662 = vsub.f32 %v4634, %v5019
      %v5663 = vsub.f32 %v4639, %v5024
      %v5664 = vsub.f32 %v4644, %v5029
      %v5665 = vsub.f32 %v4649, %v5034
      %v5666 = vsub.f32 %v4654, %v5039
      %v5667 = vsub.f32 %v4659, %v5044
      %v5668 = vsub.f32 %v4664, %v5049
      %v5669 = vsub.f32 %v4669, %v5054
      %v5670 = vsub.f32 %v4674, %v5059
      %v5671 = vsub.f32 %v4679, %v5064
      %v5672 = vsub.f32 %v4684, %v5069
      %v5673 = vsub.f32 %v4689, %v5074
      %v5674 = vsub.f32 %v4694, %v5079
      %v5675 = vsub.f32 %v4699, %v5084
      %v5676 = vsub.f32 %v4704, %v5089
      %v5677 = vsub.f32 %v4709, %v5094
      %v5678 = vsub.f32 %v4714, %v5099
      %v5679 = vsub.f32 %v4719, %v5104
      %v5680 = vsub.f32 %v4724, %v5109
      %v5681 = vsub.f32 %v4729, %v5114
      %v5682 = vsub.f32 %v4734, %v5119
      %v5683 = vsub.f32 %v4739, %v5124
      %v5684 = vsub.f32 %v4744, %v5129
      %v5685 = vsub.f32 %v4749, %v5134
      %v5686 = vsub.f32 %v4754, %v5139
      %v5687 = vsub.f32 %v4759, %v5144
      %v5688 = vsub.f32 %v4764, %v5149
      %v5689 = vsub.f32 %v4769, %v5154
      %v5690 = vsub.f32 %v4774, %v5159
      %v5691 = vsub.f32 %v4779, %v5164
      %v5692 = vsub.f32 %v4784, %v5169
      %v5693 = vsub.f32 %v4789, %v5174
      %v5694 = vsub.f32 %v4794, %v5179
      %v5695 = vsub.f32 %v5313, %v4479
      %v5696 = vsub.f32 %v5318, %v4484
      %v5697 = vsub.f32 %v5323, %v4489
      %v5698 = vsub.f32 %v5328, %v4494
      %v5699 = vsub.f32 %v5333, %v4499
      %v5700 = vsub.f32 %v5338, %v4504
      %v5701 = vsub.f32 %v5343, %v4509
      %v5702 = vsub.f32 %v5348, %v4514
      %v5703 = vsub.f32 %v5353, %v4519
      %v5704 = vsub.f32 %v5358, %v4524
      %v5705 = vsub.f32 %v5363, %v4529
      %v5706 = vsub.f32 %v5368, %v4534
      %v5707 = vsub.f32 %v5373, %v4539
      %v5708 = vsub.f32 %v5378, %v4544
      %v5709 = vsub.f32 %v5383, %v4549
      %v5710 = vsub.f32 %v5388, %v4554
      %v5711 = vsub.f32 %v5393, %v4559
      %v5712 = vsub.f32 %v5398, %v4564
      %v5713 = vsub.f32 %v5403, %v4569
      %v5714 = vsub.f32 %v5408, %v4574
      %v5715 = vsub.f32 %v5413, %v4579
      %v5716 = vsub.f32 %v5418, %v4584
      %v5717 = vsub.f32 %v5423, %v4589
      %v5718 = vsub.f32 %v5428, %v4594
      %v5719 = vsub.f32 %v5433, %v4599
      %v5720 = vsub.f32 %v5438, %v4604
      %v5721 = vsub.f32 %v5443, %v4609
      %v5722 = vsub.f32 %v5448, %v4614
      %v5723 = vsub.f32 %v5453, %v4619
      %v5724 = vsub.f32 %v5458, %v4624
      %v5725 = vsub.f32 %v5463, %v4629
      %v5726 = vsub.f32 %v5468, %v4634
      %v5727 = vsub.f32 %v5473, %v4639
      %v5728 = vsub.f32 %v5478, %v4644
      %v5729 = vsub.f32 %v5483, %v4649
      %v5730 = vsub.f32 %v5488, %v4654
      %v5731 = vsub.f32 %v5493, %v4659
      %v5732 = vsub.f32 %v5498, %v4664
      %v5733 = vsub.f32 %v5503, %v4669
      %v5734 = vsub.f32 %v5508, %v4674
      %v5735 = vsub.f32 %v5513, %v4679
      %v5736 = vsub.f32 %v5518, %v4684
      %v5737 = vsub.f32 %v5523, %v4689
      %v5738 = vsub.f32 %v5528, %v4694
      %v5739 = vsub.f32 %v5533, %v4699
      %v5740 = vsub.f32 %v5538, %v4704
      %v5741 = vsub.f32 %v5543, %v4709
      %v5742 = vsub.f32 %v5548, %v4714
      %v5743 = vsub.f32 %v5553, %v4719
      %v5744 = vsub.f32 %v5558, %v4724
      %v5745 = vsub.f32 %v5563, %v4729
      %v5746 = vsub.f32 %v5568, %v4734
      %v5747 = vsub.f32 %v5573, %v4739
      %v5748 = vsub.f32 %v5578, %v4744
      %v5749 = vsub.f32 %v5583, %v4749
      %v5750 = vsub.f32 %v5588, %v4754
      %v5751 = vsub.f32 %v5593, %v4759
      %v5752 = vsub.f32 %v5598, %v4764
      %v5753 = vsub.f32 %v5603, %v4769
      %v5754 = vsub.f32 %v5608, %v4774
      %v5755 = vsub.f32 %v5613, %v4779
      %v5756 = vsub.f32 %v5618, %v4784
      %v5757 = vsub.f32 %v5623, %v4789
      %v5758 = vsub.f32 %v5628, %v4794
      %v5759 = vsub.f32 %v5695, %v4864
      %v5760 = vsub.f32 %v5696, %v4869
      %v5761 = vsub.f32 %v5697, %v4874
      %v5762 = vsub.f32 %v5698, %v4879
      %v5763 = vsub.f32 %v5699, %v4884
      %v5764 = vsub.f32 %v5700, %v4889
      %v5765 = vsub.f32 %v5701, %v4894
      %v5766 = vsub.f32 %v5702, %v4899
      %v5767 = vsub.f32 %v5703, %v4904
      %v5768 = vsub.f32 %v5704, %v4909
      %v5769 = vsub.f32 %v5705, %v4914
      %v5770 = vsub.f32 %v5706, %v4919
      %v5771 = vsub.f32 %v5707, %v4924
      %v5772 = vsub.f32 %v5708, %v4929
      %v5773 = vsub.f32 %v5709, %v4934
      %v5774 = vsub.f32 %v5710, %v4939
      %v5775 = vsub.f32 %v5711, %v4944
      %v5776 = vsub.f32 %v5712, %v4949
      %v5777 = vsub.f32 %v5713, %v4954
      %v5778 = vsub.f32 %v5714, %v4959
      %v5779 = vsub.f32 %v5715, %v4964
      %v5780 = vsub.f32 %v5716, %v4969
      %v5781 = vsub.f32 %v5717, %v4974
      %v5782 = vsub.f32 %v5718, %v4979
      %v5783 = vsub.f32 %v5719, %v4984
      %v5784 = vsub.f32 %v5720, %v4989
      %v5785 = vsub.f32 %v5721, %v4994
      %v5786 = vsub.f32 %v5722, %v4999
      %v5787 = vsub.f32 %v5723, %v5004
      %v5788 = vsub.f32 %v5724, %v5009
      %v5789 = vsub.f32 %v5725, %v5014
      %v5790 = vsub.f32 %v5726, %v5019
      %v5791 = vsub.f32 %v5727, %v5024
      %v5792 = vsub.f32 %v5728, %v5029
      %v5793 = vsub.f32 %v5729, %v5034
      %v5794 = vsub.f32 %v5730, %v5039
      %v5795 = vsub.f32 %v5731, %v5044
      %v5796 = vsub.f32 %v5732, %v5049
      %v5797 = vsub.f32 %v5733, %v5054
      %v5798 = vsub.f32 %v5734, %v5059
      %v5799 = vsub.f32 %v5735, %v5064
      %v5800 = vsub.f32 %v5736, %v5069
      %v5801 = vsub.f32 %v5737, %v5074
      %v5802 = vsub.f32 %v5738, %v5079
      %v5803 = vsub.f32 %v5739, %v5084
      %v5804 = vsub.f32 %v5740, %v5089
      %v5805 = vsub.f32 %v5741, %v5094
      %v5806 = vsub.f32 %v5742, %v5099
      %v5807 = vsub.f32 %v5743, %v5104
      %v5808 = vsub.f32 %v5744, %v5109
      %v5809 = vsub.f32 %v5745, %v5114
      %v5810 = vsub.f32 %v5746, %v5119
      %v5811 = vsub.f32 %v5747, %v5124
      %v5812 = vsub.f32 %v5748, %v5129
      %v5813 = vsub.f32 %v5749, %v5134
      %v5814 = vsub.f32 %v5750, %v5139
      %v5815 = vsub.f32 %v5751, %v5144
      %v5816 = vsub.f32 %v5752, %v5149
      %v5817 = vsub.f32 %v5753, %v5154
      %v5818 = vsub.f32 %v5754, %v5159
      %v5819 = vsub.f32 %v5755, %v5164
      %v5820 = vsub.f32 %v5756, %v5169
      %v5821 = vsub.f32 %v5757, %v5174
      %v5822 = vsub.f32 %v5758, %v5179
      %v5823 = vmul.f32 %v5631, %v5631
      %v5824 = vmul.f32 %v5632, %v5632
      %v5825 = vmul.f32 %v5633, %v5633
      %v5826 = vmul.f32 %v5634, %v5634
      %v5827 = vmul.f32 %v5635, %v5635
      %v5828 = vmul.f32 %v5636, %v5636
      %v5829 = vmul.f32 %v5637, %v5637
      %v5830 = vmul.f32 %v5638, %v5638
      %v5831 = vmul.f32 %v5639, %v5639
      %v5832 = vmul.f32 %v5640, %v5640
      %v5833 = vmul.f32 %v5641, %v5641
      %v5834 = vmul.f32 %v5642, %v5642
      %v5835 = vmul.f32 %v5643, %v5643
      %v5836 = vmul.f32 %v5644, %v5644
      %v5837 = vmul.f32 %v5645, %v5645
      %v5838 = vmul.f32 %v5646, %v5646
      %v5839 = vmul.f32 %v5647, %v5647
      %v5840 = vmul.f32 %v5648, %v5648
      %v5841 = vmul.f32 %v5649, %v5649
      %v5842 = vmul.f32 %v5650, %v5650
      %v5843 = vmul.f32 %v5651, %v5651
      %v5844 = vmul.f32 %v5652, %v5652
      %v5845 = vmul.f32 %v5653, %v5653
      %v5846 = vmul.f32 %v5654, %v5654
      %v5847 = vmul.f32 %v5655, %v5655
      %v5848 = vmul.f32 %v5656, %v5656
      %v5849 = vmul.f32 %v5657, %v5657
      %v5850 = vmul.f32 %v5658, %v5658
      %v5851 = vmul.f32 %v5659, %v5659
      %v5852 = vmul.f32 %v5660, %v5660
      %v5853 = vmul.f32 %v5661, %v5661
      %v5854 = vmul.f32 %v5662, %v5662
      %v5855 = vmul.f32 %v5663, %v5663
      %v5856 = vmul.f32 %v5664, %v5664
      %v5857 = vmul.f32 %v5665, %v5665
      %v5858 = vmul.f32 %v5666, %v5666
      %v5859 = vmul.f32 %v5667, %v5667
      %v5860 = vmul.f32 %v5668, %v5668
      %v5861 = vmul.f32 %v5669, %v5669
      %v5862 = vmul.f32 %v5670, %v5670
      %v5863 = vmul.f32 %v5671, %v5671
      %v5864 = vmul.f32 %v5672, %v5672
      %v5865 = vmul.f32 %v5673, %v5673
      %v5866 = vmul.f32 %v5674, %v5674
      %v5867 = vmul.f32 %v5675, %v5675
      %v5868 = vmul.f32 %v5676, %v5676
      %v5869 = vmul.f32 %v5677, %v5677
      %v5870 = vmul.f32 %v5678, %v5678
      %v5871 = vmul.f32 %v5679, %v5679
      %v5872 = vmul.f32 %v5680, %v5680
      %v5873 = vmul.f32 %v5681, %v5681
      %v5874 = vmul.f32 %v5682, %v5682
      %v5875 = vmul.f32 %v5683, %v5683
      %v5876 = vmul.f32 %v5684, %v5684
      %v5877 = vmul.f32 %v5685, %v5685
      %v5878 = vmul.f32 %v5686, %v5686
      %v5879 = vmul.f32 %v5687, %v5687
      %v5880 = vmul.f32 %v5688, %v5688
      %v5881 = vmul.f32 %v5689, %v5689
      %v5882 = vmul.f32 %v5690, %v5690
      %v5883 = vmul.f32 %v5691, %v5691
      %v5884 = vmul.f32 %v5692, %v5692
      %v5885 = vmul.f32 %v5693, %v5693
      %v5886 = vmul.f32 %v5694, %v5694
      %v5887 = vmul.f32 %v5759, %v5759
      %v5888 = vmul.f32 %v5760, %v5760
      %v5889 = vmul.f32 %v5761, %v5761
      %v5890 = vmul.f32 %v5762, %v5762
      %v5891 = vmul.f32 %v5763, %v5763
      %v5892 = vmul.f32 %v5764, %v5764
      %v5893 = vmul.f32 %v5765, %v5765
      %v5894 = vmul.f32 %v5766, %v5766
      %v5895 = vmul.f32 %v5767, %v5767
      %v5896 = vmul.f32 %v5768, %v5768
      %v5897 = vmul.f32 %v5769, %v5769
      %v5898 = vmul.f32 %v5770, %v5770
      %v5899 = vmul.f32 %v5771, %v5771
      %v5900 = vmul.f32 %v5772, %v5772
      %v5901 = vmul.f32 %v5773, %v5773
      %v5902 = vmul.f32 %v5774, %v5774
      %v5903 = vmul.f32 %v5775, %v5775
      %v5904 = vmul.f32 %v5776, %v5776
      %v5905 = vmul.f32 %v5777, %v5777
      %v5906 = vmul.f32 %v5778, %v5778
      %v5907 = vmul.f32 %v5779, %v5779
      %v5908 = vmul.f32 %v5780, %v5780
      %v5909 = vmul.f32 %v5781, %v5781
      %v5910 = vmul.f32 %v5782, %v5782
      %v5911 = vmul.f32 %v5783, %v5783
      %v5912 = vmul.f32 %v5784, %v5784
      %v5913 = vmul.f32 %v5785, %v5785
      %v5914 = vmul.f32 %v5786, %v5786
      %v5915 = vmul.f32 %v5787, %v5787
      %v5916 = vmul.f32 %v5788, %v5788
      %v5917 = vmul.f32 %v5789, %v5789
      %v5918 = vmul.f32 %v5790, %v5790
      %v5919 = vmul.f32 %v5791, %v5791
      %v5920 = vmul.f32 %v5792, %v5792
      %v5921 = vmul.f32 %v5793, %v5793
      %v5922 = vmul.f32 %v5794, %v5794
      %v5923 = vmul.f32 %v5795, %v5795
      %v5924 = vmul.f32 %v5796, %v5796
      %v5925 = vmul.f32 %v5797, %v5797
      %v5926 = vmul.f32 %v5798, %v5798
      %v5927 = vmul.f32 %v5799, %v5799
      %v5928 = vmul.f32 %v5800, %v5800
      %v5929 = vmul.f32 %v5801, %v5801
      %v5930 = vmul.f32 %v5802, %v5802
      %v5931 = vmul.f32 %v5803, %v5803
      %v5932 = vmul.f32 %v5804, %v5804
      %v5933 = vmul.f32 %v5805, %v5805
      %v5934 = vmul.f32 %v5806, %v5806
      %v5935 = vmul.f32 %v5807, %v5807
      %v5936 = vmul.f32 %v5808, %v5808
      %v5937 = vmul.f32 %v5809, %v5809
      %v5938 = vmul.f32 %v5810, %v5810
      %v5939 = vmul.f32 %v5811, %v5811
      %v5940 = vmul.f32 %v5812, %v5812
      %v5941 = vmul.f32 %v5813, %v5813
      %v5942 = vmul.f32 %v5814, %v5814
      %v5943 = vmul.f32 %v5815, %v5815
      %v5944 = vmul.f32 %v5816, %v5816
      %v5945 = vmul.f32 %v5817, %v5817
      %v5946 = vmul.f32 %v5818, %v5818
      %v5947 = vmul.f32 %v5819, %v5819
      %v5948 = vmul.f32 %v5820, %v5820
      %v5949 = vmul.f32 %v5821, %v5821
      %v5950 = vmul.f32 %v5822, %v5822
      %v5951 = vadd.f32 %v5823, %v5887
      %v5952 = vadd.f32 %v5824, %v5888
      %v5953 = vadd.f32 %v5825, %v5889
      %v5954 = vadd.f32 %v5826, %v5890
      %v5955 = vadd.f32 %v5827, %v5891
      %v5956 = vadd.f32 %v5828, %v5892
      %v5957 = vadd.f32 %v5829, %v5893
      %v5958 = vadd.f32 %v5830, %v5894
      %v5959 = vadd.f32 %v5831, %v5895
      %v5960 = vadd.f32 %v5832, %v5896
      %v5961 = vadd.f32 %v5833, %v5897
      %v5962 = vadd.f32 %v5834, %v5898
      %v5963 = vadd.f32 %v5835, %v5899
      %v5964 = vadd.f32 %v5836, %v5900
      %v5965 = vadd.f32 %v5837, %v5901
      %v5966 = vadd.f32 %v5838, %v5902
      %v5967 = vadd.f32 %v5839, %v5903
      %v5968 = vadd.f32 %v5840, %v5904
      %v5969 = vadd.f32 %v5841, %v5905
      %v5970 = vadd.f32 %v5842, %v5906
      %v5971 = vadd.f32 %v5843, %v5907
      %v5972 = vadd.f32 %v5844, %v5908
      %v5973 = vadd.f32 %v5845, %v5909
      %v5974 = vadd.f32 %v5846, %v5910
      %v5975 = vadd.f32 %v5847, %v5911
      %v5976 = vadd.f32 %v5848, %v5912
      %v5977 = vadd.f32 %v5849, %v5913
      %v5978 = vadd.f32 %v5850, %v5914
      %v5979 = vadd.f32 %v5851, %v5915
      %v5980 = vadd.f32 %v5852, %v5916
      %v5981 = vadd.f32 %v5853, %v5917
      %v5982 = vadd.f32 %v5854, %v5918
      %v5983 = vadd.f32 %v5855, %v5919
      %v5984 = vadd.f32 %v5856, %v5920
      %v5985 = vadd.f32 %v5857, %v5921
      %v5986 = vadd.f32 %v5858, %v5922
      %v5987 = vadd.f32 %v5859, %v5923
      %v5988 = vadd.f32 %v5860, %v5924
      %v5989 = vadd.f32 %v5861, %v5925
      %v5990 = vadd.f32 %v5862, %v5926
      %v5991 = vadd.f32 %v5863, %v5927
      %v5992 = vadd.f32 %v5864, %v5928
      %v5993 = vadd.f32 %v5865, %v5929
      %v5994 = vadd.f32 %v5866, %v5930
      %v5995 = vadd.f32 %v5867, %v5931
      %v5996 = vadd.f32 %v5868, %v5932
      %v5997 = vadd.f32 %v5869, %v5933
      %v5998 = vadd.f32 %v5870, %v5934
      %v5999 = vadd.f32 %v5871, %v5935
      %v6000 = vadd.f32 %v5872, %v5936
      %v6001 = vadd.f32 %v5873, %v5937
      %v6002 = vadd.f32 %v5874, %v5938
      %v6003 = vadd.f32 %v5875, %v5939
      %v6004 = vadd.f32 %v5876, %v5940
      %v6005 = vadd.f32 %v5877, %v5941
      %v6006 = vadd.f32 %v5878, %v5942
      %v6007 = vadd.f32 %v5879, %v5943
      %v6008 = vadd.f32 %v5880, %v5944
      %v6009 = vadd.f32 %v5881, %v5945
      %v6010 = vadd.f32 %v5882, %v5946
      %v6011 = vadd.f32 %v5883, %v5947
      %v6012 = vadd.f32 %v5884, %v5948
      %v6013 = vadd.f32 %v5885, %v5949
      %v6014 = vadd.f32 %v5886, %v5950
      %v6015 = vrsqrt.pop %v5951
      %v6016 = vmul.f32 %v5951, %v6015
      %vm6017 = vcmp.eq.f32.partialorder %v5951, inf
      %v6018 = vsel %vm6017, %v5951, %v6016
      %vm6019 = vcmp.eq.f32.partialorder %v5951, 0.0
      %v6020 = vand.u32 %v5951, 2147483648
      %v6021 = vsel %vm6019, %v6020, %v6018
      %v6022 = vrsqrt.pop %v5952
      %v6023 = vmul.f32 %v5952, %v6022
      %vm6024 = vcmp.eq.f32.partialorder %v5952, inf
      %v6025 = vsel %vm6024, %v5952, %v6023
      %vm6026 = vcmp.eq.f32.partialorder %v5952, 0.0
      %v6027 = vand.u32 %v5952, 2147483648
      %v6028 = vsel %vm6026, %v6027, %v6025
      %v6029 = vrsqrt.pop %v5953
      %v6030 = vmul.f32 %v5953, %v6029
      %vm6031 = vcmp.eq.f32.partialorder %v5953, inf
      %v6032 = vsel %vm6031, %v5953, %v6030
      %vm6033 = vcmp.eq.f32.partialorder %v5953, 0.0
      %v6034 = vand.u32 %v5953, 2147483648
      %v6035 = vsel %vm6033, %v6034, %v6032
      %v6036 = vrsqrt.pop %v5954
      %v6037 = vmul.f32 %v5954, %v6036
      %vm6038 = vcmp.eq.f32.partialorder %v5954, inf
      %v6039 = vsel %vm6038, %v5954, %v6037
      %vm6040 = vcmp.eq.f32.partialorder %v5954, 0.0
      %v6041 = vand.u32 %v5954, 2147483648
      %v6042 = vsel %vm6040, %v6041, %v6039
      %v6043 = vrsqrt.pop %v5955
      %v6044 = vmul.f32 %v5955, %v6043
      %vm6045 = vcmp.eq.f32.partialorder %v5955, inf
      %v6046 = vsel %vm6045, %v5955, %v6044
      %vm6047 = vcmp.eq.f32.partialorder %v5955, 0.0
      %v6048 = vand.u32 %v5955, 2147483648
      %v6049 = vsel %vm6047, %v6048, %v6046
      %v6050 = vrsqrt.pop %v5956
      %v6051 = vmul.f32 %v5956, %v6050
      %vm6052 = vcmp.eq.f32.partialorder %v5956, inf
      %v6053 = vsel %vm6052, %v5956, %v6051
      %vm6054 = vcmp.eq.f32.partialorder %v5956, 0.0
      %v6055 = vand.u32 %v5956, 2147483648
      %v6056 = vsel %vm6054, %v6055, %v6053
      %v6057 = vrsqrt.pop %v5957
      %v6058 = vmul.f32 %v5957, %v6057
      %vm6059 = vcmp.eq.f32.partialorder %v5957, inf
      %v6060 = vsel %vm6059, %v5957, %v6058
      %vm6061 = vcmp.eq.f32.partialorder %v5957, 0.0
      %v6062 = vand.u32 %v5957, 2147483648
      %v6063 = vsel %vm6061, %v6062, %v6060
      %v6064 = vrsqrt.pop %v5958
      %v6065 = vmul.f32 %v5958, %v6064
      %vm6066 = vcmp.eq.f32.partialorder %v5958, inf
      %v6067 = vsel %vm6066, %v5958, %v6065
      %vm6068 = vcmp.eq.f32.partialorder %v5958, 0.0
      %v6069 = vand.u32 %v5958, 2147483648
      %v6070 = vsel %vm6068, %v6069, %v6067
      %v6071 = vrsqrt.pop %v5959
      %v6072 = vmul.f32 %v5959, %v6071
      %vm6073 = vcmp.eq.f32.partialorder %v5959, inf
      %v6074 = vsel %vm6073, %v5959, %v6072
      %vm6075 = vcmp.eq.f32.partialorder %v5959, 0.0
      %v6076 = vand.u32 %v5959, 2147483648
      %v6077 = vsel %vm6075, %v6076, %v6074
      %v6078 = vrsqrt.pop %v5960
      %v6079 = vmul.f32 %v5960, %v6078
      %vm6080 = vcmp.eq.f32.partialorder %v5960, inf
      %v6081 = vsel %vm6080, %v5960, %v6079
      %vm6082 = vcmp.eq.f32.partialorder %v5960, 0.0
      %v6083 = vand.u32 %v5960, 2147483648
      %v6084 = vsel %vm6082, %v6083, %v6081
      %v6085 = vrsqrt.pop %v5961
      %v6086 = vmul.f32 %v5961, %v6085
      %vm6087 = vcmp.eq.f32.partialorder %v5961, inf
      %v6088 = vsel %vm6087, %v5961, %v6086
      %vm6089 = vcmp.eq.f32.partialorder %v5961, 0.0
      %v6090 = vand.u32 %v5961, 2147483648
      %v6091 = vsel %vm6089, %v6090, %v6088
      %v6092 = vrsqrt.pop %v5962
      %v6093 = vmul.f32 %v5962, %v6092
      %vm6094 = vcmp.eq.f32.partialorder %v5962, inf
      %v6095 = vsel %vm6094, %v5962, %v6093
      %vm6096 = vcmp.eq.f32.partialorder %v5962, 0.0
      %v6097 = vand.u32 %v5962, 2147483648
      %v6098 = vsel %vm6096, %v6097, %v6095
      %v6099 = vrsqrt.pop %v5963
      %v6100 = vmul.f32 %v5963, %v6099
      %vm6101 = vcmp.eq.f32.partialorder %v5963, inf
      %v6102 = vsel %vm6101, %v5963, %v6100
      %vm6103 = vcmp.eq.f32.partialorder %v5963, 0.0
      %v6104 = vand.u32 %v5963, 2147483648
      %v6105 = vsel %vm6103, %v6104, %v6102
      %v6106 = vrsqrt.pop %v5964
      %v6107 = vmul.f32 %v5964, %v6106
      %vm6108 = vcmp.eq.f32.partialorder %v5964, inf
      %v6109 = vsel %vm6108, %v5964, %v6107
      %vm6110 = vcmp.eq.f32.partialorder %v5964, 0.0
      %v6111 = vand.u32 %v5964, 2147483648
      %v6112 = vsel %vm6110, %v6111, %v6109
      %v6113 = vrsqrt.pop %v5965
      %v6114 = vmul.f32 %v5965, %v6113
      %vm6115 = vcmp.eq.f32.partialorder %v5965, inf
      %v6116 = vsel %vm6115, %v5965, %v6114
      %vm6117 = vcmp.eq.f32.partialorder %v5965, 0.0
      %v6118 = vand.u32 %v5965, 2147483648
      %v6119 = vsel %vm6117, %v6118, %v6116
      %v6120 = vrsqrt.pop %v5966
      %v6121 = vmul.f32 %v5966, %v6120
      %vm6122 = vcmp.eq.f32.partialorder %v5966, inf
      %v6123 = vsel %vm6122, %v5966, %v6121
      %vm6124 = vcmp.eq.f32.partialorder %v5966, 0.0
      %v6125 = vand.u32 %v5966, 2147483648
      %v6126 = vsel %vm6124, %v6125, %v6123
      %v6127 = vrsqrt.pop %v5967
      %v6128 = vmul.f32 %v5967, %v6127
      %vm6129 = vcmp.eq.f32.partialorder %v5967, inf
      %v6130 = vsel %vm6129, %v5967, %v6128
      %vm6131 = vcmp.eq.f32.partialorder %v5967, 0.0
      %v6132 = vand.u32 %v5967, 2147483648
      %v6133 = vsel %vm6131, %v6132, %v6130
      %v6134 = vrsqrt.pop %v5968
      %v6135 = vmul.f32 %v5968, %v6134
      %vm6136 = vcmp.eq.f32.partialorder %v5968, inf
      %v6137 = vsel %vm6136, %v5968, %v6135
      %vm6138 = vcmp.eq.f32.partialorder %v5968, 0.0
      %v6139 = vand.u32 %v5968, 2147483648
      %v6140 = vsel %vm6138, %v6139, %v6137
      %v6141 = vrsqrt.pop %v5969
      %v6142 = vmul.f32 %v5969, %v6141
      %vm6143 = vcmp.eq.f32.partialorder %v5969, inf
      %v6144 = vsel %vm6143, %v5969, %v6142
      %vm6145 = vcmp.eq.f32.partialorder %v5969, 0.0
      %v6146 = vand.u32 %v5969, 2147483648
      %v6147 = vsel %vm6145, %v6146, %v6144
      %v6148 = vrsqrt.pop %v5970
      %v6149 = vmul.f32 %v5970, %v6148
      %vm6150 = vcmp.eq.f32.partialorder %v5970, inf
      %v6151 = vsel %vm6150, %v5970, %v6149
      %vm6152 = vcmp.eq.f32.partialorder %v5970, 0.0
      %v6153 = vand.u32 %v5970, 2147483648
      %v6154 = vsel %vm6152, %v6153, %v6151
      %v6155 = vrsqrt.pop %v5971
      %v6156 = vmul.f32 %v5971, %v6155
      %vm6157 = vcmp.eq.f32.partialorder %v5971, inf
      %v6158 = vsel %vm6157, %v5971, %v6156
      %vm6159 = vcmp.eq.f32.partialorder %v5971, 0.0
      %v6160 = vand.u32 %v5971, 2147483648
      %v6161 = vsel %vm6159, %v6160, %v6158
      %v6162 = vrsqrt.pop %v5972
      %v6163 = vmul.f32 %v5972, %v6162
      %vm6164 = vcmp.eq.f32.partialorder %v5972, inf
      %v6165 = vsel %vm6164, %v5972, %v6163
      %vm6166 = vcmp.eq.f32.partialorder %v5972, 0.0
      %v6167 = vand.u32 %v5972, 2147483648
      %v6168 = vsel %vm6166, %v6167, %v6165
      %v6169 = vrsqrt.pop %v5973
      %v6170 = vmul.f32 %v5973, %v6169
      %vm6171 = vcmp.eq.f32.partialorder %v5973, inf
      %v6172 = vsel %vm6171, %v5973, %v6170
      %vm6173 = vcmp.eq.f32.partialorder %v5973, 0.0
      %v6174 = vand.u32 %v5973, 2147483648
      %v6175 = vsel %vm6173, %v6174, %v6172
      %v6176 = vrsqrt.pop %v5974
      %v6177 = vmul.f32 %v5974, %v6176
      %vm6178 = vcmp.eq.f32.partialorder %v5974, inf
      %v6179 = vsel %vm6178, %v5974, %v6177
      %vm6180 = vcmp.eq.f32.partialorder %v5974, 0.0
      %v6181 = vand.u32 %v5974, 2147483648
      %v6182 = vsel %vm6180, %v6181, %v6179
      %v6183 = vrsqrt.pop %v5975
      %v6184 = vmul.f32 %v5975, %v6183
      %vm6185 = vcmp.eq.f32.partialorder %v5975, inf
      %v6186 = vsel %vm6185, %v5975, %v6184
      %vm6187 = vcmp.eq.f32.partialorder %v5975, 0.0
      %v6188 = vand.u32 %v5975, 2147483648
      %v6189 = vsel %vm6187, %v6188, %v6186
      %v6190 = vrsqrt.pop %v5976
      %v6191 = vmul.f32 %v5976, %v6190
      %vm6192 = vcmp.eq.f32.partialorder %v5976, inf
      %v6193 = vsel %vm6192, %v5976, %v6191
      %vm6194 = vcmp.eq.f32.partialorder %v5976, 0.0
      %v6195 = vand.u32 %v5976, 2147483648
      %v6196 = vsel %vm6194, %v6195, %v6193
      %v6197 = vrsqrt.pop %v5977
      %v6198 = vmul.f32 %v5977, %v6197
      %vm6199 = vcmp.eq.f32.partialorder %v5977, inf
      %v6200 = vsel %vm6199, %v5977, %v6198
      %vm6201 = vcmp.eq.f32.partialorder %v5977, 0.0
      %v6202 = vand.u32 %v5977, 2147483648
      %v6203 = vsel %vm6201, %v6202, %v6200
      %v6204 = vrsqrt.pop %v5978
      %v6205 = vmul.f32 %v5978, %v6204
      %vm6206 = vcmp.eq.f32.partialorder %v5978, inf
      %v6207 = vsel %vm6206, %v5978, %v6205
      %vm6208 = vcmp.eq.f32.partialorder %v5978, 0.0
      %v6209 = vand.u32 %v5978, 2147483648
      %v6210 = vsel %vm6208, %v6209, %v6207
      %v6211 = vrsqrt.pop %v5979
      %v6212 = vmul.f32 %v5979, %v6211
      %vm6213 = vcmp.eq.f32.partialorder %v5979, inf
      %v6214 = vsel %vm6213, %v5979, %v6212
      %vm6215 = vcmp.eq.f32.partialorder %v5979, 0.0
      %v6216 = vand.u32 %v5979, 2147483648
      %v6217 = vsel %vm6215, %v6216, %v6214
      %v6218 = vrsqrt.pop %v5980
      %v6219 = vmul.f32 %v5980, %v6218
      %vm6220 = vcmp.eq.f32.partialorder %v5980, inf
      %v6221 = vsel %vm6220, %v5980, %v6219
      %vm6222 = vcmp.eq.f32.partialorder %v5980, 0.0
      %v6223 = vand.u32 %v5980, 2147483648
      %v6224 = vsel %vm6222, %v6223, %v6221
      %v6225 = vrsqrt.pop %v5981
      %v6226 = vmul.f32 %v5981, %v6225
      %vm6227 = vcmp.eq.f32.partialorder %v5981, inf
      %v6228 = vsel %vm6227, %v5981, %v6226
      %vm6229 = vcmp.eq.f32.partialorder %v5981, 0.0
      %v6230 = vand.u32 %v5981, 2147483648
      %v6231 = vsel %vm6229, %v6230, %v6228
      %v6232 = vrsqrt.pop %v5982
      %v6233 = vmul.f32 %v5982, %v6232
      %vm6234 = vcmp.eq.f32.partialorder %v5982, inf
      %v6235 = vsel %vm6234, %v5982, %v6233
      %vm6236 = vcmp.eq.f32.partialorder %v5982, 0.0
      %v6237 = vand.u32 %v5982, 2147483648
      %v6238 = vsel %vm6236, %v6237, %v6235
      %v6239 = vrsqrt.pop %v5983
      %v6240 = vmul.f32 %v5983, %v6239
      %vm6241 = vcmp.eq.f32.partialorder %v5983, inf
      %v6242 = vsel %vm6241, %v5983, %v6240
      %vm6243 = vcmp.eq.f32.partialorder %v5983, 0.0
      %v6244 = vand.u32 %v5983, 2147483648
      %v6245 = vsel %vm6243, %v6244, %v6242
      %v6246 = vrsqrt.pop %v5984
      %v6247 = vmul.f32 %v5984, %v6246
      %vm6248 = vcmp.eq.f32.partialorder %v5984, inf
      %v6249 = vsel %vm6248, %v5984, %v6247
      %vm6250 = vcmp.eq.f32.partialorder %v5984, 0.0
      %v6251 = vand.u32 %v5984, 2147483648
      %v6252 = vsel %vm6250, %v6251, %v6249
      %v6253 = vrsqrt.pop %v5985
      %v6254 = vmul.f32 %v5985, %v6253
      %vm6255 = vcmp.eq.f32.partialorder %v5985, inf
      %v6256 = vsel %vm6255, %v5985, %v6254
      %vm6257 = vcmp.eq.f32.partialorder %v5985, 0.0
      %v6258 = vand.u32 %v5985, 2147483648
      %v6259 = vsel %vm6257, %v6258, %v6256
      %v6260 = vrsqrt.pop %v5986
      %v6261 = vmul.f32 %v5986, %v6260
      %vm6262 = vcmp.eq.f32.partialorder %v5986, inf
      %v6263 = vsel %vm6262, %v5986, %v6261
      %vm6264 = vcmp.eq.f32.partialorder %v5986, 0.0
      %v6265 = vand.u32 %v5986, 2147483648
      %v6266 = vsel %vm6264, %v6265, %v6263
      %v6267 = vrsqrt.pop %v5987
      %v6268 = vmul.f32 %v5987, %v6267
      %vm6269 = vcmp.eq.f32.partialorder %v5987, inf
      %v6270 = vsel %vm6269, %v5987, %v6268
      %vm6271 = vcmp.eq.f32.partialorder %v5987, 0.0
      %v6272 = vand.u32 %v5987, 2147483648
      %v6273 = vsel %vm6271, %v6272, %v6270
      %v6274 = vrsqrt.pop %v5988
      %v6275 = vmul.f32 %v5988, %v6274
      %vm6276 = vcmp.eq.f32.partialorder %v5988, inf
      %v6277 = vsel %vm6276, %v5988, %v6275
      %vm6278 = vcmp.eq.f32.partialorder %v5988, 0.0
      %v6279 = vand.u32 %v5988, 2147483648
      %v6280 = vsel %vm6278, %v6279, %v6277
      %v6281 = vrsqrt.pop %v5989
      %v6282 = vmul.f32 %v5989, %v6281
      %vm6283 = vcmp.eq.f32.partialorder %v5989, inf
      %v6284 = vsel %vm6283, %v5989, %v6282
      %vm6285 = vcmp.eq.f32.partialorder %v5989, 0.0
      %v6286 = vand.u32 %v5989, 2147483648
      %v6287 = vsel %vm6285, %v6286, %v6284
      %v6288 = vrsqrt.pop %v5990
      %v6289 = vmul.f32 %v5990, %v6288
      %vm6290 = vcmp.eq.f32.partialorder %v5990, inf
      %v6291 = vsel %vm6290, %v5990, %v6289
      %vm6292 = vcmp.eq.f32.partialorder %v5990, 0.0
      %v6293 = vand.u32 %v5990, 2147483648
      %v6294 = vsel %vm6292, %v6293, %v6291
      %v6295 = vrsqrt.pop %v5991
      %v6296 = vmul.f32 %v5991, %v6295
      %vm6297 = vcmp.eq.f32.partialorder %v5991, inf
      %v6298 = vsel %vm6297, %v5991, %v6296
      %vm6299 = vcmp.eq.f32.partialorder %v5991, 0.0
      %v6300 = vand.u32 %v5991, 2147483648
      %v6301 = vsel %vm6299, %v6300, %v6298
      %v6302 = vrsqrt.pop %v5992
      %v6303 = vmul.f32 %v5992, %v6302
      %vm6304 = vcmp.eq.f32.partialorder %v5992, inf
      %v6305 = vsel %vm6304, %v5992, %v6303
      %vm6306 = vcmp.eq.f32.partialorder %v5992, 0.0
      %v6307 = vand.u32 %v5992, 2147483648
      %v6308 = vsel %vm6306, %v6307, %v6305
      %v6309 = vrsqrt.pop %v5993
      %v6310 = vmul.f32 %v5993, %v6309
      %vm6311 = vcmp.eq.f32.partialorder %v5993, inf
      %v6312 = vsel %vm6311, %v5993, %v6310
      %vm6313 = vcmp.eq.f32.partialorder %v5993, 0.0
      %v6314 = vand.u32 %v5993, 2147483648
      %v6315 = vsel %vm6313, %v6314, %v6312
      %v6316 = vrsqrt.pop %v5994
      %v6317 = vmul.f32 %v5994, %v6316
      %vm6318 = vcmp.eq.f32.partialorder %v5994, inf
      %v6319 = vsel %vm6318, %v5994, %v6317
      %vm6320 = vcmp.eq.f32.partialorder %v5994, 0.0
      %v6321 = vand.u32 %v5994, 2147483648
      %v6322 = vsel %vm6320, %v6321, %v6319
      %v6323 = vrsqrt.pop %v5995
      %v6324 = vmul.f32 %v5995, %v6323
      %vm6325 = vcmp.eq.f32.partialorder %v5995, inf
      %v6326 = vsel %vm6325, %v5995, %v6324
      %vm6327 = vcmp.eq.f32.partialorder %v5995, 0.0
      %v6328 = vand.u32 %v5995, 2147483648
      %v6329 = vsel %vm6327, %v6328, %v6326
      %v6330 = vrsqrt.pop %v5996
      %v6331 = vmul.f32 %v5996, %v6330
      %vm6332 = vcmp.eq.f32.partialorder %v5996, inf
      %v6333 = vsel %vm6332, %v5996, %v6331
      %vm6334 = vcmp.eq.f32.partialorder %v5996, 0.0
      %v6335 = vand.u32 %v5996, 2147483648
      %v6336 = vsel %vm6334, %v6335, %v6333
      %v6337 = vrsqrt.pop %v5997
      %v6338 = vmul.f32 %v5997, %v6337
      %vm6339 = vcmp.eq.f32.partialorder %v5997, inf
      %v6340 = vsel %vm6339, %v5997, %v6338
      %vm6341 = vcmp.eq.f32.partialorder %v5997, 0.0
      %v6342 = vand.u32 %v5997, 2147483648
      %v6343 = vsel %vm6341, %v6342, %v6340
      %v6344 = vrsqrt.pop %v5998
      %v6345 = vmul.f32 %v5998, %v6344
      %vm6346 = vcmp.eq.f32.partialorder %v5998, inf
      %v6347 = vsel %vm6346, %v5998, %v6345
      %vm6348 = vcmp.eq.f32.partialorder %v5998, 0.0
      %v6349 = vand.u32 %v5998, 2147483648
      %v6350 = vsel %vm6348, %v6349, %v6347
      %v6351 = vrsqrt.pop %v5999
      %v6352 = vmul.f32 %v5999, %v6351
      %vm6353 = vcmp.eq.f32.partialorder %v5999, inf
      %v6354 = vsel %vm6353, %v5999, %v6352
      %vm6355 = vcmp.eq.f32.partialorder %v5999, 0.0
      %v6356 = vand.u32 %v5999, 2147483648
      %v6357 = vsel %vm6355, %v6356, %v6354
      %v6358 = vrsqrt.pop %v6000
      %v6359 = vmul.f32 %v6000, %v6358
      %vm6360 = vcmp.eq.f32.partialorder %v6000, inf
      %v6361 = vsel %vm6360, %v6000, %v6359
      %vm6362 = vcmp.eq.f32.partialorder %v6000, 0.0
      %v6363 = vand.u32 %v6000, 2147483648
      %v6364 = vsel %vm6362, %v6363, %v6361
      %v6365 = vrsqrt.pop %v6001
      %v6366 = vmul.f32 %v6001, %v6365
      %vm6367 = vcmp.eq.f32.partialorder %v6001, inf
      %v6368 = vsel %vm6367, %v6001, %v6366
      %vm6369 = vcmp.eq.f32.partialorder %v6001, 0.0
      %v6370 = vand.u32 %v6001, 2147483648
      %v6371 = vsel %vm6369, %v6370, %v6368
      %v6372 = vrsqrt.pop %v6002
      %v6373 = vmul.f32 %v6002, %v6372
      %vm6374 = vcmp.eq.f32.partialorder %v6002, inf
      %v6375 = vsel %vm6374, %v6002, %v6373
      %vm6376 = vcmp.eq.f32.partialorder %v6002, 0.0
      %v6377 = vand.u32 %v6002, 2147483648
      %v6378 = vsel %vm6376, %v6377, %v6375
      %v6379 = vrsqrt.pop %v6003
      %v6380 = vmul.f32 %v6003, %v6379
      %vm6381 = vcmp.eq.f32.partialorder %v6003, inf
      %v6382 = vsel %vm6381, %v6003, %v6380
      %vm6383 = vcmp.eq.f32.partialorder %v6003, 0.0
      %v6384 = vand.u32 %v6003, 2147483648
      %v6385 = vsel %vm6383, %v6384, %v6382
      %v6386 = vrsqrt.pop %v6004
      %v6387 = vmul.f32 %v6004, %v6386
      %vm6388 = vcmp.eq.f32.partialorder %v6004, inf
      %v6389 = vsel %vm6388, %v6004, %v6387
      %vm6390 = vcmp.eq.f32.partialorder %v6004, 0.0
      %v6391 = vand.u32 %v6004, 2147483648
      %v6392 = vsel %vm6390, %v6391, %v6389
      %v6393 = vrsqrt.pop %v6005
      %v6394 = vmul.f32 %v6005, %v6393
      %vm6395 = vcmp.eq.f32.partialorder %v6005, inf
      %v6396 = vsel %vm6395, %v6005, %v6394
      %vm6397 = vcmp.eq.f32.partialorder %v6005, 0.0
      %v6398 = vand.u32 %v6005, 2147483648
      %v6399 = vsel %vm6397, %v6398, %v6396
      %v6400 = vrsqrt.pop %v6006
      %v6401 = vmul.f32 %v6006, %v6400
      %vm6402 = vcmp.eq.f32.partialorder %v6006, inf
      %v6403 = vsel %vm6402, %v6006, %v6401
      %vm6404 = vcmp.eq.f32.partialorder %v6006, 0.0
      %v6405 = vand.u32 %v6006, 2147483648
      %v6406 = vsel %vm6404, %v6405, %v6403
      %v6407 = vrsqrt.pop %v6007
      %v6408 = vmul.f32 %v6007, %v6407
      %vm6409 = vcmp.eq.f32.partialorder %v6007, inf
      %v6410 = vsel %vm6409, %v6007, %v6408
      %vm6411 = vcmp.eq.f32.partialorder %v6007, 0.0
      %v6412 = vand.u32 %v6007, 2147483648
      %v6413 = vsel %vm6411, %v6412, %v6410
      %v6414 = vrsqrt.pop %v6008
      %v6415 = vmul.f32 %v6008, %v6414
      %vm6416 = vcmp.eq.f32.partialorder %v6008, inf
      %v6417 = vsel %vm6416, %v6008, %v6415
      %vm6418 = vcmp.eq.f32.partialorder %v6008, 0.0
      %v6419 = vand.u32 %v6008, 2147483648
      %v6420 = vsel %vm6418, %v6419, %v6417
      %v6421 = vrsqrt.pop %v6009
      %v6422 = vmul.f32 %v6009, %v6421
      %vm6423 = vcmp.eq.f32.partialorder %v6009, inf
      %v6424 = vsel %vm6423, %v6009, %v6422
      %vm6425 = vcmp.eq.f32.partialorder %v6009, 0.0
      %v6426 = vand.u32 %v6009, 2147483648
      %v6427 = vsel %vm6425, %v6426, %v6424
      %v6428 = vrsqrt.pop %v6010
      %v6429 = vmul.f32 %v6010, %v6428
      %vm6430 = vcmp.eq.f32.partialorder %v6010, inf
      %v6431 = vsel %vm6430, %v6010, %v6429
      %vm6432 = vcmp.eq.f32.partialorder %v6010, 0.0
      %v6433 = vand.u32 %v6010, 2147483648
      %v6434 = vsel %vm6432, %v6433, %v6431
      %v6435 = vrsqrt.pop %v6011
      %v6436 = vmul.f32 %v6011, %v6435
      %vm6437 = vcmp.eq.f32.partialorder %v6011, inf
      %v6438 = vsel %vm6437, %v6011, %v6436
      %vm6439 = vcmp.eq.f32.partialorder %v6011, 0.0
      %v6440 = vand.u32 %v6011, 2147483648
      %v6441 = vsel %vm6439, %v6440, %v6438
      %v6442 = vrsqrt.pop %v6012
      %v6443 = vmul.f32 %v6012, %v6442
      %vm6444 = vcmp.eq.f32.partialorder %v6012, inf
      %v6445 = vsel %vm6444, %v6012, %v6443
      %vm6446 = vcmp.eq.f32.partialorder %v6012, 0.0
      %v6447 = vand.u32 %v6012, 2147483648
      %v6448 = vsel %vm6446, %v6447, %v6445
      %v6449 = vrsqrt.pop %v6013
      %v6450 = vmul.f32 %v6013, %v6449
      %vm6451 = vcmp.eq.f32.partialorder %v6013, inf
      %v6452 = vsel %vm6451, %v6013, %v6450
      %vm6453 = vcmp.eq.f32.partialorder %v6013, 0.0
      %v6454 = vand.u32 %v6013, 2147483648
      %v6455 = vsel %vm6453, %v6454, %v6452
      %v6456 = vrsqrt.pop %v6014
      %v6457 = vmul.f32 %v6014, %v6456
      %vm6458 = vcmp.eq.f32.partialorder %v6014, inf
      %v6459 = vsel %vm6458, %v6014, %v6457
      %vm6460 = vcmp.eq.f32.partialorder %v6014, 0.0
      %v6461 = vand.u32 %v6014, 2147483648
      %v6462 = vsel %vm6460, %v6461, %v6459
      %6463 = vst [vmem:[%s307] sm:$0xff] %v6021
      %6464 = vst [vmem:[%s307 + $0x8] sm:$0xff] %v6028
      %6465 = vst [vmem:[%s307 + $0x10] sm:$0xff] %v6035
      %6466 = vst [vmem:[%s307 + $0x18] sm:$0xff] %v6042
      %6467 = vst [vmem:[%s307 + $0x20] sm:$0xff] %v6049
      %6468 = vst [vmem:[%s307 + $0x28] sm:$0xff] %v6056
      %6469 = vst [vmem:[%s307 + $0x30] sm:$0xff] %v6063
      %6470 = vst [vmem:[%s307 + $0x38] sm:$0xff] %v6070
      %6471 = vst [vmem:[%s307 + $0x40] sm:$0xff] %v6077
      %6472 = vst [vmem:[%s307 + $0x48] sm:$0xff] %v6084
      %6473 = vst [vmem:[%s307 + $0x50] sm:$0xff] %v6091
      %6474 = vst [vmem:[%s307 + $0x58] sm:$0xff] %v6098
      %6475 = vst [vmem:[%s307 + $0x60] sm:$0xff] %v6105
      %6476 = vst [vmem:[%s307 + $0x68] sm:$0xff] %v6112
      %6477 = vst [vmem:[%s307 + $0x70] sm:$0xff] %v6119
      %6478 = vst [vmem:[%s307 + $0x78] sm:$0xff] %v6126
      %6479 = vst [vmem:[%s307 + $0x80] sm:$0xff] %v6133
      %6480 = vst [vmem:[%s307 + $0x88] sm:$0xff] %v6140
      %6481 = vst [vmem:[%s307 + $0x90] sm:$0xff] %v6147
      %6482 = vst [vmem:[%s307 + $0x98] sm:$0xff] %v6154
      %6483 = vst [vmem:[%s307 + $0xa0] sm:$0xff] %v6161
      %6484 = vst [vmem:[%s307 + $0xa8] sm:$0xff] %v6168
      %6485 = vst [vmem:[%s307 + $0xb0] sm:$0xff] %v6175
      %6486 = vst [vmem:[%s307 + $0xb8] sm:$0xff] %v6182
      %6487 = vst [vmem:[%s307 + $0xc0] sm:$0xff] %v6189
      %6488 = vst [vmem:[%s307 + $0xc8] sm:$0xff] %v6196
      %6489 = vst [vmem:[%s307 + $0xd0] sm:$0xff] %v6203
      %6490 = vst [vmem:[%s307 + $0xd8] sm:$0xff] %v6210
      %6491 = vst [vmem:[%s307 + $0xe0] sm:$0xff] %v6217
      %6492 = vst [vmem:[%s307 + $0xe8] sm:$0xff] %v6224
      %6493 = vst [vmem:[%s307 + $0xf0] sm:$0xff] %v6231
      %6494 = vst [vmem:[%s307 + $0xf8] sm:$0xff] %v6238
      %6495 = vst [vmem:[%s307 + $0x100] sm:$0xff] %v6245
      %6496 = vst [vmem:[%s307 + $0x108] sm:$0xff] %v6252
      %6497 = vst [vmem:[%s307 + $0x110] sm:$0xff] %v6259
      %6498 = vst [vmem:[%s307 + $0x118] sm:$0xff] %v6266
      %6499 = vst [vmem:[%s307 + $0x120] sm:$0xff] %v6273
      %6500 = vst [vmem:[%s307 + $0x128] sm:$0xff] %v6280
      %6501 = vst [vmem:[%s307 + $0x130] sm:$0xff] %v6287
      %6502 = vst [vmem:[%s307 + $0x138] sm:$0xff] %v6294
      %6503 = vst [vmem:[%s307 + $0x140] sm:$0xff] %v6301
      %6504 = vst [vmem:[%s307 + $0x148] sm:$0xff] %v6308
      %6505 = vst [vmem:[%s307 + $0x150] sm:$0xff] %v6315
      %6506 = vst [vmem:[%s307 + $0x158] sm:$0xff] %v6322
      %6507 = vst [vmem:[%s307 + $0x160] sm:$0xff] %v6329
      %6508 = vst [vmem:[%s307 + $0x168] sm:$0xff] %v6336
      %6509 = vst [vmem:[%s307 + $0x170] sm:$0xff] %v6343
      %6510 = vst [vmem:[%s307 + $0x178] sm:$0xff] %v6350
      %6511 = vst [vmem:[%s307 + $0x180] sm:$0xff] %v6357
      %6512 = vst [vmem:[%s307 + $0x188] sm:$0xff] %v6364
      %6513 = vst [vmem:[%s307 + $0x190] sm:$0xff] %v6371
      %6514 = vst [vmem:[%s307 + $0x198] sm:$0xff] %v6378
      %6515 = vst [vmem:[%s307 + $0x1a0] sm:$0xff] %v6385
      %6516 = vst [vmem:[%s307 + $0x1a8] sm:$0xff] %v6392
      %6517 = vst [vmem:[%s307 + $0x1b0] sm:$0xff] %v6399
      %6518 = vst [vmem:[%s307 + $0x1b8] sm:$0xff] %v6406
      %6519 = vst [vmem:[%s307 + $0x1c0] sm:$0xff] %v6413
      %6520 = vst [vmem:[%s307 + $0x1c8] sm:$0xff] %v6420
      %6521 = vst [vmem:[%s307 + $0x1d0] sm:$0xff] %v6427
      %6522 = vst [vmem:[%s307 + $0x1d8] sm:$0xff] %v6434
      %6523 = vst [vmem:[%s307 + $0x1e0] sm:$0xff] %v6441
      %6524 = vst [vmem:[%s307 + $0x1e8] sm:$0xff] %v6448
      %6525 = vst [vmem:[%s307 + $0x1f0] sm:$0xff] %v6455
      %6526 = vst [vmem:[%s307 + $0x1f8] sm:$0xff] %v6462
      %s6527 = smul.u32 64, %s19
      %p6528 = scmp.lt.s32.totalorder %s6527, 127
      %s6529 = scalar_select %p6528, %s6527, 127
      %s6530 = smul.addr %s6529, 8
      %s6531 = scalar_lea.vmem %s8, %s6530
      // Predicated region
      $region53: #{_forward_impl.1} parent=51 // pred_check
        %p6532 = pneg %p210
      $region54: #{_forward_impl.1} parent=51 // pred_check_branch
        %6534 = sbr.rel (%p6532) target = $region56
      $region55: #{_forward_impl.1} parent=51 // pred_region
        %s6535 = smul.u32 64, %s19
      $region56: #{_forward_impl.1} parent=51 // pred_fallthru
        _
    $region52: #{_forward_impl.1} parent=5 // pred_fallthru
      _
    %p6536 = scmp.le.s32.totalorder 2, %s14
    // Predicated region
    $region57: #{_forward_impl.1} parent=5 // pred_check
      %p6537 = pneg %p6536
    $region58: #{_forward_impl.1} parent=5 // pred_check_branch
      %6539 = sbr.rel (%p6537) target = $region60
    $region59: #{_forward_impl.1} parent=5 // pred_region
      %s6540 = ssub.s32 %s14, 2
      // Predicated region
      $region61: #{_forward_impl.1} parent=59 // pred_check
        %p6541 = pneg %p216
      $region62: #{_forward_impl.1} parent=59 // pred_check_branch
        %6543 = sbr.rel (%p6541) target = $region64
      $region63: #{_forward_impl.1} parent=59 // pred_region
        %s6544 = smul.u32 64, %s20
        %p6545 = scmp.lt.s32.totalorder %s6544, 127
        %s6546 = scalar_select %p6545, %s6544, 127
        %s6547 = smul.addr %s6546, 8
        %s6548 = scalar_lea.vmem %s8, %s6547
      $region64: #{_forward_impl.1} parent=59 // pred_fallthru
        _
    $region60: #{_forward_impl.1} parent=5 // pred_fallthru
      _
  $region6: #{_forward_impl.1} parent=0 // loop_footer
    %s18 = sadd.s32 1, %s14
  $region7: #{_forward_impl.1} parent=0 // loop_footer_branch
    %13 = sbr.rel target = $region3
  $region8: #{_forward_impl.1} parent=0 // loop_exit
    _

</llo_original>
